<compile_context>
chip_gen: v7x
topology: tpu7x:2x2x1
jax: 0.10.0
libtpu: 0.0.40
codegen_flags: <defaults>
</compile_context>

<pallas_src>
import functools

import jax
import jax.numpy as jnp
from jax.experimental import pallas as pl
from jax.experimental.pallas import tpu as pltpu

KP_RAW = 27          # 3*3*3 im2col patch width
KP = 32              # patch width padded to a multiple of 8
STEM_C = 48          # EfficientNet-B4 stem width
STEM_PAD = 128       # stem width padded to a lane-dense multiple of 128
HEAD_C = 1792        # EfficientNet-B4 classifier in_features (= 14 * 128)
HEAD_CHUNKS = 2      # parallel channel chunks (v7x dual-core at small batch)
HEAD_CHUNK = HEAD_C // HEAD_CHUNKS   # 896 = 7 * 128
H1, H2 = 1024, 512   # custom classifier hidden sizes
NUM_CLASSES = 14     # ChestX-ray14 style label count
CLS_PAD = 128        # logits padded to a full lane group
ROW_TILE = 1024      # spatial row tile (multiple of 8)
BN_EPS = 1e-5


def _vmem():
    return pl.BlockSpec(memory_space=pltpu.MemorySpace.VMEM)


def _round_up(x, m):
    return (x + m - 1) // m * m


def _silu_bf16(v):
    """SiLU via tanh-form sigmoid, computed in bf16 (single EUP op per element)."""
    v = v.astype(jnp.bfloat16)
    return v * ((jnp.tanh(v * 0.5) + 1.0) * 0.5)


# ---------------------------------------------------------------------------
# Kernels
# ---------------------------------------------------------------------------
def backbone_kernel(p_ref, sw_ref, sb_ref, hw_ref, hb_ref, corr_ref, o_ref, *, inv_hw):
    """Fused stem conv + BN + SiLU + 1x1 head conv + BN + SiLU + partial GAP.

    BN scales are pre-folded into the bf16 weights; only f32 biases are added here.
    grid = (batch, head-channel-chunk, row-tile); GAP accumulates into the resident
    output block across the (last, 'arbitrary') row-tile axis.
    """
    t = pl.program_id(2)

    x = p_ref[0]                                                   # (tile, KP) bf16
    s = jnp.dot(x, sw_ref[...], preferred_element_type=jnp.float32) + sb_ref[...]
    s = _silu_bf16(s)                                              # (tile, 128) bf16

    y = jnp.dot(s, hw_ref[...], preferred_element_type=jnp.float32) + hb_ref[...]
    y = _silu_bf16(y)                                              # (tile, chunk) bf16

    # GAP partial sum on the MXU (ones-vector matmul), f32 accumulation.
    ones = jnp.ones((1, y.shape[0]), jnp.bfloat16)
    partial = jnp.dot(ones, y, preferred_element_type=jnp.float32) # (1, chunk)
    partial = partial.reshape(1, 1, -1)

    @pl.when(t == 0)
    def _():
        o_ref[...] = jnp.zeros_like(o_ref)

    o_ref[...] += partial

    @pl.when(t == pl.num_programs(2) - 1)
    def _():
        # Subtract the precomputed contribution of padded spatial rows, then mean.
        o_ref[...] = (o_ref[...] - corr_ref[...].reshape(1, 1, -1)) * inv_hw


def classifier_kernel(x_ref, w1_ref, b1_ref, w2_ref, b2_ref, w3_ref, b3_ref, o_ref):
    # Dropout layers are identity in eval mode; BN1d affines folded into w2/b2, w3/b3.
    x = x_ref[...].astype(jnp.bfloat16)
    h = jnp.dot(x, w1_ref[...], preferred_element_type=jnp.float32) + b1_ref[...]
    h = jnp.maximum(h, 0.0)
    h = jnp.dot(h.astype(jnp.bfloat16), w2_ref[...],
                preferred_element_type=jnp.float32) + b2_ref[...]
    h = jnp.maximum(h, 0.0)
    o_ref[...] = jnp.dot(h.astype(jnp.bfloat16), w3_ref[...],
                         preferred_element_type=jnp.float32) + b3_ref[...]


# ---------------------------------------------------------------------------
# Wrappers (im2col, BN folding, padding, pallas_call plumbing)
# ---------------------------------------------------------------------------
def _fold_bn(gamma, beta, mean, var, pad_to=None):
    scale = gamma / jnp.sqrt(var + BN_EPS)
    bias = beta - mean * scale
    if pad_to is not None and pad_to > scale.shape[0]:
        pad = pad_to - scale.shape[0]
        scale = jnp.pad(scale, (0, pad))
        bias = jnp.pad(bias, (0, pad))
    return scale.reshape(1, -1), bias.reshape(1, -1)


def _im2col_3x3_s2(x_nhwc):
    # 3x3 conv, stride 2, padding 1 (EfficientNet stem); tap ordering = (kh, kw, cin).
    # Patches are assembled directly in bf16 to halve the 9x-expanded HBM traffic.
    b, h, w, c = x_nhwc.shape
    oh, ow = h // 2, w // 2
    xp = jnp.pad(x_nhwc, ((0, 0), (1, 1), (1, 1), (0, 0)))
    cols = [xp[:, dh:dh + 2 * oh:2, dw:dw + 2 * ow:2, :]
            for dh in range(3) for dw in range(3)]
    patches = jnp.concatenate(cols, axis=-1)                       # (B, OH, OW, 27)
    return patches.reshape(b, oh * ow, 9 * c), (oh, ow)


@jax.jit
def chest_xray_forward(x_nchw, params):
    # PyTorch NCHW -> NHWC, cast to bf16 BEFORE im2col expansion.
    x = jnp.transpose(x_nchw.astype(jnp.bfloat16), (0, 2, 3, 1))
    patches, (oh, ow) = _im2col_3x3_s2(x)
    b = patches.shape[0]
    hw = oh * ow

    tile = min(ROW_TILE, _round_up(hw, 8))
    hw_pad = _round_up(hw, tile)
    num_tiles = hw_pad // tile
    num_pad_rows = hw_pad - hw

    # pad rows to a tile multiple, pad patch width 27 -> 32 (already bf16)
    patches = jnp.pad(patches, ((0, 0), (0, num_pad_rows), (0, KP - KP_RAW)))

    # --- fold BN scales into backbone weights; biases stay f32 ---
    # NOTE: when loading real PyTorch weights (cout,cin,kh,kw) permute to
    # (kh,kw,cin,cout) before the (27,48) reshape to match the im2col tap order.
    ss, sb = _fold_bn(*params["stem_bn"], pad_to=STEM_PAD)          # (1,128) f32
    hs, hb = _fold_bn(*params["head_bn"])                           # (1,1792) f32

    stem_w = jnp.pad(params["stem_w"], ((0, KP - KP_RAW), (0, STEM_PAD - STEM_C)))
    stem_w = (stem_w * ss).astype(jnp.bfloat16)                     # (32, 128)
    head_w = jnp.pad(params["head_w"], ((0, STEM_PAD - STEM_C), (0, 0)))
    head_w = (head_w * hs).astype(jnp.bfloat16)                     # (128, 1792)

    # Padded (all-zero) patch rows produce a constant y row; precompute its total
    # contribution once here and subtract at the kernel's finalize step.
    if num_pad_rows > 0:
        s_pad = _silu_bf16(sb)                                      # (1,128) bf16
        y_pad = jnp.dot(s_pad, head_w, preferred_element_type=jnp.float32) + hb
        y_pad = _silu_bf16(y_pad).astype(jnp.float32)               # (1,1792)
        pad_corr = float(num_pad_rows) * y_pad
    else:
        pad_corr = jnp.zeros((1, HEAD_C), jnp.float32)

    feats = pl.pallas_call(
        functools.partial(backbone_kernel, inv_hw=1.0 / hw),
        out_shape=jax.ShapeDtypeStruct((b, 1, HEAD_C), jnp.float32),
        grid_spec=pltpu.PrefetchScalarGridSpec(
            num_scalar_prefetch=0,
            grid=(b, HEAD_CHUNKS, num_tiles),
            in_specs=[
                pl.BlockSpec((1, tile, KP), lambda i, c, t: (i, t, 0)),        # patches
                pl.BlockSpec((KP, STEM_PAD), lambda i, c, t: (0, 0)),          # stem_w
                pl.BlockSpec((1, STEM_PAD), lambda i, c, t: (0, 0)),           # stem bias
                pl.BlockSpec((STEM_PAD, HEAD_CHUNK), lambda i, c, t: (0, c)),  # head_w
                pl.BlockSpec((1, HEAD_CHUNK), lambda i, c, t: (0, c)),         # head bias
                pl.BlockSpec((1, HEAD_CHUNK), lambda i, c, t: (0, c)),         # pad corr
            ],
            out_specs=pl.BlockSpec((1, 1, HEAD_CHUNK), lambda i, c, t: (i, 0, c)),
        ),
        compiler_params=pltpu.CompilerParams(
            dimension_semantics=("parallel", "parallel", "arbitrary"),
            vmem_limit_bytes=32 << 20,
        ),
    )(patches, stem_w, sb, head_w, hb, pad_corr)
    feats = feats.reshape(b, HEAD_C)

    # --- custom classifier head: BN1d affines folded into following Linears ---
    s1, t1 = _fold_bn(*params["cls_bn1"])                           # (1,1024)
    s2, t2 = _fold_bn(*params["cls_bn2"])                           # (1,512)

    w1 = params["fc1_w"].astype(jnp.bfloat16)
    b1 = params["fc1_b"].reshape(1, -1)

    w2 = (params["fc2_w"] * s1.reshape(-1, 1)).astype(jnp.bfloat16)
    b2 = (t1 @ params["fc2_w"] + params["fc2_b"].reshape(1, -1))

    w3p = jnp.pad(params["fc3_w"], ((0, 0), (0, CLS_PAD - NUM_CLASSES)))
    w3 = (w3p * s2.reshape(-1, 1)).astype(jnp.bfloat16)
    b3p = jnp.pad(params["fc3_b"], (0, CLS_PAD - NUM_CLASSES)).reshape(1, -1)
    b3 = t2 @ w3p + b3p

    # TODO(synk): for batch<=8 the classifier could be fused into the backbone's
    #             finalize branch to save a launch + the feats HBM round-trip.
    logits_pad = pl.pallas_call(
        classifier_kernel,
        out_shape=jax.ShapeDtypeStruct((b, CLS_PAD), jnp.float32),
        in_specs=[_vmem()] * 7,
        out_specs=_vmem(),
        compiler_params=pltpu.CompilerParams(vmem_limit_bytes=32 << 20),
    )(feats, w1, b1, w2, b2, w3, b3)

    return logits_pad[:, :NUM_CLASSES]


def init_params(key):
    ks = jax.random.split(key, 8)
    f32 = jnp.float32

    def bn(c):
        return (jnp.ones((c,), f32), jnp.zeros((c,), f32),
                jnp.zeros((c,), f32), jnp.ones((c,), f32))

    return {
        "stem_w": 0.05 * jax.random.normal(ks[0], (KP_RAW, STEM_C), f32),
        "stem_bn": bn(STEM_C),
        "head_w": 0.05 * jax.random.normal(ks[1], (STEM_C, HEAD_C), f32),
        "head_bn": bn(HEAD_C),
        "fc1_w": 0.02 * jax.random.normal(ks[2], (HEAD_C, H1), f32),
        "fc1_b": jnp.zeros((H1,), f32),
        "cls_bn1": bn(H1),
        "fc2_w": 0.02 * jax.random.normal(ks[3], (H1, H2), f32),
        "fc2_b": jnp.zeros((H2,), f32),
        "cls_bn2": bn(H2),
        "fc3_w": 0.02 * jax.random.normal(ks[4], (H2, NUM_CLASSES), f32),
        "fc3_b": jnp.zeros((NUM_CLASSES,), f32),
    }


if __name__ == "__main__":
    key = jax.random.PRNGKey(0)
    kx, kp = jax.random.split(key)
    # PyTorch-convention NCHW input at small spatial size.
    x = jax.random.normal(kx, (2, 3, 16, 16), jnp.float32)
    params = init_params(kp)
    out = chest_xray_forward(x, params)
    jax.block_until_ready(out)
    assert out.shape == (2, NUM_CLASSES) and out.dtype == jnp.float32
    print("KERNEL_OK")
</pallas_src>

<mosaic_0001>
module attributes {stable_mosaic.version = 11 : i64} {
  func.func @backbone_kernel(%arg0: i32, %arg1: i32, %arg2: i32, %arg3: memref<1x64x32xbf16, #tpu.memory_space<vmem>>, %arg4: memref<32x128xbf16, #tpu.memory_space<vmem>>, %arg5: memref<1x128xf32, #tpu.memory_space<vmem>>, %arg6: memref<128x896xbf16, #tpu.memory_space<vmem>>, %arg7: memref<1x896xf32, #tpu.memory_space<vmem>>, %arg8: memref<1x896xf32, #tpu.memory_space<vmem>>, %arg9: memref<1x1x896xf32, #tpu.memory_space<vmem>>) attributes {dimension_semantics = [#tpu.dimension_semantics<parallel>, #tpu.dimension_semantics<parallel>, #tpu.dimension_semantics<arbitrary>], iteration_bounds = array<i64: 2, 2, 1>, scalar_prefetch = 0 : i64, scratch_operands = 0 : i64, tpu.core_type = #tpu.core_type<tc>, window_params = [{transform_indices = @transform_0, window_bounds = array<i64: 1, 64, 32>}, {pipeline_mode = #tpu.pipeline_mode<synchronous>, transform_indices = @transform_1, window_bounds = array<i64: 32, 128>}, {pipeline_mode = #tpu.pipeline_mode<synchronous>, transform_indices = @transform_2, window_bounds = array<i64: 1, 128>}, {transform_indices = @transform_3, window_bounds = array<i64: 128, 896>}, {transform_indices = @transform_4, window_bounds = array<i64: 1, 896>}, {transform_indices = @transform_5, window_bounds = array<i64: 1, 896>}, {transform_indices = @transform_6, window_bounds = array<i64: 1, 1, 896>}]} {
    %c0 = arith.constant 0 : index
    %c0_0 = arith.constant 0 : index
    %c0_1 = arith.constant 0 : index
    %0 = vector.load %arg3[%c0, %c0_0, %c0_1] : memref<1x64x32xbf16, #tpu.memory_space<vmem>>, vector<1x64x32xbf16>
    %1 = vector.shape_cast %0 : vector<1x64x32xbf16> to vector<64x32xbf16>
    %c0_2 = arith.constant 0 : index
    %c0_3 = arith.constant 0 : index
    %2 = vector.load %arg4[%c0_2, %c0_3] : memref<32x128xbf16, #tpu.memory_space<vmem>>, vector<32x128xbf16>
    %cst = arith.constant dense<0.000000e+00> : vector<64x128xf32>
    %3 = tpu.matmul %1, %2, %cst {dimension_numbers = #tpu.dot_dimension_numbers<[1], [0], [0], [1], [0, 0, 1, 1], [], []>} : vector<64x32xbf16>, vector<32x128xbf16>, vector<64x128xf32> -> vector<64x128xf32>
    %c0_4 = arith.constant 0 : index
    %c0_5 = arith.constant 0 : index
    %4 = vector.load %arg5[%c0_4, %c0_5] : memref<1x128xf32, #tpu.memory_space<vmem>>, vector<1x128xf32>
    %5 = vector.broadcast %4 : vector<1x128xf32> to vector<64x128xf32>
    %6 = arith.addf %3, %5 : vector<64x128xf32>
    %7 = arith.truncf %6 : vector<64x128xf32> to vector<64x128xbf16>
    %cst_6 = arith.constant 5.000000e-01 : bf16
    %8 = vector.broadcast %cst_6 : bf16 to vector<64x128xbf16>
    %9 = arith.mulf %7, %8 : vector<64x128xbf16>
    %10 = math.tanh %9 : vector<64x128xbf16>
    %cst_7 = arith.constant 1.000000e+00 : bf16
    %11 = vector.broadcast %cst_7 : bf16 to vector<64x128xbf16>
    %12 = arith.addf %10, %11 : vector<64x128xbf16>
    %cst_8 = arith.constant 5.000000e-01 : bf16
    %13 = vector.broadcast %cst_8 : bf16 to vector<64x128xbf16>
    %14 = arith.mulf %12, %13 : vector<64x128xbf16>
    %15 = arith.mulf %7, %14 : vector<64x128xbf16>
    %c0_9 = arith.constant 0 : index
    %c0_10 = arith.constant 0 : index
    %16 = vector.load %arg6[%c0_9, %c0_10] : memref<128x896xbf16, #tpu.memory_space<vmem>>, vector<128x896xbf16>
    %cst_11 = arith.constant dense<0.000000e+00> : vector<64x896xf32>
    %17 = tpu.matmul %15, %16, %cst_11 {dimension_numbers = #tpu.dot_dimension_numbers<[1], [0], [0], [1], [0, 0, 1, 1], [], []>} : vector<64x128xbf16>, vector<128x896xbf16>, vector<64x896xf32> -> vector<64x896xf32>
    %c0_12 = arith.constant 0 : index
    %c0_13 = arith.constant 0 : index
    %18 = vector.load %arg7[%c0_12, %c0_13] : memref<1x896xf32, #tpu.memory_space<vmem>>, vector<1x896xf32>
    %19 = vector.broadcast %18 : vector<1x896xf32> to vector<64x896xf32>
    %20 = arith.addf %17, %19 : vector<64x896xf32>
    %21 = arith.truncf %20 : vector<64x896xf32> to vector<64x896xbf16>
    %cst_14 = arith.constant 5.000000e-01 : bf16
    %22 = vector.broadcast %cst_14 : bf16 to vector<64x896xbf16>
    %23 = arith.mulf %21, %22 : vector<64x896xbf16>
    %24 = math.tanh %23 : vector<64x896xbf16>
    %cst_15 = arith.constant 1.000000e+00 : bf16
    %25 = vector.broadcast %cst_15 : bf16 to vector<64x896xbf16>
    %26 = arith.addf %24, %25 : vector<64x896xbf16>
    %cst_16 = arith.constant 5.000000e-01 : bf16
    %27 = vector.broadcast %cst_16 : bf16 to vector<64x896xbf16>
    %28 = arith.mulf %26, %27 : vector<64x896xbf16>
    %29 = arith.mulf %21, %28 : vector<64x896xbf16>
    %cst_17 = arith.constant 1.000000e+00 : bf16
    %30 = vector.broadcast %cst_17 : bf16 to vector<1x64xbf16>
    %cst_18 = arith.constant dense<0.000000e+00> : vector<1x896xf32>
    %31 = tpu.matmul %30, %29, %cst_18 {dimension_numbers = #tpu.dot_dimension_numbers<[1], [0], [0], [1], [0, 0, 1, 1], [], []>} : vector<1x64xbf16>, vector<64x896xbf16>, vector<1x896xf32> -> vector<1x896xf32>
    %32 = vector.shape_cast %31 : vector<1x896xf32> to vector<1x1x896xf32>
    %c0_i32 = arith.constant 0 : i32
    %33 = arith.cmpi eq, %arg2, %c0_i32 : i32
    %34 = arith.extui %33 : i1 to i32
    %c0_i32_19 = arith.constant 0 : i32
    %35 = arith.cmpi ne, %34, %c0_i32_19 : i32
    scf.if %35 {
      %cst_28 = arith.constant 0.000000e+00 : f32
      %42 = vector.broadcast %cst_28 : f32 to vector<1x1x896xf32>
      %c0_29 = arith.constant 0 : index
      %c0_30 = arith.constant 0 : index
      %c0_31 = arith.constant 0 : index
      %43 = vector.load %arg9[%c0_29, %c0_30, %c0_31] : memref<1x1x896xf32, #tpu.memory_space<vmem>>, vector<1x1x896xf32>
      tpu.vector_store %arg9[%c0_29, %c0_30, %c0_31], %42 {strides = array<i32>} : memref<1x1x896xf32, #tpu.memory_space<vmem>>, vector<1x1x896xf32>,
    } else {
    }
    %c0_20 = arith.constant 0 : index
    %c0_21 = arith.constant 0 : index
    %c0_22 = arith.constant 0 : index
    %36 = vector.load %arg9[%c0_20, %c0_21, %c0_22] : memref<1x1x896xf32, #tpu.memory_space<vmem>>, vector<1x1x896xf32>
    %37 = arith.addf %36, %32 : vector<1x1x896xf32>
    %c0_23 = arith.constant 0 : index
    %c0_24 = arith.constant 0 : index
    %c0_25 = arith.constant 0 : index
    %38 = vector.load %arg9[%c0_23, %c0_24, %c0_25] : memref<1x1x896xf32, #tpu.memory_space<vmem>>, vector<1x1x896xf32>
    tpu.vector_store %arg9[%c0_23, %c0_24, %c0_25], %37 {strides = array<i32>} : memref<1x1x896xf32, #tpu.memory_space<vmem>>, vector<1x1x896xf32>,
    %c0_i32_26 = arith.constant 0 : i32
    %39 = arith.cmpi eq, %arg2, %c0_i32_26 : i32
    %40 = arith.extui %39 : i1 to i32
    %c0_i32_27 = arith.constant 0 : i32
    %41 = arith.cmpi ne, %40, %c0_i32_27 : i32
    scf.if %41 {
      %c0_28 = arith.constant 0 : index
      %c0_29 = arith.constant 0 : index
      %c0_30 = arith.constant 0 : index
      %42 = vector.load %arg9[%c0_28, %c0_29, %c0_30] : memref<1x1x896xf32, #tpu.memory_space<vmem>>, vector<1x1x896xf32>
      %c0_31 = arith.constant 0 : index
      %c0_32 = arith.constant 0 : index
      %43 = vector.load %arg8[%c0_31, %c0_32] : memref<1x896xf32, #tpu.memory_space<vmem>>, vector<1x896xf32>
      %44 = vector.shape_cast %43 : vector<1x896xf32> to vector<1x1x896xf32>
      %45 = arith.subf %42, %44 : vector<1x1x896xf32>
      %cst_33 = arith.constant 1.562500e-02 : f32
      %46 = vector.broadcast %cst_33 : f32 to vector<1x1x896xf32>
      %47 = arith.mulf %45, %46 : vector<1x1x896xf32>
      %c0_34 = arith.constant 0 : index
      %c0_35 = arith.constant 0 : index
      %c0_36 = arith.constant 0 : index
      %48 = vector.load %arg9[%c0_34, %c0_35, %c0_36] : memref<1x1x896xf32, #tpu.memory_space<vmem>>, vector<1x1x896xf32>
      tpu.vector_store %arg9[%c0_34, %c0_35, %c0_36], %47 {strides = array<i32>} : memref<1x1x896xf32, #tpu.memory_space<vmem>>, vector<1x1x896xf32>,
    } else {
    }
    return
  }
  func.func @transform_0(%arg0: i32, %arg1: i32, %arg2: i32) -> (i32, i32, i32) {
    %c0_i32 = arith.constant 0 : i32
    %c0_i32_0 = arith.constant 0 : i32
    return %arg0, %arg2, %c0_i32 : i32, i32, i32
  }
  func.func @transform_1(%arg0: i32, %arg1: i32, %arg2: i32) -> (i32, i32) {
    %c0_i32 = arith.constant 0 : i32
    %c0_i32_0 = arith.constant 0 : i32
    %c0_i32_1 = arith.constant 0 : i32
    return %c0_i32, %c0_i32_0 : i32, i32
  }
  func.func @transform_2(%arg0: i32, %arg1: i32, %arg2: i32) -> (i32, i32) {
    %c0_i32 = arith.constant 0 : i32
    %c0_i32_0 = arith.constant 0 : i32
    %c0_i32_1 = arith.constant 0 : i32
    return %c0_i32, %c0_i32_0 : i32, i32
  }
  func.func @transform_3(%arg0: i32, %arg1: i32, %arg2: i32) -> (i32, i32) {
    %c0_i32 = arith.constant 0 : i32
    %c0_i32_0 = arith.constant 0 : i32
    return %c0_i32, %arg1 : i32, i32
  }
  func.func @transform_4(%arg0: i32, %arg1: i32, %arg2: i32) -> (i32, i32) {
    %c0_i32 = arith.constant 0 : i32
    %c0_i32_0 = arith.constant 0 : i32
    return %c0_i32, %arg1 : i32, i32
  }
  func.func @transform_5(%arg0: i32, %arg1: i32, %arg2: i32) -> (i32, i32) {
    %c0_i32 = arith.constant 0 : i32
    %c0_i32_0 = arith.constant 0 : i32
    return %c0_i32, %arg1 : i32, i32
  }
  func.func @transform_6(%arg0: i32, %arg1: i32, %arg2: i32) -> (i32, i32, i32) {
    %c0_i32 = arith.constant 0 : i32
    %c0_i32_0 = arith.constant 0 : i32
    return %arg0, %c0_i32, %arg1 : i32, i32, i32
  }
}

module attributes {stable_mosaic.version = 11 : i64} {
  func.func @classifier_kernel(%arg0: memref<2x1792xf32, #tpu.memory_space<vmem>>, %arg1: memref<1792x1024xbf16, #tpu.memory_space<vmem>>, %arg2: memref<1x1024xf32, #tpu.memory_space<vmem>>, %arg3: memref<1024x512xbf16, #tpu.memory_space<vmem>>, %arg4: memref<1x512xf32, #tpu.memory_space<vmem>>, %arg5: memref<512x128xbf16, #tpu.memory_space<vmem>>, %arg6: memref<1x128xf32, #tpu.memory_space<vmem>>, %arg7: memref<2x128xf32, #tpu.memory_space<vmem>>) attributes {dimension_semantics = [], scalar_prefetch = 0 : i64, scratch_operands = 0 : i64, tpu.core_type = #tpu.core_type<tc>} {
    %c0 = arith.constant 0 : index
    %c0_0 = arith.constant 0 : index
    %0 = vector.load %arg0[%c0, %c0_0] : memref<2x1792xf32, #tpu.memory_space<vmem>>, vector<2x1792xf32>
    %1 = arith.truncf %0 : vector<2x1792xf32> to vector<2x1792xbf16>
    %c0_1 = arith.constant 0 : index
    %c0_2 = arith.constant 0 : index
    %2 = vector.load %arg1[%c0_1, %c0_2] : memref<1792x1024xbf16, #tpu.memory_space<vmem>>, vector<1792x1024xbf16>
    %cst = arith.constant dense<0.000000e+00> : vector<2x1024xf32>
    %3 = tpu.matmul %1, %2, %cst {dimension_numbers = #tpu.dot_dimension_numbers<[1], [0], [0], [1], [0, 0, 1, 1], [], []>} : vector<2x1792xbf16>, vector<1792x1024xbf16>, vector<2x1024xf32> -> vector<2x1024xf32>
    %c0_3 = arith.constant 0 : index
    %c0_4 = arith.constant 0 : index
    %4 = vector.load %arg2[%c0_3, %c0_4] : memref<1x1024xf32, #tpu.memory_space<vmem>>, vector<1x1024xf32>
    %5 = vector.broadcast %4 : vector<1x1024xf32> to vector<2x1024xf32>
    %6 = arith.addf %3, %5 : vector<2x1024xf32>
    %cst_5 = arith.constant 0.000000e+00 : f32
    %7 = vector.broadcast %cst_5 : f32 to vector<2x1024xf32>
    %8 = arith.maximumf %6, %7 : vector<2x1024xf32>
    %9 = arith.truncf %8 : vector<2x1024xf32> to vector<2x1024xbf16>
    %c0_6 = arith.constant 0 : index
    %c0_7 = arith.constant 0 : index
    %10 = vector.load %arg3[%c0_6, %c0_7] : memref<1024x512xbf16, #tpu.memory_space<vmem>>, vector<1024x512xbf16>
    %cst_8 = arith.constant dense<0.000000e+00> : vector<2x512xf32>
    %11 = tpu.matmul %9, %10, %cst_8 {dimension_numbers = #tpu.dot_dimension_numbers<[1], [0], [0], [1], [0, 0, 1, 1], [], []>} : vector<2x1024xbf16>, vector<1024x512xbf16>, vector<2x512xf32> -> vector<2x512xf32>
    %c0_9 = arith.constant 0 : index
    %c0_10 = arith.constant 0 : index
    %12 = vector.load %arg4[%c0_9, %c0_10] : memref<1x512xf32, #tpu.memory_space<vmem>>, vector<1x512xf32>
    %13 = vector.broadcast %12 : vector<1x512xf32> to vector<2x512xf32>
    %14 = arith.addf %11, %13 : vector<2x512xf32>
    %cst_11 = arith.constant 0.000000e+00 : f32
    %15 = vector.broadcast %cst_11 : f32 to vector<2x512xf32>
    %16 = arith.maximumf %14, %15 : vector<2x512xf32>
    %17 = arith.truncf %16 : vector<2x512xf32> to vector<2x512xbf16>
    %c0_12 = arith.constant 0 : index
    %c0_13 = arith.constant 0 : index
    %18 = vector.load %arg5[%c0_12, %c0_13] : memref<512x128xbf16, #tpu.memory_space<vmem>>, vector<512x128xbf16>
    %cst_14 = arith.constant dense<0.000000e+00> : vector<2x128xf32>
    %19 = tpu.matmul %17, %18, %cst_14 {dimension_numbers = #tpu.dot_dimension_numbers<[1], [0], [0], [1], [0, 0, 1, 1], [], []>} : vector<2x512xbf16>, vector<512x128xbf16>, vector<2x128xf32> -> vector<2x128xf32>
    %c0_15 = arith.constant 0 : index
    %c0_16 = arith.constant 0 : index
    %20 = vector.load %arg6[%c0_15, %c0_16] : memref<1x128xf32, #tpu.memory_space<vmem>>, vector<1x128xf32>
    %21 = vector.broadcast %20 : vector<1x128xf32> to vector<2x128xf32>
    %22 = arith.addf %19, %21 : vector<2x128xf32>
    %c0_17 = arith.constant 0 : index
    %c0_18 = arith.constant 0 : index
    %23 = vector.load %arg7[%c0_17, %c0_18] : memref<2x128xf32, #tpu.memory_space<vmem>>, vector<2x128xf32>
    tpu.vector_store %arg7[%c0_17, %c0_18], %22 {strides = array<i32>} : memref<2x128xf32, #tpu.memory_space<vmem>>, vector<2x128xf32>,
    return
  }
}

</mosaic_0001>

<llo_original>
// kernel: chest_xray_forward.2
$region0: #{chest_xray_forward.2}
  #allocation0 [shape = 'u32[]', space=smem, size = 0x4, offset = 0x4, fixed_abs, tag = 'smem constant byte address 0x4 - core index']
  #allocation1 [shape = 'u32[144,128]{1,0:T(1,128)}', space=vmem, size = 0x12000, scoped, tag = 'internal scratch']
  %s0 = inlined_call_operand.vmem [shape: bf16[2,64,32], index: 0, kind: input, shape index: {}]
  %s1 = inlined_call_operand.vmem [shape: bf16[32,128], index: 1, kind: input, shape index: {}]
  %s2 = inlined_call_operand.vmem [shape: f32[1,128], index: 2, kind: input, shape index: {}]
  %s3 = inlined_call_operand.vmem [shape: bf16[128,1792], index: 3, kind: input, shape index: {}]
  %s4 = inlined_call_operand.vmem [shape: f32[1,1792], index: 4, kind: input, shape index: {}]
  %s5 = inlined_call_operand.vmem [shape: f32[1,1792], index: 5, kind: input, shape index: {}]
  %s6 = inlined_call_operand.vmem [shape: f32[2,1,1792], index: 6, kind: output, shape index: {}]
  %s7 = sld [smem:[#allocation0]]
  $region91: #{chest_xray_forward.2} parent=0
    _
  %s9 = ssub.s32 1, %s7
  %s10 = scalar_select 0, %s9, %s7
  $region1: #{chest_xray_forward.2} parent=0
    #allocation2 [shape = 'u8[458752]{0}', space=vmem, size = 0x70000, scoped, tag = 'input window, operand 3']
    loop: start=0, step=1, limit=6
    $region2: #{chest_xray_forward.2} parent=1 // loop_pre_header
      _
    $region3: #{chest_xray_forward.2} parent=1 // loop_header
      %s12 = sphi 0, %s16
      %p13 = scmp.ge.s32.totalorder %s12, 6
      %s19 = sphi 0, %s38
      %s20 = sphi 0, %s34
      %s21 = sphi 0, %s30
      %s22 = sphi 0, %s19
      %s23 = sphi 0, %s20
      %s24 = sphi 0, %s21
      %s25 = sphi 0, %s22
      %s26 = sphi 0, %s23
      %s27 = sphi 0, %s24
      %s43 = sphi 0, %s45
      %s46 = sphi 0, %s43
      %s47 = sphi 0, %s46
      %s63 = sphi 0, %s47
      %s67 = sphi 0, %s67
      %s69 = sphi 0, %s67
      %s70 = sphi 0, %s69
      %s84 = sphi 0, %s70
      %s88 = sphi 0, %s88
      %s90 = sphi 0, %s88
      %s91 = sphi 0, %s90
      %s105 = sphi 0, %s91
      %s111 = sphi 0, %s113
      %s114 = sphi 0, %s111
      %s115 = sphi 0, %s114
      %s131 = sphi 0, %s115
      %s137 = sphi 0, %s139
      %s140 = sphi 0, %s137
      %s141 = sphi 0, %s140
      %s157 = sphi 0, %s141
      %s163 = sphi 0, %s165
      %s166 = sphi 0, %s163
      %s167 = sphi 0, %s166
      %s183 = sphi 0, %s167
      %s191 = sphi 0, %s193
      %s194 = sphi 0, %s191
      %s195 = sphi 0, %s194
      %s211 = sphi 0, %s195
    $region4: #{chest_xray_forward.2} parent=1 // loop_header_branch
      %15 = sbr.rel (%p13) target = $region8
    $region5: #{chest_xray_forward.2} parent=1 // loop_body
      %s17 = ssub.s32 %s12, 1
      %s18 = ssub.s32 %s12, 2
      %s28 = sadd.s32 1, %s21
      %p29 = scmp.ge.s32.totalorder %s28, 1
      %s30 = scalar_select %p29, 0, %s28
      %s31 = sadd.s32 1, %s20
      %s32 = scalar_select %p29, %s31, %s20
      %p33 = scmp.ge.s32.totalorder %s32, 2
      %s34 = scalar_select %p33, 0, %s32
      %s35 = sadd.s32 1, %s19
      %s36 = scalar_select %p33, %s35, %s19
      %p37 = scmp.ge.s32.totalorder %s36, 2
      %s38 = scalar_select %p37, 0, %s36
      %s39 = ssub.s32 %s19, %s38
      %s40 = ssub.s32 %s21, %s30
      %s41 = sor.u32 %s39, %s40
      %p42 = scmp.eq.s32.totalorder %s41, 0
      %s44 = sadd.s32 %s43, 1
      %s45 = scalar_select %p42, %s43, %s44
      %p48 = pneg %p42
      %p49 = scmp.eq.s32.totalorder %s12, 3
      %p50 = por %p48, %p49
      %p51 = scmp.ne.s32.totalorder %s43, %s46
      %p52 = scmp.eq.s32.totalorder %s12, 0
      %p53 = por %p51, %p52
      %p54 = scmp.ne.s32.totalorder %s43, %s46
      %p55 = scmp.eq.s32.totalorder %s17, 3
      %p56 = por %p54, %p55
      %p57 = scmp.ne.s32.totalorder %s46, %s47
      %p58 = scmp.eq.s32.totalorder %s17, 0
      %p59 = por %p57, %p58
      %p60 = scmp.ne.s32.totalorder %s46, %s47
      %p61 = scmp.eq.s32.totalorder %s18, 3
      %p62 = por %p60, %p61
      %p64 = scmp.ne.s32.totalorder %s47, %s63
      %p65 = scmp.eq.s32.totalorder %s18, 0
      %p66 = por %p64, %p65
      %s68 = sadd.s32 %s67, 1
      %p71 = scmp.eq.s32.totalorder %s12, 3
      %p72 = scmp.ne.s32.totalorder %s67, %s69
      %p73 = scmp.eq.s32.totalorder %s12, 0
      %p74 = por %p72, %p73
      %p75 = scmp.ne.s32.totalorder %s67, %s69
      %p76 = scmp.eq.s32.totalorder %s17, 3
      %p77 = por %p75, %p76
      %p78 = scmp.ne.s32.totalorder %s69, %s70
      %p79 = scmp.eq.s32.totalorder %s17, 0
      %p80 = por %p78, %p79
      %p81 = scmp.ne.s32.totalorder %s69, %s70
      %p82 = scmp.eq.s32.totalorder %s18, 3
      %p83 = por %p81, %p82
      %p85 = scmp.ne.s32.totalorder %s70, %s84
      %p86 = scmp.eq.s32.totalorder %s18, 0
      %p87 = por %p85, %p86
      %s89 = sadd.s32 %s88, 1
      %p92 = scmp.eq.s32.totalorder %s12, 3
      %p93 = scmp.ne.s32.totalorder %s88, %s90
      %p94 = scmp.eq.s32.totalorder %s12, 0
      %p95 = por %p93, %p94
      %p96 = scmp.ne.s32.totalorder %s88, %s90
      %p97 = scmp.eq.s32.totalorder %s17, 3
      %p98 = por %p96, %p97
      %p99 = scmp.ne.s32.totalorder %s90, %s91
      %p100 = scmp.eq.s32.totalorder %s17, 0
      %p101 = por %p99, %p100
      %p102 = scmp.ne.s32.totalorder %s90, %s91
      %p103 = scmp.eq.s32.totalorder %s18, 3
      %p104 = por %p102, %p103
      %p106 = scmp.ne.s32.totalorder %s91, %s105
      %p107 = scmp.eq.s32.totalorder %s18, 0
      %p108 = por %p106, %p107
      %s109 = ssub.s32 %s20, %s34
      %p110 = scmp.eq.s32.totalorder %s109, 0
      %s112 = sadd.s32 %s111, 1
      %s113 = scalar_select %p110, %s111, %s112
      %p116 = pneg %p110
      %p117 = scmp.eq.s32.totalorder %s12, 3
      %p118 = por %p116, %p117
      %p119 = scmp.ne.s32.totalorder %s111, %s114
      %p120 = scmp.eq.s32.totalorder %s12, 0
      %p121 = por %p119, %p120
      %p122 = scmp.ne.s32.totalorder %s111, %s114
      %p123 = scmp.eq.s32.totalorder %s17, 3
      %p124 = por %p122, %p123
      %p125 = scmp.ne.s32.totalorder %s114, %s115
      %p126 = scmp.eq.s32.totalorder %s17, 0
      %p127 = por %p125, %p126
      %p128 = scmp.ne.s32.totalorder %s114, %s115
      %p129 = scmp.eq.s32.totalorder %s18, 3
      %p130 = por %p128, %p129
      %p132 = scmp.ne.s32.totalorder %s115, %s131
      %p133 = scmp.eq.s32.totalorder %s18, 0
      %p134 = por %p132, %p133
      %s135 = ssub.s32 %s20, %s34
      %p136 = scmp.eq.s32.totalorder %s135, 0
      %s138 = sadd.s32 %s137, 1
      %s139 = scalar_select %p136, %s137, %s138
      %p142 = pneg %p136
      %p143 = scmp.eq.s32.totalorder %s12, 3
      %p144 = por %p142, %p143
      %p145 = scmp.ne.s32.totalorder %s137, %s140
      %p146 = scmp.eq.s32.totalorder %s12, 0
      %p147 = por %p145, %p146
      %p148 = scmp.ne.s32.totalorder %s137, %s140
      %p149 = scmp.eq.s32.totalorder %s17, 3
      %p150 = por %p148, %p149
      %p151 = scmp.ne.s32.totalorder %s140, %s141
      %p152 = scmp.eq.s32.totalorder %s17, 0
      %p153 = por %p151, %p152
      %p154 = scmp.ne.s32.totalorder %s140, %s141
      %p155 = scmp.eq.s32.totalorder %s18, 3
      %p156 = por %p154, %p155
      %p158 = scmp.ne.s32.totalorder %s141, %s157
      %p159 = scmp.eq.s32.totalorder %s18, 0
      %p160 = por %p158, %p159
      %s161 = ssub.s32 %s20, %s34
      %p162 = scmp.eq.s32.totalorder %s161, 0
      %s164 = sadd.s32 %s163, 1
      %s165 = scalar_select %p162, %s163, %s164
      %p168 = pneg %p162
      %p169 = scmp.eq.s32.totalorder %s12, 3
      %p170 = por %p168, %p169
      %p171 = scmp.ne.s32.totalorder %s163, %s166
      %p172 = scmp.eq.s32.totalorder %s12, 0
      %p173 = por %p171, %p172
      %p174 = scmp.ne.s32.totalorder %s163, %s166
      %p175 = scmp.eq.s32.totalorder %s17, 3
      %p176 = por %p174, %p175
      %p177 = scmp.ne.s32.totalorder %s166, %s167
      %p178 = scmp.eq.s32.totalorder %s17, 0
      %p179 = por %p177, %p178
      %p180 = scmp.ne.s32.totalorder %s166, %s167
      %p181 = scmp.eq.s32.totalorder %s18, 3
      %p182 = por %p180, %p181
      %p184 = scmp.ne.s32.totalorder %s167, %s183
      %p185 = scmp.eq.s32.totalorder %s18, 0
      %p186 = por %p184, %p185
      %s187 = ssub.s32 %s19, %s38
      %s188 = ssub.s32 %s20, %s34
      %s189 = sor.u32 %s187, %s188
      %p190 = scmp.eq.s32.totalorder %s189, 0
      %s192 = sadd.s32 %s191, 1
      %s193 = scalar_select %p190, %s191, %s192
      %p196 = pneg %p190
      %p197 = scmp.eq.s32.totalorder %s12, 3
      %p198 = por %p196, %p197
      %p199 = scmp.ne.s32.totalorder %s191, %s194
      %p200 = scmp.eq.s32.totalorder %s12, 0
      %p201 = por %p199, %p200
      %p202 = scmp.ne.s32.totalorder %s191, %s194
      %p203 = scmp.eq.s32.totalorder %s17, 3
      %p204 = por %p202, %p203
      %p205 = scmp.ne.s32.totalorder %s194, %s195
      %p206 = scmp.eq.s32.totalorder %s17, 0
      %p207 = por %p205, %p206
      %p208 = scmp.ne.s32.totalorder %s194, %s195
      %p209 = scmp.eq.s32.totalorder %s18, 3
      %p210 = por %p208, %p209
      %p212 = scmp.ne.s32.totalorder %s195, %s211
      %p213 = scmp.eq.s32.totalorder %s18, 0
      %p214 = por %p212, %p213
      %p215 = scmp.le.s32.totalorder 1, %s12
      %p216 = scmp.lt.s32.totalorder %s12, 5
      %p217 = pnand %p215, %p216
      %p218 = pneg %p217
      // Predicated region
      $region9: #{chest_xray_forward.2} parent=5 // pred_check
        _
      $region10: #{chest_xray_forward.2} parent=5 // pred_check_branch
        %220 = sbr.rel (%p217) target = $region12
      $region11: #{chest_xray_forward.2} parent=5 // pred_region
        %s221 = ssub.s32 %s12, 1
        // Predicated region
        $region13: #{chest_xray_forward.2} parent=11 // pred_check
          %p222 = pneg %p80
        $region14: #{chest_xray_forward.2} parent=11 // pred_check_branch
          %224 = sbr.rel (%p222) target = $region16
        $region15: #{chest_xray_forward.2} parent=11 // pred_region
          _
        $region16: #{chest_xray_forward.2} parent=11 // pred_fallthru
          _
        // Predicated region
        $region17: #{chest_xray_forward.2} parent=11 // pred_check
          %p225 = pneg %p101
        $region18: #{chest_xray_forward.2} parent=11 // pred_check_branch
          %227 = sbr.rel (%p225) target = $region20
        $region19: #{chest_xray_forward.2} parent=11 // pred_region
          _
        $region20: #{chest_xray_forward.2} parent=11 // pred_fallthru
          _
      $region12: #{chest_xray_forward.2} parent=5 // pred_fallthru
        _
      %p228 = scmp.lt.s32.totalorder %s12, 4
      // Predicated region
      $region21: #{chest_xray_forward.2} parent=5 // pred_check
        %p229 = pneg %p228
      $region22: #{chest_xray_forward.2} parent=5 // pred_check_branch
        %231 = sbr.rel (%p229) target = $region24
      $region23: #{chest_xray_forward.2} parent=5 // pred_region
        // Predicated region
        $region25: #{chest_xray_forward.2} parent=23 // pred_check
          %p232 = pneg %p53
        $region26: #{chest_xray_forward.2} parent=23 // pred_check_branch
          %234 = sbr.rel (%p232) target = $region28
        $region27: #{chest_xray_forward.2} parent=23 // pred_region
          %s235 = smul.u32 8, %s21
          %p236 = scmp.lt.s32.totalorder %s19, 1
          %s237 = scalar_select %p236, %s19, 1
          %p238 = scmp.lt.s32.totalorder %s235, 7
          %s239 = scalar_select %p238, %s235, 7
          %s240 = smul.addr %s237, 8
          %s241 = sadd.s32 %s239, %s240
          %s242 = smul.addr %s241, 4
          %s243 = scalar_lea.vmem %s0, %s242
          %s244 = smul.u32 8, %s21
        $region28: #{chest_xray_forward.2} parent=23 // pred_fallthru
          _
        // Predicated region
        $region29: #{chest_xray_forward.2} parent=23 // pred_check
          %p245 = pneg %p121
        $region30: #{chest_xray_forward.2} parent=23 // pred_check_branch
          %247 = sbr.rel (%p245) target = $region32
        $region31: #{chest_xray_forward.2} parent=23 // pred_region
          %s248 = sand.u32 %s111, 1
          %s249 = sand.u32 %s111, 1
          %s250 = smul.addr %s249, 448
          %s251 = scalar_lea.vmem [#allocation2], %s250
          %s252 = smul.u32 7, %s20
          %s253 = smul.addr %s252, 4
          %s254 = scalar_lea.vmem %s3, %s253
          // Predicated region
          $region33: #{chest_xray_forward.2} parent=31 // pred_check
            _
          $region34: #{chest_xray_forward.2} parent=31 // pred_check_branch
            %256 = sbr.rel (0) target = $region36
          $region35: #{chest_xray_forward.2} parent=31 // pred_region
            // Predicated region
            $region37: #{chest_xray_forward.2} parent=35 // pred_check
              _
            $region38: #{chest_xray_forward.2} parent=35 // pred_check_branch
              %258 = sbr.rel (0) target = $region40
            $region39: #{chest_xray_forward.2} parent=35 // pred_region
              %s259 = scalar_lea.vmem %s254, 24
              %s260 = scalar_lea.vmem %s251, 24 [#allocation2]
              loop: start=0, step=1, limit=1
              $region41: #{chest_xray_forward.2} parent=39 // loop_pre_header
                _
              $region42: #{chest_xray_forward.2} parent=39 // loop_header
                %s262 = sphi 0, %s266
                %p263 = scmp.ge.s32.totalorder %s262, 1
                %s267 = sphi %s254, %s254
                %s268 = sphi %s251, %s251
              $region43: #{chest_xray_forward.2} parent=39 // loop_header_branch
                %265 = sbr.rel (%p263) target = $region47
              $region44: #{chest_xray_forward.2} parent=39 // loop_body
                %v269 = vld [vmem:[%s267] sm:$0xff]
                %270 = vst [vmem:[%s268] sm:$0xff] %v269
                %v271 = vld [vmem:[%s267 + $0x8] sm:$0xff]
                %272 = vst [vmem:[%s268 + $0x8] sm:$0xff] %v271
                %v273 = vld [vmem:[%s267 + $0x10] sm:$0xff]
                %274 = vst [vmem:[%s268 + $0x10] sm:$0xff] %v273
                %v275 = vld [vmem:[%s267 + $0x38] sm:$0xff]
                %276 = vst [vmem:[%s268 + $0x1c] sm:$0xff] %v275
                %v277 = vld [vmem:[%s267 + $0x40] sm:$0xff]
                %278 = vst [vmem:[%s268 + $0x24] sm:$0xff] %v277
                %v279 = vld [vmem:[%s267 + $0x48] sm:$0xff]
                %280 = vst [vmem:[%s268 + $0x2c] sm:$0xff] %v279
                %v281 = vld [vmem:[%s267 + $0x70] sm:$0xff]
                %282 = vst [vmem:[%s268 + $0x38] sm:$0xff] %v281
                %v283 = vld [vmem:[%s267 + $0x78] sm:$0xff]
                %284 = vst [vmem:[%s268 + $0x40] sm:$0xff] %v283
                %v285 = vld [vmem:[%s267 + $0x80] sm:$0xff]
                %286 = vst [vmem:[%s268 + $0x48] sm:$0xff] %v285
                %v287 = vld [vmem:[%s267 + $0xa8] sm:$0xff]
                %288 = vst [vmem:[%s268 + $0x54] sm:$0xff] %v287
                %v289 = vld [vmem:[%s267 + $0xb0] sm:$0xff]
                %290 = vst [vmem:[%s268 + $0x5c] sm:$0xff] %v289
                %v291 = vld [vmem:[%s267 + $0xb8] sm:$0xff]
                %292 = vst [vmem:[%s268 + $0x64] sm:$0xff] %v291
                %v293 = vld [vmem:[%s267 + $0xe0] sm:$0xff]
                %294 = vst [vmem:[%s268 + $0x70] sm:$0xff] %v293
                %v295 = vld [vmem:[%s267 + $0xe8] sm:$0xff]
                %296 = vst [vmem:[%s268 + $0x78] sm:$0xff] %v295
                %v297 = vld [vmem:[%s267 + $0xf0] sm:$0xff]
                %298 = vst [vmem:[%s268 + $0x80] sm:$0xff] %v297
                %v299 = vld [vmem:[%s267 + $0x118] sm:$0xff]
                %300 = vst [vmem:[%s268 + $0x8c] sm:$0xff] %v299
                %v301 = vld [vmem:[%s267 + $0x120] sm:$0xff]
                %302 = vst [vmem:[%s268 + $0x94] sm:$0xff] %v301
                %v303 = vld [vmem:[%s267 + $0x128] sm:$0xff]
                %304 = vst [vmem:[%s268 + $0x9c] sm:$0xff] %v303
                %v305 = vld [vmem:[%s267 + $0x150] sm:$0xff]
                %306 = vst [vmem:[%s268 + $0xa8] sm:$0xff] %v305
                %v307 = vld [vmem:[%s267 + $0x158] sm:$0xff]
                %308 = vst [vmem:[%s268 + $0xb0] sm:$0xff] %v307
                %v309 = vld [vmem:[%s267 + $0x160] sm:$0xff]
                %310 = vst [vmem:[%s268 + $0xb8] sm:$0xff] %v309
                %v311 = vld [vmem:[%s267 + $0x188] sm:$0xff]
                %312 = vst [vmem:[%s268 + $0xc4] sm:$0xff] %v311
                %v313 = vld [vmem:[%s267 + $0x190] sm:$0xff]
                %314 = vst [vmem:[%s268 + $0xcc] sm:$0xff] %v313
                %v315 = vld [vmem:[%s267 + $0x198] sm:$0xff]
                %316 = vst [vmem:[%s268 + $0xd4] sm:$0xff] %v315
                %v317 = vld [vmem:[%s267 + $0x1c0] sm:$0xff]
                %318 = vst [vmem:[%s268 + $0xe0] sm:$0xff] %v317
                %v319 = vld [vmem:[%s267 + $0x1c8] sm:$0xff]
                %320 = vst [vmem:[%s268 + $0xe8] sm:$0xff] %v319
                %v321 = vld [vmem:[%s267 + $0x1d0] sm:$0xff]
                %322 = vst [vmem:[%s268 + $0xf0] sm:$0xff] %v321
                %v323 = vld [vmem:[%s267 + $0x1f8] sm:$0xff]
                %324 = vst [vmem:[%s268 + $0xfc] sm:$0xff] %v323
                %v325 = vld [vmem:[%s267 + $0x200] sm:$0xff]
                %326 = vst [vmem:[%s268 + $0x104] sm:$0xff] %v325
                %v327 = vld [vmem:[%s267 + $0x208] sm:$0xff]
                %328 = vst [vmem:[%s268 + $0x10c] sm:$0xff] %v327
                %v329 = vld [vmem:[%s267 + $0x230] sm:$0xff]
                %330 = vst [vmem:[%s268 + $0x118] sm:$0xff] %v329
                %v331 = vld [vmem:[%s267 + $0x238] sm:$0xff]
                %332 = vst [vmem:[%s268 + $0x120] sm:$0xff] %v331
                %v333 = vld [vmem:[%s267 + $0x240] sm:$0xff]
                %334 = vst [vmem:[%s268 + $0x128] sm:$0xff] %v333
                %v335 = vld [vmem:[%s267 + $0x268] sm:$0xff]
                %336 = vst [vmem:[%s268 + $0x134] sm:$0xff] %v335
                %v337 = vld [vmem:[%s267 + $0x270] sm:$0xff]
                %338 = vst [vmem:[%s268 + $0x13c] sm:$0xff] %v337
                %v339 = vld [vmem:[%s267 + $0x278] sm:$0xff]
                %340 = vst [vmem:[%s268 + $0x144] sm:$0xff] %v339
                %v341 = vld [vmem:[%s267 + $0x2a0] sm:$0xff]
                %342 = vst [vmem:[%s268 + $0x150] sm:$0xff] %v341
                %v343 = vld [vmem:[%s267 + $0x2a8] sm:$0xff]
                %344 = vst [vmem:[%s268 + $0x158] sm:$0xff] %v343
                %v345 = vld [vmem:[%s267 + $0x2b0] sm:$0xff]
                %346 = vst [vmem:[%s268 + $0x160] sm:$0xff] %v345
                %v347 = vld [vmem:[%s267 + $0x2d8] sm:$0xff]
                %348 = vst [vmem:[%s268 + $0x16c] sm:$0xff] %v347
                %v349 = vld [vmem:[%s267 + $0x2e0] sm:$0xff]
                %350 = vst [vmem:[%s268 + $0x174] sm:$0xff] %v349
                %v351 = vld [vmem:[%s267 + $0x2e8] sm:$0xff]
                %352 = vst [vmem:[%s268 + $0x17c] sm:$0xff] %v351
                %v353 = vld [vmem:[%s267 + $0x310] sm:$0xff]
                %354 = vst [vmem:[%s268 + $0x188] sm:$0xff] %v353
                %v355 = vld [vmem:[%s267 + $0x318] sm:$0xff]
                %356 = vst [vmem:[%s268 + $0x190] sm:$0xff] %v355
                %v357 = vld [vmem:[%s267 + $0x320] sm:$0xff]
                %358 = vst [vmem:[%s268 + $0x198] sm:$0xff] %v357
                %v359 = vld [vmem:[%s267 + $0x348] sm:$0xff]
                %360 = vst [vmem:[%s268 + $0x1a4] sm:$0xff] %v359
                %v361 = vld [vmem:[%s267 + $0x350] sm:$0xff]
                %362 = vst [vmem:[%s268 + $0x1ac] sm:$0xff] %v361
                %v363 = vld [vmem:[%s267 + $0x358] sm:$0xff]
                %364 = vst [vmem:[%s268 + $0x1b4] sm:$0xff] %v363
              $region45: #{chest_xray_forward.2} parent=39 // loop_footer
                %s266 = sadd.s32 1, %s262
              $region46: #{chest_xray_forward.2} parent=39 // loop_footer_branch
                %261 = sbr.rel target = $region42
              $region47: #{chest_xray_forward.2} parent=39 // loop_exit
                _
              loop: start=0, step=1, limit=1
              $region48: #{chest_xray_forward.2} parent=39 // loop_pre_header
                _
              $region49: #{chest_xray_forward.2} parent=39 // loop_header
                %s367 = sphi 0, %s371
                %p368 = scmp.ge.s32.totalorder %s367, 1
                %s372 = sphi %s259, %s259
                %s373 = sphi %s260, %s260
              $region50: #{chest_xray_forward.2} parent=39 // loop_header_branch
                %370 = sbr.rel (%p368) target = $region54
              $region51: #{chest_xray_forward.2} parent=39 // loop_body
                %v374 = vld [vmem:[%s372] sm:$0xf]
                %375 = vst [vmem:[%s373] sm:$0xf] %v374
                %v376 = vld [vmem:[%s372 + $0x38] sm:$0xf]
                %377 = vst [vmem:[%s373 + $0x1c] sm:$0xf] %v376
                %v378 = vld [vmem:[%s372 + $0x70] sm:$0xf]
                %379 = vst [vmem:[%s373 + $0x38] sm:$0xf] %v378
                %v380 = vld [vmem:[%s372 + $0xa8] sm:$0xf]
                %381 = vst [vmem:[%s373 + $0x54] sm:$0xf] %v380
                %v382 = vld [vmem:[%s372 + $0xe0] sm:$0xf]
                %383 = vst [vmem:[%s373 + $0x70] sm:$0xf] %v382
                %v384 = vld [vmem:[%s372 + $0x118] sm:$0xf]
                %385 = vst [vmem:[%s373 + $0x8c] sm:$0xf] %v384
                %v386 = vld [vmem:[%s372 + $0x150] sm:$0xf]
                %387 = vst [vmem:[%s373 + $0xa8] sm:$0xf] %v386
                %v388 = vld [vmem:[%s372 + $0x188] sm:$0xf]
                %389 = vst [vmem:[%s373 + $0xc4] sm:$0xf] %v388
                %v390 = vld [vmem:[%s372 + $0x1c0] sm:$0xf]
                %391 = vst [vmem:[%s373 + $0xe0] sm:$0xf] %v390
                %v392 = vld [vmem:[%s372 + $0x1f8] sm:$0xf]
                %393 = vst [vmem:[%s373 + $0xfc] sm:$0xf] %v392
                %v394 = vld [vmem:[%s372 + $0x230] sm:$0xf]
                %395 = vst [vmem:[%s373 + $0x118] sm:$0xf] %v394
                %v396 = vld [vmem:[%s372 + $0x268] sm:$0xf]
                %397 = vst [vmem:[%s373 + $0x134] sm:$0xf] %v396
                %v398 = vld [vmem:[%s372 + $0x2a0] sm:$0xf]
                %399 = vst [vmem:[%s373 + $0x150] sm:$0xf] %v398
                %v400 = vld [vmem:[%s372 + $0x2d8] sm:$0xf]
                %401 = vst [vmem:[%s373 + $0x16c] sm:$0xf] %v400
                %v402 = vld [vmem:[%s372 + $0x310] sm:$0xf]
                %403 = vst [vmem:[%s373 + $0x188] sm:$0xf] %v402
                %v404 = vld [vmem:[%s372 + $0x348] sm:$0xf]
                %405 = vst [vmem:[%s373 + $0x1a4] sm:$0xf] %v404
              $region52: #{chest_xray_forward.2} parent=39 // loop_footer
                %s371 = sadd.s32 1, %s367
              $region53: #{chest_xray_forward.2} parent=39 // loop_footer_branch
                %366 = sbr.rel target = $region49
              $region54: #{chest_xray_forward.2} parent=39 // loop_exit
                _
            $region40: #{chest_xray_forward.2} parent=35 // pred_fallthru
              _
          $region36: #{chest_xray_forward.2} parent=31 // pred_fallthru
            _
          %406 = vnop
        $region32: #{chest_xray_forward.2} parent=23 // pred_fallthru
          _
        // Predicated region
        $region55: #{chest_xray_forward.2} parent=23 // pred_check
          %p407 = pneg %p147
        $region56: #{chest_xray_forward.2} parent=23 // pred_check_branch
          %409 = sbr.rel (%p407) target = $region58
        $region57: #{chest_xray_forward.2} parent=23 // pred_region
          %s410 = smul.u32 7, %s20
          %p411 = scmp.lt.s32.totalorder %s410, 13
          %s412 = scalar_select %p411, %s410, 13
          %s413 = scalar_lea.vmem %s4, %s412
          %s414 = smul.u32 7, %s20
        $region58: #{chest_xray_forward.2} parent=23 // pred_fallthru
          _
        // Predicated region
        $region59: #{chest_xray_forward.2} parent=23 // pred_check
          %p415 = pneg %p173
        $region60: #{chest_xray_forward.2} parent=23 // pred_check_branch
          %417 = sbr.rel (%p415) target = $region62
        $region61: #{chest_xray_forward.2} parent=23 // pred_region
          %s418 = smul.u32 7, %s20
          %p419 = scmp.lt.s32.totalorder %s418, 13
          %s420 = scalar_select %p419, %s418, 13
          %s421 = scalar_lea.vmem %s5, %s420
          %s422 = smul.u32 7, %s20
        $region62: #{chest_xray_forward.2} parent=23 // pred_fallthru
          _
      $region24: #{chest_xray_forward.2} parent=5 // pred_fallthru
        _
      %p423 = scmp.le.s32.totalorder 1, %s12
      %p424 = scmp.lt.s32.totalorder %s12, 5
      %p425 = pnand %p423, %p424
      %p426 = pneg %p425
      // Predicated region
      $region63: #{chest_xray_forward.2} parent=5 // pred_check
        _
      $region64: #{chest_xray_forward.2} parent=5 // pred_check_branch
        %428 = sbr.rel (%p425) target = $region66
      $region65: #{chest_xray_forward.2} parent=5 // pred_region
        %s429 = ssub.s32 %s12, 1
        %s430 = sand.u32 %s114, 1
        %s431 = sand.u32 %s114, 1
        %s432 = smul.addr %s431, 448
        %s433 = scalar_lea.vmem [#allocation2], %s432
        // Predicated region
        $region67: #{chest_xray_forward.2} parent=65 // pred_check
          %p434 = pneg %p127
        $region68: #{chest_xray_forward.2} parent=65 // pred_check_branch
          %436 = sbr.rel (%p434) target = $region70
        $region69: #{chest_xray_forward.2} parent=65 // pred_region
          _
        $region70: #{chest_xray_forward.2} parent=65 // pred_fallthru
          _
        %s437 = smul.u32 8, %s24
        %p438 = scmp.lt.s32.totalorder %s22, 1
        %s439 = scalar_select %p438, %s22, 1
        %p440 = scmp.lt.s32.totalorder %s437, 7
        %s441 = scalar_select %p440, %s437, 7
        %s442 = smul.addr %s439, 8
        %s443 = sadd.s32 %s441, %s442
        %s444 = smul.addr %s443, 4
        %s445 = scalar_lea.vmem %s0, %s444
        %p446 = pneg %p59
        %p447 = pneg %p56
        %p448 = pneg %p80
        %p449 = pneg %p77
        %p450 = pneg %p101
        %p451 = pneg %p98
        %s452 = sand.u32 %s114, 1
        %s453 = sand.u32 %s114, 1
        %s454 = smul.addr %s453, 448
        %s455 = scalar_lea.vmem [#allocation2], %s454
        %p456 = pneg %p127
        %p457 = pneg %p124
        %s458 = smul.u32 7, %s23
        %p459 = scmp.lt.s32.totalorder %s458, 13
        %s460 = scalar_select %p459, %s458, 13
        %s461 = scalar_lea.vmem %s4, %s460
        %p462 = pneg %p153
        %p463 = pneg %p150
        %s464 = smul.u32 7, %s23
        %p465 = scmp.lt.s32.totalorder %s464, 13
        %s466 = scalar_select %p465, %s464, 13
        %s467 = scalar_lea.vmem %s5, %s466
        %p468 = pneg %p179
        %p469 = pneg %p176
        %p470 = pneg %p207
        %p471 = pneg %p204
        %s472 = smul.u32 7, %s23
        %p473 = scmp.lt.s32.totalorder %s22, 1
        %s474 = scalar_select %p473, %s22, 1
        %p475 = scmp.lt.s32.totalorder %s472, 13
        %s476 = scalar_select %p475, %s472, 13
        %s477 = smul.addr %s474, 14
        %s478 = sadd.s32 %s476, %s477
        %s479 = scalar_lea.vmem %s6, %s478
        %s480 = smul.u32 8, %s24
        %p481 = scmp.lt.s32.totalorder %s22, 1
        %s482 = scalar_select %p481, %s22, 1
        %p483 = scmp.lt.s32.totalorder %s480, 7
        %s484 = scalar_select %p483, %s480, 7
        %s485 = smul.addr %s482, 8
        %s486 = sadd.s32 %s484, %s485
        %s487 = smul.addr %s486, 4
        %s488 = scalar_lea.vmem %s0, %s487
        %s489 = smul.u32 8, %s24
        %s490 = smul.u32 7, %s23
        %s491 = smul.u32 7, %s23
        %p492 = scmp.lt.s32.totalorder %s491, 13
        %s493 = scalar_select %p492, %s491, 13
        %s494 = scalar_lea.vmem %s4, %s493
        %s495 = smul.u32 7, %s23
        %s496 = smul.u32 7, %s23
        %p497 = scmp.lt.s32.totalorder %s496, 13
        %s498 = scalar_select %p497, %s496, 13
        %s499 = scalar_lea.vmem %s5, %s498
        %s500 = smul.u32 7, %s23
        %s501 = smul.u32 7, %s23
        %p502 = scmp.lt.s32.totalorder %s22, 1
        %s503 = scalar_select %p502, %s22, 1
        %p504 = scmp.lt.s32.totalorder %s501, 13
        %s505 = scalar_select %p504, %s501, 13
        %s506 = smul.addr %s503, 14
        %s507 = sadd.s32 %s505, %s506
        %s508 = scalar_lea.vmem %s6, %s507
        %s509 = smul.u32 7, %s23
        %v513 = vld [vmem:[%s488] sm:$0xf]
        %v514 = vld [vmem:[%s488 + $0x4] sm:$0xf]
        %v515 = vld [vmem:[%s488 + $0x8] sm:$0xf]
        %v516 = vld [vmem:[%s488 + $0xc] sm:$0xf]
        %v517 = vld [vmem:[%s488 + $0x10] sm:$0xf]
        %v518 = vld [vmem:[%s488 + $0x14] sm:$0xf]
        %v519 = vld [vmem:[%s488 + $0x18] sm:$0xf]
        %v520 = vld [vmem:[%s488 + $0x1c] sm:$0xf]
        %v521 = vld [vmem:[%s1] sm:$0xf]
        %v522 = vld [vmem:[%s1 + $0x4] sm:$0xf]
        %v523 = vld [vmem:[%s1 + $0x8] sm:$0xf]
        %v524 = vld [vmem:[%s1 + $0xc] sm:$0xf]
        %v525 = vld [vmem:[%s2] sm:$0x1]
        %v527 = vlaneseq
        %v528 = vshrl.u32 %v527, 7
        %v529 = vsub.s32 0, %v528
        %v530 = vrot.slane %v525, %v529
        %v540 = vunpack.c.l.b16 %v513
        %v541 = vunpack.c.l.b16 %v514
        %v542 = vunpack.c.l.b16 %v515
        %v543 = vunpack.c.l.b16 %v516
        %v544 = vunpack.c.l.b16 %v517
        %v545 = vunpack.c.l.b16 %v518
        %v546 = vunpack.c.l.b16 %v519
        %v547 = vunpack.c.l.b16 %v520
        %v548 = vpack.c.b16 %v541, %v540
        %v549 = vpack.c.b16 %v543, %v542
        %v550 = vpack.c.b16 %v545, %v544
        %v551 = vpack.c.b16 %v547, %v546
        %v556 = vunpack.c.l.b16 %v521
        %v557 = vunpack.c.l.b16 %v522
        %v558 = vunpack.c.l.b16 %v523
        %v559 = vunpack.c.l.b16 %v524
        %v560 = vpack.c.b16 %v557, %v556
        %v561 = vpack.c.b16 %v559, %v558
        %vm564 = vcmask 261120
        %v566 = vsel %vm564, %v548, 0
        %v569 = vsel %vm564, %v549, 0
        %v572 = vsel %vm564, %v550, 0
        %v575 = vsel %vm564, %v551, 0
        %577 = vmatprep.subr.bf16.mxu0 0
        %578 = vmatpush1.bf16.msra.mxu0 %v560
        %579 = vmatprep.subr.bf16.mxu0 0
        %580 = vmatpush1.bf16.msra.mxu0 %v561
        %581 = vmatprep.subr.bf16.mxu0 0
        %582 = vmatpush1.bf16.msra.mxu0 0
        %583 = vmatprep.subr.bf16.mxu0 0
        %584 = vmatpush1.bf16.msra.mxu0 0
        %585 = vmatprep.subr.bf16.mxu0 0
        %586 = vmatpush1.bf16.msra.mxu0 0
        %587 = vmatprep.subr.bf16.mxu0 0
        %588 = vmatpush1.bf16.msra.mxu0 0
        %589 = vmatprep.subr.bf16.mxu0 0
        %590 = vmatpush1.bf16.msra.mxu0 0
        %591 = vmatprep.subr.bf16.mxu0 0
        %592 = vmatpush1.bf16.msra.mxu0 0
        %593 = vmatprep.subr.bf16.mxu0 0
        %594 = vmatpush1.bf16.msra.mxu0 0
        %595 = vmatprep.subr.bf16.mxu0 0
        %596 = vmatpush1.bf16.msra.mxu0 0
        %597 = vmatprep.subr.bf16.mxu0 0
        %598 = vmatpush1.bf16.msra.mxu0 0
        %599 = vmatprep.subr.bf16.mxu0 0
        %600 = vmatpush1.bf16.msra.mxu0 0
        %601 = vmatprep.subr.bf16.mxu0 0
        %602 = vmatpush1.bf16.msra.mxu0 0
        %603 = vmatprep.subr.bf16.mxu0 0
        %604 = vmatpush1.bf16.msra.mxu0 0
        %605 = vmatprep.subr.bf16.mxu0 0
        %606 = vmatpush1.bf16.msra.mxu0 0
        %607 = vmatprep.subr.bf16.mxu0 0
        %608 = vmatpush1.bf16.msra.mxu0 0
        %609 = vmatprep.mubr.bf16.mxu0 0
        %610 = vmatmul.mubr.bf16.gmra.mrb[0].mxu0 %v566
        %v611 = vpop.f32.mrb[0].mxu0
        %v612 = vadd.f32 %v530, %v611
        %v613 = vpop.f32.mrb[0].mxu0
        %v614 = vpop.f32.mrb[0].mxu0
        %v615 = vadd.f32 %v530, %v614
        %v616 = vpop.f32.mrb[0].mxu0
        %617 = vmatprep.mubr.bf16.mxu0 0
        %618 = vmatmul.mubr.bf16.gmra.mrb[0].mxu0 %v569
        %v619 = vpop.f32.mrb[0].mxu0
        %v620 = vadd.f32 %v530, %v619
        %v621 = vpop.f32.mrb[0].mxu0
        %v622 = vpop.f32.mrb[0].mxu0
        %v623 = vadd.f32 %v530, %v622
        %v624 = vpop.f32.mrb[0].mxu0
        %625 = vmatprep.mubr.bf16.mxu0 0
        %626 = vmatmul.mubr.bf16.gmra.mrb[0].mxu0 %v572
        %v627 = vpop.f32.mrb[0].mxu0
        %v628 = vadd.f32 %v530, %v627
        %v629 = vpop.f32.mrb[0].mxu0
        %v630 = vpop.f32.mrb[0].mxu0
        %v631 = vadd.f32 %v530, %v630
        %v632 = vpop.f32.mrb[0].mxu0
        %633 = vmatprep.mubr.bf16.mxu0 0
        %634 = vmatmul.mubr.bf16.gmra.mrb[0].mxu0 %v575
        %v635 = vpop.f32.mrb[0].mxu0
        %v636 = vadd.f32 %v530, %v635
        %v637 = vpop.f32.mrb[0].mxu0
        %v638 = vpop.f32.mrb[0].mxu0
        %v639 = vadd.f32 %v530, %v638
        %v640 = vpop.f32.mrb[0].mxu0
        %641 = vdwg.mxu0
        %v642 = vpack.c.bf16 %v615, %v612
        %v643 = vpack.c.bf16 %v623, %v620
        %v644 = vpack.c.bf16 %v631, %v628
        %v645 = vpack.c.bf16 %v639, %v636
        %v646 = vmul.bf16 %v642, 1056980736
        %v647 = vmul.bf16 %v643, 1056980736
        %v648 = vmul.bf16 %v644, 1056980736
        %v649 = vmul.bf16 %v645, 1056980736
        %v650 = vtanh.bf16.pop %v646
        %v651 = vtanh.bf16.pop %v647
        %v652 = vtanh.bf16.pop %v648
        %v653 = vtanh.bf16.pop %v649
        %v654 = vadd.bf16 %v650, 1065369472
        %v655 = vadd.bf16 %v651, 1065369472
        %v656 = vadd.bf16 %v652, 1065369472
        %v657 = vadd.bf16 %v653, 1065369472
        %v658 = vmul.bf16 %v654, 1056980736
        %v659 = vmul.bf16 %v655, 1056980736
        %v660 = vmul.bf16 %v656, 1056980736
        %v661 = vmul.bf16 %v657, 1056980736
        %v662 = vmul.bf16 %v642, %v658
        %v663 = vmul.bf16 %v643, %v659
        %v664 = vmul.bf16 %v644, %v660
        %v665 = vmul.bf16 %v645, %v661
        %v666 = vld [vmem:[%s433] sm:$0xff]
        %v667 = vld [vmem:[%s433 + $0x8] sm:$0xff]
        %v668 = vld [vmem:[%s433 + $0x10] sm:$0xff]
        %v669 = vld [vmem:[%s433 + $0x18] sm:$0xf]
        %v670 = vld [vmem:[%s433 + $0x1c] sm:$0xff]
        %v671 = vld [vmem:[%s433 + $0x24] sm:$0xff]
        %v672 = vld [vmem:[%s433 + $0x2c] sm:$0xff]
        %v673 = vld [vmem:[%s433 + $0x34] sm:$0xf]
        %v674 = vld [vmem:[%s433 + $0x38] sm:$0xff]
        %v675 = vld [vmem:[%s433 + $0x40] sm:$0xff]
        %v676 = vld [vmem:[%s433 + $0x48] sm:$0xff]
        %v677 = vld [vmem:[%s433 + $0x50] sm:$0xf]
        %v678 = vld [vmem:[%s433 + $0x54] sm:$0xff]
        %v679 = vld [vmem:[%s433 + $0x5c] sm:$0xff]
        %v680 = vld [vmem:[%s433 + $0x64] sm:$0xff]
        %v681 = vld [vmem:[%s433 + $0x6c] sm:$0xf]
        %v682 = vld [vmem:[%s433 + $0x70] sm:$0xff]
        %v683 = vld [vmem:[%s433 + $0x78] sm:$0xff]
        %v684 = vld [vmem:[%s433 + $0x80] sm:$0xff]
        %v685 = vld [vmem:[%s433 + $0x88] sm:$0xf]
        %v686 = vld [vmem:[%s433 + $0x8c] sm:$0xff]
        %v687 = vld [vmem:[%s433 + $0x94] sm:$0xff]
        %v688 = vld [vmem:[%s433 + $0x9c] sm:$0xff]
        %v689 = vld [vmem:[%s433 + $0xa4] sm:$0xf]
        %v690 = vld [vmem:[%s433 + $0xa8] sm:$0xff]
        %v691 = vld [vmem:[%s433 + $0xb0] sm:$0xff]
        %v692 = vld [vmem:[%s433 + $0xb8] sm:$0xff]
        %v693 = vld [vmem:[%s433 + $0xc0] sm:$0xf]
        %v694 = vld [vmem:[%s433 + $0xc4] sm:$0xff]
        %v695 = vld [vmem:[%s433 + $0xcc] sm:$0xff]
        %v696 = vld [vmem:[%s433 + $0xd4] sm:$0xff]
        %v697 = vld [vmem:[%s433 + $0xdc] sm:$0xf]
        %v698 = vld [vmem:[%s433 + $0xe0] sm:$0xff]
        %v699 = vld [vmem:[%s433 + $0xe8] sm:$0xff]
        %v700 = vld [vmem:[%s433 + $0xf0] sm:$0xff]
        %v701 = vld [vmem:[%s433 + $0xf8] sm:$0xf]
        %v702 = vld [vmem:[%s433 + $0xfc] sm:$0xff]
        %v703 = vld [vmem:[%s433 + $0x104] sm:$0xff]
        %v704 = vld [vmem:[%s433 + $0x10c] sm:$0xff]
        %v705 = vld [vmem:[%s433 + $0x114] sm:$0xf]
        %v706 = vld [vmem:[%s433 + $0x118] sm:$0xff]
        %v707 = vld [vmem:[%s433 + $0x120] sm:$0xff]
        %v708 = vld [vmem:[%s433 + $0x128] sm:$0xff]
        %v709 = vld [vmem:[%s433 + $0x130] sm:$0xf]
        %v710 = vld [vmem:[%s433 + $0x134] sm:$0xff]
        %v711 = vld [vmem:[%s433 + $0x13c] sm:$0xff]
        %v712 = vld [vmem:[%s433 + $0x144] sm:$0xff]
        %v713 = vld [vmem:[%s433 + $0x14c] sm:$0xf]
        %v714 = vld [vmem:[%s433 + $0x150] sm:$0xff]
        %v715 = vld [vmem:[%s433 + $0x158] sm:$0xff]
        %v716 = vld [vmem:[%s433 + $0x160] sm:$0xff]
        %v717 = vld [vmem:[%s433 + $0x168] sm:$0xf]
        %v718 = vld [vmem:[%s433 + $0x16c] sm:$0xff]
        %v719 = vld [vmem:[%s433 + $0x174] sm:$0xff]
        %v720 = vld [vmem:[%s433 + $0x17c] sm:$0xff]
        %v721 = vld [vmem:[%s433 + $0x184] sm:$0xf]
        %v722 = vld [vmem:[%s433 + $0x188] sm:$0xff]
        %v723 = vld [vmem:[%s433 + $0x190] sm:$0xff]
        %v724 = vld [vmem:[%s433 + $0x198] sm:$0xff]
        %v725 = vld [vmem:[%s433 + $0x1a0] sm:$0xf]
        %v726 = vld [vmem:[%s433 + $0x1a4] sm:$0xff]
        %v727 = vld [vmem:[%s433 + $0x1ac] sm:$0xff]
        %v728 = vld [vmem:[%s433 + $0x1b4] sm:$0xff]
        %v729 = vld [vmem:[%s433 + $0x1bc] sm:$0xf]
        %v730 = vld [vmem:[%s494] sm:$0xff]
        %v732 = vlaneseq
        %v733 = vshrl.u32 %v732, 7
        %v734 = vsub.s32 0, %v733
        %v735 = vrot.slane %v730, %v734
        %v736 = vlaneseq
        %v737 = vshrl.u32 %v736, 7
        %v738 = vsub.s32 1, %v737
        %v739 = vrot.slane %v730, %v738
        %v740 = vlaneseq
        %v741 = vshrl.u32 %v740, 7
        %v742 = vsub.s32 2, %v741
        %v743 = vrot.slane %v730, %v742
        %v744 = vlaneseq
        %v745 = vshrl.u32 %v744, 7
        %v746 = vsub.s32 3, %v745
        %v747 = vrot.slane %v730, %v746
        %v748 = vlaneseq
        %v749 = vshrl.u32 %v748, 7
        %v750 = vsub.s32 4, %v749
        %v751 = vrot.slane %v730, %v750
        %v752 = vlaneseq
        %v753 = vshrl.u32 %v752, 7
        %v754 = vsub.s32 5, %v753
        %v755 = vrot.slane %v730, %v754
        %v756 = vlaneseq
        %v757 = vshrl.u32 %v756, 7
        %v758 = vsub.s32 6, %v757
        %v759 = vrot.slane %v730, %v758
        %v831 = vunpack.c.l.b16 %v666
        %v832 = vunpack.c.h.b16 %v666
        %v833 = vunpack.c.l.b16 %v667
        %v834 = vunpack.c.h.b16 %v667
        %v835 = vunpack.c.l.b16 %v668
        %v836 = vunpack.c.h.b16 %v668
        %v837 = vunpack.c.l.b16 %v669
        %v838 = vunpack.c.l.b16 %v670
        %v839 = vunpack.c.h.b16 %v670
        %v840 = vunpack.c.l.b16 %v671
        %v841 = vunpack.c.h.b16 %v671
        %v842 = vunpack.c.l.b16 %v672
        %v843 = vunpack.c.h.b16 %v672
        %v844 = vunpack.c.l.b16 %v673
        %v845 = vunpack.c.l.b16 %v674
        %v846 = vunpack.c.h.b16 %v674
        %v847 = vunpack.c.l.b16 %v675
        %v848 = vunpack.c.h.b16 %v675
        %v849 = vunpack.c.l.b16 %v676
        %v850 = vunpack.c.h.b16 %v676
        %v851 = vunpack.c.l.b16 %v677
        %v852 = vunpack.c.l.b16 %v678
        %v853 = vunpack.c.h.b16 %v678
        %v854 = vunpack.c.l.b16 %v679
        %v855 = vunpack.c.h.b16 %v679
        %v856 = vunpack.c.l.b16 %v680
        %v857 = vunpack.c.h.b16 %v680
        %v858 = vunpack.c.l.b16 %v681
        %v859 = vunpack.c.l.b16 %v682
        %v860 = vunpack.c.h.b16 %v682
        %v861 = vunpack.c.l.b16 %v683
        %v862 = vunpack.c.h.b16 %v683
        %v863 = vunpack.c.l.b16 %v684
        %v864 = vunpack.c.h.b16 %v684
        %v865 = vunpack.c.l.b16 %v685
        %v866 = vunpack.c.l.b16 %v686
        %v867 = vunpack.c.h.b16 %v686
        %v868 = vunpack.c.l.b16 %v687
        %v869 = vunpack.c.h.b16 %v687
        %v870 = vunpack.c.l.b16 %v688
        %v871 = vunpack.c.h.b16 %v688
        %v872 = vunpack.c.l.b16 %v689
        %v873 = vunpack.c.l.b16 %v690
        %v874 = vunpack.c.h.b16 %v690
        %v875 = vunpack.c.l.b16 %v691
        %v876 = vunpack.c.h.b16 %v691
        %v877 = vunpack.c.l.b16 %v692
        %v878 = vunpack.c.h.b16 %v692
        %v879 = vunpack.c.l.b16 %v693
        %v880 = vunpack.c.l.b16 %v694
        %v881 = vunpack.c.h.b16 %v694
        %v882 = vunpack.c.l.b16 %v695
        %v883 = vunpack.c.h.b16 %v695
        %v884 = vunpack.c.l.b16 %v696
        %v885 = vunpack.c.h.b16 %v696
        %v886 = vunpack.c.l.b16 %v697
        %v887 = vunpack.c.l.b16 %v698
        %v888 = vunpack.c.h.b16 %v698
        %v889 = vunpack.c.l.b16 %v699
        %v890 = vunpack.c.h.b16 %v699
        %v891 = vunpack.c.l.b16 %v700
        %v892 = vunpack.c.h.b16 %v700
        %v893 = vunpack.c.l.b16 %v701
        %v894 = vunpack.c.l.b16 %v702
        %v895 = vunpack.c.h.b16 %v702
        %v896 = vunpack.c.l.b16 %v703
        %v897 = vunpack.c.h.b16 %v703
        %v898 = vunpack.c.l.b16 %v704
        %v899 = vunpack.c.h.b16 %v704
        %v900 = vunpack.c.l.b16 %v705
        %v901 = vunpack.c.l.b16 %v706
        %v902 = vunpack.c.h.b16 %v706
        %v903 = vunpack.c.l.b16 %v707
        %v904 = vunpack.c.h.b16 %v707
        %v905 = vunpack.c.l.b16 %v708
        %v906 = vunpack.c.h.b16 %v708
        %v907 = vunpack.c.l.b16 %v709
        %v908 = vunpack.c.l.b16 %v710
        %v909 = vunpack.c.h.b16 %v710
        %v910 = vunpack.c.l.b16 %v711
        %v911 = vunpack.c.h.b16 %v711
        %v912 = vunpack.c.l.b16 %v712
        %v913 = vunpack.c.h.b16 %v712
        %v914 = vunpack.c.l.b16 %v713
        %v915 = vunpack.c.l.b16 %v714
        %v916 = vunpack.c.h.b16 %v714
        %v917 = vunpack.c.l.b16 %v715
        %v918 = vunpack.c.h.b16 %v715
        %v919 = vunpack.c.l.b16 %v716
        %v920 = vunpack.c.h.b16 %v716
        %v921 = vunpack.c.l.b16 %v717
        %v922 = vunpack.c.l.b16 %v718
        %v923 = vunpack.c.h.b16 %v718
        %v924 = vunpack.c.l.b16 %v719
        %v925 = vunpack.c.h.b16 %v719
        %v926 = vunpack.c.l.b16 %v720
        %v927 = vunpack.c.h.b16 %v720
        %v928 = vunpack.c.l.b16 %v721
        %v929 = vunpack.c.l.b16 %v722
        %v930 = vunpack.c.h.b16 %v722
        %v931 = vunpack.c.l.b16 %v723
        %v932 = vunpack.c.h.b16 %v723
        %v933 = vunpack.c.l.b16 %v724
        %v934 = vunpack.c.h.b16 %v724
        %v935 = vunpack.c.l.b16 %v725
        %v936 = vunpack.c.l.b16 %v726
        %v937 = vunpack.c.h.b16 %v726
        %v938 = vunpack.c.l.b16 %v727
        %v939 = vunpack.c.h.b16 %v727
        %v940 = vunpack.c.l.b16 %v728
        %v941 = vunpack.c.h.b16 %v728
        %v942 = vunpack.c.l.b16 %v729
        %v943 = vpack.c.b16 %v838, %v831
        %v944 = vpack.c.b16 %v839, %v832
        %v945 = vpack.c.b16 %v840, %v833
        %v946 = vpack.c.b16 %v841, %v834
        %v947 = vpack.c.b16 %v842, %v835
        %v948 = vpack.c.b16 %v843, %v836
        %v949 = vpack.c.b16 %v844, %v837
        %v950 = vpack.c.b16 %v852, %v845
        %v951 = vpack.c.b16 %v853, %v846
        %v952 = vpack.c.b16 %v854, %v847
        %v953 = vpack.c.b16 %v855, %v848
        %v954 = vpack.c.b16 %v856, %v849
        %v955 = vpack.c.b16 %v857, %v850
        %v956 = vpack.c.b16 %v858, %v851
        %v957 = vpack.c.b16 %v866, %v859
        %v958 = vpack.c.b16 %v867, %v860
        %v959 = vpack.c.b16 %v868, %v861
        %v960 = vpack.c.b16 %v869, %v862
        %v961 = vpack.c.b16 %v870, %v863
        %v962 = vpack.c.b16 %v871, %v864
        %v963 = vpack.c.b16 %v872, %v865
        %v964 = vpack.c.b16 %v880, %v873
        %v965 = vpack.c.b16 %v881, %v874
        %v966 = vpack.c.b16 %v882, %v875
        %v967 = vpack.c.b16 %v883, %v876
        %v968 = vpack.c.b16 %v884, %v877
        %v969 = vpack.c.b16 %v885, %v878
        %v970 = vpack.c.b16 %v886, %v879
        %v971 = vpack.c.b16 %v894, %v887
        %v972 = vpack.c.b16 %v895, %v888
        %v973 = vpack.c.b16 %v896, %v889
        %v974 = vpack.c.b16 %v897, %v890
        %v975 = vpack.c.b16 %v898, %v891
        %v976 = vpack.c.b16 %v899, %v892
        %v977 = vpack.c.b16 %v900, %v893
        %v978 = vpack.c.b16 %v908, %v901
        %v979 = vpack.c.b16 %v909, %v902
        %v980 = vpack.c.b16 %v910, %v903
        %v981 = vpack.c.b16 %v911, %v904
        %v982 = vpack.c.b16 %v912, %v905
        %v983 = vpack.c.b16 %v913, %v906
        %v984 = vpack.c.b16 %v914, %v907
        %v985 = vpack.c.b16 %v922, %v915
        %v986 = vpack.c.b16 %v923, %v916
        %v987 = vpack.c.b16 %v924, %v917
        %v988 = vpack.c.b16 %v925, %v918
        %v989 = vpack.c.b16 %v926, %v919
        %v990 = vpack.c.b16 %v927, %v920
        %v991 = vpack.c.b16 %v928, %v921
        %v992 = vpack.c.b16 %v936, %v929
        %v993 = vpack.c.b16 %v937, %v930
        %v994 = vpack.c.b16 %v938, %v931
        %v995 = vpack.c.b16 %v939, %v932
        %v996 = vpack.c.b16 %v940, %v933
        %v997 = vpack.c.b16 %v941, %v934
        %v998 = vpack.c.b16 %v942, %v935
        %1055 = vmatprep.subr.bf16.mxu0 %v944
        %1056 = vmatpush1.bf16.msra.mxu0 %v943
        %1057 = vmatprep.subr.bf16.mxu0 %v951
        %1058 = vmatpush1.bf16.msra.mxu0 %v950
        %1059 = vmatprep.subr.bf16.mxu0 %v958
        %1060 = vmatpush1.bf16.msra.mxu0 %v957
        %1061 = vmatprep.subr.bf16.mxu0 %v965
        %1062 = vmatpush1.bf16.msra.mxu0 %v964
        %1063 = vmatprep.subr.bf16.mxu0 %v972
        %1064 = vmatpush1.bf16.msra.mxu0 %v971
        %1065 = vmatprep.subr.bf16.mxu0 %v979
        %1066 = vmatpush1.bf16.msra.mxu0 %v978
        %1067 = vmatprep.subr.bf16.mxu0 %v986
        %1068 = vmatpush1.bf16.msra.mxu0 %v985
        %1069 = vmatprep.subr.bf16.mxu0 %v993
        %1070 = vmatpush1.bf16.msra.mxu0 %v992
        %1071 = vmatprep.subr.bf16.mxu0 0
        %1072 = vmatpush1.bf16.msra.mxu0 0
        %1073 = vmatprep.subr.bf16.mxu0 0
        %1074 = vmatpush1.bf16.msra.mxu0 0
        %1075 = vmatprep.subr.bf16.mxu0 0
        %1076 = vmatpush1.bf16.msra.mxu0 0
        %1077 = vmatprep.subr.bf16.mxu0 0
        %1078 = vmatpush1.bf16.msra.mxu0 0
        %1079 = vmatprep.subr.bf16.mxu0 0
        %1080 = vmatpush1.bf16.msra.mxu0 0
        %1081 = vmatprep.subr.bf16.mxu0 0
        %1082 = vmatpush1.bf16.msra.mxu0 0
        %1083 = vmatprep.subr.bf16.mxu0 0
        %1084 = vmatpush1.bf16.msra.mxu0 0
        %1085 = vmatprep.subr.bf16.mxu0 0
        %1086 = vmatpush1.bf16.msra.mxu0 0
        %1087 = vmatprep.mubr.bf16.mxu0 0
        %1088 = vmatmul.mubr.bf16.gmra.mrb[0].mxu0 %v662
        %v1089 = vpop.f32.mrb[0].mxu0
        %v1090 = vadd.f32 %v735, %v1089
        %v1091 = vpop.f32.mrb[0].mxu0
        %v1092 = vadd.f32 %v739, %v1091
        %v1093 = vpop.f32.mrb[0].mxu0
        %v1094 = vadd.f32 %v735, %v1093
        %v1095 = vpop.f32.mrb[0].mxu0
        %v1096 = vadd.f32 %v739, %v1095
        %1097 = vmatprep.mubr.bf16.mxu0 0
        %1098 = vmatmul.mubr.bf16.gmra.mrb[0].mxu0 %v663
        %v1099 = vpop.f32.mrb[0].mxu0
        %v1100 = vadd.f32 %v735, %v1099
        %v1101 = vpop.f32.mrb[0].mxu0
        %v1102 = vadd.f32 %v739, %v1101
        %v1103 = vpop.f32.mrb[0].mxu0
        %v1104 = vadd.f32 %v735, %v1103
        %v1105 = vpop.f32.mrb[0].mxu0
        %v1106 = vadd.f32 %v739, %v1105
        %1107 = vmatprep.mubr.bf16.mxu0 0
        %1108 = vmatmul.mubr.bf16.gmra.mrb[0].mxu0 %v664
        %v1109 = vpop.f32.mrb[0].mxu0
        %v1110 = vadd.f32 %v735, %v1109
        %v1111 = vpop.f32.mrb[0].mxu0
        %v1112 = vadd.f32 %v739, %v1111
        %v1113 = vpop.f32.mrb[0].mxu0
        %v1114 = vadd.f32 %v735, %v1113
        %v1115 = vpop.f32.mrb[0].mxu0
        %v1116 = vadd.f32 %v739, %v1115
        %1117 = vmatprep.mubr.bf16.mxu0 0
        %1118 = vmatmul.mubr.bf16.gmra.mrb[0].mxu0 %v665
        %v1119 = vpop.f32.mrb[0].mxu0
        %v1120 = vadd.f32 %v735, %v1119
        %v1121 = vpop.f32.mrb[0].mxu0
        %v1122 = vadd.f32 %v739, %v1121
        %v1123 = vpop.f32.mrb[0].mxu0
        %v1124 = vadd.f32 %v735, %v1123
        %v1125 = vpop.f32.mrb[0].mxu0
        %v1126 = vadd.f32 %v739, %v1125
        %1127 = vdwg.mxu0
        %1128 = vmatprep.subr.bf16.mxu0 %v946
        %1129 = vmatpush1.bf16.msra.mxu0 %v945
        %1130 = vmatprep.subr.bf16.mxu0 %v953
        %1131 = vmatpush1.bf16.msra.mxu0 %v952
        %1132 = vmatprep.subr.bf16.mxu0 %v960
        %1133 = vmatpush1.bf16.msra.mxu0 %v959
        %1134 = vmatprep.subr.bf16.mxu0 %v967
        %1135 = vmatpush1.bf16.msra.mxu0 %v966
        %1136 = vmatprep.subr.bf16.mxu0 %v974
        %1137 = vmatpush1.bf16.msra.mxu0 %v973
        %1138 = vmatprep.subr.bf16.mxu0 %v981
        %1139 = vmatpush1.bf16.msra.mxu0 %v980
        %1140 = vmatprep.subr.bf16.mxu0 %v988
        %1141 = vmatpush1.bf16.msra.mxu0 %v987
        %1142 = vmatprep.subr.bf16.mxu0 %v995
        %1143 = vmatpush1.bf16.msra.mxu0 %v994
        %1144 = vmatprep.subr.bf16.mxu0 0
        %1145 = vmatpush1.bf16.msra.mxu0 0
        %1146 = vmatprep.subr.bf16.mxu0 0
        %1147 = vmatpush1.bf16.msra.mxu0 0
        %1148 = vmatprep.subr.bf16.mxu0 0
        %1149 = vmatpush1.bf16.msra.mxu0 0
        %1150 = vmatprep.subr.bf16.mxu0 0
        %1151 = vmatpush1.bf16.msra.mxu0 0
        %1152 = vmatprep.subr.bf16.mxu0 0
        %1153 = vmatpush1.bf16.msra.mxu0 0
        %1154 = vmatprep.subr.bf16.mxu0 0
        %1155 = vmatpush1.bf16.msra.mxu0 0
        %1156 = vmatprep.subr.bf16.mxu0 0
        %1157 = vmatpush1.bf16.msra.mxu0 0
        %1158 = vmatprep.subr.bf16.mxu0 0
        %1159 = vmatpush1.bf16.msra.mxu0 0
        %1160 = vmatprep.mubr.bf16.mxu0 0
        %1161 = vmatmul.mubr.bf16.gmra.mrb[0].mxu0 %v662
        %v1162 = vpop.f32.mrb[0].mxu0
        %v1163 = vadd.f32 %v743, %v1162
        %v1164 = vpop.f32.mrb[0].mxu0
        %v1165 = vadd.f32 %v747, %v1164
        %v1166 = vpop.f32.mrb[0].mxu0
        %v1167 = vadd.f32 %v743, %v1166
        %v1168 = vpop.f32.mrb[0].mxu0
        %v1169 = vadd.f32 %v747, %v1168
        %1170 = vmatprep.mubr.bf16.mxu0 0
        %1171 = vmatmul.mubr.bf16.gmra.mrb[0].mxu0 %v663
        %v1172 = vpop.f32.mrb[0].mxu0
        %v1173 = vadd.f32 %v743, %v1172
        %v1174 = vpop.f32.mrb[0].mxu0
        %v1175 = vadd.f32 %v747, %v1174
        %v1176 = vpop.f32.mrb[0].mxu0
        %v1177 = vadd.f32 %v743, %v1176
        %v1178 = vpop.f32.mrb[0].mxu0
        %v1179 = vadd.f32 %v747, %v1178
        %1180 = vmatprep.mubr.bf16.mxu0 0
        %1181 = vmatmul.mubr.bf16.gmra.mrb[0].mxu0 %v664
        %v1182 = vpop.f32.mrb[0].mxu0
        %v1183 = vadd.f32 %v743, %v1182
        %v1184 = vpop.f32.mrb[0].mxu0
        %v1185 = vadd.f32 %v747, %v1184
        %v1186 = vpop.f32.mrb[0].mxu0
        %v1187 = vadd.f32 %v743, %v1186
        %v1188 = vpop.f32.mrb[0].mxu0
        %v1189 = vadd.f32 %v747, %v1188
        %1190 = vmatprep.mubr.bf16.mxu0 0
        %1191 = vmatmul.mubr.bf16.gmra.mrb[0].mxu0 %v665
        %v1192 = vpop.f32.mrb[0].mxu0
        %v1193 = vadd.f32 %v743, %v1192
        %v1194 = vpop.f32.mrb[0].mxu0
        %v1195 = vadd.f32 %v747, %v1194
        %v1196 = vpop.f32.mrb[0].mxu0
        %v1197 = vadd.f32 %v743, %v1196
        %v1198 = vpop.f32.mrb[0].mxu0
        %v1199 = vadd.f32 %v747, %v1198
        %1200 = vdwg.mxu0
        %1201 = vmatprep.subr.bf16.mxu0 %v948
        %1202 = vmatpush1.bf16.msra.mxu0 %v947
        %1203 = vmatprep.subr.bf16.mxu0 %v955
        %1204 = vmatpush1.bf16.msra.mxu0 %v954
        %1205 = vmatprep.subr.bf16.mxu0 %v962
        %1206 = vmatpush1.bf16.msra.mxu0 %v961
        %1207 = vmatprep.subr.bf16.mxu0 %v969
        %1208 = vmatpush1.bf16.msra.mxu0 %v968
        %1209 = vmatprep.subr.bf16.mxu0 %v976
        %1210 = vmatpush1.bf16.msra.mxu0 %v975
        %1211 = vmatprep.subr.bf16.mxu0 %v983
        %1212 = vmatpush1.bf16.msra.mxu0 %v982
        %1213 = vmatprep.subr.bf16.mxu0 %v990
        %1214 = vmatpush1.bf16.msra.mxu0 %v989
        %1215 = vmatprep.subr.bf16.mxu0 %v997
        %1216 = vmatpush1.bf16.msra.mxu0 %v996
        %1217 = vmatprep.subr.bf16.mxu0 0
        %1218 = vmatpush1.bf16.msra.mxu0 0
        %1219 = vmatprep.subr.bf16.mxu0 0
        %1220 = vmatpush1.bf16.msra.mxu0 0
        %1221 = vmatprep.subr.bf16.mxu0 0
        %1222 = vmatpush1.bf16.msra.mxu0 0
        %1223 = vmatprep.subr.bf16.mxu0 0
        %1224 = vmatpush1.bf16.msra.mxu0 0
        %1225 = vmatprep.subr.bf16.mxu0 0
        %1226 = vmatpush1.bf16.msra.mxu0 0
        %1227 = vmatprep.subr.bf16.mxu0 0
        %1228 = vmatpush1.bf16.msra.mxu0 0
        %1229 = vmatprep.subr.bf16.mxu0 0
        %1230 = vmatpush1.bf16.msra.mxu0 0
        %1231 = vmatprep.subr.bf16.mxu0 0
        %1232 = vmatpush1.bf16.msra.mxu0 0
        %1233 = vmatprep.mubr.bf16.mxu0 0
        %1234 = vmatmul.mubr.bf16.gmra.mrb[0].mxu0 %v662
        %v1235 = vpop.f32.mrb[0].mxu0
        %v1236 = vadd.f32 %v751, %v1235
        %v1237 = vpop.f32.mrb[0].mxu0
        %v1238 = vadd.f32 %v755, %v1237
        %v1239 = vpop.f32.mrb[0].mxu0
        %v1240 = vadd.f32 %v751, %v1239
        %v1241 = vpop.f32.mrb[0].mxu0
        %v1242 = vadd.f32 %v755, %v1241
        %1243 = vmatprep.mubr.bf16.mxu0 0
        %1244 = vmatmul.mubr.bf16.gmra.mrb[0].mxu0 %v663
        %v1245 = vpop.f32.mrb[0].mxu0
        %v1246 = vadd.f32 %v751, %v1245
        %v1247 = vpop.f32.mrb[0].mxu0
        %v1248 = vadd.f32 %v755, %v1247
        %v1249 = vpop.f32.mrb[0].mxu0
        %v1250 = vadd.f32 %v751, %v1249
        %v1251 = vpop.f32.mrb[0].mxu0
        %v1252 = vadd.f32 %v755, %v1251
        %1253 = vmatprep.mubr.bf16.mxu0 0
        %1254 = vmatmul.mubr.bf16.gmra.mrb[0].mxu0 %v664
        %v1255 = vpop.f32.mrb[0].mxu0
        %v1256 = vadd.f32 %v751, %v1255
        %v1257 = vpop.f32.mrb[0].mxu0
        %v1258 = vadd.f32 %v755, %v1257
        %v1259 = vpop.f32.mrb[0].mxu0
        %v1260 = vadd.f32 %v751, %v1259
        %v1261 = vpop.f32.mrb[0].mxu0
        %v1262 = vadd.f32 %v755, %v1261
        %1263 = vmatprep.mubr.bf16.mxu0 0
        %1264 = vmatmul.mubr.bf16.gmra.mrb[0].mxu0 %v665
        %v1265 = vpop.f32.mrb[0].mxu0
        %v1266 = vadd.f32 %v751, %v1265
        %v1267 = vpop.f32.mrb[0].mxu0
        %v1268 = vadd.f32 %v755, %v1267
        %v1269 = vpop.f32.mrb[0].mxu0
        %v1270 = vadd.f32 %v751, %v1269
        %v1271 = vpop.f32.mrb[0].mxu0
        %v1272 = vadd.f32 %v755, %v1271
        %1273 = vdwg.mxu0
        %1274 = vmatprep.subr.bf16.mxu0 0
        %1275 = vmatpush1.bf16.msra.mxu0 %v949
        %1276 = vmatprep.subr.bf16.mxu0 0
        %1277 = vmatpush1.bf16.msra.mxu0 %v956
        %1278 = vmatprep.subr.bf16.mxu0 0
        %1279 = vmatpush1.bf16.msra.mxu0 %v963
        %1280 = vmatprep.subr.bf16.mxu0 0
        %1281 = vmatpush1.bf16.msra.mxu0 %v970
        %1282 = vmatprep.subr.bf16.mxu0 0
        %1283 = vmatpush1.bf16.msra.mxu0 %v977
        %1284 = vmatprep.subr.bf16.mxu0 0
        %1285 = vmatpush1.bf16.msra.mxu0 %v984
        %1286 = vmatprep.subr.bf16.mxu0 0
        %1287 = vmatpush1.bf16.msra.mxu0 %v991
        %1288 = vmatprep.subr.bf16.mxu0 0
        %1289 = vmatpush1.bf16.msra.mxu0 %v998
        %1290 = vmatprep.subr.bf16.mxu0 0
        %1291 = vmatpush1.bf16.msra.mxu0 0
        %1292 = vmatprep.subr.bf16.mxu0 0
        %1293 = vmatpush1.bf16.msra.mxu0 0
        %1294 = vmatprep.subr.bf16.mxu0 0
        %1295 = vmatpush1.bf16.msra.mxu0 0
        %1296 = vmatprep.subr.bf16.mxu0 0
        %1297 = vmatpush1.bf16.msra.mxu0 0
        %1298 = vmatprep.subr.bf16.mxu0 0
        %1299 = vmatpush1.bf16.msra.mxu0 0
        %1300 = vmatprep.subr.bf16.mxu0 0
        %1301 = vmatpush1.bf16.msra.mxu0 0
        %1302 = vmatprep.subr.bf16.mxu0 0
        %1303 = vmatpush1.bf16.msra.mxu0 0
        %1304 = vmatprep.subr.bf16.mxu0 0
        %1305 = vmatpush1.bf16.msra.mxu0 0
        %1306 = vmatprep.mubr.bf16.mxu0 0
        %1307 = vmatmul.mubr.bf16.gmra.mrb[0].mxu0 %v662
        %v1308 = vpop.f32.mrb[0].mxu0
        %v1309 = vadd.f32 %v759, %v1308
        %v1310 = vpop.f32.mrb[0].mxu0
        %v1311 = vpop.f32.mrb[0].mxu0
        %v1312 = vadd.f32 %v759, %v1311
        %v1313 = vpop.f32.mrb[0].mxu0
        %1314 = vmatprep.mubr.bf16.mxu0 0
        %1315 = vmatmul.mubr.bf16.gmra.mrb[0].mxu0 %v663
        %v1316 = vpop.f32.mrb[0].mxu0
        %v1317 = vadd.f32 %v759, %v1316
        %v1318 = vpop.f32.mrb[0].mxu0
        %v1319 = vpop.f32.mrb[0].mxu0
        %v1320 = vadd.f32 %v759, %v1319
        %v1321 = vpop.f32.mrb[0].mxu0
        %1322 = vmatprep.mubr.bf16.mxu0 0
        %1323 = vmatmul.mubr.bf16.gmra.mrb[0].mxu0 %v664
        %v1324 = vpop.f32.mrb[0].mxu0
        %v1325 = vadd.f32 %v759, %v1324
        %v1326 = vpop.f32.mrb[0].mxu0
        %v1327 = vpop.f32.mrb[0].mxu0
        %v1328 = vadd.f32 %v759, %v1327
        %v1329 = vpop.f32.mrb[0].mxu0
        %1330 = vmatprep.mubr.bf16.mxu0 0
        %1331 = vmatmul.mubr.bf16.gmra.mrb[0].mxu0 %v665
        %v1332 = vpop.f32.mrb[0].mxu0
        %v1333 = vadd.f32 %v759, %v1332
        %v1334 = vpop.f32.mrb[0].mxu0
        %v1335 = vpop.f32.mrb[0].mxu0
        %v1336 = vadd.f32 %v759, %v1335
        %v1337 = vpop.f32.mrb[0].mxu0
        %1338 = vdwg.mxu0
        %v1339 = vpack.c.bf16 %v1094, %v1090
        %v1340 = vpack.c.bf16 %v1096, %v1092
        %v1341 = vpack.c.bf16 %v1167, %v1163
        %v1342 = vpack.c.bf16 %v1169, %v1165
        %v1343 = vpack.c.bf16 %v1240, %v1236
        %v1344 = vpack.c.bf16 %v1242, %v1238
        %v1345 = vpack.c.bf16 %v1312, %v1309
        %v1346 = vpack.c.bf16 %v1104, %v1100
        %v1347 = vpack.c.bf16 %v1106, %v1102
        %v1348 = vpack.c.bf16 %v1177, %v1173
        %v1349 = vpack.c.bf16 %v1179, %v1175
        %v1350 = vpack.c.bf16 %v1250, %v1246
        %v1351 = vpack.c.bf16 %v1252, %v1248
        %v1352 = vpack.c.bf16 %v1320, %v1317
        %v1353 = vpack.c.bf16 %v1114, %v1110
        %v1354 = vpack.c.bf16 %v1116, %v1112
        %v1355 = vpack.c.bf16 %v1187, %v1183
        %v1356 = vpack.c.bf16 %v1189, %v1185
        %v1357 = vpack.c.bf16 %v1260, %v1256
        %v1358 = vpack.c.bf16 %v1262, %v1258
        %v1359 = vpack.c.bf16 %v1328, %v1325
        %v1360 = vpack.c.bf16 %v1124, %v1120
        %v1361 = vpack.c.bf16 %v1126, %v1122
        %v1362 = vpack.c.bf16 %v1197, %v1193
        %v1363 = vpack.c.bf16 %v1199, %v1195
        %v1364 = vpack.c.bf16 %v1270, %v1266
        %v1365 = vpack.c.bf16 %v1272, %v1268
        %v1366 = vpack.c.bf16 %v1336, %v1333
        %v1367 = vmul.bf16 %v1339, 1056980736
        %v1368 = vmul.bf16 %v1340, 1056980736
        %v1369 = vmul.bf16 %v1341, 1056980736
        %v1370 = vmul.bf16 %v1342, 1056980736
        %v1371 = vmul.bf16 %v1343, 1056980736
        %v1372 = vmul.bf16 %v1344, 1056980736
        %v1373 = vmul.bf16 %v1345, 1056980736
        %v1374 = vmul.bf16 %v1346, 1056980736
        %v1375 = vmul.bf16 %v1347, 1056980736
        %v1376 = vmul.bf16 %v1348, 1056980736
        %v1377 = vmul.bf16 %v1349, 1056980736
        %v1378 = vmul.bf16 %v1350, 1056980736
        %v1379 = vmul.bf16 %v1351, 1056980736
        %v1380 = vmul.bf16 %v1352, 1056980736
        %v1381 = vmul.bf16 %v1353, 1056980736
        %v1382 = vmul.bf16 %v1354, 1056980736
        %v1383 = vmul.bf16 %v1355, 1056980736
        %v1384 = vmul.bf16 %v1356, 1056980736
        %v1385 = vmul.bf16 %v1357, 1056980736
        %v1386 = vmul.bf16 %v1358, 1056980736
        %v1387 = vmul.bf16 %v1359, 1056980736
        %v1388 = vmul.bf16 %v1360, 1056980736
        %v1389 = vmul.bf16 %v1361, 1056980736
        %v1390 = vmul.bf16 %v1362, 1056980736
        %v1391 = vmul.bf16 %v1363, 1056980736
        %v1392 = vmul.bf16 %v1364, 1056980736
        %v1393 = vmul.bf16 %v1365, 1056980736
        %v1394 = vmul.bf16 %v1366, 1056980736
        %v1395 = vtanh.bf16.pop %v1367
        %v1396 = vtanh.bf16.pop %v1368
        %v1397 = vtanh.bf16.pop %v1369
        %v1398 = vtanh.bf16.pop %v1370
        %v1399 = vtanh.bf16.pop %v1371
        %v1400 = vtanh.bf16.pop %v1372
        %v1401 = vtanh.bf16.pop %v1373
        %v1402 = vtanh.bf16.pop %v1374
        %v1403 = vtanh.bf16.pop %v1375
        %v1404 = vtanh.bf16.pop %v1376
        %v1405 = vtanh.bf16.pop %v1377
        %v1406 = vtanh.bf16.pop %v1378
        %v1407 = vtanh.bf16.pop %v1379
        %v1408 = vtanh.bf16.pop %v1380
        %v1409 = vtanh.bf16.pop %v1381
        %v1410 = vtanh.bf16.pop %v1382
        %v1411 = vtanh.bf16.pop %v1383
        %v1412 = vtanh.bf16.pop %v1384
        %v1413 = vtanh.bf16.pop %v1385
        %v1414 = vtanh.bf16.pop %v1386
        %v1415 = vtanh.bf16.pop %v1387
        %v1416 = vtanh.bf16.pop %v1388
        %v1417 = vtanh.bf16.pop %v1389
        %v1418 = vtanh.bf16.pop %v1390
        %v1419 = vtanh.bf16.pop %v1391
        %v1420 = vtanh.bf16.pop %v1392
        %v1421 = vtanh.bf16.pop %v1393
        %v1422 = vtanh.bf16.pop %v1394
        %v1423 = vadd.bf16 %v1395, 1065369472
        %v1424 = vadd.bf16 %v1396, 1065369472
        %v1425 = vadd.bf16 %v1397, 1065369472
        %v1426 = vadd.bf16 %v1398, 1065369472
        %v1427 = vadd.bf16 %v1399, 1065369472
        %v1428 = vadd.bf16 %v1400, 1065369472
        %v1429 = vadd.bf16 %v1401, 1065369472
        %v1430 = vadd.bf16 %v1402, 1065369472
        %v1431 = vadd.bf16 %v1403, 1065369472
        %v1432 = vadd.bf16 %v1404, 1065369472
        %v1433 = vadd.bf16 %v1405, 1065369472
        %v1434 = vadd.bf16 %v1406, 1065369472
        %v1435 = vadd.bf16 %v1407, 1065369472
        %v1436 = vadd.bf16 %v1408, 1065369472
        %v1437 = vadd.bf16 %v1409, 1065369472
        %v1438 = vadd.bf16 %v1410, 1065369472
        %v1439 = vadd.bf16 %v1411, 1065369472
        %v1440 = vadd.bf16 %v1412, 1065369472
        %v1441 = vadd.bf16 %v1413, 1065369472
        %v1442 = vadd.bf16 %v1414, 1065369472
        %v1443 = vadd.bf16 %v1415, 1065369472
        %v1444 = vadd.bf16 %v1416, 1065369472
        %v1445 = vadd.bf16 %v1417, 1065369472
        %v1446 = vadd.bf16 %v1418, 1065369472
        %v1447 = vadd.bf16 %v1419, 1065369472
        %v1448 = vadd.bf16 %v1420, 1065369472
        %v1449 = vadd.bf16 %v1421, 1065369472
        %v1450 = vadd.bf16 %v1422, 1065369472
        %v1451 = vmul.bf16 %v1423, 1056980736
        %v1452 = vmul.bf16 %v1424, 1056980736
        %v1453 = vmul.bf16 %v1425, 1056980736
        %v1454 = vmul.bf16 %v1426, 1056980736
        %v1455 = vmul.bf16 %v1427, 1056980736
        %v1456 = vmul.bf16 %v1428, 1056980736
        %v1457 = vmul.bf16 %v1429, 1056980736
        %v1458 = vmul.bf16 %v1430, 1056980736
        %v1459 = vmul.bf16 %v1431, 1056980736
        %v1460 = vmul.bf16 %v1432, 1056980736
        %v1461 = vmul.bf16 %v1433, 1056980736
        %v1462 = vmul.bf16 %v1434, 1056980736
        %v1463 = vmul.bf16 %v1435, 1056980736
        %v1464 = vmul.bf16 %v1436, 1056980736
        %v1465 = vmul.bf16 %v1437, 1056980736
        %v1466 = vmul.bf16 %v1438, 1056980736
        %v1467 = vmul.bf16 %v1439, 1056980736
        %v1468 = vmul.bf16 %v1440, 1056980736
        %v1469 = vmul.bf16 %v1441, 1056980736
        %v1470 = vmul.bf16 %v1442, 1056980736
        %v1471 = vmul.bf16 %v1443, 1056980736
        %v1472 = vmul.bf16 %v1444, 1056980736
        %v1473 = vmul.bf16 %v1445, 1056980736
        %v1474 = vmul.bf16 %v1446, 1056980736
        %v1475 = vmul.bf16 %v1447, 1056980736
        %v1476 = vmul.bf16 %v1448, 1056980736
        %v1477 = vmul.bf16 %v1449, 1056980736
        %v1478 = vmul.bf16 %v1450, 1056980736
        %v1479 = vmul.bf16 %v1339, %v1451
        %v1480 = vmul.bf16 %v1340, %v1452
        %v1481 = vmul.bf16 %v1341, %v1453
        %v1482 = vmul.bf16 %v1342, %v1454
        %v1483 = vmul.bf16 %v1343, %v1455
        %v1484 = vmul.bf16 %v1344, %v1456
        %v1485 = vmul.bf16 %v1345, %v1457
        %v1486 = vmul.bf16 %v1346, %v1458
        %v1487 = vmul.bf16 %v1347, %v1459
        %v1488 = vmul.bf16 %v1348, %v1460
        %v1489 = vmul.bf16 %v1349, %v1461
        %v1490 = vmul.bf16 %v1350, %v1462
        %v1491 = vmul.bf16 %v1351, %v1463
        %v1492 = vmul.bf16 %v1352, %v1464
        %v1493 = vmul.bf16 %v1353, %v1465
        %v1494 = vmul.bf16 %v1354, %v1466
        %v1495 = vmul.bf16 %v1355, %v1467
        %v1496 = vmul.bf16 %v1356, %v1468
        %v1497 = vmul.bf16 %v1357, %v1469
        %v1498 = vmul.bf16 %v1358, %v1470
        %v1499 = vmul.bf16 %v1359, %v1471
        %v1500 = vmul.bf16 %v1360, %v1472
        %v1501 = vmul.bf16 %v1361, %v1473
        %v1502 = vmul.bf16 %v1362, %v1474
        %v1503 = vmul.bf16 %v1363, %v1475
        %v1504 = vmul.bf16 %v1364, %v1476
        %v1505 = vmul.bf16 %v1365, %v1477
        %v1506 = vmul.bf16 %v1366, %v1478
        %vm1507 = vcmask 523264
        %v1509 = vsel %vm1507, 1065369472, 0
        %1511 = vmatprep.subr.bf16.mxu0 %v1480
        %1512 = vmatpush1.bf16.msra.mxu0 %v1479
        %1513 = vmatprep.subr.bf16.mxu0 %v1487
        %1514 = vmatpush1.bf16.msra.mxu0 %v1486
        %1515 = vmatprep.subr.bf16.mxu0 %v1494
        %1516 = vmatpush1.bf16.msra.mxu0 %v1493
        %1517 = vmatprep.subr.bf16.mxu0 %v1501
        %1518 = vmatpush1.bf16.msra.mxu0 %v1500
        %1519 = vmatprep.subr.bf16.mxu0 0
        %1520 = vmatpush1.bf16.msra.mxu0 0
        %1521 = vmatprep.subr.bf16.mxu0 0
        %1522 = vmatpush1.bf16.msra.mxu0 0
        %1523 = vmatprep.subr.bf16.mxu0 0
        %1524 = vmatpush1.bf16.msra.mxu0 0
        %1525 = vmatprep.subr.bf16.mxu0 0
        %1526 = vmatpush1.bf16.msra.mxu0 0
        %1527 = vmatprep.subr.bf16.mxu0 0
        %1528 = vmatpush1.bf16.msra.mxu0 0
        %1529 = vmatprep.subr.bf16.mxu0 0
        %1530 = vmatpush1.bf16.msra.mxu0 0
        %1531 = vmatprep.subr.bf16.mxu0 0
        %1532 = vmatpush1.bf16.msra.mxu0 0
        %1533 = vmatprep.subr.bf16.mxu0 0
        %1534 = vmatpush1.bf16.msra.mxu0 0
        %1535 = vmatprep.subr.bf16.mxu0 0
        %1536 = vmatpush1.bf16.msra.mxu0 0
        %1537 = vmatprep.subr.bf16.mxu0 0
        %1538 = vmatpush1.bf16.msra.mxu0 0
        %1539 = vmatprep.subr.bf16.mxu0 0
        %1540 = vmatpush1.bf16.msra.mxu0 0
        %1541 = vmatprep.subr.bf16.mxu0 0
        %1542 = vmatpush1.bf16.msra.mxu0 0
        %1543 = vmatprep.mubr.bf16.mxu0 0
        %1544 = vmatmul.mubr.bf16.gmra.mrb[0].mxu0 %v1509
        %v1545 = vpop.f32.mrb[0].mxu0
        %v1546 = vadd.f32 0.0, %v1545
        %v1547 = vpop.f32.mrb[0].mxu0
        %v1548 = vadd.f32 0.0, %v1547
        %v1549 = vpop.f32.mrb[0].mxu0
        %v1550 = vpop.f32.mrb[0].mxu0
        %1551 = vdwg.mxu0
        %1552 = vmatprep.subr.bf16.mxu0 %v1482
        %1553 = vmatpush1.bf16.msra.mxu0 %v1481
        %1554 = vmatprep.subr.bf16.mxu0 %v1489
        %1555 = vmatpush1.bf16.msra.mxu0 %v1488
        %1556 = vmatprep.subr.bf16.mxu0 %v1496
        %1557 = vmatpush1.bf16.msra.mxu0 %v1495
        %1558 = vmatprep.subr.bf16.mxu0 %v1503
        %1559 = vmatpush1.bf16.msra.mxu0 %v1502
        %1560 = vmatprep.subr.bf16.mxu0 0
        %1561 = vmatpush1.bf16.msra.mxu0 0
        %1562 = vmatprep.subr.bf16.mxu0 0
        %1563 = vmatpush1.bf16.msra.mxu0 0
        %1564 = vmatprep.subr.bf16.mxu0 0
        %1565 = vmatpush1.bf16.msra.mxu0 0
        %1566 = vmatprep.subr.bf16.mxu0 0
        %1567 = vmatpush1.bf16.msra.mxu0 0
        %1568 = vmatprep.subr.bf16.mxu0 0
        %1569 = vmatpush1.bf16.msra.mxu0 0
        %1570 = vmatprep.subr.bf16.mxu0 0
        %1571 = vmatpush1.bf16.msra.mxu0 0
        %1572 = vmatprep.subr.bf16.mxu0 0
        %1573 = vmatpush1.bf16.msra.mxu0 0
        %1574 = vmatprep.subr.bf16.mxu0 0
        %1575 = vmatpush1.bf16.msra.mxu0 0
        %1576 = vmatprep.subr.bf16.mxu0 0
        %1577 = vmatpush1.bf16.msra.mxu0 0
        %1578 = vmatprep.subr.bf16.mxu0 0
        %1579 = vmatpush1.bf16.msra.mxu0 0
        %1580 = vmatprep.subr.bf16.mxu0 0
        %1581 = vmatpush1.bf16.msra.mxu0 0
        %1582 = vmatprep.subr.bf16.mxu0 0
        %1583 = vmatpush1.bf16.msra.mxu0 0
        %1584 = vmatprep.mubr.bf16.mxu0 0
        %1585 = vmatmul.mubr.bf16.gmra.mrb[0].mxu0 %v1509
        %v1586 = vpop.f32.mrb[0].mxu0
        %v1587 = vadd.f32 0.0, %v1586
        %v1588 = vpop.f32.mrb[0].mxu0
        %v1589 = vadd.f32 0.0, %v1588
        %v1590 = vpop.f32.mrb[0].mxu0
        %v1591 = vpop.f32.mrb[0].mxu0
        %1592 = vdwg.mxu0
        %1593 = vmatprep.subr.bf16.mxu0 %v1484
        %1594 = vmatpush1.bf16.msra.mxu0 %v1483
        %1595 = vmatprep.subr.bf16.mxu0 %v1491
        %1596 = vmatpush1.bf16.msra.mxu0 %v1490
        %1597 = vmatprep.subr.bf16.mxu0 %v1498
        %1598 = vmatpush1.bf16.msra.mxu0 %v1497
        %1599 = vmatprep.subr.bf16.mxu0 %v1505
        %1600 = vmatpush1.bf16.msra.mxu0 %v1504
        %1601 = vmatprep.subr.bf16.mxu0 0
        %1602 = vmatpush1.bf16.msra.mxu0 0
        %1603 = vmatprep.subr.bf16.mxu0 0
        %1604 = vmatpush1.bf16.msra.mxu0 0
        %1605 = vmatprep.subr.bf16.mxu0 0
        %1606 = vmatpush1.bf16.msra.mxu0 0
        %1607 = vmatprep.subr.bf16.mxu0 0
        %1608 = vmatpush1.bf16.msra.mxu0 0
        %1609 = vmatprep.subr.bf16.mxu0 0
        %1610 = vmatpush1.bf16.msra.mxu0 0
        %1611 = vmatprep.subr.bf16.mxu0 0
        %1612 = vmatpush1.bf16.msra.mxu0 0
        %1613 = vmatprep.subr.bf16.mxu0 0
        %1614 = vmatpush1.bf16.msra.mxu0 0
        %1615 = vmatprep.subr.bf16.mxu0 0
        %1616 = vmatpush1.bf16.msra.mxu0 0
        %1617 = vmatprep.subr.bf16.mxu0 0
        %1618 = vmatpush1.bf16.msra.mxu0 0
        %1619 = vmatprep.subr.bf16.mxu0 0
        %1620 = vmatpush1.bf16.msra.mxu0 0
        %1621 = vmatprep.subr.bf16.mxu0 0
        %1622 = vmatpush1.bf16.msra.mxu0 0
        %1623 = vmatprep.subr.bf16.mxu0 0
        %1624 = vmatpush1.bf16.msra.mxu0 0
        %1625 = vmatprep.mubr.bf16.mxu0 0
        %1626 = vmatmul.mubr.bf16.gmra.mrb[0].mxu0 %v1509
        %v1627 = vpop.f32.mrb[0].mxu0
        %v1628 = vadd.f32 0.0, %v1627
        %v1629 = vpop.f32.mrb[0].mxu0
        %v1630 = vadd.f32 0.0, %v1629
        %v1631 = vpop.f32.mrb[0].mxu0
        %v1632 = vpop.f32.mrb[0].mxu0
        %1633 = vdwg.mxu0
        %1634 = vmatprep.subr.bf16.mxu0 0
        %1635 = vmatpush1.bf16.msra.mxu0 %v1485
        %1636 = vmatprep.subr.bf16.mxu0 0
        %1637 = vmatpush1.bf16.msra.mxu0 %v1492
        %1638 = vmatprep.subr.bf16.mxu0 0
        %1639 = vmatpush1.bf16.msra.mxu0 %v1499
        %1640 = vmatprep.subr.bf16.mxu0 0
        %1641 = vmatpush1.bf16.msra.mxu0 %v1506
        %1642 = vmatprep.subr.bf16.mxu0 0
        %1643 = vmatpush1.bf16.msra.mxu0 0
        %1644 = vmatprep.subr.bf16.mxu0 0
        %1645 = vmatpush1.bf16.msra.mxu0 0
        %1646 = vmatprep.subr.bf16.mxu0 0
        %1647 = vmatpush1.bf16.msra.mxu0 0
        %1648 = vmatprep.subr.bf16.mxu0 0
        %1649 = vmatpush1.bf16.msra.mxu0 0
        %1650 = vmatprep.subr.bf16.mxu0 0
        %1651 = vmatpush1.bf16.msra.mxu0 0
        %1652 = vmatprep.subr.bf16.mxu0 0
        %1653 = vmatpush1.bf16.msra.mxu0 0
        %1654 = vmatprep.subr.bf16.mxu0 0
        %1655 = vmatpush1.bf16.msra.mxu0 0
        %1656 = vmatprep.subr.bf16.mxu0 0
        %1657 = vmatpush1.bf16.msra.mxu0 0
        %1658 = vmatprep.subr.bf16.mxu0 0
        %1659 = vmatpush1.bf16.msra.mxu0 0
        %1660 = vmatprep.subr.bf16.mxu0 0
        %1661 = vmatpush1.bf16.msra.mxu0 0
        %1662 = vmatprep.subr.bf16.mxu0 0
        %1663 = vmatpush1.bf16.msra.mxu0 0
        %1664 = vmatprep.subr.bf16.mxu0 0
        %1665 = vmatpush1.bf16.msra.mxu0 0
        %1666 = vmatprep.mubr.bf16.mxu0 0
        %1667 = vmatmul.mubr.bf16.gmra.mrb[0].mxu0 %v1509
        %v1668 = vpop.f32.mrb[0].mxu0
        %v1669 = vadd.f32 0.0, %v1668
        %v1670 = vpop.f32.mrb[0].mxu0
        %v1671 = vpop.f32.mrb[0].mxu0
        %v1672 = vpop.f32.mrb[0].mxu0
        %1673 = vdwg.mxu0
        %p1674 = scmp.eq.s32.totalorder %s24, 0
        // Predicated region
        $region71: #{chest_xray_forward.2} parent=65 // pred_check
          %p1675 = pneg %p1674
        $region72: #{chest_xray_forward.2} parent=65 // pred_check_branch
          %1677 = sbr.rel (%p1675) target = $region74
        $region73: #{chest_xray_forward.2} parent=65 // pred_region
          %v1678 = vlaneseq
          %vm1679 = vcmp.ge.s32.totalorder %v1678, 0
          %vm1680 = vcmp.lt.s32.totalorder %v1678, 896
          %vm1681 = vmand %vm1679, %vm1680
          %1682 = vst.msk [vmem:[%s508] sm:$0x7f] %vm1681, 0.0
        $region74: #{chest_xray_forward.2} parent=65 // pred_fallthru
          _
        %v1683 = vld [vmem:[%s508] sm:$0xff]
        %v1691 = vcombine.low %v1546, %v1548
        %v1692 = vcombine.low %v1587, %v1589
        %v1693 = vcombine.low %v1628, %v1630
        %v1695 = vunpack.c.l.s4 1966171168
        %v1696 = vunpack.c.0.s8 %v1695
        %v1697 = vlaneseq
        %v1698 = vshrl.u32 %v1697, 7
        %v1699 = vsub.s32 %v1696, %v1698
        %v1700 = vrot.slane %v1691, %v1699
        %v1702 = vunpack.c.l.s4 1966171168
        %v1703 = vunpack.c.0.s8 %v1702
        %v1704 = vlaneseq
        %v1705 = vshrl.u32 %v1704, 7
        %v1706 = vsub.s32 %v1703, %v1705
        %v1707 = vrot.slane %v1692, %v1706
        %v1709 = vunpack.c.l.s4 1966171168
        %v1710 = vunpack.c.0.s8 %v1709
        %v1711 = vlaneseq
        %v1712 = vshrl.u32 %v1711, 7
        %v1713 = vsub.s32 %v1710, %v1712
        %v1714 = vrot.slane %v1693, %v1713
        %v1716 = vunpack.c.l.s4 1966171168
        %v1717 = vunpack.c.0.s8 %v1716
        %v1718 = vlaneseq
        %v1719 = vshrl.u32 %v1718, 7
        %v1720 = vsub.s32 %v1717, %v1719
        %v1721 = vrot.slane %v1669, %v1720
        %v1722 = vcombine.low %v1700, %v1707
        %v1723 = vcombine.low %v1714, %v1721
        %v1725 = vunpack.c.l.s4 1966171168
        %v1726 = vunpack.c.0.s8 %v1725
        %v1727 = vlaneseq
        %v1728 = vshrl.u32 %v1727, 7
        %v1729 = vsub.s32 %v1726, %v1728
        %v1730 = vrot.slane %v1722, %v1729
        %v1732 = vunpack.c.l.s4 1966171168
        %v1733 = vunpack.c.0.s8 %v1732
        %v1734 = vlaneseq
        %v1735 = vshrl.u32 %v1734, 7
        %v1736 = vsub.s32 %v1733, %v1735
        %v1737 = vrot.slane %v1723, %v1736
        %v1738 = vcombine.low %v1730, %v1737
        %v1740 = vadd.f32 %v1683, %v1738
        %v1741 = vlaneseq
        %vm1742 = vcmp.ge.s32.totalorder %v1741, 0
        %vm1743 = vcmp.lt.s32.totalorder %v1741, 896
        %vm1744 = vmand %vm1742, %vm1743
        %1745 = vst.msk [vmem:[%s508] sm:$0x7f] %vm1744, %v1740
        // Predicated region
        $region75: #{chest_xray_forward.2} parent=65 // pred_check
          %p1746 = pneg %p1674
        $region76: #{chest_xray_forward.2} parent=65 // pred_check_branch
          %1748 = sbr.rel (%p1746) target = $region78
        $region77: #{chest_xray_forward.2} parent=65 // pred_region
          %v1749 = vld [vmem:[%s508] sm:$0xff]
          %v1750 = vld [vmem:[%s499] sm:$0xff]
          %v1751 = vsub.f32 %v1749, %v1750
          %v1752 = vmul.f32 %v1751, 0.015625
          %1753 = vst.msk [vmem:[%s508] sm:$0x7f] %vm1744, %v1752
        $region78: #{chest_xray_forward.2} parent=65 // pred_fallthru
          _
        %s1754 = smul.u32 7, %s23
        %p1755 = scmp.lt.s32.totalorder %s22, 1
        %s1756 = scalar_select %p1755, %s22, 1
        %p1757 = scmp.lt.s32.totalorder %s1754, 13
        %s1758 = scalar_select %p1757, %s1754, 13
        %s1759 = smul.addr %s1756, 14
        %s1760 = sadd.s32 %s1758, %s1759
        %s1761 = scalar_lea.vmem %s6, %s1760
        // Predicated region
        $region79: #{chest_xray_forward.2} parent=65 // pred_check
          %p1762 = pneg %p204
        $region80: #{chest_xray_forward.2} parent=65 // pred_check_branch
          %1764 = sbr.rel (%p1762) target = $region82
        $region81: #{chest_xray_forward.2} parent=65 // pred_region
          %s1765 = smul.u32 7, %s23
        $region82: #{chest_xray_forward.2} parent=65 // pred_fallthru
          _
      $region66: #{chest_xray_forward.2} parent=5 // pred_fallthru
        _
      %p1766 = scmp.le.s32.totalorder 2, %s12
      // Predicated region
      $region83: #{chest_xray_forward.2} parent=5 // pred_check
        %p1767 = pneg %p1766
      $region84: #{chest_xray_forward.2} parent=5 // pred_check_branch
        %1769 = sbr.rel (%p1767) target = $region86
      $region85: #{chest_xray_forward.2} parent=5 // pred_region
        %s1770 = ssub.s32 %s12, 2
        // Predicated region
        $region87: #{chest_xray_forward.2} parent=85 // pred_check
          %p1771 = pneg %p210
        $region88: #{chest_xray_forward.2} parent=85 // pred_check_branch
          %1773 = sbr.rel (%p1771) target = $region90
        $region89: #{chest_xray_forward.2} parent=85 // pred_region
          %s1774 = smul.u32 7, %s26
          %p1775 = scmp.lt.s32.totalorder %s25, 1
          %s1776 = scalar_select %p1775, %s25, 1
          %p1777 = scmp.lt.s32.totalorder %s1774, 13
          %s1778 = scalar_select %p1777, %s1774, 13
          %s1779 = smul.addr %s1776, 14
          %s1780 = sadd.s32 %s1778, %s1779
          %s1781 = scalar_lea.vmem %s6, %s1780
        $region90: #{chest_xray_forward.2} parent=85 // pred_fallthru
          _
      $region86: #{chest_xray_forward.2} parent=5 // pred_fallthru
        _
    $region6: #{chest_xray_forward.2} parent=1 // loop_footer
      %s16 = sadd.s32 1, %s12
    $region7: #{chest_xray_forward.2} parent=1 // loop_footer_branch
      %11 = sbr.rel target = $region3
    $region8: #{chest_xray_forward.2} parent=1 // loop_exit
      _

// kernel: chest_xray_forward.3
$region0: #{chest_xray_forward.3}
  #allocation0 [shape = 'u32[]', space=smem, size = 0x4, offset = 0x4, fixed_abs, tag = 'smem constant byte address 0x4 - core index']
  #allocation1 [shape = 'u32[144,128]{1,0:T(1,128)}', space=vmem, size = 0x12000, scoped, tag = 'internal scratch']
  %s0 = inlined_call_operand.vmem [shape: f32[2,1792], index: 0, kind: input, shape index: {}]
  %s1 = inlined_call_operand.vmem [shape: bf16[1792,1024], index: 1, kind: input, shape index: {}]
  %s2 = inlined_call_operand.vmem [shape: f32[1,1024], index: 2, kind: input, shape index: {}]
  %s3 = inlined_call_operand.vmem [shape: bf16[1024,512], index: 3, kind: input, shape index: {}]
  %s4 = inlined_call_operand.vmem [shape: f32[1,512], index: 4, kind: input, shape index: {}]
  %s5 = inlined_call_operand.vmem [shape: bf16[512,128], index: 5, kind: input, shape index: {}]
  %s6 = inlined_call_operand.vmem [shape: f32[1,128], index: 6, kind: input, shape index: {}]
  %s7 = inlined_call_operand.hbm [shape: f32[2,128], index: 7, kind: output, shape index: {}]
  %s8 = sld [smem:[#allocation0]]
  $region38: #{chest_xray_forward.3} parent=0
    _
  %s10 = ssub.s32 1, %s8
  %s11 = scalar_select 0, %s10, %s8
  $region1: #{chest_xray_forward.3} parent=0
    #allocation2 [shape = 'u8[1024]{0}', space=vmem, size = 0x400, scoped, tag = 'output window, operand 0, single buffered']
    #allocation3 [shape = 's32[1]{0}', space=sflag, size = 0x4, scoped, tag = 'scoped memory for chest_xray_forward.3']
    %12 = vsyncpa [#allocation3], 0
    // Predicated region
    $region2: #{chest_xray_forward.3} parent=1 // pred_check
      _
    $region3: #{chest_xray_forward.3} parent=1 // pred_check_branch
      %14 = sbr.rel (0) target = $region5
    $region4: #{chest_xray_forward.3} parent=1 // pred_region
      _
    $region5: #{chest_xray_forward.3} parent=1 // pred_fallthru
      _
    // Predicated region
    $region6: #{chest_xray_forward.3} parent=1 // pred_check
      _
    $region7: #{chest_xray_forward.3} parent=1 // pred_check_branch
      %16 = sbr.rel (0) target = $region9
    $region8: #{chest_xray_forward.3} parent=1 // pred_region
      _
    $region9: #{chest_xray_forward.3} parent=1 // pred_fallthru
      _
    // Predicated region
    $region10: #{chest_xray_forward.3} parent=1 // pred_check
      _
    $region11: #{chest_xray_forward.3} parent=1 // pred_check_branch
      %18 = sbr.rel (0) target = $region13
    $region12: #{chest_xray_forward.3} parent=1 // pred_region
      _
    $region13: #{chest_xray_forward.3} parent=1 // pred_fallthru
      _
    // Predicated region
    $region14: #{chest_xray_forward.3} parent=1 // pred_check
      _
    $region15: #{chest_xray_forward.3} parent=1 // pred_check_branch
      %20 = sbr.rel (0) target = $region17
    $region16: #{chest_xray_forward.3} parent=1 // pred_region
      _
    $region17: #{chest_xray_forward.3} parent=1 // pred_fallthru
      _
    // Predicated region
    $region18: #{chest_xray_forward.3} parent=1 // pred_check
      _
    $region19: #{chest_xray_forward.3} parent=1 // pred_check_branch
      %22 = sbr.rel (0) target = $region21
    $region20: #{chest_xray_forward.3} parent=1 // pred_region
      _
    $region21: #{chest_xray_forward.3} parent=1 // pred_fallthru
      _
    // Predicated region
    $region22: #{chest_xray_forward.3} parent=1 // pred_check
      _
    $region23: #{chest_xray_forward.3} parent=1 // pred_check_branch
      %24 = sbr.rel (0) target = $region25
    $region24: #{chest_xray_forward.3} parent=1 // pred_region
      _
    $region25: #{chest_xray_forward.3} parent=1 // pred_fallthru
      _
    // Predicated region
    $region26: #{chest_xray_forward.3} parent=1 // pred_check
      _
    $region27: #{chest_xray_forward.3} parent=1 // pred_check_branch
      %26 = sbr.rel (0) target = $region29
    $region28: #{chest_xray_forward.3} parent=1 // pred_region
      _
    $region29: #{chest_xray_forward.3} parent=1 // pred_fallthru
      _
    %v28 = vld [vmem:[%s0] sm:$0xff]
    %v29 = vld [vmem:[%s0 + $0x8] sm:$0xff]
    %v30 = vld [vmem:[%s0 + $0x10] sm:$0xff]
    %v31 = vld [vmem:[%s0 + $0x18] sm:$0xf]
    %v36 = vcombine.high %v28, %v28
    %v38 = vunpack.c.l.s4 1983009808
    %v39 = vunpack.c.0.s8 %v38
    %v40 = vlaneseq
    %v41 = vshrl.u32 %v40, 7
    %v42 = vsub.s32 %v39, %v41
    %v43 = vrot.slane %v28, %v42
    %v45 = vunpack.c.l.s4 1983009808
    %v46 = vunpack.c.0.s8 %v45
    %v47 = vlaneseq
    %v48 = vshrl.u32 %v47, 7
    %v49 = vsub.s32 %v46, %v48
    %v50 = vrot.slane %v36, %v49
    %v51 = vcombine.high %v43, %v43
    %v52 = vcombine.high %v50, %v50
    %v53 = vcombine.high %v29, %v29
    %v55 = vunpack.c.l.s4 1983009808
    %v56 = vunpack.c.0.s8 %v55
    %v57 = vlaneseq
    %v58 = vshrl.u32 %v57, 7
    %v59 = vsub.s32 %v56, %v58
    %v60 = vrot.slane %v29, %v59
    %v62 = vunpack.c.l.s4 1983009808
    %v63 = vunpack.c.0.s8 %v62
    %v64 = vlaneseq
    %v65 = vshrl.u32 %v64, 7
    %v66 = vsub.s32 %v63, %v65
    %v67 = vrot.slane %v53, %v66
    %v68 = vcombine.high %v60, %v60
    %v69 = vcombine.high %v67, %v67
    %v70 = vcombine.high %v30, %v30
    %v72 = vunpack.c.l.s4 1983009808
    %v73 = vunpack.c.0.s8 %v72
    %v74 = vlaneseq
    %v75 = vshrl.u32 %v74, 7
    %v76 = vsub.s32 %v73, %v75
    %v77 = vrot.slane %v30, %v76
    %v79 = vunpack.c.l.s4 1983009808
    %v80 = vunpack.c.0.s8 %v79
    %v81 = vlaneseq
    %v82 = vshrl.u32 %v81, 7
    %v83 = vsub.s32 %v80, %v82
    %v84 = vrot.slane %v70, %v83
    %v85 = vcombine.high %v77, %v77
    %v86 = vcombine.high %v84, %v84
    %v88 = vunpack.c.l.s4 1983009808
    %v89 = vunpack.c.0.s8 %v88
    %v90 = vlaneseq
    %v91 = vshrl.u32 %v90, 7
    %v92 = vsub.s32 %v89, %v91
    %v93 = vrot.slane %v31, %v92
    %v94 = vcombine.high %v93, %v93
    %v109 = vpack.c.bf16 %v43, %v43
    %v110 = vpack.c.bf16 %v51, %v51
    %v111 = vpack.c.bf16 %v50, %v50
    %v112 = vpack.c.bf16 %v52, %v52
    %v113 = vpack.c.bf16 %v60, %v60
    %v114 = vpack.c.bf16 %v68, %v68
    %v115 = vpack.c.bf16 %v67, %v67
    %v116 = vpack.c.bf16 %v69, %v69
    %v117 = vpack.c.bf16 %v77, %v77
    %v118 = vpack.c.bf16 %v85, %v85
    %v119 = vpack.c.bf16 %v84, %v84
    %v120 = vpack.c.bf16 %v86, %v86
    %v121 = vpack.c.bf16 %v93, %v93
    %v122 = vpack.c.bf16 %v94, %v94
    %v123 = vld [vmem:[%s1] sm:$0xff]
    %v124 = vld [vmem:[%s1 + $0x8] sm:$0xff]
    %v125 = vld [vmem:[%s1 + $0x10] sm:$0xff]
    %v126 = vld [vmem:[%s1 + $0x18] sm:$0xff]
    %v127 = vld [vmem:[%s1 + $0x20] sm:$0xff]
    %v128 = vld [vmem:[%s1 + $0x28] sm:$0xff]
    %v129 = vld [vmem:[%s1 + $0x30] sm:$0xff]
    %v130 = vld [vmem:[%s1 + $0x38] sm:$0xff]
    %v131 = vld [vmem:[%s1 + $0x40] sm:$0xff]
    %v132 = vld [vmem:[%s1 + $0x48] sm:$0xff]
    %v133 = vld [vmem:[%s1 + $0x50] sm:$0xff]
    %v134 = vld [vmem:[%s1 + $0x58] sm:$0xff]
    %v135 = vld [vmem:[%s1 + $0x60] sm:$0xff]
    %v136 = vld [vmem:[%s1 + $0x68] sm:$0xff]
    %v137 = vld [vmem:[%s1 + $0x70] sm:$0xff]
    %v138 = vld [vmem:[%s1 + $0x78] sm:$0xff]
    %v139 = vld [vmem:[%s1 + $0x80] sm:$0xff]
    %v140 = vld [vmem:[%s1 + $0x88] sm:$0xff]
    %v141 = vld [vmem:[%s1 + $0x90] sm:$0xff]
    %v142 = vld [vmem:[%s1 + $0x98] sm:$0xff]
    %v143 = vld [vmem:[%s1 + $0xa0] sm:$0xff]
    %v144 = vld [vmem:[%s1 + $0xa8] sm:$0xff]
    %v145 = vld [vmem:[%s1 + $0xb0] sm:$0xff]
    %v146 = vld [vmem:[%s1 + $0xb8] sm:$0xff]
    %v147 = vld [vmem:[%s1 + $0xc0] sm:$0xff]
    %v148 = vld [vmem:[%s1 + $0xc8] sm:$0xff]
    %v149 = vld [vmem:[%s1 + $0xd0] sm:$0xff]
    %v150 = vld [vmem:[%s1 + $0xd8] sm:$0xff]
    %v151 = vld [vmem:[%s1 + $0xe0] sm:$0xff]
    %v152 = vld [vmem:[%s1 + $0xe8] sm:$0xff]
    %v153 = vld [vmem:[%s1 + $0xf0] sm:$0xff]
    %v154 = vld [vmem:[%s1 + $0xf8] sm:$0xff]
    %v155 = vld [vmem:[%s1 + $0x100] sm:$0xff]
    %v156 = vld [vmem:[%s1 + $0x108] sm:$0xff]
    %v157 = vld [vmem:[%s1 + $0x110] sm:$0xff]
    %v158 = vld [vmem:[%s1 + $0x118] sm:$0xff]
    %v159 = vld [vmem:[%s1 + $0x120] sm:$0xff]
    %v160 = vld [vmem:[%s1 + $0x128] sm:$0xff]
    %v161 = vld [vmem:[%s1 + $0x130] sm:$0xff]
    %v162 = vld [vmem:[%s1 + $0x138] sm:$0xff]
    %v163 = vld [vmem:[%s1 + $0x140] sm:$0xff]
    %v164 = vld [vmem:[%s1 + $0x148] sm:$0xff]
    %v165 = vld [vmem:[%s1 + $0x150] sm:$0xff]
    %v166 = vld [vmem:[%s1 + $0x158] sm:$0xff]
    %v167 = vld [vmem:[%s1 + $0x160] sm:$0xff]
    %v168 = vld [vmem:[%s1 + $0x168] sm:$0xff]
    %v169 = vld [vmem:[%s1 + $0x170] sm:$0xff]
    %v170 = vld [vmem:[%s1 + $0x178] sm:$0xff]
    %v171 = vld [vmem:[%s1 + $0x180] sm:$0xff]
    %v172 = vld [vmem:[%s1 + $0x188] sm:$0xff]
    %v173 = vld [vmem:[%s1 + $0x190] sm:$0xff]
    %v174 = vld [vmem:[%s1 + $0x198] sm:$0xff]
    %v175 = vld [vmem:[%s1 + $0x1a0] sm:$0xff]
    %v176 = vld [vmem:[%s1 + $0x1a8] sm:$0xff]
    %v177 = vld [vmem:[%s1 + $0x1b0] sm:$0xff]
    %v178 = vld [vmem:[%s1 + $0x1b8] sm:$0xff]
    %v179 = vld [vmem:[%s1 + $0x1c0] sm:$0xff]
    %v180 = vld [vmem:[%s1 + $0x1c8] sm:$0xff]
    %v181 = vld [vmem:[%s1 + $0x1d0] sm:$0xff]
    %v182 = vld [vmem:[%s1 + $0x1d8] sm:$0xff]
    %v183 = vld [vmem:[%s1 + $0x1e0] sm:$0xff]
    %v184 = vld [vmem:[%s1 + $0x1e8] sm:$0xff]
    %v185 = vld [vmem:[%s1 + $0x1f0] sm:$0xff]
    %v186 = vld [vmem:[%s1 + $0x1f8] sm:$0xff]
    %v187 = vld [vmem:[%s1 + $0x200] sm:$0xff]
    %v188 = vld [vmem:[%s1 + $0x208] sm:$0xff]
    %v189 = vld [vmem:[%s1 + $0x210] sm:$0xff]
    %v190 = vld [vmem:[%s1 + $0x218] sm:$0xff]
    %v191 = vld [vmem:[%s1 + $0x220] sm:$0xff]
    %v192 = vld [vmem:[%s1 + $0x228] sm:$0xff]
    %v193 = vld [vmem:[%s1 + $0x230] sm:$0xff]
    %v194 = vld [vmem:[%s1 + $0x238] sm:$0xff]
    %v195 = vld [vmem:[%s1 + $0x240] sm:$0xff]
    %v196 = vld [vmem:[%s1 + $0x248] sm:$0xff]
    %v197 = vld [vmem:[%s1 + $0x250] sm:$0xff]
    %v198 = vld [vmem:[%s1 + $0x258] sm:$0xff]
    %v199 = vld [vmem:[%s1 + $0x260] sm:$0xff]
    %v200 = vld [vmem:[%s1 + $0x268] sm:$0xff]
    %v201 = vld [vmem:[%s1 + $0x270] sm:$0xff]
    %v202 = vld [vmem:[%s1 + $0x278] sm:$0xff]
    %v203 = vld [vmem:[%s1 + $0x280] sm:$0xff]
    %v204 = vld [vmem:[%s1 + $0x288] sm:$0xff]
    %v205 = vld [vmem:[%s1 + $0x290] sm:$0xff]
    %v206 = vld [vmem:[%s1 + $0x298] sm:$0xff]
    %v207 = vld [vmem:[%s1 + $0x2a0] sm:$0xff]
    %v208 = vld [vmem:[%s1 + $0x2a8] sm:$0xff]
    %v209 = vld [vmem:[%s1 + $0x2b0] sm:$0xff]
    %v210 = vld [vmem:[%s1 + $0x2b8] sm:$0xff]
    %v211 = vld [vmem:[%s1 + $0x2c0] sm:$0xff]
    %v212 = vld [vmem:[%s1 + $0x2c8] sm:$0xff]
    %v213 = vld [vmem:[%s1 + $0x2d0] sm:$0xff]
    %v214 = vld [vmem:[%s1 + $0x2d8] sm:$0xff]
    %v215 = vld [vmem:[%s1 + $0x2e0] sm:$0xff]
    %v216 = vld [vmem:[%s1 + $0x2e8] sm:$0xff]
    %v217 = vld [vmem:[%s1 + $0x2f0] sm:$0xff]
    %v218 = vld [vmem:[%s1 + $0x2f8] sm:$0xff]
    %v219 = vld [vmem:[%s1 + $0x300] sm:$0xff]
    %v220 = vld [vmem:[%s1 + $0x308] sm:$0xff]
    %v221 = vld [vmem:[%s1 + $0x310] sm:$0xff]
    %v222 = vld [vmem:[%s1 + $0x318] sm:$0xff]
    %v223 = vld [vmem:[%s1 + $0x320] sm:$0xff]
    %v224 = vld [vmem:[%s1 + $0x328] sm:$0xff]
    %v225 = vld [vmem:[%s1 + $0x330] sm:$0xff]
    %v226 = vld [vmem:[%s1 + $0x338] sm:$0xff]
    %v227 = vld [vmem:[%s1 + $0x340] sm:$0xff]
    %v228 = vld [vmem:[%s1 + $0x348] sm:$0xff]
    %v229 = vld [vmem:[%s1 + $0x350] sm:$0xff]
    %v230 = vld [vmem:[%s1 + $0x358] sm:$0xff]
    %v231 = vld [vmem:[%s1 + $0x360] sm:$0xff]
    %v232 = vld [vmem:[%s1 + $0x368] sm:$0xff]
    %v233 = vld [vmem:[%s1 + $0x370] sm:$0xff]
    %v234 = vld [vmem:[%s1 + $0x378] sm:$0xff]
    %v235 = vld [vmem:[%s1 + $0x380] sm:$0xff]
    %v236 = vld [vmem:[%s1 + $0x388] sm:$0xff]
    %v237 = vld [vmem:[%s1 + $0x390] sm:$0xff]
    %v238 = vld [vmem:[%s1 + $0x398] sm:$0xff]
    %v239 = vld [vmem:[%s1 + $0x3a0] sm:$0xff]
    %v240 = vld [vmem:[%s1 + $0x3a8] sm:$0xff]
    %v241 = vld [vmem:[%s1 + $0x3b0] sm:$0xff]
    %v242 = vld [vmem:[%s1 + $0x3b8] sm:$0xff]
    %v243 = vld [vmem:[%s1 + $0x3c0] sm:$0xff]
    %v244 = vld [vmem:[%s1 + $0x3c8] sm:$0xff]
    %v245 = vld [vmem:[%s1 + $0x3d0] sm:$0xff]
    %v246 = vld [vmem:[%s1 + $0x3d8] sm:$0xff]
    %v247 = vld [vmem:[%s1 + $0x3e0] sm:$0xff]
    %v248 = vld [vmem:[%s1 + $0x3e8] sm:$0xff]
    %v249 = vld [vmem:[%s1 + $0x3f0] sm:$0xff]
    %v250 = vld [vmem:[%s1 + $0x3f8] sm:$0xff]
    %v251 = vld [vmem:[%s1 + $0x400] sm:$0xff]
    %v252 = vld [vmem:[%s1 + $0x408] sm:$0xff]
    %v253 = vld [vmem:[%s1 + $0x410] sm:$0xff]
    %v254 = vld [vmem:[%s1 + $0x418] sm:$0xff]
    %v255 = vld [vmem:[%s1 + $0x420] sm:$0xff]
    %v256 = vld [vmem:[%s1 + $0x428] sm:$0xff]
    %v257 = vld [vmem:[%s1 + $0x430] sm:$0xff]
    %v258 = vld [vmem:[%s1 + $0x438] sm:$0xff]
    %v259 = vld [vmem:[%s1 + $0x440] sm:$0xff]
    %v260 = vld [vmem:[%s1 + $0x448] sm:$0xff]
    %v261 = vld [vmem:[%s1 + $0x450] sm:$0xff]
    %v262 = vld [vmem:[%s1 + $0x458] sm:$0xff]
    %v263 = vld [vmem:[%s1 + $0x460] sm:$0xff]
    %v264 = vld [vmem:[%s1 + $0x468] sm:$0xff]
    %v265 = vld [vmem:[%s1 + $0x470] sm:$0xff]
    %v266 = vld [vmem:[%s1 + $0x478] sm:$0xff]
    %v267 = vld [vmem:[%s1 + $0x480] sm:$0xff]
    %v268 = vld [vmem:[%s1 + $0x488] sm:$0xff]
    %v269 = vld [vmem:[%s1 + $0x490] sm:$0xff]
    %v270 = vld [vmem:[%s1 + $0x498] sm:$0xff]
    %v271 = vld [vmem:[%s1 + $0x4a0] sm:$0xff]
    %v272 = vld [vmem:[%s1 + $0x4a8] sm:$0xff]
    %v273 = vld [vmem:[%s1 + $0x4b0] sm:$0xff]
    %v274 = vld [vmem:[%s1 + $0x4b8] sm:$0xff]
    %v275 = vld [vmem:[%s1 + $0x4c0] sm:$0xff]
    %v276 = vld [vmem:[%s1 + $0x4c8] sm:$0xff]
    %v277 = vld [vmem:[%s1 + $0x4d0] sm:$0xff]
    %v278 = vld [vmem:[%s1 + $0x4d8] sm:$0xff]
    %v279 = vld [vmem:[%s1 + $0x4e0] sm:$0xff]
    %v280 = vld [vmem:[%s1 + $0x4e8] sm:$0xff]
    %v281 = vld [vmem:[%s1 + $0x4f0] sm:$0xff]
    %v282 = vld [vmem:[%s1 + $0x4f8] sm:$0xff]
    %v283 = vld [vmem:[%s1 + $0x500] sm:$0xff]
    %v284 = vld [vmem:[%s1 + $0x508] sm:$0xff]
    %v285 = vld [vmem:[%s1 + $0x510] sm:$0xff]
    %v286 = vld [vmem:[%s1 + $0x518] sm:$0xff]
    %v287 = vld [vmem:[%s1 + $0x520] sm:$0xff]
    %v288 = vld [vmem:[%s1 + $0x528] sm:$0xff]
    %v289 = vld [vmem:[%s1 + $0x530] sm:$0xff]
    %v290 = vld [vmem:[%s1 + $0x538] sm:$0xff]
    %v291 = vld [vmem:[%s1 + $0x540] sm:$0xff]
    %v292 = vld [vmem:[%s1 + $0x548] sm:$0xff]
    %v293 = vld [vmem:[%s1 + $0x550] sm:$0xff]
    %v294 = vld [vmem:[%s1 + $0x558] sm:$0xff]
    %v295 = vld [vmem:[%s1 + $0x560] sm:$0xff]
    %v296 = vld [vmem:[%s1 + $0x568] sm:$0xff]
    %v297 = vld [vmem:[%s1 + $0x570] sm:$0xff]
    %v298 = vld [vmem:[%s1 + $0x578] sm:$0xff]
    %v299 = vld [vmem:[%s1 + $0x580] sm:$0xff]
    %v300 = vld [vmem:[%s1 + $0x588] sm:$0xff]
    %v301 = vld [vmem:[%s1 + $0x590] sm:$0xff]
    %v302 = vld [vmem:[%s1 + $0x598] sm:$0xff]
    %v303 = vld [vmem:[%s1 + $0x5a0] sm:$0xff]
    %v304 = vld [vmem:[%s1 + $0x5a8] sm:$0xff]
    %v305 = vld [vmem:[%s1 + $0x5b0] sm:$0xff]
    %v306 = vld [vmem:[%s1 + $0x5b8] sm:$0xff]
    %v307 = vld [vmem:[%s1 + $0x5c0] sm:$0xff]
    %v308 = vld [vmem:[%s1 + $0x5c8] sm:$0xff]
    %v309 = vld [vmem:[%s1 + $0x5d0] sm:$0xff]
    %v310 = vld [vmem:[%s1 + $0x5d8] sm:$0xff]
    %v311 = vld [vmem:[%s1 + $0x5e0] sm:$0xff]
    %v312 = vld [vmem:[%s1 + $0x5e8] sm:$0xff]
    %v313 = vld [vmem:[%s1 + $0x5f0] sm:$0xff]
    %v314 = vld [vmem:[%s1 + $0x5f8] sm:$0xff]
    %v315 = vld [vmem:[%s1 + $0x600] sm:$0xff]
    %v316 = vld [vmem:[%s1 + $0x608] sm:$0xff]
    %v317 = vld [vmem:[%s1 + $0x610] sm:$0xff]
    %v318 = vld [vmem:[%s1 + $0x618] sm:$0xff]
    %v319 = vld [vmem:[%s1 + $0x620] sm:$0xff]
    %v320 = vld [vmem:[%s1 + $0x628] sm:$0xff]
    %v321 = vld [vmem:[%s1 + $0x630] sm:$0xff]
    %v322 = vld [vmem:[%s1 + $0x638] sm:$0xff]
    %v323 = vld [vmem:[%s1 + $0x640] sm:$0xff]
    %v324 = vld [vmem:[%s1 + $0x648] sm:$0xff]
    %v325 = vld [vmem:[%s1 + $0x650] sm:$0xff]
    %v326 = vld [vmem:[%s1 + $0x658] sm:$0xff]
    %v327 = vld [vmem:[%s1 + $0x660] sm:$0xff]
    %v328 = vld [vmem:[%s1 + $0x668] sm:$0xff]
    %v329 = vld [vmem:[%s1 + $0x670] sm:$0xff]
    %v330 = vld [vmem:[%s1 + $0x678] sm:$0xff]
    %v331 = vld [vmem:[%s1 + $0x680] sm:$0xff]
    %v332 = vld [vmem:[%s1 + $0x688] sm:$0xff]
    %v333 = vld [vmem:[%s1 + $0x690] sm:$0xff]
    %v334 = vld [vmem:[%s1 + $0x698] sm:$0xff]
    %v335 = vld [vmem:[%s1 + $0x6a0] sm:$0xff]
    %v336 = vld [vmem:[%s1 + $0x6a8] sm:$0xff]
    %v337 = vld [vmem:[%s1 + $0x6b0] sm:$0xff]
    %v338 = vld [vmem:[%s1 + $0x6b8] sm:$0xff]
    %v339 = vld [vmem:[%s1 + $0x6c0] sm:$0xff]
    %v340 = vld [vmem:[%s1 + $0x6c8] sm:$0xff]
    %v341 = vld [vmem:[%s1 + $0x6d0] sm:$0xff]
    %v342 = vld [vmem:[%s1 + $0x6d8] sm:$0xff]
    %v343 = vld [vmem:[%s1 + $0x6e0] sm:$0xff]
    %v344 = vld [vmem:[%s1 + $0x6e8] sm:$0xff]
    %v345 = vld [vmem:[%s1 + $0x6f0] sm:$0xff]
    %v346 = vld [vmem:[%s1 + $0x6f8] sm:$0xff]
    %v347 = vld [vmem:[%s1 + $0x700] sm:$0xff]
    %v348 = vld [vmem:[%s1 + $0x708] sm:$0xff]
    %v349 = vld [vmem:[%s1 + $0x710] sm:$0xff]
    %v350 = vld [vmem:[%s1 + $0x718] sm:$0xff]
    %v351 = vld [vmem:[%s1 + $0x720] sm:$0xff]
    %v352 = vld [vmem:[%s1 + $0x728] sm:$0xff]
    %v353 = vld [vmem:[%s1 + $0x730] sm:$0xff]
    %v354 = vld [vmem:[%s1 + $0x738] sm:$0xff]
    %v355 = vld [vmem:[%s1 + $0x740] sm:$0xff]
    %v356 = vld [vmem:[%s1 + $0x748] sm:$0xff]
    %v357 = vld [vmem:[%s1 + $0x750] sm:$0xff]
    %v358 = vld [vmem:[%s1 + $0x758] sm:$0xff]
    %v359 = vld [vmem:[%s1 + $0x760] sm:$0xff]
    %v360 = vld [vmem:[%s1 + $0x768] sm:$0xff]
    %v361 = vld [vmem:[%s1 + $0x770] sm:$0xff]
    %v362 = vld [vmem:[%s1 + $0x778] sm:$0xff]
    %v363 = vld [vmem:[%s1 + $0x780] sm:$0xff]
    %v364 = vld [vmem:[%s1 + $0x788] sm:$0xff]
    %v365 = vld [vmem:[%s1 + $0x790] sm:$0xff]
    %v366 = vld [vmem:[%s1 + $0x798] sm:$0xff]
    %v367 = vld [vmem:[%s1 + $0x7a0] sm:$0xff]
    %v368 = vld [vmem:[%s1 + $0x7a8] sm:$0xff]
    %v369 = vld [vmem:[%s1 + $0x7b0] sm:$0xff]
    %v370 = vld [vmem:[%s1 + $0x7b8] sm:$0xff]
    %v371 = vld [vmem:[%s1 + $0x7c0] sm:$0xff]
    %v372 = vld [vmem:[%s1 + $0x7c8] sm:$0xff]
    %v373 = vld [vmem:[%s1 + $0x7d0] sm:$0xff]
    %v374 = vld [vmem:[%s1 + $0x7d8] sm:$0xff]
    %v375 = vld [vmem:[%s1 + $0x7e0] sm:$0xff]
    %v376 = vld [vmem:[%s1 + $0x7e8] sm:$0xff]
    %v377 = vld [vmem:[%s1 + $0x7f0] sm:$0xff]
    %v378 = vld [vmem:[%s1 + $0x7f8] sm:$0xff]
    %v379 = vld [vmem:[%s1 + $0x800] sm:$0xff]
    %v380 = vld [vmem:[%s1 + $0x808] sm:$0xff]
    %v381 = vld [vmem:[%s1 + $0x810] sm:$0xff]
    %v382 = vld [vmem:[%s1 + $0x818] sm:$0xff]
    %v383 = vld [vmem:[%s1 + $0x820] sm:$0xff]
    %v384 = vld [vmem:[%s1 + $0x828] sm:$0xff]
    %v385 = vld [vmem:[%s1 + $0x830] sm:$0xff]
    %v386 = vld [vmem:[%s1 + $0x838] sm:$0xff]
    %v387 = vld [vmem:[%s1 + $0x840] sm:$0xff]
    %v388 = vld [vmem:[%s1 + $0x848] sm:$0xff]
    %v389 = vld [vmem:[%s1 + $0x850] sm:$0xff]
    %v390 = vld [vmem:[%s1 + $0x858] sm:$0xff]
    %v391 = vld [vmem:[%s1 + $0x860] sm:$0xff]
    %v392 = vld [vmem:[%s1 + $0x868] sm:$0xff]
    %v393 = vld [vmem:[%s1 + $0x870] sm:$0xff]
    %v394 = vld [vmem:[%s1 + $0x878] sm:$0xff]
    %v395 = vld [vmem:[%s1 + $0x880] sm:$0xff]
    %v396 = vld [vmem:[%s1 + $0x888] sm:$0xff]
    %v397 = vld [vmem:[%s1 + $0x890] sm:$0xff]
    %v398 = vld [vmem:[%s1 + $0x898] sm:$0xff]
    %v399 = vld [vmem:[%s1 + $0x8a0] sm:$0xff]
    %v400 = vld [vmem:[%s1 + $0x8a8] sm:$0xff]
    %v401 = vld [vmem:[%s1 + $0x8b0] sm:$0xff]
    %v402 = vld [vmem:[%s1 + $0x8b8] sm:$0xff]
    %v403 = vld [vmem:[%s1 + $0x8c0] sm:$0xff]
    %v404 = vld [vmem:[%s1 + $0x8c8] sm:$0xff]
    %v405 = vld [vmem:[%s1 + $0x8d0] sm:$0xff]
    %v406 = vld [vmem:[%s1 + $0x8d8] sm:$0xff]
    %v407 = vld [vmem:[%s1 + $0x8e0] sm:$0xff]
    %v408 = vld [vmem:[%s1 + $0x8e8] sm:$0xff]
    %v409 = vld [vmem:[%s1 + $0x8f0] sm:$0xff]
    %v410 = vld [vmem:[%s1 + $0x8f8] sm:$0xff]
    %v411 = vld [vmem:[%s1 + $0x900] sm:$0xff]
    %v412 = vld [vmem:[%s1 + $0x908] sm:$0xff]
    %v413 = vld [vmem:[%s1 + $0x910] sm:$0xff]
    %v414 = vld [vmem:[%s1 + $0x918] sm:$0xff]
    %v415 = vld [vmem:[%s1 + $0x920] sm:$0xff]
    %v416 = vld [vmem:[%s1 + $0x928] sm:$0xff]
    %v417 = vld [vmem:[%s1 + $0x930] sm:$0xff]
    %v418 = vld [vmem:[%s1 + $0x938] sm:$0xff]
    %v419 = vld [vmem:[%s1 + $0x940] sm:$0xff]
    %v420 = vld [vmem:[%s1 + $0x948] sm:$0xff]
    %v421 = vld [vmem:[%s1 + $0x950] sm:$0xff]
    %v422 = vld [vmem:[%s1 + $0x958] sm:$0xff]
    %v423 = vld [vmem:[%s1 + $0x960] sm:$0xff]
    %v424 = vld [vmem:[%s1 + $0x968] sm:$0xff]
    %v425 = vld [vmem:[%s1 + $0x970] sm:$0xff]
    %v426 = vld [vmem:[%s1 + $0x978] sm:$0xff]
    %v427 = vld [vmem:[%s1 + $0x980] sm:$0xff]
    %v428 = vld [vmem:[%s1 + $0x988] sm:$0xff]
    %v429 = vld [vmem:[%s1 + $0x990] sm:$0xff]
    %v430 = vld [vmem:[%s1 + $0x998] sm:$0xff]
    %v431 = vld [vmem:[%s1 + $0x9a0] sm:$0xff]
    %v432 = vld [vmem:[%s1 + $0x9a8] sm:$0xff]
    %v433 = vld [vmem:[%s1 + $0x9b0] sm:$0xff]
    %v434 = vld [vmem:[%s1 + $0x9b8] sm:$0xff]
    %v435 = vld [vmem:[%s1 + $0x9c0] sm:$0xff]
    %v436 = vld [vmem:[%s1 + $0x9c8] sm:$0xff]
    %v437 = vld [vmem:[%s1 + $0x9d0] sm:$0xff]
    %v438 = vld [vmem:[%s1 + $0x9d8] sm:$0xff]
    %v439 = vld [vmem:[%s1 + $0x9e0] sm:$0xff]
    %v440 = vld [vmem:[%s1 + $0x9e8] sm:$0xff]
    %v441 = vld [vmem:[%s1 + $0x9f0] sm:$0xff]
    %v442 = vld [vmem:[%s1 + $0x9f8] sm:$0xff]
    %v443 = vld [vmem:[%s1 + $0xa00] sm:$0xff]
    %v444 = vld [vmem:[%s1 + $0xa08] sm:$0xff]
    %v445 = vld [vmem:[%s1 + $0xa10] sm:$0xff]
    %v446 = vld [vmem:[%s1 + $0xa18] sm:$0xff]
    %v447 = vld [vmem:[%s1 + $0xa20] sm:$0xff]
    %v448 = vld [vmem:[%s1 + $0xa28] sm:$0xff]
    %v449 = vld [vmem:[%s1 + $0xa30] sm:$0xff]
    %v450 = vld [vmem:[%s1 + $0xa38] sm:$0xff]
    %v451 = vld [vmem:[%s1 + $0xa40] sm:$0xff]
    %v452 = vld [vmem:[%s1 + $0xa48] sm:$0xff]
    %v453 = vld [vmem:[%s1 + $0xa50] sm:$0xff]
    %v454 = vld [vmem:[%s1 + $0xa58] sm:$0xff]
    %v455 = vld [vmem:[%s1 + $0xa60] sm:$0xff]
    %v456 = vld [vmem:[%s1 + $0xa68] sm:$0xff]
    %v457 = vld [vmem:[%s1 + $0xa70] sm:$0xff]
    %v458 = vld [vmem:[%s1 + $0xa78] sm:$0xff]
    %v459 = vld [vmem:[%s1 + $0xa80] sm:$0xff]
    %v460 = vld [vmem:[%s1 + $0xa88] sm:$0xff]
    %v461 = vld [vmem:[%s1 + $0xa90] sm:$0xff]
    %v462 = vld [vmem:[%s1 + $0xa98] sm:$0xff]
    %v463 = vld [vmem:[%s1 + $0xaa0] sm:$0xff]
    %v464 = vld [vmem:[%s1 + $0xaa8] sm:$0xff]
    %v465 = vld [vmem:[%s1 + $0xab0] sm:$0xff]
    %v466 = vld [vmem:[%s1 + $0xab8] sm:$0xff]
    %v467 = vld [vmem:[%s1 + $0xac0] sm:$0xff]
    %v468 = vld [vmem:[%s1 + $0xac8] sm:$0xff]
    %v469 = vld [vmem:[%s1 + $0xad0] sm:$0xff]
    %v470 = vld [vmem:[%s1 + $0xad8] sm:$0xff]
    %v471 = vld [vmem:[%s1 + $0xae0] sm:$0xff]
    %v472 = vld [vmem:[%s1 + $0xae8] sm:$0xff]
    %v473 = vld [vmem:[%s1 + $0xaf0] sm:$0xff]
    %v474 = vld [vmem:[%s1 + $0xaf8] sm:$0xff]
    %v475 = vld [vmem:[%s1 + $0xb00] sm:$0xff]
    %v476 = vld [vmem:[%s1 + $0xb08] sm:$0xff]
    %v477 = vld [vmem:[%s1 + $0xb10] sm:$0xff]
    %v478 = vld [vmem:[%s1 + $0xb18] sm:$0xff]
    %v479 = vld [vmem:[%s1 + $0xb20] sm:$0xff]
    %v480 = vld [vmem:[%s1 + $0xb28] sm:$0xff]
    %v481 = vld [vmem:[%s1 + $0xb30] sm:$0xff]
    %v482 = vld [vmem:[%s1 + $0xb38] sm:$0xff]
    %v483 = vld [vmem:[%s1 + $0xb40] sm:$0xff]
    %v484 = vld [vmem:[%s1 + $0xb48] sm:$0xff]
    %v485 = vld [vmem:[%s1 + $0xb50] sm:$0xff]
    %v486 = vld [vmem:[%s1 + $0xb58] sm:$0xff]
    %v487 = vld [vmem:[%s1 + $0xb60] sm:$0xff]
    %v488 = vld [vmem:[%s1 + $0xb68] sm:$0xff]
    %v489 = vld [vmem:[%s1 + $0xb70] sm:$0xff]
    %v490 = vld [vmem:[%s1 + $0xb78] sm:$0xff]
    %v491 = vld [vmem:[%s1 + $0xb80] sm:$0xff]
    %v492 = vld [vmem:[%s1 + $0xb88] sm:$0xff]
    %v493 = vld [vmem:[%s1 + $0xb90] sm:$0xff]
    %v494 = vld [vmem:[%s1 + $0xb98] sm:$0xff]
    %v495 = vld [vmem:[%s1 + $0xba0] sm:$0xff]
    %v496 = vld [vmem:[%s1 + $0xba8] sm:$0xff]
    %v497 = vld [vmem:[%s1 + $0xbb0] sm:$0xff]
    %v498 = vld [vmem:[%s1 + $0xbb8] sm:$0xff]
    %v499 = vld [vmem:[%s1 + $0xbc0] sm:$0xff]
    %v500 = vld [vmem:[%s1 + $0xbc8] sm:$0xff]
    %v501 = vld [vmem:[%s1 + $0xbd0] sm:$0xff]
    %v502 = vld [vmem:[%s1 + $0xbd8] sm:$0xff]
    %v503 = vld [vmem:[%s1 + $0xbe0] sm:$0xff]
    %v504 = vld [vmem:[%s1 + $0xbe8] sm:$0xff]
    %v505 = vld [vmem:[%s1 + $0xbf0] sm:$0xff]
    %v506 = vld [vmem:[%s1 + $0xbf8] sm:$0xff]
    %v507 = vld [vmem:[%s1 + $0xc00] sm:$0xff]
    %v508 = vld [vmem:[%s1 + $0xc08] sm:$0xff]
    %v509 = vld [vmem:[%s1 + $0xc10] sm:$0xff]
    %v510 = vld [vmem:[%s1 + $0xc18] sm:$0xff]
    %v511 = vld [vmem:[%s1 + $0xc20] sm:$0xff]
    %v512 = vld [vmem:[%s1 + $0xc28] sm:$0xff]
    %v513 = vld [vmem:[%s1 + $0xc30] sm:$0xff]
    %v514 = vld [vmem:[%s1 + $0xc38] sm:$0xff]
    %v515 = vld [vmem:[%s1 + $0xc40] sm:$0xff]
    %v516 = vld [vmem:[%s1 + $0xc48] sm:$0xff]
    %v517 = vld [vmem:[%s1 + $0xc50] sm:$0xff]
    %v518 = vld [vmem:[%s1 + $0xc58] sm:$0xff]
    %v519 = vld [vmem:[%s1 + $0xc60] sm:$0xff]
    %v520 = vld [vmem:[%s1 + $0xc68] sm:$0xff]
    %v521 = vld [vmem:[%s1 + $0xc70] sm:$0xff]
    %v522 = vld [vmem:[%s1 + $0xc78] sm:$0xff]
    %v523 = vld [vmem:[%s1 + $0xc80] sm:$0xff]
    %v524 = vld [vmem:[%s1 + $0xc88] sm:$0xff]
    %v525 = vld [vmem:[%s1 + $0xc90] sm:$0xff]
    %v526 = vld [vmem:[%s1 + $0xc98] sm:$0xff]
    %v527 = vld [vmem:[%s1 + $0xca0] sm:$0xff]
    %v528 = vld [vmem:[%s1 + $0xca8] sm:$0xff]
    %v529 = vld [vmem:[%s1 + $0xcb0] sm:$0xff]
    %v530 = vld [vmem:[%s1 + $0xcb8] sm:$0xff]
    %v531 = vld [vmem:[%s1 + $0xcc0] sm:$0xff]
    %v532 = vld [vmem:[%s1 + $0xcc8] sm:$0xff]
    %v533 = vld [vmem:[%s1 + $0xcd0] sm:$0xff]
    %v534 = vld [vmem:[%s1 + $0xcd8] sm:$0xff]
    %v535 = vld [vmem:[%s1 + $0xce0] sm:$0xff]
    %v536 = vld [vmem:[%s1 + $0xce8] sm:$0xff]
    %v537 = vld [vmem:[%s1 + $0xcf0] sm:$0xff]
    %v538 = vld [vmem:[%s1 + $0xcf8] sm:$0xff]
    %v539 = vld [vmem:[%s1 + $0xd00] sm:$0xff]
    %v540 = vld [vmem:[%s1 + $0xd08] sm:$0xff]
    %v541 = vld [vmem:[%s1 + $0xd10] sm:$0xff]
    %v542 = vld [vmem:[%s1 + $0xd18] sm:$0xff]
    %v543 = vld [vmem:[%s1 + $0xd20] sm:$0xff]
    %v544 = vld [vmem:[%s1 + $0xd28] sm:$0xff]
    %v545 = vld [vmem:[%s1 + $0xd30] sm:$0xff]
    %v546 = vld [vmem:[%s1 + $0xd38] sm:$0xff]
    %v547 = vld [vmem:[%s1 + $0xd40] sm:$0xff]
    %v548 = vld [vmem:[%s1 + $0xd48] sm:$0xff]
    %v549 = vld [vmem:[%s1 + $0xd50] sm:$0xff]
    %v550 = vld [vmem:[%s1 + $0xd58] sm:$0xff]
    %v551 = vld [vmem:[%s1 + $0xd60] sm:$0xff]
    %v552 = vld [vmem:[%s1 + $0xd68] sm:$0xff]
    %v553 = vld [vmem:[%s1 + $0xd70] sm:$0xff]
    %v554 = vld [vmem:[%s1 + $0xd78] sm:$0xff]
    %v555 = vld [vmem:[%s1 + $0xd80] sm:$0xff]
    %v556 = vld [vmem:[%s1 + $0xd88] sm:$0xff]
    %v557 = vld [vmem:[%s1 + $0xd90] sm:$0xff]
    %v558 = vld [vmem:[%s1 + $0xd98] sm:$0xff]
    %v559 = vld [vmem:[%s1 + $0xda0] sm:$0xff]
    %v560 = vld [vmem:[%s1 + $0xda8] sm:$0xff]
    %v561 = vld [vmem:[%s1 + $0xdb0] sm:$0xff]
    %v562 = vld [vmem:[%s1 + $0xdb8] sm:$0xff]
    %v563 = vld [vmem:[%s1 + $0xdc0] sm:$0xff]
    %v564 = vld [vmem:[%s1 + $0xdc8] sm:$0xff]
    %v565 = vld [vmem:[%s1 + $0xdd0] sm:$0xff]
    %v566 = vld [vmem:[%s1 + $0xdd8] sm:$0xff]
    %v567 = vld [vmem:[%s1 + $0xde0] sm:$0xff]
    %v568 = vld [vmem:[%s1 + $0xde8] sm:$0xff]
    %v569 = vld [vmem:[%s1 + $0xdf0] sm:$0xff]
    %v570 = vld [vmem:[%s1 + $0xdf8] sm:$0xff]
    %v571 = vld [vmem:[%s1 + $0xe00] sm:$0xff]
    %v572 = vld [vmem:[%s1 + $0xe08] sm:$0xff]
    %v573 = vld [vmem:[%s1 + $0xe10] sm:$0xff]
    %v574 = vld [vmem:[%s1 + $0xe18] sm:$0xff]
    %v575 = vld [vmem:[%s1 + $0xe20] sm:$0xff]
    %v576 = vld [vmem:[%s1 + $0xe28] sm:$0xff]
    %v577 = vld [vmem:[%s1 + $0xe30] sm:$0xff]
    %v578 = vld [vmem:[%s1 + $0xe38] sm:$0xff]
    %v579 = vld [vmem:[%s1 + $0xe40] sm:$0xff]
    %v580 = vld [vmem:[%s1 + $0xe48] sm:$0xff]
    %v581 = vld [vmem:[%s1 + $0xe50] sm:$0xff]
    %v582 = vld [vmem:[%s1 + $0xe58] sm:$0xff]
    %v583 = vld [vmem:[%s1 + $0xe60] sm:$0xff]
    %v584 = vld [vmem:[%s1 + $0xe68] sm:$0xff]
    %v585 = vld [vmem:[%s1 + $0xe70] sm:$0xff]
    %v586 = vld [vmem:[%s1 + $0xe78] sm:$0xff]
    %v587 = vld [vmem:[%s1 + $0xe80] sm:$0xff]
    %v588 = vld [vmem:[%s1 + $0xe88] sm:$0xff]
    %v589 = vld [vmem:[%s1 + $0xe90] sm:$0xff]
    %v590 = vld [vmem:[%s1 + $0xe98] sm:$0xff]
    %v591 = vld [vmem:[%s1 + $0xea0] sm:$0xff]
    %v592 = vld [vmem:[%s1 + $0xea8] sm:$0xff]
    %v593 = vld [vmem:[%s1 + $0xeb0] sm:$0xff]
    %v594 = vld [vmem:[%s1 + $0xeb8] sm:$0xff]
    %v595 = vld [vmem:[%s1 + $0xec0] sm:$0xff]
    %v596 = vld [vmem:[%s1 + $0xec8] sm:$0xff]
    %v597 = vld [vmem:[%s1 + $0xed0] sm:$0xff]
    %v598 = vld [vmem:[%s1 + $0xed8] sm:$0xff]
    %v599 = vld [vmem:[%s1 + $0xee0] sm:$0xff]
    %v600 = vld [vmem:[%s1 + $0xee8] sm:$0xff]
    %v601 = vld [vmem:[%s1 + $0xef0] sm:$0xff]
    %v602 = vld [vmem:[%s1 + $0xef8] sm:$0xff]
    %v603 = vld [vmem:[%s1 + $0xf00] sm:$0xff]
    %v604 = vld [vmem:[%s1 + $0xf08] sm:$0xff]
    %v605 = vld [vmem:[%s1 + $0xf10] sm:$0xff]
    %v606 = vld [vmem:[%s1 + $0xf18] sm:$0xff]
    %v607 = vld [vmem:[%s1 + $0xf20] sm:$0xff]
    %v608 = vld [vmem:[%s1 + $0xf28] sm:$0xff]
    %v609 = vld [vmem:[%s1 + $0xf30] sm:$0xff]
    %v610 = vld [vmem:[%s1 + $0xf38] sm:$0xff]
    %v611 = vld [vmem:[%s1 + $0xf40] sm:$0xff]
    %v612 = vld [vmem:[%s1 + $0xf48] sm:$0xff]
    %v613 = vld [vmem:[%s1 + $0xf50] sm:$0xff]
    %v614 = vld [vmem:[%s1 + $0xf58] sm:$0xff]
    %v615 = vld [vmem:[%s1 + $0xf60] sm:$0xff]
    %v616 = vld [vmem:[%s1 + $0xf68] sm:$0xff]
    %v617 = vld [vmem:[%s1 + $0xf70] sm:$0xff]
    %v618 = vld [vmem:[%s1 + $0xf78] sm:$0xff]
    %v619 = vld [vmem:[%s1 + $0xf80] sm:$0xff]
    %v620 = vld [vmem:[%s1 + $0xf88] sm:$0xff]
    %v621 = vld [vmem:[%s1 + $0xf90] sm:$0xff]
    %v622 = vld [vmem:[%s1 + $0xf98] sm:$0xff]
    %v623 = vld [vmem:[%s1 + $0xfa0] sm:$0xff]
    %v624 = vld [vmem:[%s1 + $0xfa8] sm:$0xff]
    %v625 = vld [vmem:[%s1 + $0xfb0] sm:$0xff]
    %v626 = vld [vmem:[%s1 + $0xfb8] sm:$0xff]
    %v627 = vld [vmem:[%s1 + $0xfc0] sm:$0xff]
    %v628 = vld [vmem:[%s1 + $0xfc8] sm:$0xff]
    %v629 = vld [vmem:[%s1 + $0xfd0] sm:$0xff]
    %v630 = vld [vmem:[%s1 + $0xfd8] sm:$0xff]
    %v631 = vld [vmem:[%s1 + $0xfe0] sm:$0xff]
    %v632 = vld [vmem:[%s1 + $0xfe8] sm:$0xff]
    %v633 = vld [vmem:[%s1 + $0xff0] sm:$0xff]
    %v634 = vld [vmem:[%s1 + $0xff8] sm:$0xff]
    %v635 = vld [vmem:[%s1 + $0x1000] sm:$0xff]
    %v636 = vld [vmem:[%s1 + $0x1008] sm:$0xff]
    %v637 = vld [vmem:[%s1 + $0x1010] sm:$0xff]
    %v638 = vld [vmem:[%s1 + $0x1018] sm:$0xff]
    %v639 = vld [vmem:[%s1 + $0x1020] sm:$0xff]
    %v640 = vld [vmem:[%s1 + $0x1028] sm:$0xff]
    %v641 = vld [vmem:[%s1 + $0x1030] sm:$0xff]
    %v642 = vld [vmem:[%s1 + $0x1038] sm:$0xff]
    %v643 = vld [vmem:[%s1 + $0x1040] sm:$0xff]
    %v644 = vld [vmem:[%s1 + $0x1048] sm:$0xff]
    %v645 = vld [vmem:[%s1 + $0x1050] sm:$0xff]
    %v646 = vld [vmem:[%s1 + $0x1058] sm:$0xff]
    %v647 = vld [vmem:[%s1 + $0x1060] sm:$0xff]
    %v648 = vld [vmem:[%s1 + $0x1068] sm:$0xff]
    %v649 = vld [vmem:[%s1 + $0x1070] sm:$0xff]
    %v650 = vld [vmem:[%s1 + $0x1078] sm:$0xff]
    %v651 = vld [vmem:[%s1 + $0x1080] sm:$0xff]
    %v652 = vld [vmem:[%s1 + $0x1088] sm:$0xff]
    %v653 = vld [vmem:[%s1 + $0x1090] sm:$0xff]
    %v654 = vld [vmem:[%s1 + $0x1098] sm:$0xff]
    %v655 = vld [vmem:[%s1 + $0x10a0] sm:$0xff]
    %v656 = vld [vmem:[%s1 + $0x10a8] sm:$0xff]
    %v657 = vld [vmem:[%s1 + $0x10b0] sm:$0xff]
    %v658 = vld [vmem:[%s1 + $0x10b8] sm:$0xff]
    %v659 = vld [vmem:[%s1 + $0x10c0] sm:$0xff]
    %v660 = vld [vmem:[%s1 + $0x10c8] sm:$0xff]
    %v661 = vld [vmem:[%s1 + $0x10d0] sm:$0xff]
    %v662 = vld [vmem:[%s1 + $0x10d8] sm:$0xff]
    %v663 = vld [vmem:[%s1 + $0x10e0] sm:$0xff]
    %v664 = vld [vmem:[%s1 + $0x10e8] sm:$0xff]
    %v665 = vld [vmem:[%s1 + $0x10f0] sm:$0xff]
    %v666 = vld [vmem:[%s1 + $0x10f8] sm:$0xff]
    %v667 = vld [vmem:[%s1 + $0x1100] sm:$0xff]
    %v668 = vld [vmem:[%s1 + $0x1108] sm:$0xff]
    %v669 = vld [vmem:[%s1 + $0x1110] sm:$0xff]
    %v670 = vld [vmem:[%s1 + $0x1118] sm:$0xff]
    %v671 = vld [vmem:[%s1 + $0x1120] sm:$0xff]
    %v672 = vld [vmem:[%s1 + $0x1128] sm:$0xff]
    %v673 = vld [vmem:[%s1 + $0x1130] sm:$0xff]
    %v674 = vld [vmem:[%s1 + $0x1138] sm:$0xff]
    %v675 = vld [vmem:[%s1 + $0x1140] sm:$0xff]
    %v676 = vld [vmem:[%s1 + $0x1148] sm:$0xff]
    %v677 = vld [vmem:[%s1 + $0x1150] sm:$0xff]
    %v678 = vld [vmem:[%s1 + $0x1158] sm:$0xff]
    %v679 = vld [vmem:[%s1 + $0x1160] sm:$0xff]
    %v680 = vld [vmem:[%s1 + $0x1168] sm:$0xff]
    %v681 = vld [vmem:[%s1 + $0x1170] sm:$0xff]
    %v682 = vld [vmem:[%s1 + $0x1178] sm:$0xff]
    %v683 = vld [vmem:[%s1 + $0x1180] sm:$0xff]
    %v684 = vld [vmem:[%s1 + $0x1188] sm:$0xff]
    %v685 = vld [vmem:[%s1 + $0x1190] sm:$0xff]
    %v686 = vld [vmem:[%s1 + $0x1198] sm:$0xff]
    %v687 = vld [vmem:[%s1 + $0x11a0] sm:$0xff]
    %v688 = vld [vmem:[%s1 + $0x11a8] sm:$0xff]
    %v689 = vld [vmem:[%s1 + $0x11b0] sm:$0xff]
    %v690 = vld [vmem:[%s1 + $0x11b8] sm:$0xff]
    %v691 = vld [vmem:[%s1 + $0x11c0] sm:$0xff]
    %v692 = vld [vmem:[%s1 + $0x11c8] sm:$0xff]
    %v693 = vld [vmem:[%s1 + $0x11d0] sm:$0xff]
    %v694 = vld [vmem:[%s1 + $0x11d8] sm:$0xff]
    %v695 = vld [vmem:[%s1 + $0x11e0] sm:$0xff]
    %v696 = vld [vmem:[%s1 + $0x11e8] sm:$0xff]
    %v697 = vld [vmem:[%s1 + $0x11f0] sm:$0xff]
    %v698 = vld [vmem:[%s1 + $0x11f8] sm:$0xff]
    %v699 = vld [vmem:[%s1 + $0x1200] sm:$0xff]
    %v700 = vld [vmem:[%s1 + $0x1208] sm:$0xff]
    %v701 = vld [vmem:[%s1 + $0x1210] sm:$0xff]
    %v702 = vld [vmem:[%s1 + $0x1218] sm:$0xff]
    %v703 = vld [vmem:[%s1 + $0x1220] sm:$0xff]
    %v704 = vld [vmem:[%s1 + $0x1228] sm:$0xff]
    %v705 = vld [vmem:[%s1 + $0x1230] sm:$0xff]
    %v706 = vld [vmem:[%s1 + $0x1238] sm:$0xff]
    %v707 = vld [vmem:[%s1 + $0x1240] sm:$0xff]
    %v708 = vld [vmem:[%s1 + $0x1248] sm:$0xff]
    %v709 = vld [vmem:[%s1 + $0x1250] sm:$0xff]
    %v710 = vld [vmem:[%s1 + $0x1258] sm:$0xff]
    %v711 = vld [vmem:[%s1 + $0x1260] sm:$0xff]
    %v712 = vld [vmem:[%s1 + $0x1268] sm:$0xff]
    %v713 = vld [vmem:[%s1 + $0x1270] sm:$0xff]
    %v714 = vld [vmem:[%s1 + $0x1278] sm:$0xff]
    %v715 = vld [vmem:[%s1 + $0x1280] sm:$0xff]
    %v716 = vld [vmem:[%s1 + $0x1288] sm:$0xff]
    %v717 = vld [vmem:[%s1 + $0x1290] sm:$0xff]
    %v718 = vld [vmem:[%s1 + $0x1298] sm:$0xff]
    %v719 = vld [vmem:[%s1 + $0x12a0] sm:$0xff]
    %v720 = vld [vmem:[%s1 + $0x12a8] sm:$0xff]
    %v721 = vld [vmem:[%s1 + $0x12b0] sm:$0xff]
    %v722 = vld [vmem:[%s1 + $0x12b8] sm:$0xff]
    %v723 = vld [vmem:[%s1 + $0x12c0] sm:$0xff]
    %v724 = vld [vmem:[%s1 + $0x12c8] sm:$0xff]
    %v725 = vld [vmem:[%s1 + $0x12d0] sm:$0xff]
    %v726 = vld [vmem:[%s1 + $0x12d8] sm:$0xff]
    %v727 = vld [vmem:[%s1 + $0x12e0] sm:$0xff]
    %v728 = vld [vmem:[%s1 + $0x12e8] sm:$0xff]
    %v729 = vld [vmem:[%s1 + $0x12f0] sm:$0xff]
    %v730 = vld [vmem:[%s1 + $0x12f8] sm:$0xff]
    %v731 = vld [vmem:[%s1 + $0x1300] sm:$0xff]
    %v732 = vld [vmem:[%s1 + $0x1308] sm:$0xff]
    %v733 = vld [vmem:[%s1 + $0x1310] sm:$0xff]
    %v734 = vld [vmem:[%s1 + $0x1318] sm:$0xff]
    %v735 = vld [vmem:[%s1 + $0x1320] sm:$0xff]
    %v736 = vld [vmem:[%s1 + $0x1328] sm:$0xff]
    %v737 = vld [vmem:[%s1 + $0x1330] sm:$0xff]
    %v738 = vld [vmem:[%s1 + $0x1338] sm:$0xff]
    %v739 = vld [vmem:[%s1 + $0x1340] sm:$0xff]
    %v740 = vld [vmem:[%s1 + $0x1348] sm:$0xff]
    %v741 = vld [vmem:[%s1 + $0x1350] sm:$0xff]
    %v742 = vld [vmem:[%s1 + $0x1358] sm:$0xff]
    %v743 = vld [vmem:[%s1 + $0x1360] sm:$0xff]
    %v744 = vld [vmem:[%s1 + $0x1368] sm:$0xff]
    %v745 = vld [vmem:[%s1 + $0x1370] sm:$0xff]
    %v746 = vld [vmem:[%s1 + $0x1378] sm:$0xff]
    %v747 = vld [vmem:[%s1 + $0x1380] sm:$0xff]
    %v748 = vld [vmem:[%s1 + $0x1388] sm:$0xff]
    %v749 = vld [vmem:[%s1 + $0x1390] sm:$0xff]
    %v750 = vld [vmem:[%s1 + $0x1398] sm:$0xff]
    %v751 = vld [vmem:[%s1 + $0x13a0] sm:$0xff]
    %v752 = vld [vmem:[%s1 + $0x13a8] sm:$0xff]
    %v753 = vld [vmem:[%s1 + $0x13b0] sm:$0xff]
    %v754 = vld [vmem:[%s1 + $0x13b8] sm:$0xff]
    %v755 = vld [vmem:[%s1 + $0x13c0] sm:$0xff]
    %v756 = vld [vmem:[%s1 + $0x13c8] sm:$0xff]
    %v757 = vld [vmem:[%s1 + $0x13d0] sm:$0xff]
    %v758 = vld [vmem:[%s1 + $0x13d8] sm:$0xff]
    %v759 = vld [vmem:[%s1 + $0x13e0] sm:$0xff]
    %v760 = vld [vmem:[%s1 + $0x13e8] sm:$0xff]
    %v761 = vld [vmem:[%s1 + $0x13f0] sm:$0xff]
    %v762 = vld [vmem:[%s1 + $0x13f8] sm:$0xff]
    %v763 = vld [vmem:[%s1 + $0x1400] sm:$0xff]
    %v764 = vld [vmem:[%s1 + $0x1408] sm:$0xff]
    %v765 = vld [vmem:[%s1 + $0x1410] sm:$0xff]
    %v766 = vld [vmem:[%s1 + $0x1418] sm:$0xff]
    %v767 = vld [vmem:[%s1 + $0x1420] sm:$0xff]
    %v768 = vld [vmem:[%s1 + $0x1428] sm:$0xff]
    %v769 = vld [vmem:[%s1 + $0x1430] sm:$0xff]
    %v770 = vld [vmem:[%s1 + $0x1438] sm:$0xff]
    %v771 = vld [vmem:[%s1 + $0x1440] sm:$0xff]
    %v772 = vld [vmem:[%s1 + $0x1448] sm:$0xff]
    %v773 = vld [vmem:[%s1 + $0x1450] sm:$0xff]
    %v774 = vld [vmem:[%s1 + $0x1458] sm:$0xff]
    %v775 = vld [vmem:[%s1 + $0x1460] sm:$0xff]
    %v776 = vld [vmem:[%s1 + $0x1468] sm:$0xff]
    %v777 = vld [vmem:[%s1 + $0x1470] sm:$0xff]
    %v778 = vld [vmem:[%s1 + $0x1478] sm:$0xff]
    %v779 = vld [vmem:[%s1 + $0x1480] sm:$0xff]
    %v780 = vld [vmem:[%s1 + $0x1488] sm:$0xff]
    %v781 = vld [vmem:[%s1 + $0x1490] sm:$0xff]
    %v782 = vld [vmem:[%s1 + $0x1498] sm:$0xff]
    %v783 = vld [vmem:[%s1 + $0x14a0] sm:$0xff]
    %v784 = vld [vmem:[%s1 + $0x14a8] sm:$0xff]
    %v785 = vld [vmem:[%s1 + $0x14b0] sm:$0xff]
    %v786 = vld [vmem:[%s1 + $0x14b8] sm:$0xff]
    %v787 = vld [vmem:[%s1 + $0x14c0] sm:$0xff]
    %v788 = vld [vmem:[%s1 + $0x14c8] sm:$0xff]
    %v789 = vld [vmem:[%s1 + $0x14d0] sm:$0xff]
    %v790 = vld [vmem:[%s1 + $0x14d8] sm:$0xff]
    %v791 = vld [vmem:[%s1 + $0x14e0] sm:$0xff]
    %v792 = vld [vmem:[%s1 + $0x14e8] sm:$0xff]
    %v793 = vld [vmem:[%s1 + $0x14f0] sm:$0xff]
    %v794 = vld [vmem:[%s1 + $0x14f8] sm:$0xff]
    %v795 = vld [vmem:[%s1 + $0x1500] sm:$0xff]
    %v796 = vld [vmem:[%s1 + $0x1508] sm:$0xff]
    %v797 = vld [vmem:[%s1 + $0x1510] sm:$0xff]
    %v798 = vld [vmem:[%s1 + $0x1518] sm:$0xff]
    %v799 = vld [vmem:[%s1 + $0x1520] sm:$0xff]
    %v800 = vld [vmem:[%s1 + $0x1528] sm:$0xff]
    %v801 = vld [vmem:[%s1 + $0x1530] sm:$0xff]
    %v802 = vld [vmem:[%s1 + $0x1538] sm:$0xff]
    %v803 = vld [vmem:[%s1 + $0x1540] sm:$0xff]
    %v804 = vld [vmem:[%s1 + $0x1548] sm:$0xff]
    %v805 = vld [vmem:[%s1 + $0x1550] sm:$0xff]
    %v806 = vld [vmem:[%s1 + $0x1558] sm:$0xff]
    %v807 = vld [vmem:[%s1 + $0x1560] sm:$0xff]
    %v808 = vld [vmem:[%s1 + $0x1568] sm:$0xff]
    %v809 = vld [vmem:[%s1 + $0x1570] sm:$0xff]
    %v810 = vld [vmem:[%s1 + $0x1578] sm:$0xff]
    %v811 = vld [vmem:[%s1 + $0x1580] sm:$0xff]
    %v812 = vld [vmem:[%s1 + $0x1588] sm:$0xff]
    %v813 = vld [vmem:[%s1 + $0x1590] sm:$0xff]
    %v814 = vld [vmem:[%s1 + $0x1598] sm:$0xff]
    %v815 = vld [vmem:[%s1 + $0x15a0] sm:$0xff]
    %v816 = vld [vmem:[%s1 + $0x15a8] sm:$0xff]
    %v817 = vld [vmem:[%s1 + $0x15b0] sm:$0xff]
    %v818 = vld [vmem:[%s1 + $0x15b8] sm:$0xff]
    %v819 = vld [vmem:[%s1 + $0x15c0] sm:$0xff]
    %v820 = vld [vmem:[%s1 + $0x15c8] sm:$0xff]
    %v821 = vld [vmem:[%s1 + $0x15d0] sm:$0xff]
    %v822 = vld [vmem:[%s1 + $0x15d8] sm:$0xff]
    %v823 = vld [vmem:[%s1 + $0x15e0] sm:$0xff]
    %v824 = vld [vmem:[%s1 + $0x15e8] sm:$0xff]
    %v825 = vld [vmem:[%s1 + $0x15f0] sm:$0xff]
    %v826 = vld [vmem:[%s1 + $0x15f8] sm:$0xff]
    %v827 = vld [vmem:[%s1 + $0x1600] sm:$0xff]
    %v828 = vld [vmem:[%s1 + $0x1608] sm:$0xff]
    %v829 = vld [vmem:[%s1 + $0x1610] sm:$0xff]
    %v830 = vld [vmem:[%s1 + $0x1618] sm:$0xff]
    %v831 = vld [vmem:[%s1 + $0x1620] sm:$0xff]
    %v832 = vld [vmem:[%s1 + $0x1628] sm:$0xff]
    %v833 = vld [vmem:[%s1 + $0x1630] sm:$0xff]
    %v834 = vld [vmem:[%s1 + $0x1638] sm:$0xff]
    %v835 = vld [vmem:[%s1 + $0x1640] sm:$0xff]
    %v836 = vld [vmem:[%s1 + $0x1648] sm:$0xff]
    %v837 = vld [vmem:[%s1 + $0x1650] sm:$0xff]
    %v838 = vld [vmem:[%s1 + $0x1658] sm:$0xff]
    %v839 = vld [vmem:[%s1 + $0x1660] sm:$0xff]
    %v840 = vld [vmem:[%s1 + $0x1668] sm:$0xff]
    %v841 = vld [vmem:[%s1 + $0x1670] sm:$0xff]
    %v842 = vld [vmem:[%s1 + $0x1678] sm:$0xff]
    %v843 = vld [vmem:[%s1 + $0x1680] sm:$0xff]
    %v844 = vld [vmem:[%s1 + $0x1688] sm:$0xff]
    %v845 = vld [vmem:[%s1 + $0x1690] sm:$0xff]
    %v846 = vld [vmem:[%s1 + $0x1698] sm:$0xff]
    %v847 = vld [vmem:[%s1 + $0x16a0] sm:$0xff]
    %v848 = vld [vmem:[%s1 + $0x16a8] sm:$0xff]
    %v849 = vld [vmem:[%s1 + $0x16b0] sm:$0xff]
    %v850 = vld [vmem:[%s1 + $0x16b8] sm:$0xff]
    %v851 = vld [vmem:[%s1 + $0x16c0] sm:$0xff]
    %v852 = vld [vmem:[%s1 + $0x16c8] sm:$0xff]
    %v853 = vld [vmem:[%s1 + $0x16d0] sm:$0xff]
    %v854 = vld [vmem:[%s1 + $0x16d8] sm:$0xff]
    %v855 = vld [vmem:[%s1 + $0x16e0] sm:$0xff]
    %v856 = vld [vmem:[%s1 + $0x16e8] sm:$0xff]
    %v857 = vld [vmem:[%s1 + $0x16f0] sm:$0xff]
    %v858 = vld [vmem:[%s1 + $0x16f8] sm:$0xff]
    %v859 = vld [vmem:[%s1 + $0x1700] sm:$0xff]
    %v860 = vld [vmem:[%s1 + $0x1708] sm:$0xff]
    %v861 = vld [vmem:[%s1 + $0x1710] sm:$0xff]
    %v862 = vld [vmem:[%s1 + $0x1718] sm:$0xff]
    %v863 = vld [vmem:[%s1 + $0x1720] sm:$0xff]
    %v864 = vld [vmem:[%s1 + $0x1728] sm:$0xff]
    %v865 = vld [vmem:[%s1 + $0x1730] sm:$0xff]
    %v866 = vld [vmem:[%s1 + $0x1738] sm:$0xff]
    %v867 = vld [vmem:[%s1 + $0x1740] sm:$0xff]
    %v868 = vld [vmem:[%s1 + $0x1748] sm:$0xff]
    %v869 = vld [vmem:[%s1 + $0x1750] sm:$0xff]
    %v870 = vld [vmem:[%s1 + $0x1758] sm:$0xff]
    %v871 = vld [vmem:[%s1 + $0x1760] sm:$0xff]
    %v872 = vld [vmem:[%s1 + $0x1768] sm:$0xff]
    %v873 = vld [vmem:[%s1 + $0x1770] sm:$0xff]
    %v874 = vld [vmem:[%s1 + $0x1778] sm:$0xff]
    %v875 = vld [vmem:[%s1 + $0x1780] sm:$0xff]
    %v876 = vld [vmem:[%s1 + $0x1788] sm:$0xff]
    %v877 = vld [vmem:[%s1 + $0x1790] sm:$0xff]
    %v878 = vld [vmem:[%s1 + $0x1798] sm:$0xff]
    %v879 = vld [vmem:[%s1 + $0x17a0] sm:$0xff]
    %v880 = vld [vmem:[%s1 + $0x17a8] sm:$0xff]
    %v881 = vld [vmem:[%s1 + $0x17b0] sm:$0xff]
    %v882 = vld [vmem:[%s1 + $0x17b8] sm:$0xff]
    %v883 = vld [vmem:[%s1 + $0x17c0] sm:$0xff]
    %v884 = vld [vmem:[%s1 + $0x17c8] sm:$0xff]
    %v885 = vld [vmem:[%s1 + $0x17d0] sm:$0xff]
    %v886 = vld [vmem:[%s1 + $0x17d8] sm:$0xff]
    %v887 = vld [vmem:[%s1 + $0x17e0] sm:$0xff]
    %v888 = vld [vmem:[%s1 + $0x17e8] sm:$0xff]
    %v889 = vld [vmem:[%s1 + $0x17f0] sm:$0xff]
    %v890 = vld [vmem:[%s1 + $0x17f8] sm:$0xff]
    %v891 = vld [vmem:[%s1 + $0x1800] sm:$0xff]
    %v892 = vld [vmem:[%s1 + $0x1808] sm:$0xff]
    %v893 = vld [vmem:[%s1 + $0x1810] sm:$0xff]
    %v894 = vld [vmem:[%s1 + $0x1818] sm:$0xff]
    %v895 = vld [vmem:[%s1 + $0x1820] sm:$0xff]
    %v896 = vld [vmem:[%s1 + $0x1828] sm:$0xff]
    %v897 = vld [vmem:[%s1 + $0x1830] sm:$0xff]
    %v898 = vld [vmem:[%s1 + $0x1838] sm:$0xff]
    %v899 = vld [vmem:[%s1 + $0x1840] sm:$0xff]
    %v900 = vld [vmem:[%s1 + $0x1848] sm:$0xff]
    %v901 = vld [vmem:[%s1 + $0x1850] sm:$0xff]
    %v902 = vld [vmem:[%s1 + $0x1858] sm:$0xff]
    %v903 = vld [vmem:[%s1 + $0x1860] sm:$0xff]
    %v904 = vld [vmem:[%s1 + $0x1868] sm:$0xff]
    %v905 = vld [vmem:[%s1 + $0x1870] sm:$0xff]
    %v906 = vld [vmem:[%s1 + $0x1878] sm:$0xff]
    %v907 = vld [vmem:[%s1 + $0x1880] sm:$0xff]
    %v908 = vld [vmem:[%s1 + $0x1888] sm:$0xff]
    %v909 = vld [vmem:[%s1 + $0x1890] sm:$0xff]
    %v910 = vld [vmem:[%s1 + $0x1898] sm:$0xff]
    %v911 = vld [vmem:[%s1 + $0x18a0] sm:$0xff]
    %v912 = vld [vmem:[%s1 + $0x18a8] sm:$0xff]
    %v913 = vld [vmem:[%s1 + $0x18b0] sm:$0xff]
    %v914 = vld [vmem:[%s1 + $0x18b8] sm:$0xff]
    %v915 = vld [vmem:[%s1 + $0x18c0] sm:$0xff]
    %v916 = vld [vmem:[%s1 + $0x18c8] sm:$0xff]
    %v917 = vld [vmem:[%s1 + $0x18d0] sm:$0xff]
    %v918 = vld [vmem:[%s1 + $0x18d8] sm:$0xff]
    %v919 = vld [vmem:[%s1 + $0x18e0] sm:$0xff]
    %v920 = vld [vmem:[%s1 + $0x18e8] sm:$0xff]
    %v921 = vld [vmem:[%s1 + $0x18f0] sm:$0xff]
    %v922 = vld [vmem:[%s1 + $0x18f8] sm:$0xff]
    %v923 = vld [vmem:[%s1 + $0x1900] sm:$0xff]
    %v924 = vld [vmem:[%s1 + $0x1908] sm:$0xff]
    %v925 = vld [vmem:[%s1 + $0x1910] sm:$0xff]
    %v926 = vld [vmem:[%s1 + $0x1918] sm:$0xff]
    %v927 = vld [vmem:[%s1 + $0x1920] sm:$0xff]
    %v928 = vld [vmem:[%s1 + $0x1928] sm:$0xff]
    %v929 = vld [vmem:[%s1 + $0x1930] sm:$0xff]
    %v930 = vld [vmem:[%s1 + $0x1938] sm:$0xff]
    %v931 = vld [vmem:[%s1 + $0x1940] sm:$0xff]
    %v932 = vld [vmem:[%s1 + $0x1948] sm:$0xff]
    %v933 = vld [vmem:[%s1 + $0x1950] sm:$0xff]
    %v934 = vld [vmem:[%s1 + $0x1958] sm:$0xff]
    %v935 = vld [vmem:[%s1 + $0x1960] sm:$0xff]
    %v936 = vld [vmem:[%s1 + $0x1968] sm:$0xff]
    %v937 = vld [vmem:[%s1 + $0x1970] sm:$0xff]
    %v938 = vld [vmem:[%s1 + $0x1978] sm:$0xff]
    %v939 = vld [vmem:[%s1 + $0x1980] sm:$0xff]
    %v940 = vld [vmem:[%s1 + $0x1988] sm:$0xff]
    %v941 = vld [vmem:[%s1 + $0x1990] sm:$0xff]
    %v942 = vld [vmem:[%s1 + $0x1998] sm:$0xff]
    %v943 = vld [vmem:[%s1 + $0x19a0] sm:$0xff]
    %v944 = vld [vmem:[%s1 + $0x19a8] sm:$0xff]
    %v945 = vld [vmem:[%s1 + $0x19b0] sm:$0xff]
    %v946 = vld [vmem:[%s1 + $0x19b8] sm:$0xff]
    %v947 = vld [vmem:[%s1 + $0x19c0] sm:$0xff]
    %v948 = vld [vmem:[%s1 + $0x19c8] sm:$0xff]
    %v949 = vld [vmem:[%s1 + $0x19d0] sm:$0xff]
    %v950 = vld [vmem:[%s1 + $0x19d8] sm:$0xff]
    %v951 = vld [vmem:[%s1 + $0x19e0] sm:$0xff]
    %v952 = vld [vmem:[%s1 + $0x19e8] sm:$0xff]
    %v953 = vld [vmem:[%s1 + $0x19f0] sm:$0xff]
    %v954 = vld [vmem:[%s1 + $0x19f8] sm:$0xff]
    %v955 = vld [vmem:[%s1 + $0x1a00] sm:$0xff]
    %v956 = vld [vmem:[%s1 + $0x1a08] sm:$0xff]
    %v957 = vld [vmem:[%s1 + $0x1a10] sm:$0xff]
    %v958 = vld [vmem:[%s1 + $0x1a18] sm:$0xff]
    %v959 = vld [vmem:[%s1 + $0x1a20] sm:$0xff]
    %v960 = vld [vmem:[%s1 + $0x1a28] sm:$0xff]
    %v961 = vld [vmem:[%s1 + $0x1a30] sm:$0xff]
    %v962 = vld [vmem:[%s1 + $0x1a38] sm:$0xff]
    %v963 = vld [vmem:[%s1 + $0x1a40] sm:$0xff]
    %v964 = vld [vmem:[%s1 + $0x1a48] sm:$0xff]
    %v965 = vld [vmem:[%s1 + $0x1a50] sm:$0xff]
    %v966 = vld [vmem:[%s1 + $0x1a58] sm:$0xff]
    %v967 = vld [vmem:[%s1 + $0x1a60] sm:$0xff]
    %v968 = vld [vmem:[%s1 + $0x1a68] sm:$0xff]
    %v969 = vld [vmem:[%s1 + $0x1a70] sm:$0xff]
    %v970 = vld [vmem:[%s1 + $0x1a78] sm:$0xff]
    %v971 = vld [vmem:[%s1 + $0x1a80] sm:$0xff]
    %v972 = vld [vmem:[%s1 + $0x1a88] sm:$0xff]
    %v973 = vld [vmem:[%s1 + $0x1a90] sm:$0xff]
    %v974 = vld [vmem:[%s1 + $0x1a98] sm:$0xff]
    %v975 = vld [vmem:[%s1 + $0x1aa0] sm:$0xff]
    %v976 = vld [vmem:[%s1 + $0x1aa8] sm:$0xff]
    %v977 = vld [vmem:[%s1 + $0x1ab0] sm:$0xff]
    %v978 = vld [vmem:[%s1 + $0x1ab8] sm:$0xff]
    %v979 = vld [vmem:[%s1 + $0x1ac0] sm:$0xff]
    %v980 = vld [vmem:[%s1 + $0x1ac8] sm:$0xff]
    %v981 = vld [vmem:[%s1 + $0x1ad0] sm:$0xff]
    %v982 = vld [vmem:[%s1 + $0x1ad8] sm:$0xff]
    %v983 = vld [vmem:[%s1 + $0x1ae0] sm:$0xff]
    %v984 = vld [vmem:[%s1 + $0x1ae8] sm:$0xff]
    %v985 = vld [vmem:[%s1 + $0x1af0] sm:$0xff]
    %v986 = vld [vmem:[%s1 + $0x1af8] sm:$0xff]
    %v987 = vld [vmem:[%s1 + $0x1b00] sm:$0xff]
    %v988 = vld [vmem:[%s1 + $0x1b08] sm:$0xff]
    %v989 = vld [vmem:[%s1 + $0x1b10] sm:$0xff]
    %v990 = vld [vmem:[%s1 + $0x1b18] sm:$0xff]
    %v991 = vld [vmem:[%s1 + $0x1b20] sm:$0xff]
    %v992 = vld [vmem:[%s1 + $0x1b28] sm:$0xff]
    %v993 = vld [vmem:[%s1 + $0x1b30] sm:$0xff]
    %v994 = vld [vmem:[%s1 + $0x1b38] sm:$0xff]
    %v995 = vld [vmem:[%s1 + $0x1b40] sm:$0xff]
    %v996 = vld [vmem:[%s1 + $0x1b48] sm:$0xff]
    %v997 = vld [vmem:[%s1 + $0x1b50] sm:$0xff]
    %v998 = vld [vmem:[%s1 + $0x1b58] sm:$0xff]
    %v999 = vld [vmem:[%s1 + $0x1b60] sm:$0xff]
    %v1000 = vld [vmem:[%s1 + $0x1b68] sm:$0xff]
    %v1001 = vld [vmem:[%s1 + $0x1b70] sm:$0xff]
    %v1002 = vld [vmem:[%s1 + $0x1b78] sm:$0xff]
    %v1003 = vld [vmem:[%s1 + $0x1b80] sm:$0xff]
    %v1004 = vld [vmem:[%s1 + $0x1b88] sm:$0xff]
    %v1005 = vld [vmem:[%s1 + $0x1b90] sm:$0xff]
    %v1006 = vld [vmem:[%s1 + $0x1b98] sm:$0xff]
    %v1007 = vld [vmem:[%s1 + $0x1ba0] sm:$0xff]
    %v1008 = vld [vmem:[%s1 + $0x1ba8] sm:$0xff]
    %v1009 = vld [vmem:[%s1 + $0x1bb0] sm:$0xff]
    %v1010 = vld [vmem:[%s1 + $0x1bb8] sm:$0xff]
    %v1011 = vld [vmem:[%s1 + $0x1bc0] sm:$0xff]
    %v1012 = vld [vmem:[%s1 + $0x1bc8] sm:$0xff]
    %v1013 = vld [vmem:[%s1 + $0x1bd0] sm:$0xff]
    %v1014 = vld [vmem:[%s1 + $0x1bd8] sm:$0xff]
    %v1015 = vld [vmem:[%s1 + $0x1be0] sm:$0xff]
    %v1016 = vld [vmem:[%s1 + $0x1be8] sm:$0xff]
    %v1017 = vld [vmem:[%s1 + $0x1bf0] sm:$0xff]
    %v1018 = vld [vmem:[%s1 + $0x1bf8] sm:$0xff]
    %v1019 = vld [vmem:[%s2] sm:$0xff]
    %v1021 = vlaneseq
    %v1022 = vshrl.u32 %v1021, 7
    %v1023 = vsub.s32 0, %v1022
    %v1024 = vrot.slane %v1019, %v1023
    %v1025 = vlaneseq
    %v1026 = vshrl.u32 %v1025, 7
    %v1027 = vsub.s32 1, %v1026
    %v1028 = vrot.slane %v1019, %v1027
    %v1029 = vlaneseq
    %v1030 = vshrl.u32 %v1029, 7
    %v1031 = vsub.s32 2, %v1030
    %v1032 = vrot.slane %v1019, %v1031
    %v1033 = vlaneseq
    %v1034 = vshrl.u32 %v1033, 7
    %v1035 = vsub.s32 3, %v1034
    %v1036 = vrot.slane %v1019, %v1035
    %v1037 = vlaneseq
    %v1038 = vshrl.u32 %v1037, 7
    %v1039 = vsub.s32 4, %v1038
    %v1040 = vrot.slane %v1019, %v1039
    %v1041 = vlaneseq
    %v1042 = vshrl.u32 %v1041, 7
    %v1043 = vsub.s32 5, %v1042
    %v1044 = vrot.slane %v1019, %v1043
    %v1045 = vlaneseq
    %v1046 = vshrl.u32 %v1045, 7
    %v1047 = vsub.s32 6, %v1046
    %v1048 = vrot.slane %v1019, %v1047
    %v1049 = vlaneseq
    %v1050 = vshrl.u32 %v1049, 7
    %v1051 = vsub.s32 7, %v1050
    %v1052 = vrot.slane %v1019, %v1051
    %v1957 = vunpack.c.l.b16 %v123
    %v1958 = vunpack.c.h.b16 %v123
    %v1959 = vunpack.c.l.b16 %v124
    %v1960 = vunpack.c.h.b16 %v124
    %v1961 = vunpack.c.l.b16 %v125
    %v1962 = vunpack.c.h.b16 %v125
    %v1963 = vunpack.c.l.b16 %v126
    %v1964 = vunpack.c.h.b16 %v126
    %v1965 = vunpack.c.l.b16 %v127
    %v1966 = vunpack.c.h.b16 %v127
    %v1967 = vunpack.c.l.b16 %v128
    %v1968 = vunpack.c.h.b16 %v128
    %v1969 = vunpack.c.l.b16 %v129
    %v1970 = vunpack.c.h.b16 %v129
    %v1971 = vunpack.c.l.b16 %v130
    %v1972 = vunpack.c.h.b16 %v130
    %v1973 = vunpack.c.l.b16 %v131
    %v1974 = vunpack.c.h.b16 %v131
    %v1975 = vunpack.c.l.b16 %v132
    %v1976 = vunpack.c.h.b16 %v132
    %v1977 = vunpack.c.l.b16 %v133
    %v1978 = vunpack.c.h.b16 %v133
    %v1979 = vunpack.c.l.b16 %v134
    %v1980 = vunpack.c.h.b16 %v134
    %v1981 = vunpack.c.l.b16 %v135
    %v1982 = vunpack.c.h.b16 %v135
    %v1983 = vunpack.c.l.b16 %v136
    %v1984 = vunpack.c.h.b16 %v136
    %v1985 = vunpack.c.l.b16 %v137
    %v1986 = vunpack.c.h.b16 %v137
    %v1987 = vunpack.c.l.b16 %v138
    %v1988 = vunpack.c.h.b16 %v138
    %v1989 = vunpack.c.l.b16 %v139
    %v1990 = vunpack.c.h.b16 %v139
    %v1991 = vunpack.c.l.b16 %v140
    %v1992 = vunpack.c.h.b16 %v140
    %v1993 = vunpack.c.l.b16 %v141
    %v1994 = vunpack.c.h.b16 %v141
    %v1995 = vunpack.c.l.b16 %v142
    %v1996 = vunpack.c.h.b16 %v142
    %v1997 = vunpack.c.l.b16 %v143
    %v1998 = vunpack.c.h.b16 %v143
    %v1999 = vunpack.c.l.b16 %v144
    %v2000 = vunpack.c.h.b16 %v144
    %v2001 = vunpack.c.l.b16 %v145
    %v2002 = vunpack.c.h.b16 %v145
    %v2003 = vunpack.c.l.b16 %v146
    %v2004 = vunpack.c.h.b16 %v146
    %v2005 = vunpack.c.l.b16 %v147
    %v2006 = vunpack.c.h.b16 %v147
    %v2007 = vunpack.c.l.b16 %v148
    %v2008 = vunpack.c.h.b16 %v148
    %v2009 = vunpack.c.l.b16 %v149
    %v2010 = vunpack.c.h.b16 %v149
    %v2011 = vunpack.c.l.b16 %v150
    %v2012 = vunpack.c.h.b16 %v150
    %v2013 = vunpack.c.l.b16 %v151
    %v2014 = vunpack.c.h.b16 %v151
    %v2015 = vunpack.c.l.b16 %v152
    %v2016 = vunpack.c.h.b16 %v152
    %v2017 = vunpack.c.l.b16 %v153
    %v2018 = vunpack.c.h.b16 %v153
    %v2019 = vunpack.c.l.b16 %v154
    %v2020 = vunpack.c.h.b16 %v154
    %v2021 = vunpack.c.l.b16 %v155
    %v2022 = vunpack.c.h.b16 %v155
    %v2023 = vunpack.c.l.b16 %v156
    %v2024 = vunpack.c.h.b16 %v156
    %v2025 = vunpack.c.l.b16 %v157
    %v2026 = vunpack.c.h.b16 %v157
    %v2027 = vunpack.c.l.b16 %v158
    %v2028 = vunpack.c.h.b16 %v158
    %v2029 = vunpack.c.l.b16 %v159
    %v2030 = vunpack.c.h.b16 %v159
    %v2031 = vunpack.c.l.b16 %v160
    %v2032 = vunpack.c.h.b16 %v160
    %v2033 = vunpack.c.l.b16 %v161
    %v2034 = vunpack.c.h.b16 %v161
    %v2035 = vunpack.c.l.b16 %v162
    %v2036 = vunpack.c.h.b16 %v162
    %v2037 = vunpack.c.l.b16 %v163
    %v2038 = vunpack.c.h.b16 %v163
    %v2039 = vunpack.c.l.b16 %v164
    %v2040 = vunpack.c.h.b16 %v164
    %v2041 = vunpack.c.l.b16 %v165
    %v2042 = vunpack.c.h.b16 %v165
    %v2043 = vunpack.c.l.b16 %v166
    %v2044 = vunpack.c.h.b16 %v166
    %v2045 = vunpack.c.l.b16 %v167
    %v2046 = vunpack.c.h.b16 %v167
    %v2047 = vunpack.c.l.b16 %v168
    %v2048 = vunpack.c.h.b16 %v168
    %v2049 = vunpack.c.l.b16 %v169
    %v2050 = vunpack.c.h.b16 %v169
    %v2051 = vunpack.c.l.b16 %v170
    %v2052 = vunpack.c.h.b16 %v170
    %v2053 = vunpack.c.l.b16 %v171
    %v2054 = vunpack.c.h.b16 %v171
    %v2055 = vunpack.c.l.b16 %v172
    %v2056 = vunpack.c.h.b16 %v172
    %v2057 = vunpack.c.l.b16 %v173
    %v2058 = vunpack.c.h.b16 %v173
    %v2059 = vunpack.c.l.b16 %v174
    %v2060 = vunpack.c.h.b16 %v174
    %v2061 = vunpack.c.l.b16 %v175
    %v2062 = vunpack.c.h.b16 %v175
    %v2063 = vunpack.c.l.b16 %v176
    %v2064 = vunpack.c.h.b16 %v176
    %v2065 = vunpack.c.l.b16 %v177
    %v2066 = vunpack.c.h.b16 %v177
    %v2067 = vunpack.c.l.b16 %v178
    %v2068 = vunpack.c.h.b16 %v178
    %v2069 = vunpack.c.l.b16 %v179
    %v2070 = vunpack.c.h.b16 %v179
    %v2071 = vunpack.c.l.b16 %v180
    %v2072 = vunpack.c.h.b16 %v180
    %v2073 = vunpack.c.l.b16 %v181
    %v2074 = vunpack.c.h.b16 %v181
    %v2075 = vunpack.c.l.b16 %v182
    %v2076 = vunpack.c.h.b16 %v182
    %v2077 = vunpack.c.l.b16 %v183
    %v2078 = vunpack.c.h.b16 %v183
    %v2079 = vunpack.c.l.b16 %v184
    %v2080 = vunpack.c.h.b16 %v184
    %v2081 = vunpack.c.l.b16 %v185
    %v2082 = vunpack.c.h.b16 %v185
    %v2083 = vunpack.c.l.b16 %v186
    %v2084 = vunpack.c.h.b16 %v186
    %v2085 = vunpack.c.l.b16 %v187
    %v2086 = vunpack.c.h.b16 %v187
    %v2087 = vunpack.c.l.b16 %v188
    %v2088 = vunpack.c.h.b16 %v188
    %v2089 = vunpack.c.l.b16 %v189
    %v2090 = vunpack.c.h.b16 %v189
    %v2091 = vunpack.c.l.b16 %v190
    %v2092 = vunpack.c.h.b16 %v190
    %v2093 = vunpack.c.l.b16 %v191
    %v2094 = vunpack.c.h.b16 %v191
    %v2095 = vunpack.c.l.b16 %v192
    %v2096 = vunpack.c.h.b16 %v192
    %v2097 = vunpack.c.l.b16 %v193
    %v2098 = vunpack.c.h.b16 %v193
    %v2099 = vunpack.c.l.b16 %v194
    %v2100 = vunpack.c.h.b16 %v194
    %v2101 = vunpack.c.l.b16 %v195
    %v2102 = vunpack.c.h.b16 %v195
    %v2103 = vunpack.c.l.b16 %v196
    %v2104 = vunpack.c.h.b16 %v196
    %v2105 = vunpack.c.l.b16 %v197
    %v2106 = vunpack.c.h.b16 %v197
    %v2107 = vunpack.c.l.b16 %v198
    %v2108 = vunpack.c.h.b16 %v198
    %v2109 = vunpack.c.l.b16 %v199
    %v2110 = vunpack.c.h.b16 %v199
    %v2111 = vunpack.c.l.b16 %v200
    %v2112 = vunpack.c.h.b16 %v200
    %v2113 = vunpack.c.l.b16 %v201
    %v2114 = vunpack.c.h.b16 %v201
    %v2115 = vunpack.c.l.b16 %v202
    %v2116 = vunpack.c.h.b16 %v202
    %v2117 = vunpack.c.l.b16 %v203
    %v2118 = vunpack.c.h.b16 %v203
    %v2119 = vunpack.c.l.b16 %v204
    %v2120 = vunpack.c.h.b16 %v204
    %v2121 = vunpack.c.l.b16 %v205
    %v2122 = vunpack.c.h.b16 %v205
    %v2123 = vunpack.c.l.b16 %v206
    %v2124 = vunpack.c.h.b16 %v206
    %v2125 = vunpack.c.l.b16 %v207
    %v2126 = vunpack.c.h.b16 %v207
    %v2127 = vunpack.c.l.b16 %v208
    %v2128 = vunpack.c.h.b16 %v208
    %v2129 = vunpack.c.l.b16 %v209
    %v2130 = vunpack.c.h.b16 %v209
    %v2131 = vunpack.c.l.b16 %v210
    %v2132 = vunpack.c.h.b16 %v210
    %v2133 = vunpack.c.l.b16 %v211
    %v2134 = vunpack.c.h.b16 %v211
    %v2135 = vunpack.c.l.b16 %v212
    %v2136 = vunpack.c.h.b16 %v212
    %v2137 = vunpack.c.l.b16 %v213
    %v2138 = vunpack.c.h.b16 %v213
    %v2139 = vunpack.c.l.b16 %v214
    %v2140 = vunpack.c.h.b16 %v214
    %v2141 = vunpack.c.l.b16 %v215
    %v2142 = vunpack.c.h.b16 %v215
    %v2143 = vunpack.c.l.b16 %v216
    %v2144 = vunpack.c.h.b16 %v216
    %v2145 = vunpack.c.l.b16 %v217
    %v2146 = vunpack.c.h.b16 %v217
    %v2147 = vunpack.c.l.b16 %v218
    %v2148 = vunpack.c.h.b16 %v218
    %v2149 = vunpack.c.l.b16 %v219
    %v2150 = vunpack.c.h.b16 %v219
    %v2151 = vunpack.c.l.b16 %v220
    %v2152 = vunpack.c.h.b16 %v220
    %v2153 = vunpack.c.l.b16 %v221
    %v2154 = vunpack.c.h.b16 %v221
    %v2155 = vunpack.c.l.b16 %v222
    %v2156 = vunpack.c.h.b16 %v222
    %v2157 = vunpack.c.l.b16 %v223
    %v2158 = vunpack.c.h.b16 %v223
    %v2159 = vunpack.c.l.b16 %v224
    %v2160 = vunpack.c.h.b16 %v224
    %v2161 = vunpack.c.l.b16 %v225
    %v2162 = vunpack.c.h.b16 %v225
    %v2163 = vunpack.c.l.b16 %v226
    %v2164 = vunpack.c.h.b16 %v226
    %v2165 = vunpack.c.l.b16 %v227
    %v2166 = vunpack.c.h.b16 %v227
    %v2167 = vunpack.c.l.b16 %v228
    %v2168 = vunpack.c.h.b16 %v228
    %v2169 = vunpack.c.l.b16 %v229
    %v2170 = vunpack.c.h.b16 %v229
    %v2171 = vunpack.c.l.b16 %v230
    %v2172 = vunpack.c.h.b16 %v230
    %v2173 = vunpack.c.l.b16 %v231
    %v2174 = vunpack.c.h.b16 %v231
    %v2175 = vunpack.c.l.b16 %v232
    %v2176 = vunpack.c.h.b16 %v232
    %v2177 = vunpack.c.l.b16 %v233
    %v2178 = vunpack.c.h.b16 %v233
    %v2179 = vunpack.c.l.b16 %v234
    %v2180 = vunpack.c.h.b16 %v234
    %v2181 = vunpack.c.l.b16 %v235
    %v2182 = vunpack.c.h.b16 %v235
    %v2183 = vunpack.c.l.b16 %v236
    %v2184 = vunpack.c.h.b16 %v236
    %v2185 = vunpack.c.l.b16 %v237
    %v2186 = vunpack.c.h.b16 %v237
    %v2187 = vunpack.c.l.b16 %v238
    %v2188 = vunpack.c.h.b16 %v238
    %v2189 = vunpack.c.l.b16 %v239
    %v2190 = vunpack.c.h.b16 %v239
    %v2191 = vunpack.c.l.b16 %v240
    %v2192 = vunpack.c.h.b16 %v240
    %v2193 = vunpack.c.l.b16 %v241
    %v2194 = vunpack.c.h.b16 %v241
    %v2195 = vunpack.c.l.b16 %v242
    %v2196 = vunpack.c.h.b16 %v242
    %v2197 = vunpack.c.l.b16 %v243
    %v2198 = vunpack.c.h.b16 %v243
    %v2199 = vunpack.c.l.b16 %v244
    %v2200 = vunpack.c.h.b16 %v244
    %v2201 = vunpack.c.l.b16 %v245
    %v2202 = vunpack.c.h.b16 %v245
    %v2203 = vunpack.c.l.b16 %v246
    %v2204 = vunpack.c.h.b16 %v246
    %v2205 = vunpack.c.l.b16 %v247
    %v2206 = vunpack.c.h.b16 %v247
    %v2207 = vunpack.c.l.b16 %v248
    %v2208 = vunpack.c.h.b16 %v248
    %v2209 = vunpack.c.l.b16 %v249
    %v2210 = vunpack.c.h.b16 %v249
    %v2211 = vunpack.c.l.b16 %v250
    %v2212 = vunpack.c.h.b16 %v250
    %v2213 = vunpack.c.l.b16 %v251
    %v2214 = vunpack.c.h.b16 %v251
    %v2215 = vunpack.c.l.b16 %v252
    %v2216 = vunpack.c.h.b16 %v252
    %v2217 = vunpack.c.l.b16 %v253
    %v2218 = vunpack.c.h.b16 %v253
    %v2219 = vunpack.c.l.b16 %v254
    %v2220 = vunpack.c.h.b16 %v254
    %v2221 = vunpack.c.l.b16 %v255
    %v2222 = vunpack.c.h.b16 %v255
    %v2223 = vunpack.c.l.b16 %v256
    %v2224 = vunpack.c.h.b16 %v256
    %v2225 = vunpack.c.l.b16 %v257
    %v2226 = vunpack.c.h.b16 %v257
    %v2227 = vunpack.c.l.b16 %v258
    %v2228 = vunpack.c.h.b16 %v258
    %v2229 = vunpack.c.l.b16 %v259
    %v2230 = vunpack.c.h.b16 %v259
    %v2231 = vunpack.c.l.b16 %v260
    %v2232 = vunpack.c.h.b16 %v260
    %v2233 = vunpack.c.l.b16 %v261
    %v2234 = vunpack.c.h.b16 %v261
    %v2235 = vunpack.c.l.b16 %v262
    %v2236 = vunpack.c.h.b16 %v262
    %v2237 = vunpack.c.l.b16 %v263
    %v2238 = vunpack.c.h.b16 %v263
    %v2239 = vunpack.c.l.b16 %v264
    %v2240 = vunpack.c.h.b16 %v264
    %v2241 = vunpack.c.l.b16 %v265
    %v2242 = vunpack.c.h.b16 %v265
    %v2243 = vunpack.c.l.b16 %v266
    %v2244 = vunpack.c.h.b16 %v266
    %v2245 = vunpack.c.l.b16 %v267
    %v2246 = vunpack.c.h.b16 %v267
    %v2247 = vunpack.c.l.b16 %v268
    %v2248 = vunpack.c.h.b16 %v268
    %v2249 = vunpack.c.l.b16 %v269
    %v2250 = vunpack.c.h.b16 %v269
    %v2251 = vunpack.c.l.b16 %v270
    %v2252 = vunpack.c.h.b16 %v270
    %v2253 = vunpack.c.l.b16 %v271
    %v2254 = vunpack.c.h.b16 %v271
    %v2255 = vunpack.c.l.b16 %v272
    %v2256 = vunpack.c.h.b16 %v272
    %v2257 = vunpack.c.l.b16 %v273
    %v2258 = vunpack.c.h.b16 %v273
    %v2259 = vunpack.c.l.b16 %v274
    %v2260 = vunpack.c.h.b16 %v274
    %v2261 = vunpack.c.l.b16 %v275
    %v2262 = vunpack.c.h.b16 %v275
    %v2263 = vunpack.c.l.b16 %v276
    %v2264 = vunpack.c.h.b16 %v276
    %v2265 = vunpack.c.l.b16 %v277
    %v2266 = vunpack.c.h.b16 %v277
    %v2267 = vunpack.c.l.b16 %v278
    %v2268 = vunpack.c.h.b16 %v278
    %v2269 = vunpack.c.l.b16 %v279
    %v2270 = vunpack.c.h.b16 %v279
    %v2271 = vunpack.c.l.b16 %v280
    %v2272 = vunpack.c.h.b16 %v280
    %v2273 = vunpack.c.l.b16 %v281
    %v2274 = vunpack.c.h.b16 %v281
    %v2275 = vunpack.c.l.b16 %v282
    %v2276 = vunpack.c.h.b16 %v282
    %v2277 = vunpack.c.l.b16 %v283
    %v2278 = vunpack.c.h.b16 %v283
    %v2279 = vunpack.c.l.b16 %v284
    %v2280 = vunpack.c.h.b16 %v284
    %v2281 = vunpack.c.l.b16 %v285
    %v2282 = vunpack.c.h.b16 %v285
    %v2283 = vunpack.c.l.b16 %v286
    %v2284 = vunpack.c.h.b16 %v286
    %v2285 = vunpack.c.l.b16 %v287
    %v2286 = vunpack.c.h.b16 %v287
    %v2287 = vunpack.c.l.b16 %v288
    %v2288 = vunpack.c.h.b16 %v288
    %v2289 = vunpack.c.l.b16 %v289
    %v2290 = vunpack.c.h.b16 %v289
    %v2291 = vunpack.c.l.b16 %v290
    %v2292 = vunpack.c.h.b16 %v290
    %v2293 = vunpack.c.l.b16 %v291
    %v2294 = vunpack.c.h.b16 %v291
    %v2295 = vunpack.c.l.b16 %v292
    %v2296 = vunpack.c.h.b16 %v292
    %v2297 = vunpack.c.l.b16 %v293
    %v2298 = vunpack.c.h.b16 %v293
    %v2299 = vunpack.c.l.b16 %v294
    %v2300 = vunpack.c.h.b16 %v294
    %v2301 = vunpack.c.l.b16 %v295
    %v2302 = vunpack.c.h.b16 %v295
    %v2303 = vunpack.c.l.b16 %v296
    %v2304 = vunpack.c.h.b16 %v296
    %v2305 = vunpack.c.l.b16 %v297
    %v2306 = vunpack.c.h.b16 %v297
    %v2307 = vunpack.c.l.b16 %v298
    %v2308 = vunpack.c.h.b16 %v298
    %v2309 = vunpack.c.l.b16 %v299
    %v2310 = vunpack.c.h.b16 %v299
    %v2311 = vunpack.c.l.b16 %v300
    %v2312 = vunpack.c.h.b16 %v300
    %v2313 = vunpack.c.l.b16 %v301
    %v2314 = vunpack.c.h.b16 %v301
    %v2315 = vunpack.c.l.b16 %v302
    %v2316 = vunpack.c.h.b16 %v302
    %v2317 = vunpack.c.l.b16 %v303
    %v2318 = vunpack.c.h.b16 %v303
    %v2319 = vunpack.c.l.b16 %v304
    %v2320 = vunpack.c.h.b16 %v304
    %v2321 = vunpack.c.l.b16 %v305
    %v2322 = vunpack.c.h.b16 %v305
    %v2323 = vunpack.c.l.b16 %v306
    %v2324 = vunpack.c.h.b16 %v306
    %v2325 = vunpack.c.l.b16 %v307
    %v2326 = vunpack.c.h.b16 %v307
    %v2327 = vunpack.c.l.b16 %v308
    %v2328 = vunpack.c.h.b16 %v308
    %v2329 = vunpack.c.l.b16 %v309
    %v2330 = vunpack.c.h.b16 %v309
    %v2331 = vunpack.c.l.b16 %v310
    %v2332 = vunpack.c.h.b16 %v310
    %v2333 = vunpack.c.l.b16 %v311
    %v2334 = vunpack.c.h.b16 %v311
    %v2335 = vunpack.c.l.b16 %v312
    %v2336 = vunpack.c.h.b16 %v312
    %v2337 = vunpack.c.l.b16 %v313
    %v2338 = vunpack.c.h.b16 %v313
    %v2339 = vunpack.c.l.b16 %v314
    %v2340 = vunpack.c.h.b16 %v314
    %v2341 = vunpack.c.l.b16 %v315
    %v2342 = vunpack.c.h.b16 %v315
    %v2343 = vunpack.c.l.b16 %v316
    %v2344 = vunpack.c.h.b16 %v316
    %v2345 = vunpack.c.l.b16 %v317
    %v2346 = vunpack.c.h.b16 %v317
    %v2347 = vunpack.c.l.b16 %v318
    %v2348 = vunpack.c.h.b16 %v318
    %v2349 = vunpack.c.l.b16 %v319
    %v2350 = vunpack.c.h.b16 %v319
    %v2351 = vunpack.c.l.b16 %v320
    %v2352 = vunpack.c.h.b16 %v320
    %v2353 = vunpack.c.l.b16 %v321
    %v2354 = vunpack.c.h.b16 %v321
    %v2355 = vunpack.c.l.b16 %v322
    %v2356 = vunpack.c.h.b16 %v322
    %v2357 = vunpack.c.l.b16 %v323
    %v2358 = vunpack.c.h.b16 %v323
    %v2359 = vunpack.c.l.b16 %v324
    %v2360 = vunpack.c.h.b16 %v324
    %v2361 = vunpack.c.l.b16 %v325
    %v2362 = vunpack.c.h.b16 %v325
    %v2363 = vunpack.c.l.b16 %v326
    %v2364 = vunpack.c.h.b16 %v326
    %v2365 = vunpack.c.l.b16 %v327
    %v2366 = vunpack.c.h.b16 %v327
    %v2367 = vunpack.c.l.b16 %v328
    %v2368 = vunpack.c.h.b16 %v328
    %v2369 = vunpack.c.l.b16 %v329
    %v2370 = vunpack.c.h.b16 %v329
    %v2371 = vunpack.c.l.b16 %v330
    %v2372 = vunpack.c.h.b16 %v330
    %v2373 = vunpack.c.l.b16 %v331
    %v2374 = vunpack.c.h.b16 %v331
    %v2375 = vunpack.c.l.b16 %v332
    %v2376 = vunpack.c.h.b16 %v332
    %v2377 = vunpack.c.l.b16 %v333
    %v2378 = vunpack.c.h.b16 %v333
    %v2379 = vunpack.c.l.b16 %v334
    %v2380 = vunpack.c.h.b16 %v334
    %v2381 = vunpack.c.l.b16 %v335
    %v2382 = vunpack.c.h.b16 %v335
    %v2383 = vunpack.c.l.b16 %v336
    %v2384 = vunpack.c.h.b16 %v336
    %v2385 = vunpack.c.l.b16 %v337
    %v2386 = vunpack.c.h.b16 %v337
    %v2387 = vunpack.c.l.b16 %v338
    %v2388 = vunpack.c.h.b16 %v338
    %v2389 = vunpack.c.l.b16 %v339
    %v2390 = vunpack.c.h.b16 %v339
    %v2391 = vunpack.c.l.b16 %v340
    %v2392 = vunpack.c.h.b16 %v340
    %v2393 = vunpack.c.l.b16 %v341
    %v2394 = vunpack.c.h.b16 %v341
    %v2395 = vunpack.c.l.b16 %v342
    %v2396 = vunpack.c.h.b16 %v342
    %v2397 = vunpack.c.l.b16 %v343
    %v2398 = vunpack.c.h.b16 %v343
    %v2399 = vunpack.c.l.b16 %v344
    %v2400 = vunpack.c.h.b16 %v344
    %v2401 = vunpack.c.l.b16 %v345
    %v2402 = vunpack.c.h.b16 %v345
    %v2403 = vunpack.c.l.b16 %v346
    %v2404 = vunpack.c.h.b16 %v346
    %v2405 = vunpack.c.l.b16 %v347
    %v2406 = vunpack.c.h.b16 %v347
    %v2407 = vunpack.c.l.b16 %v348
    %v2408 = vunpack.c.h.b16 %v348
    %v2409 = vunpack.c.l.b16 %v349
    %v2410 = vunpack.c.h.b16 %v349
    %v2411 = vunpack.c.l.b16 %v350
    %v2412 = vunpack.c.h.b16 %v350
    %v2413 = vunpack.c.l.b16 %v351
    %v2414 = vunpack.c.h.b16 %v351
    %v2415 = vunpack.c.l.b16 %v352
    %v2416 = vunpack.c.h.b16 %v352
    %v2417 = vunpack.c.l.b16 %v353
    %v2418 = vunpack.c.h.b16 %v353
    %v2419 = vunpack.c.l.b16 %v354
    %v2420 = vunpack.c.h.b16 %v354
    %v2421 = vunpack.c.l.b16 %v355
    %v2422 = vunpack.c.h.b16 %v355
    %v2423 = vunpack.c.l.b16 %v356
    %v2424 = vunpack.c.h.b16 %v356
    %v2425 = vunpack.c.l.b16 %v357
    %v2426 = vunpack.c.h.b16 %v357
    %v2427 = vunpack.c.l.b16 %v358
    %v2428 = vunpack.c.h.b16 %v358
    %v2429 = vunpack.c.l.b16 %v359
    %v2430 = vunpack.c.h.b16 %v359
    %v2431 = vunpack.c.l.b16 %v360
    %v2432 = vunpack.c.h.b16 %v360
    %v2433 = vunpack.c.l.b16 %v361
    %v2434 = vunpack.c.h.b16 %v361
    %v2435 = vunpack.c.l.b16 %v362
    %v2436 = vunpack.c.h.b16 %v362
    %v2437 = vunpack.c.l.b16 %v363
    %v2438 = vunpack.c.h.b16 %v363
    %v2439 = vunpack.c.l.b16 %v364
    %v2440 = vunpack.c.h.b16 %v364
    %v2441 = vunpack.c.l.b16 %v365
    %v2442 = vunpack.c.h.b16 %v365
    %v2443 = vunpack.c.l.b16 %v366
    %v2444 = vunpack.c.h.b16 %v366
    %v2445 = vunpack.c.l.b16 %v367
    %v2446 = vunpack.c.h.b16 %v367
    %v2447 = vunpack.c.l.b16 %v368
    %v2448 = vunpack.c.h.b16 %v368
    %v2449 = vunpack.c.l.b16 %v369
    %v2450 = vunpack.c.h.b16 %v369
    %v2451 = vunpack.c.l.b16 %v370
    %v2452 = vunpack.c.h.b16 %v370
    %v2453 = vunpack.c.l.b16 %v371
    %v2454 = vunpack.c.h.b16 %v371
    %v2455 = vunpack.c.l.b16 %v372
    %v2456 = vunpack.c.h.b16 %v372
    %v2457 = vunpack.c.l.b16 %v373
    %v2458 = vunpack.c.h.b16 %v373
    %v2459 = vunpack.c.l.b16 %v374
    %v2460 = vunpack.c.h.b16 %v374
    %v2461 = vunpack.c.l.b16 %v375
    %v2462 = vunpack.c.h.b16 %v375
    %v2463 = vunpack.c.l.b16 %v376
    %v2464 = vunpack.c.h.b16 %v376
    %v2465 = vunpack.c.l.b16 %v377
    %v2466 = vunpack.c.h.b16 %v377
    %v2467 = vunpack.c.l.b16 %v378
    %v2468 = vunpack.c.h.b16 %v378
    %v2469 = vunpack.c.l.b16 %v379
    %v2470 = vunpack.c.h.b16 %v379
    %v2471 = vunpack.c.l.b16 %v380
    %v2472 = vunpack.c.h.b16 %v380
    %v2473 = vunpack.c.l.b16 %v381
    %v2474 = vunpack.c.h.b16 %v381
    %v2475 = vunpack.c.l.b16 %v382
    %v2476 = vunpack.c.h.b16 %v382
    %v2477 = vunpack.c.l.b16 %v383
    %v2478 = vunpack.c.h.b16 %v383
    %v2479 = vunpack.c.l.b16 %v384
    %v2480 = vunpack.c.h.b16 %v384
    %v2481 = vunpack.c.l.b16 %v385
    %v2482 = vunpack.c.h.b16 %v385
    %v2483 = vunpack.c.l.b16 %v386
    %v2484 = vunpack.c.h.b16 %v386
    %v2485 = vunpack.c.l.b16 %v387
    %v2486 = vunpack.c.h.b16 %v387
    %v2487 = vunpack.c.l.b16 %v388
    %v2488 = vunpack.c.h.b16 %v388
    %v2489 = vunpack.c.l.b16 %v389
    %v2490 = vunpack.c.h.b16 %v389
    %v2491 = vunpack.c.l.b16 %v390
    %v2492 = vunpack.c.h.b16 %v390
    %v2493 = vunpack.c.l.b16 %v391
    %v2494 = vunpack.c.h.b16 %v391
    %v2495 = vunpack.c.l.b16 %v392
    %v2496 = vunpack.c.h.b16 %v392
    %v2497 = vunpack.c.l.b16 %v393
    %v2498 = vunpack.c.h.b16 %v393
    %v2499 = vunpack.c.l.b16 %v394
    %v2500 = vunpack.c.h.b16 %v394
    %v2501 = vunpack.c.l.b16 %v395
    %v2502 = vunpack.c.h.b16 %v395
    %v2503 = vunpack.c.l.b16 %v396
    %v2504 = vunpack.c.h.b16 %v396
    %v2505 = vunpack.c.l.b16 %v397
    %v2506 = vunpack.c.h.b16 %v397
    %v2507 = vunpack.c.l.b16 %v398
    %v2508 = vunpack.c.h.b16 %v398
    %v2509 = vunpack.c.l.b16 %v399
    %v2510 = vunpack.c.h.b16 %v399
    %v2511 = vunpack.c.l.b16 %v400
    %v2512 = vunpack.c.h.b16 %v400
    %v2513 = vunpack.c.l.b16 %v401
    %v2514 = vunpack.c.h.b16 %v401
    %v2515 = vunpack.c.l.b16 %v402
    %v2516 = vunpack.c.h.b16 %v402
    %v2517 = vunpack.c.l.b16 %v403
    %v2518 = vunpack.c.h.b16 %v403
    %v2519 = vunpack.c.l.b16 %v404
    %v2520 = vunpack.c.h.b16 %v404
    %v2521 = vunpack.c.l.b16 %v405
    %v2522 = vunpack.c.h.b16 %v405
    %v2523 = vunpack.c.l.b16 %v406
    %v2524 = vunpack.c.h.b16 %v406
    %v2525 = vunpack.c.l.b16 %v407
    %v2526 = vunpack.c.h.b16 %v407
    %v2527 = vunpack.c.l.b16 %v408
    %v2528 = vunpack.c.h.b16 %v408
    %v2529 = vunpack.c.l.b16 %v409
    %v2530 = vunpack.c.h.b16 %v409
    %v2531 = vunpack.c.l.b16 %v410
    %v2532 = vunpack.c.h.b16 %v410
    %v2533 = vunpack.c.l.b16 %v411
    %v2534 = vunpack.c.h.b16 %v411
    %v2535 = vunpack.c.l.b16 %v412
    %v2536 = vunpack.c.h.b16 %v412
    %v2537 = vunpack.c.l.b16 %v413
    %v2538 = vunpack.c.h.b16 %v413
    %v2539 = vunpack.c.l.b16 %v414
    %v2540 = vunpack.c.h.b16 %v414
    %v2541 = vunpack.c.l.b16 %v415
    %v2542 = vunpack.c.h.b16 %v415
    %v2543 = vunpack.c.l.b16 %v416
    %v2544 = vunpack.c.h.b16 %v416
    %v2545 = vunpack.c.l.b16 %v417
    %v2546 = vunpack.c.h.b16 %v417
    %v2547 = vunpack.c.l.b16 %v418
    %v2548 = vunpack.c.h.b16 %v418
    %v2549 = vunpack.c.l.b16 %v419
    %v2550 = vunpack.c.h.b16 %v419
    %v2551 = vunpack.c.l.b16 %v420
    %v2552 = vunpack.c.h.b16 %v420
    %v2553 = vunpack.c.l.b16 %v421
    %v2554 = vunpack.c.h.b16 %v421
    %v2555 = vunpack.c.l.b16 %v422
    %v2556 = vunpack.c.h.b16 %v422
    %v2557 = vunpack.c.l.b16 %v423
    %v2558 = vunpack.c.h.b16 %v423
    %v2559 = vunpack.c.l.b16 %v424
    %v2560 = vunpack.c.h.b16 %v424
    %v2561 = vunpack.c.l.b16 %v425
    %v2562 = vunpack.c.h.b16 %v425
    %v2563 = vunpack.c.l.b16 %v426
    %v2564 = vunpack.c.h.b16 %v426
    %v2565 = vunpack.c.l.b16 %v427
    %v2566 = vunpack.c.h.b16 %v427
    %v2567 = vunpack.c.l.b16 %v428
    %v2568 = vunpack.c.h.b16 %v428
    %v2569 = vunpack.c.l.b16 %v429
    %v2570 = vunpack.c.h.b16 %v429
    %v2571 = vunpack.c.l.b16 %v430
    %v2572 = vunpack.c.h.b16 %v430
    %v2573 = vunpack.c.l.b16 %v431
    %v2574 = vunpack.c.h.b16 %v431
    %v2575 = vunpack.c.l.b16 %v432
    %v2576 = vunpack.c.h.b16 %v432
    %v2577 = vunpack.c.l.b16 %v433
    %v2578 = vunpack.c.h.b16 %v433
    %v2579 = vunpack.c.l.b16 %v434
    %v2580 = vunpack.c.h.b16 %v434
    %v2581 = vunpack.c.l.b16 %v435
    %v2582 = vunpack.c.h.b16 %v435
    %v2583 = vunpack.c.l.b16 %v436
    %v2584 = vunpack.c.h.b16 %v436
    %v2585 = vunpack.c.l.b16 %v437
    %v2586 = vunpack.c.h.b16 %v437
    %v2587 = vunpack.c.l.b16 %v438
    %v2588 = vunpack.c.h.b16 %v438
    %v2589 = vunpack.c.l.b16 %v439
    %v2590 = vunpack.c.h.b16 %v439
    %v2591 = vunpack.c.l.b16 %v440
    %v2592 = vunpack.c.h.b16 %v440
    %v2593 = vunpack.c.l.b16 %v441
    %v2594 = vunpack.c.h.b16 %v441
    %v2595 = vunpack.c.l.b16 %v442
    %v2596 = vunpack.c.h.b16 %v442
    %v2597 = vunpack.c.l.b16 %v443
    %v2598 = vunpack.c.h.b16 %v443
    %v2599 = vunpack.c.l.b16 %v444
    %v2600 = vunpack.c.h.b16 %v444
    %v2601 = vunpack.c.l.b16 %v445
    %v2602 = vunpack.c.h.b16 %v445
    %v2603 = vunpack.c.l.b16 %v446
    %v2604 = vunpack.c.h.b16 %v446
    %v2605 = vunpack.c.l.b16 %v447
    %v2606 = vunpack.c.h.b16 %v447
    %v2607 = vunpack.c.l.b16 %v448
    %v2608 = vunpack.c.h.b16 %v448
    %v2609 = vunpack.c.l.b16 %v449
    %v2610 = vunpack.c.h.b16 %v449
    %v2611 = vunpack.c.l.b16 %v450
    %v2612 = vunpack.c.h.b16 %v450
    %v2613 = vunpack.c.l.b16 %v451
    %v2614 = vunpack.c.h.b16 %v451
    %v2615 = vunpack.c.l.b16 %v452
    %v2616 = vunpack.c.h.b16 %v452
    %v2617 = vunpack.c.l.b16 %v453
    %v2618 = vunpack.c.h.b16 %v453
    %v2619 = vunpack.c.l.b16 %v454
    %v2620 = vunpack.c.h.b16 %v454
    %v2621 = vunpack.c.l.b16 %v455
    %v2622 = vunpack.c.h.b16 %v455
    %v2623 = vunpack.c.l.b16 %v456
    %v2624 = vunpack.c.h.b16 %v456
    %v2625 = vunpack.c.l.b16 %v457
    %v2626 = vunpack.c.h.b16 %v457
    %v2627 = vunpack.c.l.b16 %v458
    %v2628 = vunpack.c.h.b16 %v458
    %v2629 = vunpack.c.l.b16 %v459
    %v2630 = vunpack.c.h.b16 %v459
    %v2631 = vunpack.c.l.b16 %v460
    %v2632 = vunpack.c.h.b16 %v460
    %v2633 = vunpack.c.l.b16 %v461
    %v2634 = vunpack.c.h.b16 %v461
    %v2635 = vunpack.c.l.b16 %v462
    %v2636 = vunpack.c.h.b16 %v462
    %v2637 = vunpack.c.l.b16 %v463
    %v2638 = vunpack.c.h.b16 %v463
    %v2639 = vunpack.c.l.b16 %v464
    %v2640 = vunpack.c.h.b16 %v464
    %v2641 = vunpack.c.l.b16 %v465
    %v2642 = vunpack.c.h.b16 %v465
    %v2643 = vunpack.c.l.b16 %v466
    %v2644 = vunpack.c.h.b16 %v466
    %v2645 = vunpack.c.l.b16 %v467
    %v2646 = vunpack.c.h.b16 %v467
    %v2647 = vunpack.c.l.b16 %v468
    %v2648 = vunpack.c.h.b16 %v468
    %v2649 = vunpack.c.l.b16 %v469
    %v2650 = vunpack.c.h.b16 %v469
    %v2651 = vunpack.c.l.b16 %v470
    %v2652 = vunpack.c.h.b16 %v470
    %v2653 = vunpack.c.l.b16 %v471
    %v2654 = vunpack.c.h.b16 %v471
    %v2655 = vunpack.c.l.b16 %v472
    %v2656 = vunpack.c.h.b16 %v472
    %v2657 = vunpack.c.l.b16 %v473
    %v2658 = vunpack.c.h.b16 %v473
    %v2659 = vunpack.c.l.b16 %v474
    %v2660 = vunpack.c.h.b16 %v474
    %v2661 = vunpack.c.l.b16 %v475
    %v2662 = vunpack.c.h.b16 %v475
    %v2663 = vunpack.c.l.b16 %v476
    %v2664 = vunpack.c.h.b16 %v476
    %v2665 = vunpack.c.l.b16 %v477
    %v2666 = vunpack.c.h.b16 %v477
    %v2667 = vunpack.c.l.b16 %v478
    %v2668 = vunpack.c.h.b16 %v478
    %v2669 = vunpack.c.l.b16 %v479
    %v2670 = vunpack.c.h.b16 %v479
    %v2671 = vunpack.c.l.b16 %v480
    %v2672 = vunpack.c.h.b16 %v480
    %v2673 = vunpack.c.l.b16 %v481
    %v2674 = vunpack.c.h.b16 %v481
    %v2675 = vunpack.c.l.b16 %v482
    %v2676 = vunpack.c.h.b16 %v482
    %v2677 = vunpack.c.l.b16 %v483
    %v2678 = vunpack.c.h.b16 %v483
    %v2679 = vunpack.c.l.b16 %v484
    %v2680 = vunpack.c.h.b16 %v484
    %v2681 = vunpack.c.l.b16 %v485
    %v2682 = vunpack.c.h.b16 %v485
    %v2683 = vunpack.c.l.b16 %v486
    %v2684 = vunpack.c.h.b16 %v486
    %v2685 = vunpack.c.l.b16 %v487
    %v2686 = vunpack.c.h.b16 %v487
    %v2687 = vunpack.c.l.b16 %v488
    %v2688 = vunpack.c.h.b16 %v488
    %v2689 = vunpack.c.l.b16 %v489
    %v2690 = vunpack.c.h.b16 %v489
    %v2691 = vunpack.c.l.b16 %v490
    %v2692 = vunpack.c.h.b16 %v490
    %v2693 = vunpack.c.l.b16 %v491
    %v2694 = vunpack.c.h.b16 %v491
    %v2695 = vunpack.c.l.b16 %v492
    %v2696 = vunpack.c.h.b16 %v492
    %v2697 = vunpack.c.l.b16 %v493
    %v2698 = vunpack.c.h.b16 %v493
    %v2699 = vunpack.c.l.b16 %v494
    %v2700 = vunpack.c.h.b16 %v494
    %v2701 = vunpack.c.l.b16 %v495
    %v2702 = vunpack.c.h.b16 %v495
    %v2703 = vunpack.c.l.b16 %v496
    %v2704 = vunpack.c.h.b16 %v496
    %v2705 = vunpack.c.l.b16 %v497
    %v2706 = vunpack.c.h.b16 %v497
    %v2707 = vunpack.c.l.b16 %v498
    %v2708 = vunpack.c.h.b16 %v498
    %v2709 = vunpack.c.l.b16 %v499
    %v2710 = vunpack.c.h.b16 %v499
    %v2711 = vunpack.c.l.b16 %v500
    %v2712 = vunpack.c.h.b16 %v500
    %v2713 = vunpack.c.l.b16 %v501
    %v2714 = vunpack.c.h.b16 %v501
    %v2715 = vunpack.c.l.b16 %v502
    %v2716 = vunpack.c.h.b16 %v502
    %v2717 = vunpack.c.l.b16 %v503
    %v2718 = vunpack.c.h.b16 %v503
    %v2719 = vunpack.c.l.b16 %v504
    %v2720 = vunpack.c.h.b16 %v504
    %v2721 = vunpack.c.l.b16 %v505
    %v2722 = vunpack.c.h.b16 %v505
    %v2723 = vunpack.c.l.b16 %v506
    %v2724 = vunpack.c.h.b16 %v506
    %v2725 = vunpack.c.l.b16 %v507
    %v2726 = vunpack.c.h.b16 %v507
    %v2727 = vunpack.c.l.b16 %v508
    %v2728 = vunpack.c.h.b16 %v508
    %v2729 = vunpack.c.l.b16 %v509
    %v2730 = vunpack.c.h.b16 %v509
    %v2731 = vunpack.c.l.b16 %v510
    %v2732 = vunpack.c.h.b16 %v510
    %v2733 = vunpack.c.l.b16 %v511
    %v2734 = vunpack.c.h.b16 %v511
    %v2735 = vunpack.c.l.b16 %v512
    %v2736 = vunpack.c.h.b16 %v512
    %v2737 = vunpack.c.l.b16 %v513
    %v2738 = vunpack.c.h.b16 %v513
    %v2739 = vunpack.c.l.b16 %v514
    %v2740 = vunpack.c.h.b16 %v514
    %v2741 = vunpack.c.l.b16 %v515
    %v2742 = vunpack.c.h.b16 %v515
    %v2743 = vunpack.c.l.b16 %v516
    %v2744 = vunpack.c.h.b16 %v516
    %v2745 = vunpack.c.l.b16 %v517
    %v2746 = vunpack.c.h.b16 %v517
    %v2747 = vunpack.c.l.b16 %v518
    %v2748 = vunpack.c.h.b16 %v518
    %v2749 = vunpack.c.l.b16 %v519
    %v2750 = vunpack.c.h.b16 %v519
    %v2751 = vunpack.c.l.b16 %v520
    %v2752 = vunpack.c.h.b16 %v520
    %v2753 = vunpack.c.l.b16 %v521
    %v2754 = vunpack.c.h.b16 %v521
    %v2755 = vunpack.c.l.b16 %v522
    %v2756 = vunpack.c.h.b16 %v522
    %v2757 = vunpack.c.l.b16 %v523
    %v2758 = vunpack.c.h.b16 %v523
    %v2759 = vunpack.c.l.b16 %v524
    %v2760 = vunpack.c.h.b16 %v524
    %v2761 = vunpack.c.l.b16 %v525
    %v2762 = vunpack.c.h.b16 %v525
    %v2763 = vunpack.c.l.b16 %v526
    %v2764 = vunpack.c.h.b16 %v526
    %v2765 = vunpack.c.l.b16 %v527
    %v2766 = vunpack.c.h.b16 %v527
    %v2767 = vunpack.c.l.b16 %v528
    %v2768 = vunpack.c.h.b16 %v528
    %v2769 = vunpack.c.l.b16 %v529
    %v2770 = vunpack.c.h.b16 %v529
    %v2771 = vunpack.c.l.b16 %v530
    %v2772 = vunpack.c.h.b16 %v530
    %v2773 = vunpack.c.l.b16 %v531
    %v2774 = vunpack.c.h.b16 %v531
    %v2775 = vunpack.c.l.b16 %v532
    %v2776 = vunpack.c.h.b16 %v532
    %v2777 = vunpack.c.l.b16 %v533
    %v2778 = vunpack.c.h.b16 %v533
    %v2779 = vunpack.c.l.b16 %v534
    %v2780 = vunpack.c.h.b16 %v534
    %v2781 = vunpack.c.l.b16 %v535
    %v2782 = vunpack.c.h.b16 %v535
    %v2783 = vunpack.c.l.b16 %v536
    %v2784 = vunpack.c.h.b16 %v536
    %v2785 = vunpack.c.l.b16 %v537
    %v2786 = vunpack.c.h.b16 %v537
    %v2787 = vunpack.c.l.b16 %v538
    %v2788 = vunpack.c.h.b16 %v538
    %v2789 = vunpack.c.l.b16 %v539
    %v2790 = vunpack.c.h.b16 %v539
    %v2791 = vunpack.c.l.b16 %v540
    %v2792 = vunpack.c.h.b16 %v540
    %v2793 = vunpack.c.l.b16 %v541
    %v2794 = vunpack.c.h.b16 %v541
    %v2795 = vunpack.c.l.b16 %v542
    %v2796 = vunpack.c.h.b16 %v542
    %v2797 = vunpack.c.l.b16 %v543
    %v2798 = vunpack.c.h.b16 %v543
    %v2799 = vunpack.c.l.b16 %v544
    %v2800 = vunpack.c.h.b16 %v544
    %v2801 = vunpack.c.l.b16 %v545
    %v2802 = vunpack.c.h.b16 %v545
    %v2803 = vunpack.c.l.b16 %v546
    %v2804 = vunpack.c.h.b16 %v546
    %v2805 = vunpack.c.l.b16 %v547
    %v2806 = vunpack.c.h.b16 %v547
    %v2807 = vunpack.c.l.b16 %v548
    %v2808 = vunpack.c.h.b16 %v548
    %v2809 = vunpack.c.l.b16 %v549
    %v2810 = vunpack.c.h.b16 %v549
    %v2811 = vunpack.c.l.b16 %v550
    %v2812 = vunpack.c.h.b16 %v550
    %v2813 = vunpack.c.l.b16 %v551
    %v2814 = vunpack.c.h.b16 %v551
    %v2815 = vunpack.c.l.b16 %v552
    %v2816 = vunpack.c.h.b16 %v552
    %v2817 = vunpack.c.l.b16 %v553
    %v2818 = vunpack.c.h.b16 %v553
    %v2819 = vunpack.c.l.b16 %v554
    %v2820 = vunpack.c.h.b16 %v554
    %v2821 = vunpack.c.l.b16 %v555
    %v2822 = vunpack.c.h.b16 %v555
    %v2823 = vunpack.c.l.b16 %v556
    %v2824 = vunpack.c.h.b16 %v556
    %v2825 = vunpack.c.l.b16 %v557
    %v2826 = vunpack.c.h.b16 %v557
    %v2827 = vunpack.c.l.b16 %v558
    %v2828 = vunpack.c.h.b16 %v558
    %v2829 = vunpack.c.l.b16 %v559
    %v2830 = vunpack.c.h.b16 %v559
    %v2831 = vunpack.c.l.b16 %v560
    %v2832 = vunpack.c.h.b16 %v560
    %v2833 = vunpack.c.l.b16 %v561
    %v2834 = vunpack.c.h.b16 %v561
    %v2835 = vunpack.c.l.b16 %v562
    %v2836 = vunpack.c.h.b16 %v562
    %v2837 = vunpack.c.l.b16 %v563
    %v2838 = vunpack.c.h.b16 %v563
    %v2839 = vunpack.c.l.b16 %v564
    %v2840 = vunpack.c.h.b16 %v564
    %v2841 = vunpack.c.l.b16 %v565
    %v2842 = vunpack.c.h.b16 %v565
    %v2843 = vunpack.c.l.b16 %v566
    %v2844 = vunpack.c.h.b16 %v566
    %v2845 = vunpack.c.l.b16 %v567
    %v2846 = vunpack.c.h.b16 %v567
    %v2847 = vunpack.c.l.b16 %v568
    %v2848 = vunpack.c.h.b16 %v568
    %v2849 = vunpack.c.l.b16 %v569
    %v2850 = vunpack.c.h.b16 %v569
    %v2851 = vunpack.c.l.b16 %v570
    %v2852 = vunpack.c.h.b16 %v570
    %v2853 = vunpack.c.l.b16 %v571
    %v2854 = vunpack.c.h.b16 %v571
    %v2855 = vunpack.c.l.b16 %v572
    %v2856 = vunpack.c.h.b16 %v572
    %v2857 = vunpack.c.l.b16 %v573
    %v2858 = vunpack.c.h.b16 %v573
    %v2859 = vunpack.c.l.b16 %v574
    %v2860 = vunpack.c.h.b16 %v574
    %v2861 = vunpack.c.l.b16 %v575
    %v2862 = vunpack.c.h.b16 %v575
    %v2863 = vunpack.c.l.b16 %v576
    %v2864 = vunpack.c.h.b16 %v576
    %v2865 = vunpack.c.l.b16 %v577
    %v2866 = vunpack.c.h.b16 %v577
    %v2867 = vunpack.c.l.b16 %v578
    %v2868 = vunpack.c.h.b16 %v578
    %v2869 = vunpack.c.l.b16 %v579
    %v2870 = vunpack.c.h.b16 %v579
    %v2871 = vunpack.c.l.b16 %v580
    %v2872 = vunpack.c.h.b16 %v580
    %v2873 = vunpack.c.l.b16 %v581
    %v2874 = vunpack.c.h.b16 %v581
    %v2875 = vunpack.c.l.b16 %v582
    %v2876 = vunpack.c.h.b16 %v582
    %v2877 = vunpack.c.l.b16 %v583
    %v2878 = vunpack.c.h.b16 %v583
    %v2879 = vunpack.c.l.b16 %v584
    %v2880 = vunpack.c.h.b16 %v584
    %v2881 = vunpack.c.l.b16 %v585
    %v2882 = vunpack.c.h.b16 %v585
    %v2883 = vunpack.c.l.b16 %v586
    %v2884 = vunpack.c.h.b16 %v586
    %v2885 = vunpack.c.l.b16 %v587
    %v2886 = vunpack.c.h.b16 %v587
    %v2887 = vunpack.c.l.b16 %v588
    %v2888 = vunpack.c.h.b16 %v588
    %v2889 = vunpack.c.l.b16 %v589
    %v2890 = vunpack.c.h.b16 %v589
    %v2891 = vunpack.c.l.b16 %v590
    %v2892 = vunpack.c.h.b16 %v590
    %v2893 = vunpack.c.l.b16 %v591
    %v2894 = vunpack.c.h.b16 %v591
    %v2895 = vunpack.c.l.b16 %v592
    %v2896 = vunpack.c.h.b16 %v592
    %v2897 = vunpack.c.l.b16 %v593
    %v2898 = vunpack.c.h.b16 %v593
    %v2899 = vunpack.c.l.b16 %v594
    %v2900 = vunpack.c.h.b16 %v594
    %v2901 = vunpack.c.l.b16 %v595
    %v2902 = vunpack.c.h.b16 %v595
    %v2903 = vunpack.c.l.b16 %v596
    %v2904 = vunpack.c.h.b16 %v596
    %v2905 = vunpack.c.l.b16 %v597
    %v2906 = vunpack.c.h.b16 %v597
    %v2907 = vunpack.c.l.b16 %v598
    %v2908 = vunpack.c.h.b16 %v598
    %v2909 = vunpack.c.l.b16 %v599
    %v2910 = vunpack.c.h.b16 %v599
    %v2911 = vunpack.c.l.b16 %v600
    %v2912 = vunpack.c.h.b16 %v600
    %v2913 = vunpack.c.l.b16 %v601
    %v2914 = vunpack.c.h.b16 %v601
    %v2915 = vunpack.c.l.b16 %v602
    %v2916 = vunpack.c.h.b16 %v602
    %v2917 = vunpack.c.l.b16 %v603
    %v2918 = vunpack.c.h.b16 %v603
    %v2919 = vunpack.c.l.b16 %v604
    %v2920 = vunpack.c.h.b16 %v604
    %v2921 = vunpack.c.l.b16 %v605
    %v2922 = vunpack.c.h.b16 %v605
    %v2923 = vunpack.c.l.b16 %v606
    %v2924 = vunpack.c.h.b16 %v606
    %v2925 = vunpack.c.l.b16 %v607
    %v2926 = vunpack.c.h.b16 %v607
    %v2927 = vunpack.c.l.b16 %v608
    %v2928 = vunpack.c.h.b16 %v608
    %v2929 = vunpack.c.l.b16 %v609
    %v2930 = vunpack.c.h.b16 %v609
    %v2931 = vunpack.c.l.b16 %v610
    %v2932 = vunpack.c.h.b16 %v610
    %v2933 = vunpack.c.l.b16 %v611
    %v2934 = vunpack.c.h.b16 %v611
    %v2935 = vunpack.c.l.b16 %v612
    %v2936 = vunpack.c.h.b16 %v612
    %v2937 = vunpack.c.l.b16 %v613
    %v2938 = vunpack.c.h.b16 %v613
    %v2939 = vunpack.c.l.b16 %v614
    %v2940 = vunpack.c.h.b16 %v614
    %v2941 = vunpack.c.l.b16 %v615
    %v2942 = vunpack.c.h.b16 %v615
    %v2943 = vunpack.c.l.b16 %v616
    %v2944 = vunpack.c.h.b16 %v616
    %v2945 = vunpack.c.l.b16 %v617
    %v2946 = vunpack.c.h.b16 %v617
    %v2947 = vunpack.c.l.b16 %v618
    %v2948 = vunpack.c.h.b16 %v618
    %v2949 = vunpack.c.l.b16 %v619
    %v2950 = vunpack.c.h.b16 %v619
    %v2951 = vunpack.c.l.b16 %v620
    %v2952 = vunpack.c.h.b16 %v620
    %v2953 = vunpack.c.l.b16 %v621
    %v2954 = vunpack.c.h.b16 %v621
    %v2955 = vunpack.c.l.b16 %v622
    %v2956 = vunpack.c.h.b16 %v622
    %v2957 = vunpack.c.l.b16 %v623
    %v2958 = vunpack.c.h.b16 %v623
    %v2959 = vunpack.c.l.b16 %v624
    %v2960 = vunpack.c.h.b16 %v624
    %v2961 = vunpack.c.l.b16 %v625
    %v2962 = vunpack.c.h.b16 %v625
    %v2963 = vunpack.c.l.b16 %v626
    %v2964 = vunpack.c.h.b16 %v626
    %v2965 = vunpack.c.l.b16 %v627
    %v2966 = vunpack.c.h.b16 %v627
    %v2967 = vunpack.c.l.b16 %v628
    %v2968 = vunpack.c.h.b16 %v628
    %v2969 = vunpack.c.l.b16 %v629
    %v2970 = vunpack.c.h.b16 %v629
    %v2971 = vunpack.c.l.b16 %v630
    %v2972 = vunpack.c.h.b16 %v630
    %v2973 = vunpack.c.l.b16 %v631
    %v2974 = vunpack.c.h.b16 %v631
    %v2975 = vunpack.c.l.b16 %v632
    %v2976 = vunpack.c.h.b16 %v632
    %v2977 = vunpack.c.l.b16 %v633
    %v2978 = vunpack.c.h.b16 %v633
    %v2979 = vunpack.c.l.b16 %v634
    %v2980 = vunpack.c.h.b16 %v634
    %v2981 = vunpack.c.l.b16 %v635
    %v2982 = vunpack.c.h.b16 %v635
    %v2983 = vunpack.c.l.b16 %v636
    %v2984 = vunpack.c.h.b16 %v636
    %v2985 = vunpack.c.l.b16 %v637
    %v2986 = vunpack.c.h.b16 %v637
    %v2987 = vunpack.c.l.b16 %v638
    %v2988 = vunpack.c.h.b16 %v638
    %v2989 = vunpack.c.l.b16 %v639
    %v2990 = vunpack.c.h.b16 %v639
    %v2991 = vunpack.c.l.b16 %v640
    %v2992 = vunpack.c.h.b16 %v640
    %v2993 = vunpack.c.l.b16 %v641
    %v2994 = vunpack.c.h.b16 %v641
    %v2995 = vunpack.c.l.b16 %v642
    %v2996 = vunpack.c.h.b16 %v642
    %v2997 = vunpack.c.l.b16 %v643
    %v2998 = vunpack.c.h.b16 %v643
    %v2999 = vunpack.c.l.b16 %v644
    %v3000 = vunpack.c.h.b16 %v644
    %v3001 = vunpack.c.l.b16 %v645
    %v3002 = vunpack.c.h.b16 %v645
    %v3003 = vunpack.c.l.b16 %v646
    %v3004 = vunpack.c.h.b16 %v646
    %v3005 = vunpack.c.l.b16 %v647
    %v3006 = vunpack.c.h.b16 %v647
    %v3007 = vunpack.c.l.b16 %v648
    %v3008 = vunpack.c.h.b16 %v648
    %v3009 = vunpack.c.l.b16 %v649
    %v3010 = vunpack.c.h.b16 %v649
    %v3011 = vunpack.c.l.b16 %v650
    %v3012 = vunpack.c.h.b16 %v650
    %v3013 = vunpack.c.l.b16 %v651
    %v3014 = vunpack.c.h.b16 %v651
    %v3015 = vunpack.c.l.b16 %v652
    %v3016 = vunpack.c.h.b16 %v652
    %v3017 = vunpack.c.l.b16 %v653
    %v3018 = vunpack.c.h.b16 %v653
    %v3019 = vunpack.c.l.b16 %v654
    %v3020 = vunpack.c.h.b16 %v654
    %v3021 = vunpack.c.l.b16 %v655
    %v3022 = vunpack.c.h.b16 %v655
    %v3023 = vunpack.c.l.b16 %v656
    %v3024 = vunpack.c.h.b16 %v656
    %v3025 = vunpack.c.l.b16 %v657
    %v3026 = vunpack.c.h.b16 %v657
    %v3027 = vunpack.c.l.b16 %v658
    %v3028 = vunpack.c.h.b16 %v658
    %v3029 = vunpack.c.l.b16 %v659
    %v3030 = vunpack.c.h.b16 %v659
    %v3031 = vunpack.c.l.b16 %v660
    %v3032 = vunpack.c.h.b16 %v660
    %v3033 = vunpack.c.l.b16 %v661
    %v3034 = vunpack.c.h.b16 %v661
    %v3035 = vunpack.c.l.b16 %v662
    %v3036 = vunpack.c.h.b16 %v662
    %v3037 = vunpack.c.l.b16 %v663
    %v3038 = vunpack.c.h.b16 %v663
    %v3039 = vunpack.c.l.b16 %v664
    %v3040 = vunpack.c.h.b16 %v664
    %v3041 = vunpack.c.l.b16 %v665
    %v3042 = vunpack.c.h.b16 %v665
    %v3043 = vunpack.c.l.b16 %v666
    %v3044 = vunpack.c.h.b16 %v666
    %v3045 = vunpack.c.l.b16 %v667
    %v3046 = vunpack.c.h.b16 %v667
    %v3047 = vunpack.c.l.b16 %v668
    %v3048 = vunpack.c.h.b16 %v668
    %v3049 = vunpack.c.l.b16 %v669
    %v3050 = vunpack.c.h.b16 %v669
    %v3051 = vunpack.c.l.b16 %v670
    %v3052 = vunpack.c.h.b16 %v670
    %v3053 = vunpack.c.l.b16 %v671
    %v3054 = vunpack.c.h.b16 %v671
    %v3055 = vunpack.c.l.b16 %v672
    %v3056 = vunpack.c.h.b16 %v672
    %v3057 = vunpack.c.l.b16 %v673
    %v3058 = vunpack.c.h.b16 %v673
    %v3059 = vunpack.c.l.b16 %v674
    %v3060 = vunpack.c.h.b16 %v674
    %v3061 = vunpack.c.l.b16 %v675
    %v3062 = vunpack.c.h.b16 %v675
    %v3063 = vunpack.c.l.b16 %v676
    %v3064 = vunpack.c.h.b16 %v676
    %v3065 = vunpack.c.l.b16 %v677
    %v3066 = vunpack.c.h.b16 %v677
    %v3067 = vunpack.c.l.b16 %v678
    %v3068 = vunpack.c.h.b16 %v678
    %v3069 = vunpack.c.l.b16 %v679
    %v3070 = vunpack.c.h.b16 %v679
    %v3071 = vunpack.c.l.b16 %v680
    %v3072 = vunpack.c.h.b16 %v680
    %v3073 = vunpack.c.l.b16 %v681
    %v3074 = vunpack.c.h.b16 %v681
    %v3075 = vunpack.c.l.b16 %v682
    %v3076 = vunpack.c.h.b16 %v682
    %v3077 = vunpack.c.l.b16 %v683
    %v3078 = vunpack.c.h.b16 %v683
    %v3079 = vunpack.c.l.b16 %v684
    %v3080 = vunpack.c.h.b16 %v684
    %v3081 = vunpack.c.l.b16 %v685
    %v3082 = vunpack.c.h.b16 %v685
    %v3083 = vunpack.c.l.b16 %v686
    %v3084 = vunpack.c.h.b16 %v686
    %v3085 = vunpack.c.l.b16 %v687
    %v3086 = vunpack.c.h.b16 %v687
    %v3087 = vunpack.c.l.b16 %v688
    %v3088 = vunpack.c.h.b16 %v688
    %v3089 = vunpack.c.l.b16 %v689
    %v3090 = vunpack.c.h.b16 %v689
    %v3091 = vunpack.c.l.b16 %v690
    %v3092 = vunpack.c.h.b16 %v690
    %v3093 = vunpack.c.l.b16 %v691
    %v3094 = vunpack.c.h.b16 %v691
    %v3095 = vunpack.c.l.b16 %v692
    %v3096 = vunpack.c.h.b16 %v692
    %v3097 = vunpack.c.l.b16 %v693
    %v3098 = vunpack.c.h.b16 %v693
    %v3099 = vunpack.c.l.b16 %v694
    %v3100 = vunpack.c.h.b16 %v694
    %v3101 = vunpack.c.l.b16 %v695
    %v3102 = vunpack.c.h.b16 %v695
    %v3103 = vunpack.c.l.b16 %v696
    %v3104 = vunpack.c.h.b16 %v696
    %v3105 = vunpack.c.l.b16 %v697
    %v3106 = vunpack.c.h.b16 %v697
    %v3107 = vunpack.c.l.b16 %v698
    %v3108 = vunpack.c.h.b16 %v698
    %v3109 = vunpack.c.l.b16 %v699
    %v3110 = vunpack.c.h.b16 %v699
    %v3111 = vunpack.c.l.b16 %v700
    %v3112 = vunpack.c.h.b16 %v700
    %v3113 = vunpack.c.l.b16 %v701
    %v3114 = vunpack.c.h.b16 %v701
    %v3115 = vunpack.c.l.b16 %v702
    %v3116 = vunpack.c.h.b16 %v702
    %v3117 = vunpack.c.l.b16 %v703
    %v3118 = vunpack.c.h.b16 %v703
    %v3119 = vunpack.c.l.b16 %v704
    %v3120 = vunpack.c.h.b16 %v704
    %v3121 = vunpack.c.l.b16 %v705
    %v3122 = vunpack.c.h.b16 %v705
    %v3123 = vunpack.c.l.b16 %v706
    %v3124 = vunpack.c.h.b16 %v706
    %v3125 = vunpack.c.l.b16 %v707
    %v3126 = vunpack.c.h.b16 %v707
    %v3127 = vunpack.c.l.b16 %v708
    %v3128 = vunpack.c.h.b16 %v708
    %v3129 = vunpack.c.l.b16 %v709
    %v3130 = vunpack.c.h.b16 %v709
    %v3131 = vunpack.c.l.b16 %v710
    %v3132 = vunpack.c.h.b16 %v710
    %v3133 = vunpack.c.l.b16 %v711
    %v3134 = vunpack.c.h.b16 %v711
    %v3135 = vunpack.c.l.b16 %v712
    %v3136 = vunpack.c.h.b16 %v712
    %v3137 = vunpack.c.l.b16 %v713
    %v3138 = vunpack.c.h.b16 %v713
    %v3139 = vunpack.c.l.b16 %v714
    %v3140 = vunpack.c.h.b16 %v714
    %v3141 = vunpack.c.l.b16 %v715
    %v3142 = vunpack.c.h.b16 %v715
    %v3143 = vunpack.c.l.b16 %v716
    %v3144 = vunpack.c.h.b16 %v716
    %v3145 = vunpack.c.l.b16 %v717
    %v3146 = vunpack.c.h.b16 %v717
    %v3147 = vunpack.c.l.b16 %v718
    %v3148 = vunpack.c.h.b16 %v718
    %v3149 = vunpack.c.l.b16 %v719
    %v3150 = vunpack.c.h.b16 %v719
    %v3151 = vunpack.c.l.b16 %v720
    %v3152 = vunpack.c.h.b16 %v720
    %v3153 = vunpack.c.l.b16 %v721
    %v3154 = vunpack.c.h.b16 %v721
    %v3155 = vunpack.c.l.b16 %v722
    %v3156 = vunpack.c.h.b16 %v722
    %v3157 = vunpack.c.l.b16 %v723
    %v3158 = vunpack.c.h.b16 %v723
    %v3159 = vunpack.c.l.b16 %v724
    %v3160 = vunpack.c.h.b16 %v724
    %v3161 = vunpack.c.l.b16 %v725
    %v3162 = vunpack.c.h.b16 %v725
    %v3163 = vunpack.c.l.b16 %v726
    %v3164 = vunpack.c.h.b16 %v726
    %v3165 = vunpack.c.l.b16 %v727
    %v3166 = vunpack.c.h.b16 %v727
    %v3167 = vunpack.c.l.b16 %v728
    %v3168 = vunpack.c.h.b16 %v728
    %v3169 = vunpack.c.l.b16 %v729
    %v3170 = vunpack.c.h.b16 %v729
    %v3171 = vunpack.c.l.b16 %v730
    %v3172 = vunpack.c.h.b16 %v730
    %v3173 = vunpack.c.l.b16 %v731
    %v3174 = vunpack.c.h.b16 %v731
    %v3175 = vunpack.c.l.b16 %v732
    %v3176 = vunpack.c.h.b16 %v732
    %v3177 = vunpack.c.l.b16 %v733
    %v3178 = vunpack.c.h.b16 %v733
    %v3179 = vunpack.c.l.b16 %v734
    %v3180 = vunpack.c.h.b16 %v734
    %v3181 = vunpack.c.l.b16 %v735
    %v3182 = vunpack.c.h.b16 %v735
    %v3183 = vunpack.c.l.b16 %v736
    %v3184 = vunpack.c.h.b16 %v736
    %v3185 = vunpack.c.l.b16 %v737
    %v3186 = vunpack.c.h.b16 %v737
    %v3187 = vunpack.c.l.b16 %v738
    %v3188 = vunpack.c.h.b16 %v738
    %v3189 = vunpack.c.l.b16 %v739
    %v3190 = vunpack.c.h.b16 %v739
    %v3191 = vunpack.c.l.b16 %v740
    %v3192 = vunpack.c.h.b16 %v740
    %v3193 = vunpack.c.l.b16 %v741
    %v3194 = vunpack.c.h.b16 %v741
    %v3195 = vunpack.c.l.b16 %v742
    %v3196 = vunpack.c.h.b16 %v742
    %v3197 = vunpack.c.l.b16 %v743
    %v3198 = vunpack.c.h.b16 %v743
    %v3199 = vunpack.c.l.b16 %v744
    %v3200 = vunpack.c.h.b16 %v744
    %v3201 = vunpack.c.l.b16 %v745
    %v3202 = vunpack.c.h.b16 %v745
    %v3203 = vunpack.c.l.b16 %v746
    %v3204 = vunpack.c.h.b16 %v746
    %v3205 = vunpack.c.l.b16 %v747
    %v3206 = vunpack.c.h.b16 %v747
    %v3207 = vunpack.c.l.b16 %v748
    %v3208 = vunpack.c.h.b16 %v748
    %v3209 = vunpack.c.l.b16 %v749
    %v3210 = vunpack.c.h.b16 %v749
    %v3211 = vunpack.c.l.b16 %v750
    %v3212 = vunpack.c.h.b16 %v750
    %v3213 = vunpack.c.l.b16 %v751
    %v3214 = vunpack.c.h.b16 %v751
    %v3215 = vunpack.c.l.b16 %v752
    %v3216 = vunpack.c.h.b16 %v752
    %v3217 = vunpack.c.l.b16 %v753
    %v3218 = vunpack.c.h.b16 %v753
    %v3219 = vunpack.c.l.b16 %v754
    %v3220 = vunpack.c.h.b16 %v754
    %v3221 = vunpack.c.l.b16 %v755
    %v3222 = vunpack.c.h.b16 %v755
    %v3223 = vunpack.c.l.b16 %v756
    %v3224 = vunpack.c.h.b16 %v756
    %v3225 = vunpack.c.l.b16 %v757
    %v3226 = vunpack.c.h.b16 %v757
    %v3227 = vunpack.c.l.b16 %v758
    %v3228 = vunpack.c.h.b16 %v758
    %v3229 = vunpack.c.l.b16 %v759
    %v3230 = vunpack.c.h.b16 %v759
    %v3231 = vunpack.c.l.b16 %v760
    %v3232 = vunpack.c.h.b16 %v760
    %v3233 = vunpack.c.l.b16 %v761
    %v3234 = vunpack.c.h.b16 %v761
    %v3235 = vunpack.c.l.b16 %v762
    %v3236 = vunpack.c.h.b16 %v762
    %v3237 = vunpack.c.l.b16 %v763
    %v3238 = vunpack.c.h.b16 %v763
    %v3239 = vunpack.c.l.b16 %v764
    %v3240 = vunpack.c.h.b16 %v764
    %v3241 = vunpack.c.l.b16 %v765
    %v3242 = vunpack.c.h.b16 %v765
    %v3243 = vunpack.c.l.b16 %v766
    %v3244 = vunpack.c.h.b16 %v766
    %v3245 = vunpack.c.l.b16 %v767
    %v3246 = vunpack.c.h.b16 %v767
    %v3247 = vunpack.c.l.b16 %v768
    %v3248 = vunpack.c.h.b16 %v768
    %v3249 = vunpack.c.l.b16 %v769
    %v3250 = vunpack.c.h.b16 %v769
    %v3251 = vunpack.c.l.b16 %v770
    %v3252 = vunpack.c.h.b16 %v770
    %v3253 = vunpack.c.l.b16 %v771
    %v3254 = vunpack.c.h.b16 %v771
    %v3255 = vunpack.c.l.b16 %v772
    %v3256 = vunpack.c.h.b16 %v772
    %v3257 = vunpack.c.l.b16 %v773
    %v3258 = vunpack.c.h.b16 %v773
    %v3259 = vunpack.c.l.b16 %v774
    %v3260 = vunpack.c.h.b16 %v774
    %v3261 = vunpack.c.l.b16 %v775
    %v3262 = vunpack.c.h.b16 %v775
    %v3263 = vunpack.c.l.b16 %v776
    %v3264 = vunpack.c.h.b16 %v776
    %v3265 = vunpack.c.l.b16 %v777
    %v3266 = vunpack.c.h.b16 %v777
    %v3267 = vunpack.c.l.b16 %v778
    %v3268 = vunpack.c.h.b16 %v778
    %v3269 = vunpack.c.l.b16 %v779
    %v3270 = vunpack.c.h.b16 %v779
    %v3271 = vunpack.c.l.b16 %v780
    %v3272 = vunpack.c.h.b16 %v780
    %v3273 = vunpack.c.l.b16 %v781
    %v3274 = vunpack.c.h.b16 %v781
    %v3275 = vunpack.c.l.b16 %v782
    %v3276 = vunpack.c.h.b16 %v782
    %v3277 = vunpack.c.l.b16 %v783
    %v3278 = vunpack.c.h.b16 %v783
    %v3279 = vunpack.c.l.b16 %v784
    %v3280 = vunpack.c.h.b16 %v784
    %v3281 = vunpack.c.l.b16 %v785
    %v3282 = vunpack.c.h.b16 %v785
    %v3283 = vunpack.c.l.b16 %v786
    %v3284 = vunpack.c.h.b16 %v786
    %v3285 = vunpack.c.l.b16 %v787
    %v3286 = vunpack.c.h.b16 %v787
    %v3287 = vunpack.c.l.b16 %v788
    %v3288 = vunpack.c.h.b16 %v788
    %v3289 = vunpack.c.l.b16 %v789
    %v3290 = vunpack.c.h.b16 %v789
    %v3291 = vunpack.c.l.b16 %v790
    %v3292 = vunpack.c.h.b16 %v790
    %v3293 = vunpack.c.l.b16 %v791
    %v3294 = vunpack.c.h.b16 %v791
    %v3295 = vunpack.c.l.b16 %v792
    %v3296 = vunpack.c.h.b16 %v792
    %v3297 = vunpack.c.l.b16 %v793
    %v3298 = vunpack.c.h.b16 %v793
    %v3299 = vunpack.c.l.b16 %v794
    %v3300 = vunpack.c.h.b16 %v794
    %v3301 = vunpack.c.l.b16 %v795
    %v3302 = vunpack.c.h.b16 %v795
    %v3303 = vunpack.c.l.b16 %v796
    %v3304 = vunpack.c.h.b16 %v796
    %v3305 = vunpack.c.l.b16 %v797
    %v3306 = vunpack.c.h.b16 %v797
    %v3307 = vunpack.c.l.b16 %v798
    %v3308 = vunpack.c.h.b16 %v798
    %v3309 = vunpack.c.l.b16 %v799
    %v3310 = vunpack.c.h.b16 %v799
    %v3311 = vunpack.c.l.b16 %v800
    %v3312 = vunpack.c.h.b16 %v800
    %v3313 = vunpack.c.l.b16 %v801
    %v3314 = vunpack.c.h.b16 %v801
    %v3315 = vunpack.c.l.b16 %v802
    %v3316 = vunpack.c.h.b16 %v802
    %v3317 = vunpack.c.l.b16 %v803
    %v3318 = vunpack.c.h.b16 %v803
    %v3319 = vunpack.c.l.b16 %v804
    %v3320 = vunpack.c.h.b16 %v804
    %v3321 = vunpack.c.l.b16 %v805
    %v3322 = vunpack.c.h.b16 %v805
    %v3323 = vunpack.c.l.b16 %v806
    %v3324 = vunpack.c.h.b16 %v806
    %v3325 = vunpack.c.l.b16 %v807
    %v3326 = vunpack.c.h.b16 %v807
    %v3327 = vunpack.c.l.b16 %v808
    %v3328 = vunpack.c.h.b16 %v808
    %v3329 = vunpack.c.l.b16 %v809
    %v3330 = vunpack.c.h.b16 %v809
    %v3331 = vunpack.c.l.b16 %v810
    %v3332 = vunpack.c.h.b16 %v810
    %v3333 = vunpack.c.l.b16 %v811
    %v3334 = vunpack.c.h.b16 %v811
    %v3335 = vunpack.c.l.b16 %v812
    %v3336 = vunpack.c.h.b16 %v812
    %v3337 = vunpack.c.l.b16 %v813
    %v3338 = vunpack.c.h.b16 %v813
    %v3339 = vunpack.c.l.b16 %v814
    %v3340 = vunpack.c.h.b16 %v814
    %v3341 = vunpack.c.l.b16 %v815
    %v3342 = vunpack.c.h.b16 %v815
    %v3343 = vunpack.c.l.b16 %v816
    %v3344 = vunpack.c.h.b16 %v816
    %v3345 = vunpack.c.l.b16 %v817
    %v3346 = vunpack.c.h.b16 %v817
    %v3347 = vunpack.c.l.b16 %v818
    %v3348 = vunpack.c.h.b16 %v818
    %v3349 = vunpack.c.l.b16 %v819
    %v3350 = vunpack.c.h.b16 %v819
    %v3351 = vunpack.c.l.b16 %v820
    %v3352 = vunpack.c.h.b16 %v820
    %v3353 = vunpack.c.l.b16 %v821
    %v3354 = vunpack.c.h.b16 %v821
    %v3355 = vunpack.c.l.b16 %v822
    %v3356 = vunpack.c.h.b16 %v822
    %v3357 = vunpack.c.l.b16 %v823
    %v3358 = vunpack.c.h.b16 %v823
    %v3359 = vunpack.c.l.b16 %v824
    %v3360 = vunpack.c.h.b16 %v824
    %v3361 = vunpack.c.l.b16 %v825
    %v3362 = vunpack.c.h.b16 %v825
    %v3363 = vunpack.c.l.b16 %v826
    %v3364 = vunpack.c.h.b16 %v826
    %v3365 = vunpack.c.l.b16 %v827
    %v3366 = vunpack.c.h.b16 %v827
    %v3367 = vunpack.c.l.b16 %v828
    %v3368 = vunpack.c.h.b16 %v828
    %v3369 = vunpack.c.l.b16 %v829
    %v3370 = vunpack.c.h.b16 %v829
    %v3371 = vunpack.c.l.b16 %v830
    %v3372 = vunpack.c.h.b16 %v830
    %v3373 = vunpack.c.l.b16 %v831
    %v3374 = vunpack.c.h.b16 %v831
    %v3375 = vunpack.c.l.b16 %v832
    %v3376 = vunpack.c.h.b16 %v832
    %v3377 = vunpack.c.l.b16 %v833
    %v3378 = vunpack.c.h.b16 %v833
    %v3379 = vunpack.c.l.b16 %v834
    %v3380 = vunpack.c.h.b16 %v834
    %v3381 = vunpack.c.l.b16 %v835
    %v3382 = vunpack.c.h.b16 %v835
    %v3383 = vunpack.c.l.b16 %v836
    %v3384 = vunpack.c.h.b16 %v836
    %v3385 = vunpack.c.l.b16 %v837
    %v3386 = vunpack.c.h.b16 %v837
    %v3387 = vunpack.c.l.b16 %v838
    %v3388 = vunpack.c.h.b16 %v838
    %v3389 = vunpack.c.l.b16 %v839
    %v3390 = vunpack.c.h.b16 %v839
    %v3391 = vunpack.c.l.b16 %v840
    %v3392 = vunpack.c.h.b16 %v840
    %v3393 = vunpack.c.l.b16 %v841
    %v3394 = vunpack.c.h.b16 %v841
    %v3395 = vunpack.c.l.b16 %v842
    %v3396 = vunpack.c.h.b16 %v842
    %v3397 = vunpack.c.l.b16 %v843
    %v3398 = vunpack.c.h.b16 %v843
    %v3399 = vunpack.c.l.b16 %v844
    %v3400 = vunpack.c.h.b16 %v844
    %v3401 = vunpack.c.l.b16 %v845
    %v3402 = vunpack.c.h.b16 %v845
    %v3403 = vunpack.c.l.b16 %v846
    %v3404 = vunpack.c.h.b16 %v846
    %v3405 = vunpack.c.l.b16 %v847
    %v3406 = vunpack.c.h.b16 %v847
    %v3407 = vunpack.c.l.b16 %v848
    %v3408 = vunpack.c.h.b16 %v848
    %v3409 = vunpack.c.l.b16 %v849
    %v3410 = vunpack.c.h.b16 %v849
    %v3411 = vunpack.c.l.b16 %v850
    %v3412 = vunpack.c.h.b16 %v850
    %v3413 = vunpack.c.l.b16 %v851
    %v3414 = vunpack.c.h.b16 %v851
    %v3415 = vunpack.c.l.b16 %v852
    %v3416 = vunpack.c.h.b16 %v852
    %v3417 = vunpack.c.l.b16 %v853
    %v3418 = vunpack.c.h.b16 %v853
    %v3419 = vunpack.c.l.b16 %v854
    %v3420 = vunpack.c.h.b16 %v854
    %v3421 = vunpack.c.l.b16 %v855
    %v3422 = vunpack.c.h.b16 %v855
    %v3423 = vunpack.c.l.b16 %v856
    %v3424 = vunpack.c.h.b16 %v856
    %v3425 = vunpack.c.l.b16 %v857
    %v3426 = vunpack.c.h.b16 %v857
    %v3427 = vunpack.c.l.b16 %v858
    %v3428 = vunpack.c.h.b16 %v858
    %v3429 = vunpack.c.l.b16 %v859
    %v3430 = vunpack.c.h.b16 %v859
    %v3431 = vunpack.c.l.b16 %v860
    %v3432 = vunpack.c.h.b16 %v860
    %v3433 = vunpack.c.l.b16 %v861
    %v3434 = vunpack.c.h.b16 %v861
    %v3435 = vunpack.c.l.b16 %v862
    %v3436 = vunpack.c.h.b16 %v862
    %v3437 = vunpack.c.l.b16 %v863
    %v3438 = vunpack.c.h.b16 %v863
    %v3439 = vunpack.c.l.b16 %v864
    %v3440 = vunpack.c.h.b16 %v864
    %v3441 = vunpack.c.l.b16 %v865
    %v3442 = vunpack.c.h.b16 %v865
    %v3443 = vunpack.c.l.b16 %v866
    %v3444 = vunpack.c.h.b16 %v866
    %v3445 = vunpack.c.l.b16 %v867
    %v3446 = vunpack.c.h.b16 %v867
    %v3447 = vunpack.c.l.b16 %v868
    %v3448 = vunpack.c.h.b16 %v868
    %v3449 = vunpack.c.l.b16 %v869
    %v3450 = vunpack.c.h.b16 %v869
    %v3451 = vunpack.c.l.b16 %v870
    %v3452 = vunpack.c.h.b16 %v870
    %v3453 = vunpack.c.l.b16 %v871
    %v3454 = vunpack.c.h.b16 %v871
    %v3455 = vunpack.c.l.b16 %v872
    %v3456 = vunpack.c.h.b16 %v872
    %v3457 = vunpack.c.l.b16 %v873
    %v3458 = vunpack.c.h.b16 %v873
    %v3459 = vunpack.c.l.b16 %v874
    %v3460 = vunpack.c.h.b16 %v874
    %v3461 = vunpack.c.l.b16 %v875
    %v3462 = vunpack.c.h.b16 %v875
    %v3463 = vunpack.c.l.b16 %v876
    %v3464 = vunpack.c.h.b16 %v876
    %v3465 = vunpack.c.l.b16 %v877
    %v3466 = vunpack.c.h.b16 %v877
    %v3467 = vunpack.c.l.b16 %v878
    %v3468 = vunpack.c.h.b16 %v878
    %v3469 = vunpack.c.l.b16 %v879
    %v3470 = vunpack.c.h.b16 %v879
    %v3471 = vunpack.c.l.b16 %v880
    %v3472 = vunpack.c.h.b16 %v880
    %v3473 = vunpack.c.l.b16 %v881
    %v3474 = vunpack.c.h.b16 %v881
    %v3475 = vunpack.c.l.b16 %v882
    %v3476 = vunpack.c.h.b16 %v882
    %v3477 = vunpack.c.l.b16 %v883
    %v3478 = vunpack.c.h.b16 %v883
    %v3479 = vunpack.c.l.b16 %v884
    %v3480 = vunpack.c.h.b16 %v884
    %v3481 = vunpack.c.l.b16 %v885
    %v3482 = vunpack.c.h.b16 %v885
    %v3483 = vunpack.c.l.b16 %v886
    %v3484 = vunpack.c.h.b16 %v886
    %v3485 = vunpack.c.l.b16 %v887
    %v3486 = vunpack.c.h.b16 %v887
    %v3487 = vunpack.c.l.b16 %v888
    %v3488 = vunpack.c.h.b16 %v888
    %v3489 = vunpack.c.l.b16 %v889
    %v3490 = vunpack.c.h.b16 %v889
    %v3491 = vunpack.c.l.b16 %v890
    %v3492 = vunpack.c.h.b16 %v890
    %v3493 = vunpack.c.l.b16 %v891
    %v3494 = vunpack.c.h.b16 %v891
    %v3495 = vunpack.c.l.b16 %v892
    %v3496 = vunpack.c.h.b16 %v892
    %v3497 = vunpack.c.l.b16 %v893
    %v3498 = vunpack.c.h.b16 %v893
    %v3499 = vunpack.c.l.b16 %v894
    %v3500 = vunpack.c.h.b16 %v894
    %v3501 = vunpack.c.l.b16 %v895
    %v3502 = vunpack.c.h.b16 %v895
    %v3503 = vunpack.c.l.b16 %v896
    %v3504 = vunpack.c.h.b16 %v896
    %v3505 = vunpack.c.l.b16 %v897
    %v3506 = vunpack.c.h.b16 %v897
    %v3507 = vunpack.c.l.b16 %v898
    %v3508 = vunpack.c.h.b16 %v898
    %v3509 = vunpack.c.l.b16 %v899
    %v3510 = vunpack.c.h.b16 %v899
    %v3511 = vunpack.c.l.b16 %v900
    %v3512 = vunpack.c.h.b16 %v900
    %v3513 = vunpack.c.l.b16 %v901
    %v3514 = vunpack.c.h.b16 %v901
    %v3515 = vunpack.c.l.b16 %v902
    %v3516 = vunpack.c.h.b16 %v902
    %v3517 = vunpack.c.l.b16 %v903
    %v3518 = vunpack.c.h.b16 %v903
    %v3519 = vunpack.c.l.b16 %v904
    %v3520 = vunpack.c.h.b16 %v904
    %v3521 = vunpack.c.l.b16 %v905
    %v3522 = vunpack.c.h.b16 %v905
    %v3523 = vunpack.c.l.b16 %v906
    %v3524 = vunpack.c.h.b16 %v906
    %v3525 = vunpack.c.l.b16 %v907
    %v3526 = vunpack.c.h.b16 %v907
    %v3527 = vunpack.c.l.b16 %v908
    %v3528 = vunpack.c.h.b16 %v908
    %v3529 = vunpack.c.l.b16 %v909
    %v3530 = vunpack.c.h.b16 %v909
    %v3531 = vunpack.c.l.b16 %v910
    %v3532 = vunpack.c.h.b16 %v910
    %v3533 = vunpack.c.l.b16 %v911
    %v3534 = vunpack.c.h.b16 %v911
    %v3535 = vunpack.c.l.b16 %v912
    %v3536 = vunpack.c.h.b16 %v912
    %v3537 = vunpack.c.l.b16 %v913
    %v3538 = vunpack.c.h.b16 %v913
    %v3539 = vunpack.c.l.b16 %v914
    %v3540 = vunpack.c.h.b16 %v914
    %v3541 = vunpack.c.l.b16 %v915
    %v3542 = vunpack.c.h.b16 %v915
    %v3543 = vunpack.c.l.b16 %v916
    %v3544 = vunpack.c.h.b16 %v916
    %v3545 = vunpack.c.l.b16 %v917
    %v3546 = vunpack.c.h.b16 %v917
    %v3547 = vunpack.c.l.b16 %v918
    %v3548 = vunpack.c.h.b16 %v918
    %v3549 = vunpack.c.l.b16 %v919
    %v3550 = vunpack.c.h.b16 %v919
    %v3551 = vunpack.c.l.b16 %v920
    %v3552 = vunpack.c.h.b16 %v920
    %v3553 = vunpack.c.l.b16 %v921
    %v3554 = vunpack.c.h.b16 %v921
    %v3555 = vunpack.c.l.b16 %v922
    %v3556 = vunpack.c.h.b16 %v922
    %v3557 = vunpack.c.l.b16 %v923
    %v3558 = vunpack.c.h.b16 %v923
    %v3559 = vunpack.c.l.b16 %v924
    %v3560 = vunpack.c.h.b16 %v924
    %v3561 = vunpack.c.l.b16 %v925
    %v3562 = vunpack.c.h.b16 %v925
    %v3563 = vunpack.c.l.b16 %v926
    %v3564 = vunpack.c.h.b16 %v926
    %v3565 = vunpack.c.l.b16 %v927
    %v3566 = vunpack.c.h.b16 %v927
    %v3567 = vunpack.c.l.b16 %v928
    %v3568 = vunpack.c.h.b16 %v928
    %v3569 = vunpack.c.l.b16 %v929
    %v3570 = vunpack.c.h.b16 %v929
    %v3571 = vunpack.c.l.b16 %v930
    %v3572 = vunpack.c.h.b16 %v930
    %v3573 = vunpack.c.l.b16 %v931
    %v3574 = vunpack.c.h.b16 %v931
    %v3575 = vunpack.c.l.b16 %v932
    %v3576 = vunpack.c.h.b16 %v932
    %v3577 = vunpack.c.l.b16 %v933
    %v3578 = vunpack.c.h.b16 %v933
    %v3579 = vunpack.c.l.b16 %v934
    %v3580 = vunpack.c.h.b16 %v934
    %v3581 = vunpack.c.l.b16 %v935
    %v3582 = vunpack.c.h.b16 %v935
    %v3583 = vunpack.c.l.b16 %v936
    %v3584 = vunpack.c.h.b16 %v936
    %v3585 = vunpack.c.l.b16 %v937
    %v3586 = vunpack.c.h.b16 %v937
    %v3587 = vunpack.c.l.b16 %v938
    %v3588 = vunpack.c.h.b16 %v938
    %v3589 = vunpack.c.l.b16 %v939
    %v3590 = vunpack.c.h.b16 %v939
    %v3591 = vunpack.c.l.b16 %v940
    %v3592 = vunpack.c.h.b16 %v940
    %v3593 = vunpack.c.l.b16 %v941
    %v3594 = vunpack.c.h.b16 %v941
    %v3595 = vunpack.c.l.b16 %v942
    %v3596 = vunpack.c.h.b16 %v942
    %v3597 = vunpack.c.l.b16 %v943
    %v3598 = vunpack.c.h.b16 %v943
    %v3599 = vunpack.c.l.b16 %v944
    %v3600 = vunpack.c.h.b16 %v944
    %v3601 = vunpack.c.l.b16 %v945
    %v3602 = vunpack.c.h.b16 %v945
    %v3603 = vunpack.c.l.b16 %v946
    %v3604 = vunpack.c.h.b16 %v946
    %v3605 = vunpack.c.l.b16 %v947
    %v3606 = vunpack.c.h.b16 %v947
    %v3607 = vunpack.c.l.b16 %v948
    %v3608 = vunpack.c.h.b16 %v948
    %v3609 = vunpack.c.l.b16 %v949
    %v3610 = vunpack.c.h.b16 %v949
    %v3611 = vunpack.c.l.b16 %v950
    %v3612 = vunpack.c.h.b16 %v950
    %v3613 = vunpack.c.l.b16 %v951
    %v3614 = vunpack.c.h.b16 %v951
    %v3615 = vunpack.c.l.b16 %v952
    %v3616 = vunpack.c.h.b16 %v952
    %v3617 = vunpack.c.l.b16 %v953
    %v3618 = vunpack.c.h.b16 %v953
    %v3619 = vunpack.c.l.b16 %v954
    %v3620 = vunpack.c.h.b16 %v954
    %v3621 = vunpack.c.l.b16 %v955
    %v3622 = vunpack.c.h.b16 %v955
    %v3623 = vunpack.c.l.b16 %v956
    %v3624 = vunpack.c.h.b16 %v956
    %v3625 = vunpack.c.l.b16 %v957
    %v3626 = vunpack.c.h.b16 %v957
    %v3627 = vunpack.c.l.b16 %v958
    %v3628 = vunpack.c.h.b16 %v958
    %v3629 = vunpack.c.l.b16 %v959
    %v3630 = vunpack.c.h.b16 %v959
    %v3631 = vunpack.c.l.b16 %v960
    %v3632 = vunpack.c.h.b16 %v960
    %v3633 = vunpack.c.l.b16 %v961
    %v3634 = vunpack.c.h.b16 %v961
    %v3635 = vunpack.c.l.b16 %v962
    %v3636 = vunpack.c.h.b16 %v962
    %v3637 = vunpack.c.l.b16 %v963
    %v3638 = vunpack.c.h.b16 %v963
    %v3639 = vunpack.c.l.b16 %v964
    %v3640 = vunpack.c.h.b16 %v964
    %v3641 = vunpack.c.l.b16 %v965
    %v3642 = vunpack.c.h.b16 %v965
    %v3643 = vunpack.c.l.b16 %v966
    %v3644 = vunpack.c.h.b16 %v966
    %v3645 = vunpack.c.l.b16 %v967
    %v3646 = vunpack.c.h.b16 %v967
    %v3647 = vunpack.c.l.b16 %v968
    %v3648 = vunpack.c.h.b16 %v968
    %v3649 = vunpack.c.l.b16 %v969
    %v3650 = vunpack.c.h.b16 %v969
    %v3651 = vunpack.c.l.b16 %v970
    %v3652 = vunpack.c.h.b16 %v970
    %v3653 = vunpack.c.l.b16 %v971
    %v3654 = vunpack.c.h.b16 %v971
    %v3655 = vunpack.c.l.b16 %v972
    %v3656 = vunpack.c.h.b16 %v972
    %v3657 = vunpack.c.l.b16 %v973
    %v3658 = vunpack.c.h.b16 %v973
    %v3659 = vunpack.c.l.b16 %v974
    %v3660 = vunpack.c.h.b16 %v974
    %v3661 = vunpack.c.l.b16 %v975
    %v3662 = vunpack.c.h.b16 %v975
    %v3663 = vunpack.c.l.b16 %v976
    %v3664 = vunpack.c.h.b16 %v976
    %v3665 = vunpack.c.l.b16 %v977
    %v3666 = vunpack.c.h.b16 %v977
    %v3667 = vunpack.c.l.b16 %v978
    %v3668 = vunpack.c.h.b16 %v978
    %v3669 = vunpack.c.l.b16 %v979
    %v3670 = vunpack.c.h.b16 %v979
    %v3671 = vunpack.c.l.b16 %v980
    %v3672 = vunpack.c.h.b16 %v980
    %v3673 = vunpack.c.l.b16 %v981
    %v3674 = vunpack.c.h.b16 %v981
    %v3675 = vunpack.c.l.b16 %v982
    %v3676 = vunpack.c.h.b16 %v982
    %v3677 = vunpack.c.l.b16 %v983
    %v3678 = vunpack.c.h.b16 %v983
    %v3679 = vunpack.c.l.b16 %v984
    %v3680 = vunpack.c.h.b16 %v984
    %v3681 = vunpack.c.l.b16 %v985
    %v3682 = vunpack.c.h.b16 %v985
    %v3683 = vunpack.c.l.b16 %v986
    %v3684 = vunpack.c.h.b16 %v986
    %v3685 = vunpack.c.l.b16 %v987
    %v3686 = vunpack.c.h.b16 %v987
    %v3687 = vunpack.c.l.b16 %v988
    %v3688 = vunpack.c.h.b16 %v988
    %v3689 = vunpack.c.l.b16 %v989
    %v3690 = vunpack.c.h.b16 %v989
    %v3691 = vunpack.c.l.b16 %v990
    %v3692 = vunpack.c.h.b16 %v990
    %v3693 = vunpack.c.l.b16 %v991
    %v3694 = vunpack.c.h.b16 %v991
    %v3695 = vunpack.c.l.b16 %v992
    %v3696 = vunpack.c.h.b16 %v992
    %v3697 = vunpack.c.l.b16 %v993
    %v3698 = vunpack.c.h.b16 %v993
    %v3699 = vunpack.c.l.b16 %v994
    %v3700 = vunpack.c.h.b16 %v994
    %v3701 = vunpack.c.l.b16 %v995
    %v3702 = vunpack.c.h.b16 %v995
    %v3703 = vunpack.c.l.b16 %v996
    %v3704 = vunpack.c.h.b16 %v996
    %v3705 = vunpack.c.l.b16 %v997
    %v3706 = vunpack.c.h.b16 %v997
    %v3707 = vunpack.c.l.b16 %v998
    %v3708 = vunpack.c.h.b16 %v998
    %v3709 = vunpack.c.l.b16 %v999
    %v3710 = vunpack.c.h.b16 %v999
    %v3711 = vunpack.c.l.b16 %v1000
    %v3712 = vunpack.c.h.b16 %v1000
    %v3713 = vunpack.c.l.b16 %v1001
    %v3714 = vunpack.c.h.b16 %v1001
    %v3715 = vunpack.c.l.b16 %v1002
    %v3716 = vunpack.c.h.b16 %v1002
    %v3717 = vunpack.c.l.b16 %v1003
    %v3718 = vunpack.c.h.b16 %v1003
    %v3719 = vunpack.c.l.b16 %v1004
    %v3720 = vunpack.c.h.b16 %v1004
    %v3721 = vunpack.c.l.b16 %v1005
    %v3722 = vunpack.c.h.b16 %v1005
    %v3723 = vunpack.c.l.b16 %v1006
    %v3724 = vunpack.c.h.b16 %v1006
    %v3725 = vunpack.c.l.b16 %v1007
    %v3726 = vunpack.c.h.b16 %v1007
    %v3727 = vunpack.c.l.b16 %v1008
    %v3728 = vunpack.c.h.b16 %v1008
    %v3729 = vunpack.c.l.b16 %v1009
    %v3730 = vunpack.c.h.b16 %v1009
    %v3731 = vunpack.c.l.b16 %v1010
    %v3732 = vunpack.c.h.b16 %v1010
    %v3733 = vunpack.c.l.b16 %v1011
    %v3734 = vunpack.c.h.b16 %v1011
    %v3735 = vunpack.c.l.b16 %v1012
    %v3736 = vunpack.c.h.b16 %v1012
    %v3737 = vunpack.c.l.b16 %v1013
    %v3738 = vunpack.c.h.b16 %v1013
    %v3739 = vunpack.c.l.b16 %v1014
    %v3740 = vunpack.c.h.b16 %v1014
    %v3741 = vunpack.c.l.b16 %v1015
    %v3742 = vunpack.c.h.b16 %v1015
    %v3743 = vunpack.c.l.b16 %v1016
    %v3744 = vunpack.c.h.b16 %v1016
    %v3745 = vunpack.c.l.b16 %v1017
    %v3746 = vunpack.c.h.b16 %v1017
    %v3747 = vunpack.c.l.b16 %v1018
    %v3748 = vunpack.c.h.b16 %v1018
    %v3749 = vpack.c.b16 %v1965, %v1957
    %v3750 = vpack.c.b16 %v1966, %v1958
    %v3751 = vpack.c.b16 %v1967, %v1959
    %v3752 = vpack.c.b16 %v1968, %v1960
    %v3753 = vpack.c.b16 %v1969, %v1961
    %v3754 = vpack.c.b16 %v1970, %v1962
    %v3755 = vpack.c.b16 %v1971, %v1963
    %v3756 = vpack.c.b16 %v1972, %v1964
    %v3757 = vpack.c.b16 %v1981, %v1973
    %v3758 = vpack.c.b16 %v1982, %v1974
    %v3759 = vpack.c.b16 %v1983, %v1975
    %v3760 = vpack.c.b16 %v1984, %v1976
    %v3761 = vpack.c.b16 %v1985, %v1977
    %v3762 = vpack.c.b16 %v1986, %v1978
    %v3763 = vpack.c.b16 %v1987, %v1979
    %v3764 = vpack.c.b16 %v1988, %v1980
    %v3765 = vpack.c.b16 %v1997, %v1989
    %v3766 = vpack.c.b16 %v1998, %v1990
    %v3767 = vpack.c.b16 %v1999, %v1991
    %v3768 = vpack.c.b16 %v2000, %v1992
    %v3769 = vpack.c.b16 %v2001, %v1993
    %v3770 = vpack.c.b16 %v2002, %v1994
    %v3771 = vpack.c.b16 %v2003, %v1995
    %v3772 = vpack.c.b16 %v2004, %v1996
    %v3773 = vpack.c.b16 %v2013, %v2005
    %v3774 = vpack.c.b16 %v2014, %v2006
    %v3775 = vpack.c.b16 %v2015, %v2007
    %v3776 = vpack.c.b16 %v2016, %v2008
    %v3777 = vpack.c.b16 %v2017, %v2009
    %v3778 = vpack.c.b16 %v2018, %v2010
    %v3779 = vpack.c.b16 %v2019, %v2011
    %v3780 = vpack.c.b16 %v2020, %v2012
    %v3781 = vpack.c.b16 %v2029, %v2021
    %v3782 = vpack.c.b16 %v2030, %v2022
    %v3783 = vpack.c.b16 %v2031, %v2023
    %v3784 = vpack.c.b16 %v2032, %v2024
    %v3785 = vpack.c.b16 %v2033, %v2025
    %v3786 = vpack.c.b16 %v2034, %v2026
    %v3787 = vpack.c.b16 %v2035, %v2027
    %v3788 = vpack.c.b16 %v2036, %v2028
    %v3789 = vpack.c.b16 %v2045, %v2037
    %v3790 = vpack.c.b16 %v2046, %v2038
    %v3791 = vpack.c.b16 %v2047, %v2039
    %v3792 = vpack.c.b16 %v2048, %v2040
    %v3793 = vpack.c.b16 %v2049, %v2041
    %v3794 = vpack.c.b16 %v2050, %v2042
    %v3795 = vpack.c.b16 %v2051, %v2043
    %v3796 = vpack.c.b16 %v2052, %v2044
    %v3797 = vpack.c.b16 %v2061, %v2053
    %v3798 = vpack.c.b16 %v2062, %v2054
    %v3799 = vpack.c.b16 %v2063, %v2055
    %v3800 = vpack.c.b16 %v2064, %v2056
    %v3801 = vpack.c.b16 %v2065, %v2057
    %v3802 = vpack.c.b16 %v2066, %v2058
    %v3803 = vpack.c.b16 %v2067, %v2059
    %v3804 = vpack.c.b16 %v2068, %v2060
    %v3805 = vpack.c.b16 %v2077, %v2069
    %v3806 = vpack.c.b16 %v2078, %v2070
    %v3807 = vpack.c.b16 %v2079, %v2071
    %v3808 = vpack.c.b16 %v2080, %v2072
    %v3809 = vpack.c.b16 %v2081, %v2073
    %v3810 = vpack.c.b16 %v2082, %v2074
    %v3811 = vpack.c.b16 %v2083, %v2075
    %v3812 = vpack.c.b16 %v2084, %v2076
    %v3813 = vpack.c.b16 %v2093, %v2085
    %v3814 = vpack.c.b16 %v2094, %v2086
    %v3815 = vpack.c.b16 %v2095, %v2087
    %v3816 = vpack.c.b16 %v2096, %v2088
    %v3817 = vpack.c.b16 %v2097, %v2089
    %v3818 = vpack.c.b16 %v2098, %v2090
    %v3819 = vpack.c.b16 %v2099, %v2091
    %v3820 = vpack.c.b16 %v2100, %v2092
    %v3821 = vpack.c.b16 %v2109, %v2101
    %v3822 = vpack.c.b16 %v2110, %v2102
    %v3823 = vpack.c.b16 %v2111, %v2103
    %v3824 = vpack.c.b16 %v2112, %v2104
    %v3825 = vpack.c.b16 %v2113, %v2105
    %v3826 = vpack.c.b16 %v2114, %v2106
    %v3827 = vpack.c.b16 %v2115, %v2107
    %v3828 = vpack.c.b16 %v2116, %v2108
    %v3829 = vpack.c.b16 %v2125, %v2117
    %v3830 = vpack.c.b16 %v2126, %v2118
    %v3831 = vpack.c.b16 %v2127, %v2119
    %v3832 = vpack.c.b16 %v2128, %v2120
    %v3833 = vpack.c.b16 %v2129, %v2121
    %v3834 = vpack.c.b16 %v2130, %v2122
    %v3835 = vpack.c.b16 %v2131, %v2123
    %v3836 = vpack.c.b16 %v2132, %v2124
    %v3837 = vpack.c.b16 %v2141, %v2133
    %v3838 = vpack.c.b16 %v2142, %v2134
    %v3839 = vpack.c.b16 %v2143, %v2135
    %v3840 = vpack.c.b16 %v2144, %v2136
    %v3841 = vpack.c.b16 %v2145, %v2137
    %v3842 = vpack.c.b16 %v2146, %v2138
    %v3843 = vpack.c.b16 %v2147, %v2139
    %v3844 = vpack.c.b16 %v2148, %v2140
    %v3845 = vpack.c.b16 %v2157, %v2149
    %v3846 = vpack.c.b16 %v2158, %v2150
    %v3847 = vpack.c.b16 %v2159, %v2151
    %v3848 = vpack.c.b16 %v2160, %v2152
    %v3849 = vpack.c.b16 %v2161, %v2153
    %v3850 = vpack.c.b16 %v2162, %v2154
    %v3851 = vpack.c.b16 %v2163, %v2155
    %v3852 = vpack.c.b16 %v2164, %v2156
    %v3853 = vpack.c.b16 %v2173, %v2165
    %v3854 = vpack.c.b16 %v2174, %v2166
    %v3855 = vpack.c.b16 %v2175, %v2167
    %v3856 = vpack.c.b16 %v2176, %v2168
    %v3857 = vpack.c.b16 %v2177, %v2169
    %v3858 = vpack.c.b16 %v2178, %v2170
    %v3859 = vpack.c.b16 %v2179, %v2171
    %v3860 = vpack.c.b16 %v2180, %v2172
    %v3861 = vpack.c.b16 %v2189, %v2181
    %v3862 = vpack.c.b16 %v2190, %v2182
    %v3863 = vpack.c.b16 %v2191, %v2183
    %v3864 = vpack.c.b16 %v2192, %v2184
    %v3865 = vpack.c.b16 %v2193, %v2185
    %v3866 = vpack.c.b16 %v2194, %v2186
    %v3867 = vpack.c.b16 %v2195, %v2187
    %v3868 = vpack.c.b16 %v2196, %v2188
    %v3869 = vpack.c.b16 %v2205, %v2197
    %v3870 = vpack.c.b16 %v2206, %v2198
    %v3871 = vpack.c.b16 %v2207, %v2199
    %v3872 = vpack.c.b16 %v2208, %v2200
    %v3873 = vpack.c.b16 %v2209, %v2201
    %v3874 = vpack.c.b16 %v2210, %v2202
    %v3875 = vpack.c.b16 %v2211, %v2203
    %v3876 = vpack.c.b16 %v2212, %v2204
    %v3877 = vpack.c.b16 %v2221, %v2213
    %v3878 = vpack.c.b16 %v2222, %v2214
    %v3879 = vpack.c.b16 %v2223, %v2215
    %v3880 = vpack.c.b16 %v2224, %v2216
    %v3881 = vpack.c.b16 %v2225, %v2217
    %v3882 = vpack.c.b16 %v2226, %v2218
    %v3883 = vpack.c.b16 %v2227, %v2219
    %v3884 = vpack.c.b16 %v2228, %v2220
    %v3885 = vpack.c.b16 %v2237, %v2229
    %v3886 = vpack.c.b16 %v2238, %v2230
    %v3887 = vpack.c.b16 %v2239, %v2231
    %v3888 = vpack.c.b16 %v2240, %v2232
    %v3889 = vpack.c.b16 %v2241, %v2233
    %v3890 = vpack.c.b16 %v2242, %v2234
    %v3891 = vpack.c.b16 %v2243, %v2235
    %v3892 = vpack.c.b16 %v2244, %v2236
    %v3893 = vpack.c.b16 %v2253, %v2245
    %v3894 = vpack.c.b16 %v2254, %v2246
    %v3895 = vpack.c.b16 %v2255, %v2247
    %v3896 = vpack.c.b16 %v2256, %v2248
    %v3897 = vpack.c.b16 %v2257, %v2249
    %v3898 = vpack.c.b16 %v2258, %v2250
    %v3899 = vpack.c.b16 %v2259, %v2251
    %v3900 = vpack.c.b16 %v2260, %v2252
    %v3901 = vpack.c.b16 %v2269, %v2261
    %v3902 = vpack.c.b16 %v2270, %v2262
    %v3903 = vpack.c.b16 %v2271, %v2263
    %v3904 = vpack.c.b16 %v2272, %v2264
    %v3905 = vpack.c.b16 %v2273, %v2265
    %v3906 = vpack.c.b16 %v2274, %v2266
    %v3907 = vpack.c.b16 %v2275, %v2267
    %v3908 = vpack.c.b16 %v2276, %v2268
    %v3909 = vpack.c.b16 %v2285, %v2277
    %v3910 = vpack.c.b16 %v2286, %v2278
    %v3911 = vpack.c.b16 %v2287, %v2279
    %v3912 = vpack.c.b16 %v2288, %v2280
    %v3913 = vpack.c.b16 %v2289, %v2281
    %v3914 = vpack.c.b16 %v2290, %v2282
    %v3915 = vpack.c.b16 %v2291, %v2283
    %v3916 = vpack.c.b16 %v2292, %v2284
    %v3917 = vpack.c.b16 %v2301, %v2293
    %v3918 = vpack.c.b16 %v2302, %v2294
    %v3919 = vpack.c.b16 %v2303, %v2295
    %v3920 = vpack.c.b16 %v2304, %v2296
    %v3921 = vpack.c.b16 %v2305, %v2297
    %v3922 = vpack.c.b16 %v2306, %v2298
    %v3923 = vpack.c.b16 %v2307, %v2299
    %v3924 = vpack.c.b16 %v2308, %v2300
    %v3925 = vpack.c.b16 %v2317, %v2309
    %v3926 = vpack.c.b16 %v2318, %v2310
    %v3927 = vpack.c.b16 %v2319, %v2311
    %v3928 = vpack.c.b16 %v2320, %v2312
    %v3929 = vpack.c.b16 %v2321, %v2313
    %v3930 = vpack.c.b16 %v2322, %v2314
    %v3931 = vpack.c.b16 %v2323, %v2315
    %v3932 = vpack.c.b16 %v2324, %v2316
    %v3933 = vpack.c.b16 %v2333, %v2325
    %v3934 = vpack.c.b16 %v2334, %v2326
    %v3935 = vpack.c.b16 %v2335, %v2327
    %v3936 = vpack.c.b16 %v2336, %v2328
    %v3937 = vpack.c.b16 %v2337, %v2329
    %v3938 = vpack.c.b16 %v2338, %v2330
    %v3939 = vpack.c.b16 %v2339, %v2331
    %v3940 = vpack.c.b16 %v2340, %v2332
    %v3941 = vpack.c.b16 %v2349, %v2341
    %v3942 = vpack.c.b16 %v2350, %v2342
    %v3943 = vpack.c.b16 %v2351, %v2343
    %v3944 = vpack.c.b16 %v2352, %v2344
    %v3945 = vpack.c.b16 %v2353, %v2345
    %v3946 = vpack.c.b16 %v2354, %v2346
    %v3947 = vpack.c.b16 %v2355, %v2347
    %v3948 = vpack.c.b16 %v2356, %v2348
    %v3949 = vpack.c.b16 %v2365, %v2357
    %v3950 = vpack.c.b16 %v2366, %v2358
    %v3951 = vpack.c.b16 %v2367, %v2359
    %v3952 = vpack.c.b16 %v2368, %v2360
    %v3953 = vpack.c.b16 %v2369, %v2361
    %v3954 = vpack.c.b16 %v2370, %v2362
    %v3955 = vpack.c.b16 %v2371, %v2363
    %v3956 = vpack.c.b16 %v2372, %v2364
    %v3957 = vpack.c.b16 %v2381, %v2373
    %v3958 = vpack.c.b16 %v2382, %v2374
    %v3959 = vpack.c.b16 %v2383, %v2375
    %v3960 = vpack.c.b16 %v2384, %v2376
    %v3961 = vpack.c.b16 %v2385, %v2377
    %v3962 = vpack.c.b16 %v2386, %v2378
    %v3963 = vpack.c.b16 %v2387, %v2379
    %v3964 = vpack.c.b16 %v2388, %v2380
    %v3965 = vpack.c.b16 %v2397, %v2389
    %v3966 = vpack.c.b16 %v2398, %v2390
    %v3967 = vpack.c.b16 %v2399, %v2391
    %v3968 = vpack.c.b16 %v2400, %v2392
    %v3969 = vpack.c.b16 %v2401, %v2393
    %v3970 = vpack.c.b16 %v2402, %v2394
    %v3971 = vpack.c.b16 %v2403, %v2395
    %v3972 = vpack.c.b16 %v2404, %v2396
    %v3973 = vpack.c.b16 %v2413, %v2405
    %v3974 = vpack.c.b16 %v2414, %v2406
    %v3975 = vpack.c.b16 %v2415, %v2407
    %v3976 = vpack.c.b16 %v2416, %v2408
    %v3977 = vpack.c.b16 %v2417, %v2409
    %v3978 = vpack.c.b16 %v2418, %v2410
    %v3979 = vpack.c.b16 %v2419, %v2411
    %v3980 = vpack.c.b16 %v2420, %v2412
    %v3981 = vpack.c.b16 %v2429, %v2421
    %v3982 = vpack.c.b16 %v2430, %v2422
    %v3983 = vpack.c.b16 %v2431, %v2423
    %v3984 = vpack.c.b16 %v2432, %v2424
    %v3985 = vpack.c.b16 %v2433, %v2425
    %v3986 = vpack.c.b16 %v2434, %v2426
    %v3987 = vpack.c.b16 %v2435, %v2427
    %v3988 = vpack.c.b16 %v2436, %v2428
    %v3989 = vpack.c.b16 %v2445, %v2437
    %v3990 = vpack.c.b16 %v2446, %v2438
    %v3991 = vpack.c.b16 %v2447, %v2439
    %v3992 = vpack.c.b16 %v2448, %v2440
    %v3993 = vpack.c.b16 %v2449, %v2441
    %v3994 = vpack.c.b16 %v2450, %v2442
    %v3995 = vpack.c.b16 %v2451, %v2443
    %v3996 = vpack.c.b16 %v2452, %v2444
    %v3997 = vpack.c.b16 %v2461, %v2453
    %v3998 = vpack.c.b16 %v2462, %v2454
    %v3999 = vpack.c.b16 %v2463, %v2455
    %v4000 = vpack.c.b16 %v2464, %v2456
    %v4001 = vpack.c.b16 %v2465, %v2457
    %v4002 = vpack.c.b16 %v2466, %v2458
    %v4003 = vpack.c.b16 %v2467, %v2459
    %v4004 = vpack.c.b16 %v2468, %v2460
    %v4005 = vpack.c.b16 %v2477, %v2469
    %v4006 = vpack.c.b16 %v2478, %v2470
    %v4007 = vpack.c.b16 %v2479, %v2471
    %v4008 = vpack.c.b16 %v2480, %v2472
    %v4009 = vpack.c.b16 %v2481, %v2473
    %v4010 = vpack.c.b16 %v2482, %v2474
    %v4011 = vpack.c.b16 %v2483, %v2475
    %v4012 = vpack.c.b16 %v2484, %v2476
    %v4013 = vpack.c.b16 %v2493, %v2485
    %v4014 = vpack.c.b16 %v2494, %v2486
    %v4015 = vpack.c.b16 %v2495, %v2487
    %v4016 = vpack.c.b16 %v2496, %v2488
    %v4017 = vpack.c.b16 %v2497, %v2489
    %v4018 = vpack.c.b16 %v2498, %v2490
    %v4019 = vpack.c.b16 %v2499, %v2491
    %v4020 = vpack.c.b16 %v2500, %v2492
    %v4021 = vpack.c.b16 %v2509, %v2501
    %v4022 = vpack.c.b16 %v2510, %v2502
    %v4023 = vpack.c.b16 %v2511, %v2503
    %v4024 = vpack.c.b16 %v2512, %v2504
    %v4025 = vpack.c.b16 %v2513, %v2505
    %v4026 = vpack.c.b16 %v2514, %v2506
    %v4027 = vpack.c.b16 %v2515, %v2507
    %v4028 = vpack.c.b16 %v2516, %v2508
    %v4029 = vpack.c.b16 %v2525, %v2517
    %v4030 = vpack.c.b16 %v2526, %v2518
    %v4031 = vpack.c.b16 %v2527, %v2519
    %v4032 = vpack.c.b16 %v2528, %v2520
    %v4033 = vpack.c.b16 %v2529, %v2521
    %v4034 = vpack.c.b16 %v2530, %v2522
    %v4035 = vpack.c.b16 %v2531, %v2523
    %v4036 = vpack.c.b16 %v2532, %v2524
    %v4037 = vpack.c.b16 %v2541, %v2533
    %v4038 = vpack.c.b16 %v2542, %v2534
    %v4039 = vpack.c.b16 %v2543, %v2535
    %v4040 = vpack.c.b16 %v2544, %v2536
    %v4041 = vpack.c.b16 %v2545, %v2537
    %v4042 = vpack.c.b16 %v2546, %v2538
    %v4043 = vpack.c.b16 %v2547, %v2539
    %v4044 = vpack.c.b16 %v2548, %v2540
    %v4045 = vpack.c.b16 %v2557, %v2549
    %v4046 = vpack.c.b16 %v2558, %v2550
    %v4047 = vpack.c.b16 %v2559, %v2551
    %v4048 = vpack.c.b16 %v2560, %v2552
    %v4049 = vpack.c.b16 %v2561, %v2553
    %v4050 = vpack.c.b16 %v2562, %v2554
    %v4051 = vpack.c.b16 %v2563, %v2555
    %v4052 = vpack.c.b16 %v2564, %v2556
    %v4053 = vpack.c.b16 %v2573, %v2565
    %v4054 = vpack.c.b16 %v2574, %v2566
    %v4055 = vpack.c.b16 %v2575, %v2567
    %v4056 = vpack.c.b16 %v2576, %v2568
    %v4057 = vpack.c.b16 %v2577, %v2569
    %v4058 = vpack.c.b16 %v2578, %v2570
    %v4059 = vpack.c.b16 %v2579, %v2571
    %v4060 = vpack.c.b16 %v2580, %v2572
    %v4061 = vpack.c.b16 %v2589, %v2581
    %v4062 = vpack.c.b16 %v2590, %v2582
    %v4063 = vpack.c.b16 %v2591, %v2583
    %v4064 = vpack.c.b16 %v2592, %v2584
    %v4065 = vpack.c.b16 %v2593, %v2585
    %v4066 = vpack.c.b16 %v2594, %v2586
    %v4067 = vpack.c.b16 %v2595, %v2587
    %v4068 = vpack.c.b16 %v2596, %v2588
    %v4069 = vpack.c.b16 %v2605, %v2597
    %v4070 = vpack.c.b16 %v2606, %v2598
    %v4071 = vpack.c.b16 %v2607, %v2599
    %v4072 = vpack.c.b16 %v2608, %v2600
    %v4073 = vpack.c.b16 %v2609, %v2601
    %v4074 = vpack.c.b16 %v2610, %v2602
    %v4075 = vpack.c.b16 %v2611, %v2603
    %v4076 = vpack.c.b16 %v2612, %v2604
    %v4077 = vpack.c.b16 %v2621, %v2613
    %v4078 = vpack.c.b16 %v2622, %v2614
    %v4079 = vpack.c.b16 %v2623, %v2615
    %v4080 = vpack.c.b16 %v2624, %v2616
    %v4081 = vpack.c.b16 %v2625, %v2617
    %v4082 = vpack.c.b16 %v2626, %v2618
    %v4083 = vpack.c.b16 %v2627, %v2619
    %v4084 = vpack.c.b16 %v2628, %v2620
    %v4085 = vpack.c.b16 %v2637, %v2629
    %v4086 = vpack.c.b16 %v2638, %v2630
    %v4087 = vpack.c.b16 %v2639, %v2631
    %v4088 = vpack.c.b16 %v2640, %v2632
    %v4089 = vpack.c.b16 %v2641, %v2633
    %v4090 = vpack.c.b16 %v2642, %v2634
    %v4091 = vpack.c.b16 %v2643, %v2635
    %v4092 = vpack.c.b16 %v2644, %v2636
    %v4093 = vpack.c.b16 %v2653, %v2645
    %v4094 = vpack.c.b16 %v2654, %v2646
    %v4095 = vpack.c.b16 %v2655, %v2647
    %v4096 = vpack.c.b16 %v2656, %v2648
    %v4097 = vpack.c.b16 %v2657, %v2649
    %v4098 = vpack.c.b16 %v2658, %v2650
    %v4099 = vpack.c.b16 %v2659, %v2651
    %v4100 = vpack.c.b16 %v2660, %v2652
    %v4101 = vpack.c.b16 %v2669, %v2661
    %v4102 = vpack.c.b16 %v2670, %v2662
    %v4103 = vpack.c.b16 %v2671, %v2663
    %v4104 = vpack.c.b16 %v2672, %v2664
    %v4105 = vpack.c.b16 %v2673, %v2665
    %v4106 = vpack.c.b16 %v2674, %v2666
    %v4107 = vpack.c.b16 %v2675, %v2667
    %v4108 = vpack.c.b16 %v2676, %v2668
    %v4109 = vpack.c.b16 %v2685, %v2677
    %v4110 = vpack.c.b16 %v2686, %v2678
    %v4111 = vpack.c.b16 %v2687, %v2679
    %v4112 = vpack.c.b16 %v2688, %v2680
    %v4113 = vpack.c.b16 %v2689, %v2681
    %v4114 = vpack.c.b16 %v2690, %v2682
    %v4115 = vpack.c.b16 %v2691, %v2683
    %v4116 = vpack.c.b16 %v2692, %v2684
    %v4117 = vpack.c.b16 %v2701, %v2693
    %v4118 = vpack.c.b16 %v2702, %v2694
    %v4119 = vpack.c.b16 %v2703, %v2695
    %v4120 = vpack.c.b16 %v2704, %v2696
    %v4121 = vpack.c.b16 %v2705, %v2697
    %v4122 = vpack.c.b16 %v2706, %v2698
    %v4123 = vpack.c.b16 %v2707, %v2699
    %v4124 = vpack.c.b16 %v2708, %v2700
    %v4125 = vpack.c.b16 %v2717, %v2709
    %v4126 = vpack.c.b16 %v2718, %v2710
    %v4127 = vpack.c.b16 %v2719, %v2711
    %v4128 = vpack.c.b16 %v2720, %v2712
    %v4129 = vpack.c.b16 %v2721, %v2713
    %v4130 = vpack.c.b16 %v2722, %v2714
    %v4131 = vpack.c.b16 %v2723, %v2715
    %v4132 = vpack.c.b16 %v2724, %v2716
    %v4133 = vpack.c.b16 %v2733, %v2725
    %v4134 = vpack.c.b16 %v2734, %v2726
    %v4135 = vpack.c.b16 %v2735, %v2727
    %v4136 = vpack.c.b16 %v2736, %v2728
    %v4137 = vpack.c.b16 %v2737, %v2729
    %v4138 = vpack.c.b16 %v2738, %v2730
    %v4139 = vpack.c.b16 %v2739, %v2731
    %v4140 = vpack.c.b16 %v2740, %v2732
    %v4141 = vpack.c.b16 %v2749, %v2741
    %v4142 = vpack.c.b16 %v2750, %v2742
    %v4143 = vpack.c.b16 %v2751, %v2743
    %v4144 = vpack.c.b16 %v2752, %v2744
    %v4145 = vpack.c.b16 %v2753, %v2745
    %v4146 = vpack.c.b16 %v2754, %v2746
    %v4147 = vpack.c.b16 %v2755, %v2747
    %v4148 = vpack.c.b16 %v2756, %v2748
    %v4149 = vpack.c.b16 %v2765, %v2757
    %v4150 = vpack.c.b16 %v2766, %v2758
    %v4151 = vpack.c.b16 %v2767, %v2759
    %v4152 = vpack.c.b16 %v2768, %v2760
    %v4153 = vpack.c.b16 %v2769, %v2761
    %v4154 = vpack.c.b16 %v2770, %v2762
    %v4155 = vpack.c.b16 %v2771, %v2763
    %v4156 = vpack.c.b16 %v2772, %v2764
    %v4157 = vpack.c.b16 %v2781, %v2773
    %v4158 = vpack.c.b16 %v2782, %v2774
    %v4159 = vpack.c.b16 %v2783, %v2775
    %v4160 = vpack.c.b16 %v2784, %v2776
    %v4161 = vpack.c.b16 %v2785, %v2777
    %v4162 = vpack.c.b16 %v2786, %v2778
    %v4163 = vpack.c.b16 %v2787, %v2779
    %v4164 = vpack.c.b16 %v2788, %v2780
    %v4165 = vpack.c.b16 %v2797, %v2789
    %v4166 = vpack.c.b16 %v2798, %v2790
    %v4167 = vpack.c.b16 %v2799, %v2791
    %v4168 = vpack.c.b16 %v2800, %v2792
    %v4169 = vpack.c.b16 %v2801, %v2793
    %v4170 = vpack.c.b16 %v2802, %v2794
    %v4171 = vpack.c.b16 %v2803, %v2795
    %v4172 = vpack.c.b16 %v2804, %v2796
    %v4173 = vpack.c.b16 %v2813, %v2805
    %v4174 = vpack.c.b16 %v2814, %v2806
    %v4175 = vpack.c.b16 %v2815, %v2807
    %v4176 = vpack.c.b16 %v2816, %v2808
    %v4177 = vpack.c.b16 %v2817, %v2809
    %v4178 = vpack.c.b16 %v2818, %v2810
    %v4179 = vpack.c.b16 %v2819, %v2811
    %v4180 = vpack.c.b16 %v2820, %v2812
    %v4181 = vpack.c.b16 %v2829, %v2821
    %v4182 = vpack.c.b16 %v2830, %v2822
    %v4183 = vpack.c.b16 %v2831, %v2823
    %v4184 = vpack.c.b16 %v2832, %v2824
    %v4185 = vpack.c.b16 %v2833, %v2825
    %v4186 = vpack.c.b16 %v2834, %v2826
    %v4187 = vpack.c.b16 %v2835, %v2827
    %v4188 = vpack.c.b16 %v2836, %v2828
    %v4189 = vpack.c.b16 %v2845, %v2837
    %v4190 = vpack.c.b16 %v2846, %v2838
    %v4191 = vpack.c.b16 %v2847, %v2839
    %v4192 = vpack.c.b16 %v2848, %v2840
    %v4193 = vpack.c.b16 %v2849, %v2841
    %v4194 = vpack.c.b16 %v2850, %v2842
    %v4195 = vpack.c.b16 %v2851, %v2843
    %v4196 = vpack.c.b16 %v2852, %v2844
    %v4197 = vpack.c.b16 %v2861, %v2853
    %v4198 = vpack.c.b16 %v2862, %v2854
    %v4199 = vpack.c.b16 %v2863, %v2855
    %v4200 = vpack.c.b16 %v2864, %v2856
    %v4201 = vpack.c.b16 %v2865, %v2857
    %v4202 = vpack.c.b16 %v2866, %v2858
    %v4203 = vpack.c.b16 %v2867, %v2859
    %v4204 = vpack.c.b16 %v2868, %v2860
    %v4205 = vpack.c.b16 %v2877, %v2869
    %v4206 = vpack.c.b16 %v2878, %v2870
    %v4207 = vpack.c.b16 %v2879, %v2871
    %v4208 = vpack.c.b16 %v2880, %v2872
    %v4209 = vpack.c.b16 %v2881, %v2873
    %v4210 = vpack.c.b16 %v2882, %v2874
    %v4211 = vpack.c.b16 %v2883, %v2875
    %v4212 = vpack.c.b16 %v2884, %v2876
    %v4213 = vpack.c.b16 %v2893, %v2885
    %v4214 = vpack.c.b16 %v2894, %v2886
    %v4215 = vpack.c.b16 %v2895, %v2887
    %v4216 = vpack.c.b16 %v2896, %v2888
    %v4217 = vpack.c.b16 %v2897, %v2889
    %v4218 = vpack.c.b16 %v2898, %v2890
    %v4219 = vpack.c.b16 %v2899, %v2891
    %v4220 = vpack.c.b16 %v2900, %v2892
    %v4221 = vpack.c.b16 %v2909, %v2901
    %v4222 = vpack.c.b16 %v2910, %v2902
    %v4223 = vpack.c.b16 %v2911, %v2903
    %v4224 = vpack.c.b16 %v2912, %v2904
    %v4225 = vpack.c.b16 %v2913, %v2905
    %v4226 = vpack.c.b16 %v2914, %v2906
    %v4227 = vpack.c.b16 %v2915, %v2907
    %v4228 = vpack.c.b16 %v2916, %v2908
    %v4229 = vpack.c.b16 %v2925, %v2917
    %v4230 = vpack.c.b16 %v2926, %v2918
    %v4231 = vpack.c.b16 %v2927, %v2919
    %v4232 = vpack.c.b16 %v2928, %v2920
    %v4233 = vpack.c.b16 %v2929, %v2921
    %v4234 = vpack.c.b16 %v2930, %v2922
    %v4235 = vpack.c.b16 %v2931, %v2923
    %v4236 = vpack.c.b16 %v2932, %v2924
    %v4237 = vpack.c.b16 %v2941, %v2933
    %v4238 = vpack.c.b16 %v2942, %v2934
    %v4239 = vpack.c.b16 %v2943, %v2935
    %v4240 = vpack.c.b16 %v2944, %v2936
    %v4241 = vpack.c.b16 %v2945, %v2937
    %v4242 = vpack.c.b16 %v2946, %v2938
    %v4243 = vpack.c.b16 %v2947, %v2939
    %v4244 = vpack.c.b16 %v2948, %v2940
    %v4245 = vpack.c.b16 %v2957, %v2949
    %v4246 = vpack.c.b16 %v2958, %v2950
    %v4247 = vpack.c.b16 %v2959, %v2951
    %v4248 = vpack.c.b16 %v2960, %v2952
    %v4249 = vpack.c.b16 %v2961, %v2953
    %v4250 = vpack.c.b16 %v2962, %v2954
    %v4251 = vpack.c.b16 %v2963, %v2955
    %v4252 = vpack.c.b16 %v2964, %v2956
    %v4253 = vpack.c.b16 %v2973, %v2965
    %v4254 = vpack.c.b16 %v2974, %v2966
    %v4255 = vpack.c.b16 %v2975, %v2967
    %v4256 = vpack.c.b16 %v2976, %v2968
    %v4257 = vpack.c.b16 %v2977, %v2969
    %v4258 = vpack.c.b16 %v2978, %v2970
    %v4259 = vpack.c.b16 %v2979, %v2971
    %v4260 = vpack.c.b16 %v2980, %v2972
    %v4261 = vpack.c.b16 %v2989, %v2981
    %v4262 = vpack.c.b16 %v2990, %v2982
    %v4263 = vpack.c.b16 %v2991, %v2983
    %v4264 = vpack.c.b16 %v2992, %v2984
    %v4265 = vpack.c.b16 %v2993, %v2985
    %v4266 = vpack.c.b16 %v2994, %v2986
    %v4267 = vpack.c.b16 %v2995, %v2987
    %v4268 = vpack.c.b16 %v2996, %v2988
    %v4269 = vpack.c.b16 %v3005, %v2997
    %v4270 = vpack.c.b16 %v3006, %v2998
    %v4271 = vpack.c.b16 %v3007, %v2999
    %v4272 = vpack.c.b16 %v3008, %v3000
    %v4273 = vpack.c.b16 %v3009, %v3001
    %v4274 = vpack.c.b16 %v3010, %v3002
    %v4275 = vpack.c.b16 %v3011, %v3003
    %v4276 = vpack.c.b16 %v3012, %v3004
    %v4277 = vpack.c.b16 %v3021, %v3013
    %v4278 = vpack.c.b16 %v3022, %v3014
    %v4279 = vpack.c.b16 %v3023, %v3015
    %v4280 = vpack.c.b16 %v3024, %v3016
    %v4281 = vpack.c.b16 %v3025, %v3017
    %v4282 = vpack.c.b16 %v3026, %v3018
    %v4283 = vpack.c.b16 %v3027, %v3019
    %v4284 = vpack.c.b16 %v3028, %v3020
    %v4285 = vpack.c.b16 %v3037, %v3029
    %v4286 = vpack.c.b16 %v3038, %v3030
    %v4287 = vpack.c.b16 %v3039, %v3031
    %v4288 = vpack.c.b16 %v3040, %v3032
    %v4289 = vpack.c.b16 %v3041, %v3033
    %v4290 = vpack.c.b16 %v3042, %v3034
    %v4291 = vpack.c.b16 %v3043, %v3035
    %v4292 = vpack.c.b16 %v3044, %v3036
    %v4293 = vpack.c.b16 %v3053, %v3045
    %v4294 = vpack.c.b16 %v3054, %v3046
    %v4295 = vpack.c.b16 %v3055, %v3047
    %v4296 = vpack.c.b16 %v3056, %v3048
    %v4297 = vpack.c.b16 %v3057, %v3049
    %v4298 = vpack.c.b16 %v3058, %v3050
    %v4299 = vpack.c.b16 %v3059, %v3051
    %v4300 = vpack.c.b16 %v3060, %v3052
    %v4301 = vpack.c.b16 %v3069, %v3061
    %v4302 = vpack.c.b16 %v3070, %v3062
    %v4303 = vpack.c.b16 %v3071, %v3063
    %v4304 = vpack.c.b16 %v3072, %v3064
    %v4305 = vpack.c.b16 %v3073, %v3065
    %v4306 = vpack.c.b16 %v3074, %v3066
    %v4307 = vpack.c.b16 %v3075, %v3067
    %v4308 = vpack.c.b16 %v3076, %v3068
    %v4309 = vpack.c.b16 %v3085, %v3077
    %v4310 = vpack.c.b16 %v3086, %v3078
    %v4311 = vpack.c.b16 %v3087, %v3079
    %v4312 = vpack.c.b16 %v3088, %v3080
    %v4313 = vpack.c.b16 %v3089, %v3081
    %v4314 = vpack.c.b16 %v3090, %v3082
    %v4315 = vpack.c.b16 %v3091, %v3083
    %v4316 = vpack.c.b16 %v3092, %v3084
    %v4317 = vpack.c.b16 %v3101, %v3093
    %v4318 = vpack.c.b16 %v3102, %v3094
    %v4319 = vpack.c.b16 %v3103, %v3095
    %v4320 = vpack.c.b16 %v3104, %v3096
    %v4321 = vpack.c.b16 %v3105, %v3097
    %v4322 = vpack.c.b16 %v3106, %v3098
    %v4323 = vpack.c.b16 %v3107, %v3099
    %v4324 = vpack.c.b16 %v3108, %v3100
    %v4325 = vpack.c.b16 %v3117, %v3109
    %v4326 = vpack.c.b16 %v3118, %v3110
    %v4327 = vpack.c.b16 %v3119, %v3111
    %v4328 = vpack.c.b16 %v3120, %v3112
    %v4329 = vpack.c.b16 %v3121, %v3113
    %v4330 = vpack.c.b16 %v3122, %v3114
    %v4331 = vpack.c.b16 %v3123, %v3115
    %v4332 = vpack.c.b16 %v3124, %v3116
    %v4333 = vpack.c.b16 %v3133, %v3125
    %v4334 = vpack.c.b16 %v3134, %v3126
    %v4335 = vpack.c.b16 %v3135, %v3127
    %v4336 = vpack.c.b16 %v3136, %v3128
    %v4337 = vpack.c.b16 %v3137, %v3129
    %v4338 = vpack.c.b16 %v3138, %v3130
    %v4339 = vpack.c.b16 %v3139, %v3131
    %v4340 = vpack.c.b16 %v3140, %v3132
    %v4341 = vpack.c.b16 %v3149, %v3141
    %v4342 = vpack.c.b16 %v3150, %v3142
    %v4343 = vpack.c.b16 %v3151, %v3143
    %v4344 = vpack.c.b16 %v3152, %v3144
    %v4345 = vpack.c.b16 %v3153, %v3145
    %v4346 = vpack.c.b16 %v3154, %v3146
    %v4347 = vpack.c.b16 %v3155, %v3147
    %v4348 = vpack.c.b16 %v3156, %v3148
    %v4349 = vpack.c.b16 %v3165, %v3157
    %v4350 = vpack.c.b16 %v3166, %v3158
    %v4351 = vpack.c.b16 %v3167, %v3159
    %v4352 = vpack.c.b16 %v3168, %v3160
    %v4353 = vpack.c.b16 %v3169, %v3161
    %v4354 = vpack.c.b16 %v3170, %v3162
    %v4355 = vpack.c.b16 %v3171, %v3163
    %v4356 = vpack.c.b16 %v3172, %v3164
    %v4357 = vpack.c.b16 %v3181, %v3173
    %v4358 = vpack.c.b16 %v3182, %v3174
    %v4359 = vpack.c.b16 %v3183, %v3175
    %v4360 = vpack.c.b16 %v3184, %v3176
    %v4361 = vpack.c.b16 %v3185, %v3177
    %v4362 = vpack.c.b16 %v3186, %v3178
    %v4363 = vpack.c.b16 %v3187, %v3179
    %v4364 = vpack.c.b16 %v3188, %v3180
    %v4365 = vpack.c.b16 %v3197, %v3189
    %v4366 = vpack.c.b16 %v3198, %v3190
    %v4367 = vpack.c.b16 %v3199, %v3191
    %v4368 = vpack.c.b16 %v3200, %v3192
    %v4369 = vpack.c.b16 %v3201, %v3193
    %v4370 = vpack.c.b16 %v3202, %v3194
    %v4371 = vpack.c.b16 %v3203, %v3195
    %v4372 = vpack.c.b16 %v3204, %v3196
    %v4373 = vpack.c.b16 %v3213, %v3205
    %v4374 = vpack.c.b16 %v3214, %v3206
    %v4375 = vpack.c.b16 %v3215, %v3207
    %v4376 = vpack.c.b16 %v3216, %v3208
    %v4377 = vpack.c.b16 %v3217, %v3209
    %v4378 = vpack.c.b16 %v3218, %v3210
    %v4379 = vpack.c.b16 %v3219, %v3211
    %v4380 = vpack.c.b16 %v3220, %v3212
    %v4381 = vpack.c.b16 %v3229, %v3221
    %v4382 = vpack.c.b16 %v3230, %v3222
    %v4383 = vpack.c.b16 %v3231, %v3223
    %v4384 = vpack.c.b16 %v3232, %v3224
    %v4385 = vpack.c.b16 %v3233, %v3225
    %v4386 = vpack.c.b16 %v3234, %v3226
    %v4387 = vpack.c.b16 %v3235, %v3227
    %v4388 = vpack.c.b16 %v3236, %v3228
    %v4389 = vpack.c.b16 %v3245, %v3237
    %v4390 = vpack.c.b16 %v3246, %v3238
    %v4391 = vpack.c.b16 %v3247, %v3239
    %v4392 = vpack.c.b16 %v3248, %v3240
    %v4393 = vpack.c.b16 %v3249, %v3241
    %v4394 = vpack.c.b16 %v3250, %v3242
    %v4395 = vpack.c.b16 %v3251, %v3243
    %v4396 = vpack.c.b16 %v3252, %v3244
    %v4397 = vpack.c.b16 %v3261, %v3253
    %v4398 = vpack.c.b16 %v3262, %v3254
    %v4399 = vpack.c.b16 %v3263, %v3255
    %v4400 = vpack.c.b16 %v3264, %v3256
    %v4401 = vpack.c.b16 %v3265, %v3257
    %v4402 = vpack.c.b16 %v3266, %v3258
    %v4403 = vpack.c.b16 %v3267, %v3259
    %v4404 = vpack.c.b16 %v3268, %v3260
    %v4405 = vpack.c.b16 %v3277, %v3269
    %v4406 = vpack.c.b16 %v3278, %v3270
    %v4407 = vpack.c.b16 %v3279, %v3271
    %v4408 = vpack.c.b16 %v3280, %v3272
    %v4409 = vpack.c.b16 %v3281, %v3273
    %v4410 = vpack.c.b16 %v3282, %v3274
    %v4411 = vpack.c.b16 %v3283, %v3275
    %v4412 = vpack.c.b16 %v3284, %v3276
    %v4413 = vpack.c.b16 %v3293, %v3285
    %v4414 = vpack.c.b16 %v3294, %v3286
    %v4415 = vpack.c.b16 %v3295, %v3287
    %v4416 = vpack.c.b16 %v3296, %v3288
    %v4417 = vpack.c.b16 %v3297, %v3289
    %v4418 = vpack.c.b16 %v3298, %v3290
    %v4419 = vpack.c.b16 %v3299, %v3291
    %v4420 = vpack.c.b16 %v3300, %v3292
    %v4421 = vpack.c.b16 %v3309, %v3301
    %v4422 = vpack.c.b16 %v3310, %v3302
    %v4423 = vpack.c.b16 %v3311, %v3303
    %v4424 = vpack.c.b16 %v3312, %v3304
    %v4425 = vpack.c.b16 %v3313, %v3305
    %v4426 = vpack.c.b16 %v3314, %v3306
    %v4427 = vpack.c.b16 %v3315, %v3307
    %v4428 = vpack.c.b16 %v3316, %v3308
    %v4429 = vpack.c.b16 %v3325, %v3317
    %v4430 = vpack.c.b16 %v3326, %v3318
    %v4431 = vpack.c.b16 %v3327, %v3319
    %v4432 = vpack.c.b16 %v3328, %v3320
    %v4433 = vpack.c.b16 %v3329, %v3321
    %v4434 = vpack.c.b16 %v3330, %v3322
    %v4435 = vpack.c.b16 %v3331, %v3323
    %v4436 = vpack.c.b16 %v3332, %v3324
    %v4437 = vpack.c.b16 %v3341, %v3333
    %v4438 = vpack.c.b16 %v3342, %v3334
    %v4439 = vpack.c.b16 %v3343, %v3335
    %v4440 = vpack.c.b16 %v3344, %v3336
    %v4441 = vpack.c.b16 %v3345, %v3337
    %v4442 = vpack.c.b16 %v3346, %v3338
    %v4443 = vpack.c.b16 %v3347, %v3339
    %v4444 = vpack.c.b16 %v3348, %v3340
    %v4445 = vpack.c.b16 %v3357, %v3349
    %v4446 = vpack.c.b16 %v3358, %v3350
    %v4447 = vpack.c.b16 %v3359, %v3351
    %v4448 = vpack.c.b16 %v3360, %v3352
    %v4449 = vpack.c.b16 %v3361, %v3353
    %v4450 = vpack.c.b16 %v3362, %v3354
    %v4451 = vpack.c.b16 %v3363, %v3355
    %v4452 = vpack.c.b16 %v3364, %v3356
    %v4453 = vpack.c.b16 %v3373, %v3365
    %v4454 = vpack.c.b16 %v3374, %v3366
    %v4455 = vpack.c.b16 %v3375, %v3367
    %v4456 = vpack.c.b16 %v3376, %v3368
    %v4457 = vpack.c.b16 %v3377, %v3369
    %v4458 = vpack.c.b16 %v3378, %v3370
    %v4459 = vpack.c.b16 %v3379, %v3371
    %v4460 = vpack.c.b16 %v3380, %v3372
    %v4461 = vpack.c.b16 %v3389, %v3381
    %v4462 = vpack.c.b16 %v3390, %v3382
    %v4463 = vpack.c.b16 %v3391, %v3383
    %v4464 = vpack.c.b16 %v3392, %v3384
    %v4465 = vpack.c.b16 %v3393, %v3385
    %v4466 = vpack.c.b16 %v3394, %v3386
    %v4467 = vpack.c.b16 %v3395, %v3387
    %v4468 = vpack.c.b16 %v3396, %v3388
    %v4469 = vpack.c.b16 %v3405, %v3397
    %v4470 = vpack.c.b16 %v3406, %v3398
    %v4471 = vpack.c.b16 %v3407, %v3399
    %v4472 = vpack.c.b16 %v3408, %v3400
    %v4473 = vpack.c.b16 %v3409, %v3401
    %v4474 = vpack.c.b16 %v3410, %v3402
    %v4475 = vpack.c.b16 %v3411, %v3403
    %v4476 = vpack.c.b16 %v3412, %v3404
    %v4477 = vpack.c.b16 %v3421, %v3413
    %v4478 = vpack.c.b16 %v3422, %v3414
    %v4479 = vpack.c.b16 %v3423, %v3415
    %v4480 = vpack.c.b16 %v3424, %v3416
    %v4481 = vpack.c.b16 %v3425, %v3417
    %v4482 = vpack.c.b16 %v3426, %v3418
    %v4483 = vpack.c.b16 %v3427, %v3419
    %v4484 = vpack.c.b16 %v3428, %v3420
    %v4485 = vpack.c.b16 %v3437, %v3429
    %v4486 = vpack.c.b16 %v3438, %v3430
    %v4487 = vpack.c.b16 %v3439, %v3431
    %v4488 = vpack.c.b16 %v3440, %v3432
    %v4489 = vpack.c.b16 %v3441, %v3433
    %v4490 = vpack.c.b16 %v3442, %v3434
    %v4491 = vpack.c.b16 %v3443, %v3435
    %v4492 = vpack.c.b16 %v3444, %v3436
    %v4493 = vpack.c.b16 %v3453, %v3445
    %v4494 = vpack.c.b16 %v3454, %v3446
    %v4495 = vpack.c.b16 %v3455, %v3447
    %v4496 = vpack.c.b16 %v3456, %v3448
    %v4497 = vpack.c.b16 %v3457, %v3449
    %v4498 = vpack.c.b16 %v3458, %v3450
    %v4499 = vpack.c.b16 %v3459, %v3451
    %v4500 = vpack.c.b16 %v3460, %v3452
    %v4501 = vpack.c.b16 %v3469, %v3461
    %v4502 = vpack.c.b16 %v3470, %v3462
    %v4503 = vpack.c.b16 %v3471, %v3463
    %v4504 = vpack.c.b16 %v3472, %v3464
    %v4505 = vpack.c.b16 %v3473, %v3465
    %v4506 = vpack.c.b16 %v3474, %v3466
    %v4507 = vpack.c.b16 %v3475, %v3467
    %v4508 = vpack.c.b16 %v3476, %v3468
    %v4509 = vpack.c.b16 %v3485, %v3477
    %v4510 = vpack.c.b16 %v3486, %v3478
    %v4511 = vpack.c.b16 %v3487, %v3479
    %v4512 = vpack.c.b16 %v3488, %v3480
    %v4513 = vpack.c.b16 %v3489, %v3481
    %v4514 = vpack.c.b16 %v3490, %v3482
    %v4515 = vpack.c.b16 %v3491, %v3483
    %v4516 = vpack.c.b16 %v3492, %v3484
    %v4517 = vpack.c.b16 %v3501, %v3493
    %v4518 = vpack.c.b16 %v3502, %v3494
    %v4519 = vpack.c.b16 %v3503, %v3495
    %v4520 = vpack.c.b16 %v3504, %v3496
    %v4521 = vpack.c.b16 %v3505, %v3497
    %v4522 = vpack.c.b16 %v3506, %v3498
    %v4523 = vpack.c.b16 %v3507, %v3499
    %v4524 = vpack.c.b16 %v3508, %v3500
    %v4525 = vpack.c.b16 %v3517, %v3509
    %v4526 = vpack.c.b16 %v3518, %v3510
    %v4527 = vpack.c.b16 %v3519, %v3511
    %v4528 = vpack.c.b16 %v3520, %v3512
    %v4529 = vpack.c.b16 %v3521, %v3513
    %v4530 = vpack.c.b16 %v3522, %v3514
    %v4531 = vpack.c.b16 %v3523, %v3515
    %v4532 = vpack.c.b16 %v3524, %v3516
    %v4533 = vpack.c.b16 %v3533, %v3525
    %v4534 = vpack.c.b16 %v3534, %v3526
    %v4535 = vpack.c.b16 %v3535, %v3527
    %v4536 = vpack.c.b16 %v3536, %v3528
    %v4537 = vpack.c.b16 %v3537, %v3529
    %v4538 = vpack.c.b16 %v3538, %v3530
    %v4539 = vpack.c.b16 %v3539, %v3531
    %v4540 = vpack.c.b16 %v3540, %v3532
    %v4541 = vpack.c.b16 %v3549, %v3541
    %v4542 = vpack.c.b16 %v3550, %v3542
    %v4543 = vpack.c.b16 %v3551, %v3543
    %v4544 = vpack.c.b16 %v3552, %v3544
    %v4545 = vpack.c.b16 %v3553, %v3545
    %v4546 = vpack.c.b16 %v3554, %v3546
    %v4547 = vpack.c.b16 %v3555, %v3547
    %v4548 = vpack.c.b16 %v3556, %v3548
    %v4549 = vpack.c.b16 %v3565, %v3557
    %v4550 = vpack.c.b16 %v3566, %v3558
    %v4551 = vpack.c.b16 %v3567, %v3559
    %v4552 = vpack.c.b16 %v3568, %v3560
    %v4553 = vpack.c.b16 %v3569, %v3561
    %v4554 = vpack.c.b16 %v3570, %v3562
    %v4555 = vpack.c.b16 %v3571, %v3563
    %v4556 = vpack.c.b16 %v3572, %v3564
    %v4557 = vpack.c.b16 %v3581, %v3573
    %v4558 = vpack.c.b16 %v3582, %v3574
    %v4559 = vpack.c.b16 %v3583, %v3575
    %v4560 = vpack.c.b16 %v3584, %v3576
    %v4561 = vpack.c.b16 %v3585, %v3577
    %v4562 = vpack.c.b16 %v3586, %v3578
    %v4563 = vpack.c.b16 %v3587, %v3579
    %v4564 = vpack.c.b16 %v3588, %v3580
    %v4565 = vpack.c.b16 %v3597, %v3589
    %v4566 = vpack.c.b16 %v3598, %v3590
    %v4567 = vpack.c.b16 %v3599, %v3591
    %v4568 = vpack.c.b16 %v3600, %v3592
    %v4569 = vpack.c.b16 %v3601, %v3593
    %v4570 = vpack.c.b16 %v3602, %v3594
    %v4571 = vpack.c.b16 %v3603, %v3595
    %v4572 = vpack.c.b16 %v3604, %v3596
    %v4573 = vpack.c.b16 %v3613, %v3605
    %v4574 = vpack.c.b16 %v3614, %v3606
    %v4575 = vpack.c.b16 %v3615, %v3607
    %v4576 = vpack.c.b16 %v3616, %v3608
    %v4577 = vpack.c.b16 %v3617, %v3609
    %v4578 = vpack.c.b16 %v3618, %v3610
    %v4579 = vpack.c.b16 %v3619, %v3611
    %v4580 = vpack.c.b16 %v3620, %v3612
    %v4581 = vpack.c.b16 %v3629, %v3621
    %v4582 = vpack.c.b16 %v3630, %v3622
    %v4583 = vpack.c.b16 %v3631, %v3623
    %v4584 = vpack.c.b16 %v3632, %v3624
    %v4585 = vpack.c.b16 %v3633, %v3625
    %v4586 = vpack.c.b16 %v3634, %v3626
    %v4587 = vpack.c.b16 %v3635, %v3627
    %v4588 = vpack.c.b16 %v3636, %v3628
    %v4589 = vpack.c.b16 %v3645, %v3637
    %v4590 = vpack.c.b16 %v3646, %v3638
    %v4591 = vpack.c.b16 %v3647, %v3639
    %v4592 = vpack.c.b16 %v3648, %v3640
    %v4593 = vpack.c.b16 %v3649, %v3641
    %v4594 = vpack.c.b16 %v3650, %v3642
    %v4595 = vpack.c.b16 %v3651, %v3643
    %v4596 = vpack.c.b16 %v3652, %v3644
    %v4597 = vpack.c.b16 %v3661, %v3653
    %v4598 = vpack.c.b16 %v3662, %v3654
    %v4599 = vpack.c.b16 %v3663, %v3655
    %v4600 = vpack.c.b16 %v3664, %v3656
    %v4601 = vpack.c.b16 %v3665, %v3657
    %v4602 = vpack.c.b16 %v3666, %v3658
    %v4603 = vpack.c.b16 %v3667, %v3659
    %v4604 = vpack.c.b16 %v3668, %v3660
    %v4605 = vpack.c.b16 %v3677, %v3669
    %v4606 = vpack.c.b16 %v3678, %v3670
    %v4607 = vpack.c.b16 %v3679, %v3671
    %v4608 = vpack.c.b16 %v3680, %v3672
    %v4609 = vpack.c.b16 %v3681, %v3673
    %v4610 = vpack.c.b16 %v3682, %v3674
    %v4611 = vpack.c.b16 %v3683, %v3675
    %v4612 = vpack.c.b16 %v3684, %v3676
    %v4613 = vpack.c.b16 %v3693, %v3685
    %v4614 = vpack.c.b16 %v3694, %v3686
    %v4615 = vpack.c.b16 %v3695, %v3687
    %v4616 = vpack.c.b16 %v3696, %v3688
    %v4617 = vpack.c.b16 %v3697, %v3689
    %v4618 = vpack.c.b16 %v3698, %v3690
    %v4619 = vpack.c.b16 %v3699, %v3691
    %v4620 = vpack.c.b16 %v3700, %v3692
    %v4621 = vpack.c.b16 %v3709, %v3701
    %v4622 = vpack.c.b16 %v3710, %v3702
    %v4623 = vpack.c.b16 %v3711, %v3703
    %v4624 = vpack.c.b16 %v3712, %v3704
    %v4625 = vpack.c.b16 %v3713, %v3705
    %v4626 = vpack.c.b16 %v3714, %v3706
    %v4627 = vpack.c.b16 %v3715, %v3707
    %v4628 = vpack.c.b16 %v3716, %v3708
    %v4629 = vpack.c.b16 %v3725, %v3717
    %v4630 = vpack.c.b16 %v3726, %v3718
    %v4631 = vpack.c.b16 %v3727, %v3719
    %v4632 = vpack.c.b16 %v3728, %v3720
    %v4633 = vpack.c.b16 %v3729, %v3721
    %v4634 = vpack.c.b16 %v3730, %v3722
    %v4635 = vpack.c.b16 %v3731, %v3723
    %v4636 = vpack.c.b16 %v3732, %v3724
    %v4637 = vpack.c.b16 %v3741, %v3733
    %v4638 = vpack.c.b16 %v3742, %v3734
    %v4639 = vpack.c.b16 %v3743, %v3735
    %v4640 = vpack.c.b16 %v3744, %v3736
    %v4641 = vpack.c.b16 %v3745, %v3737
    %v4642 = vpack.c.b16 %v3746, %v3738
    %v4643 = vpack.c.b16 %v3747, %v3739
    %v4644 = vpack.c.b16 %v3748, %v3740
    %5541 = vmatprep.subr.bf16.mxu0 %v3750
    %5542 = vmatpush1.bf16.msra.mxu0 %v3749
    %5543 = vmatprep.subr.bf16.mxu0 %v3758
    %5544 = vmatpush1.bf16.msra.mxu0 %v3757
    %5545 = vmatprep.subr.bf16.mxu0 %v3766
    %5546 = vmatpush1.bf16.msra.mxu0 %v3765
    %5547 = vmatprep.subr.bf16.mxu0 %v3774
    %5548 = vmatpush1.bf16.msra.mxu0 %v3773
    %5549 = vmatprep.subr.bf16.mxu0 %v3782
    %5550 = vmatpush1.bf16.msra.mxu0 %v3781
    %5551 = vmatprep.subr.bf16.mxu0 %v3790
    %5552 = vmatpush1.bf16.msra.mxu0 %v3789
    %5553 = vmatprep.subr.bf16.mxu0 %v3798
    %5554 = vmatpush1.bf16.msra.mxu0 %v3797
    %5555 = vmatprep.subr.bf16.mxu0 %v3806
    %5556 = vmatpush1.bf16.msra.mxu0 %v3805
    %5557 = vmatprep.subr.bf16.mxu0 %v3814
    %5558 = vmatpush1.bf16.msra.mxu0 %v3813
    %5559 = vmatprep.subr.bf16.mxu0 %v3822
    %5560 = vmatpush1.bf16.msra.mxu0 %v3821
    %5561 = vmatprep.subr.bf16.mxu0 %v3830
    %5562 = vmatpush1.bf16.msra.mxu0 %v3829
    %5563 = vmatprep.subr.bf16.mxu0 %v3838
    %5564 = vmatpush1.bf16.msra.mxu0 %v3837
    %5565 = vmatprep.subr.bf16.mxu0 %v3846
    %5566 = vmatpush1.bf16.msra.mxu0 %v3845
    %5567 = vmatprep.subr.bf16.mxu0 %v3854
    %5568 = vmatpush1.bf16.msra.mxu0 %v3853
    %5569 = vmatprep.subr.bf16.mxu0 %v3862
    %5570 = vmatpush1.bf16.msra.mxu0 %v3861
    %5571 = vmatprep.subr.bf16.mxu0 %v3870
    %5572 = vmatpush1.bf16.msra.mxu0 %v3869
    %5573 = vmatprep.mubr.bf16.mxu0 %v110
    %5574 = vmatmul.mubr.bf16.gmra.mrb[0].mxu0 %v109
    %v5575 = vpop.f32.mrb[0].mxu0
    %v5576 = vadd.f32 %v1024, %v5575
    %v5577 = vpop.f32.mrb[0].mxu0
    %v5578 = vadd.f32 %v1028, %v5577
    %v5579 = vpop.f32.mrb[0].mxu0
    %v5580 = vpop.f32.mrb[0].mxu0
    %5581 = vdwg.mxu0
    %5582 = vmatprep.subr.bf16.mxu0 %v3878
    %5583 = vmatpush1.bf16.msra.mxu0 %v3877
    %5584 = vmatprep.subr.bf16.mxu0 %v3886
    %5585 = vmatpush1.bf16.msra.mxu0 %v3885
    %5586 = vmatprep.subr.bf16.mxu0 %v3894
    %5587 = vmatpush1.bf16.msra.mxu0 %v3893
    %5588 = vmatprep.subr.bf16.mxu0 %v3902
    %5589 = vmatpush1.bf16.msra.mxu0 %v3901
    %5590 = vmatprep.subr.bf16.mxu0 %v3910
    %5591 = vmatpush1.bf16.msra.mxu0 %v3909
    %5592 = vmatprep.subr.bf16.mxu0 %v3918
    %5593 = vmatpush1.bf16.msra.mxu0 %v3917
    %5594 = vmatprep.subr.bf16.mxu0 %v3926
    %5595 = vmatpush1.bf16.msra.mxu0 %v3925
    %5596 = vmatprep.subr.bf16.mxu0 %v3934
    %5597 = vmatpush1.bf16.msra.mxu0 %v3933
    %5598 = vmatprep.subr.bf16.mxu0 %v3942
    %5599 = vmatpush1.bf16.msra.mxu0 %v3941
    %5600 = vmatprep.subr.bf16.mxu0 %v3950
    %5601 = vmatpush1.bf16.msra.mxu0 %v3949
    %5602 = vmatprep.subr.bf16.mxu0 %v3958
    %5603 = vmatpush1.bf16.msra.mxu0 %v3957
    %5604 = vmatprep.subr.bf16.mxu0 %v3966
    %5605 = vmatpush1.bf16.msra.mxu0 %v3965
    %5606 = vmatprep.subr.bf16.mxu0 %v3974
    %5607 = vmatpush1.bf16.msra.mxu0 %v3973
    %5608 = vmatprep.subr.bf16.mxu0 %v3982
    %5609 = vmatpush1.bf16.msra.mxu0 %v3981
    %5610 = vmatprep.subr.bf16.mxu0 %v3990
    %5611 = vmatpush1.bf16.msra.mxu0 %v3989
    %5612 = vmatprep.subr.bf16.mxu0 %v3998
    %5613 = vmatpush1.bf16.msra.mxu0 %v3997
    %5614 = vmatprep.mubr.bf16.mxu0 %v112
    %5615 = vmatmul.mubr.bf16.gmra.mrb[0].mxu0 %v111
    %v5616 = vpop.f32.mrb[0].mxu0
    %v5617 = vadd.f32 %v5576, %v5616
    %v5618 = vpop.f32.mrb[0].mxu0
    %v5619 = vadd.f32 %v5578, %v5618
    %v5620 = vpop.f32.mrb[0].mxu0
    %v5621 = vpop.f32.mrb[0].mxu0
    %5622 = vdwg.mxu0
    %5623 = vmatprep.subr.bf16.mxu0 %v4006
    %5624 = vmatpush1.bf16.msra.mxu0 %v4005
    %5625 = vmatprep.subr.bf16.mxu0 %v4014
    %5626 = vmatpush1.bf16.msra.mxu0 %v4013
    %5627 = vmatprep.subr.bf16.mxu0 %v4022
    %5628 = vmatpush1.bf16.msra.mxu0 %v4021
    %5629 = vmatprep.subr.bf16.mxu0 %v4030
    %5630 = vmatpush1.bf16.msra.mxu0 %v4029
    %5631 = vmatprep.subr.bf16.mxu0 %v4038
    %5632 = vmatpush1.bf16.msra.mxu0 %v4037
    %5633 = vmatprep.subr.bf16.mxu0 %v4046
    %5634 = vmatpush1.bf16.msra.mxu0 %v4045
    %5635 = vmatprep.subr.bf16.mxu0 %v4054
    %5636 = vmatpush1.bf16.msra.mxu0 %v4053
    %5637 = vmatprep.subr.bf16.mxu0 %v4062
    %5638 = vmatpush1.bf16.msra.mxu0 %v4061
    %5639 = vmatprep.subr.bf16.mxu0 %v4070
    %5640 = vmatpush1.bf16.msra.mxu0 %v4069
    %5641 = vmatprep.subr.bf16.mxu0 %v4078
    %5642 = vmatpush1.bf16.msra.mxu0 %v4077
    %5643 = vmatprep.subr.bf16.mxu0 %v4086
    %5644 = vmatpush1.bf16.msra.mxu0 %v4085
    %5645 = vmatprep.subr.bf16.mxu0 %v4094
    %5646 = vmatpush1.bf16.msra.mxu0 %v4093
    %5647 = vmatprep.subr.bf16.mxu0 %v4102
    %5648 = vmatpush1.bf16.msra.mxu0 %v4101
    %5649 = vmatprep.subr.bf16.mxu0 %v4110
    %5650 = vmatpush1.bf16.msra.mxu0 %v4109
    %5651 = vmatprep.subr.bf16.mxu0 %v4118
    %5652 = vmatpush1.bf16.msra.mxu0 %v4117
    %5653 = vmatprep.subr.bf16.mxu0 %v4126
    %5654 = vmatpush1.bf16.msra.mxu0 %v4125
    %5655 = vmatprep.mubr.bf16.mxu0 %v114
    %5656 = vmatmul.mubr.bf16.gmra.mrb[0].mxu0 %v113
    %v5657 = vpop.f32.mrb[0].mxu0
    %v5658 = vadd.f32 %v5617, %v5657
    %v5659 = vpop.f32.mrb[0].mxu0
    %v5660 = vadd.f32 %v5619, %v5659
    %v5661 = vpop.f32.mrb[0].mxu0
    %v5662 = vpop.f32.mrb[0].mxu0
    %5663 = vdwg.mxu0
    %5664 = vmatprep.subr.bf16.mxu0 %v4134
    %5665 = vmatpush1.bf16.msra.mxu0 %v4133
    %5666 = vmatprep.subr.bf16.mxu0 %v4142
    %5667 = vmatpush1.bf16.msra.mxu0 %v4141
    %5668 = vmatprep.subr.bf16.mxu0 %v4150
    %5669 = vmatpush1.bf16.msra.mxu0 %v4149
    %5670 = vmatprep.subr.bf16.mxu0 %v4158
    %5671 = vmatpush1.bf16.msra.mxu0 %v4157
    %5672 = vmatprep.subr.bf16.mxu0 %v4166
    %5673 = vmatpush1.bf16.msra.mxu0 %v4165
    %5674 = vmatprep.subr.bf16.mxu0 %v4174
    %5675 = vmatpush1.bf16.msra.mxu0 %v4173
    %5676 = vmatprep.subr.bf16.mxu0 %v4182
    %5677 = vmatpush1.bf16.msra.mxu0 %v4181
    %5678 = vmatprep.subr.bf16.mxu0 %v4190
    %5679 = vmatpush1.bf16.msra.mxu0 %v4189
    %5680 = vmatprep.subr.bf16.mxu0 %v4198
    %5681 = vmatpush1.bf16.msra.mxu0 %v4197
    %5682 = vmatprep.subr.bf16.mxu0 %v4206
    %5683 = vmatpush1.bf16.msra.mxu0 %v4205
    %5684 = vmatprep.subr.bf16.mxu0 %v4214
    %5685 = vmatpush1.bf16.msra.mxu0 %v4213
    %5686 = vmatprep.subr.bf16.mxu0 %v4222
    %5687 = vmatpush1.bf16.msra.mxu0 %v4221
    %5688 = vmatprep.subr.bf16.mxu0 %v4230
    %5689 = vmatpush1.bf16.msra.mxu0 %v4229
    %5690 = vmatprep.subr.bf16.mxu0 %v4238
    %5691 = vmatpush1.bf16.msra.mxu0 %v4237
    %5692 = vmatprep.subr.bf16.mxu0 %v4246
    %5693 = vmatpush1.bf16.msra.mxu0 %v4245
    %5694 = vmatprep.subr.bf16.mxu0 %v4254
    %5695 = vmatpush1.bf16.msra.mxu0 %v4253
    %5696 = vmatprep.mubr.bf16.mxu0 %v116
    %5697 = vmatmul.mubr.bf16.gmra.mrb[0].mxu0 %v115
    %v5698 = vpop.f32.mrb[0].mxu0
    %v5699 = vadd.f32 %v5658, %v5698
    %v5700 = vpop.f32.mrb[0].mxu0
    %v5701 = vadd.f32 %v5660, %v5700
    %v5702 = vpop.f32.mrb[0].mxu0
    %v5703 = vpop.f32.mrb[0].mxu0
    %5704 = vdwg.mxu0
    %5705 = vmatprep.subr.bf16.mxu0 %v4262
    %5706 = vmatpush1.bf16.msra.mxu0 %v4261
    %5707 = vmatprep.subr.bf16.mxu0 %v4270
    %5708 = vmatpush1.bf16.msra.mxu0 %v4269
    %5709 = vmatprep.subr.bf16.mxu0 %v4278
    %5710 = vmatpush1.bf16.msra.mxu0 %v4277
    %5711 = vmatprep.subr.bf16.mxu0 %v4286
    %5712 = vmatpush1.bf16.msra.mxu0 %v4285
    %5713 = vmatprep.subr.bf16.mxu0 %v4294
    %5714 = vmatpush1.bf16.msra.mxu0 %v4293
    %5715 = vmatprep.subr.bf16.mxu0 %v4302
    %5716 = vmatpush1.bf16.msra.mxu0 %v4301
    %5717 = vmatprep.subr.bf16.mxu0 %v4310
    %5718 = vmatpush1.bf16.msra.mxu0 %v4309
    %5719 = vmatprep.subr.bf16.mxu0 %v4318
    %5720 = vmatpush1.bf16.msra.mxu0 %v4317
    %5721 = vmatprep.subr.bf16.mxu0 %v4326
    %5722 = vmatpush1.bf16.msra.mxu0 %v4325
    %5723 = vmatprep.subr.bf16.mxu0 %v4334
    %5724 = vmatpush1.bf16.msra.mxu0 %v4333
    %5725 = vmatprep.subr.bf16.mxu0 %v4342
    %5726 = vmatpush1.bf16.msra.mxu0 %v4341
    %5727 = vmatprep.subr.bf16.mxu0 %v4350
    %5728 = vmatpush1.bf16.msra.mxu0 %v4349
    %5729 = vmatprep.subr.bf16.mxu0 %v4358
    %5730 = vmatpush1.bf16.msra.mxu0 %v4357
    %5731 = vmatprep.subr.bf16.mxu0 %v4366
    %5732 = vmatpush1.bf16.msra.mxu0 %v4365
    %5733 = vmatprep.subr.bf16.mxu0 %v4374
    %5734 = vmatpush1.bf16.msra.mxu0 %v4373
    %5735 = vmatprep.subr.bf16.mxu0 %v4382
    %5736 = vmatpush1.bf16.msra.mxu0 %v4381
    %5737 = vmatprep.mubr.bf16.mxu0 %v118
    %5738 = vmatmul.mubr.bf16.gmra.mrb[0].mxu0 %v117
    %v5739 = vpop.f32.mrb[0].mxu0
    %v5740 = vadd.f32 %v5699, %v5739
    %v5741 = vpop.f32.mrb[0].mxu0
    %v5742 = vadd.f32 %v5701, %v5741
    %v5743 = vpop.f32.mrb[0].mxu0
    %v5744 = vpop.f32.mrb[0].mxu0
    %5745 = vdwg.mxu0
    %5746 = vmatprep.subr.bf16.mxu0 %v4390
    %5747 = vmatpush1.bf16.msra.mxu0 %v4389
    %5748 = vmatprep.subr.bf16.mxu0 %v4398
    %5749 = vmatpush1.bf16.msra.mxu0 %v4397
    %5750 = vmatprep.subr.bf16.mxu0 %v4406
    %5751 = vmatpush1.bf16.msra.mxu0 %v4405
    %5752 = vmatprep.subr.bf16.mxu0 %v4414
    %5753 = vmatpush1.bf16.msra.mxu0 %v4413
    %5754 = vmatprep.subr.bf16.mxu0 %v4422
    %5755 = vmatpush1.bf16.msra.mxu0 %v4421
    %5756 = vmatprep.subr.bf16.mxu0 %v4430
    %5757 = vmatpush1.bf16.msra.mxu0 %v4429
    %5758 = vmatprep.subr.bf16.mxu0 %v4438
    %5759 = vmatpush1.bf16.msra.mxu0 %v4437
    %5760 = vmatprep.subr.bf16.mxu0 %v4446
    %5761 = vmatpush1.bf16.msra.mxu0 %v4445
    %5762 = vmatprep.subr.bf16.mxu0 %v4454
    %5763 = vmatpush1.bf16.msra.mxu0 %v4453
    %5764 = vmatprep.subr.bf16.mxu0 %v4462
    %5765 = vmatpush1.bf16.msra.mxu0 %v4461
    %5766 = vmatprep.subr.bf16.mxu0 %v4470
    %5767 = vmatpush1.bf16.msra.mxu0 %v4469
    %5768 = vmatprep.subr.bf16.mxu0 %v4478
    %5769 = vmatpush1.bf16.msra.mxu0 %v4477
    %5770 = vmatprep.subr.bf16.mxu0 %v4486
    %5771 = vmatpush1.bf16.msra.mxu0 %v4485
    %5772 = vmatprep.subr.bf16.mxu0 %v4494
    %5773 = vmatpush1.bf16.msra.mxu0 %v4493
    %5774 = vmatprep.subr.bf16.mxu0 %v4502
    %5775 = vmatpush1.bf16.msra.mxu0 %v4501
    %5776 = vmatprep.subr.bf16.mxu0 %v4510
    %5777 = vmatpush1.bf16.msra.mxu0 %v4509
    %5778 = vmatprep.mubr.bf16.mxu0 %v120
    %5779 = vmatmul.mubr.bf16.gmra.mrb[0].mxu0 %v119
    %v5780 = vpop.f32.mrb[0].mxu0
    %v5781 = vadd.f32 %v5740, %v5780
    %v5782 = vpop.f32.mrb[0].mxu0
    %v5783 = vadd.f32 %v5742, %v5782
    %v5784 = vpop.f32.mrb[0].mxu0
    %v5785 = vpop.f32.mrb[0].mxu0
    %5786 = vdwg.mxu0
    %5787 = vmatprep.subr.bf16.mxu0 %v4518
    %5788 = vmatpush1.bf16.msra.mxu0 %v4517
    %5789 = vmatprep.subr.bf16.mxu0 %v4526
    %5790 = vmatpush1.bf16.msra.mxu0 %v4525
    %5791 = vmatprep.subr.bf16.mxu0 %v4534
    %5792 = vmatpush1.bf16.msra.mxu0 %v4533
    %5793 = vmatprep.subr.bf16.mxu0 %v4542
    %5794 = vmatpush1.bf16.msra.mxu0 %v4541
    %5795 = vmatprep.subr.bf16.mxu0 %v4550
    %5796 = vmatpush1.bf16.msra.mxu0 %v4549
    %5797 = vmatprep.subr.bf16.mxu0 %v4558
    %5798 = vmatpush1.bf16.msra.mxu0 %v4557
    %5799 = vmatprep.subr.bf16.mxu0 %v4566
    %5800 = vmatpush1.bf16.msra.mxu0 %v4565
    %5801 = vmatprep.subr.bf16.mxu0 %v4574
    %5802 = vmatpush1.bf16.msra.mxu0 %v4573
    %5803 = vmatprep.subr.bf16.mxu0 %v4582
    %5804 = vmatpush1.bf16.msra.mxu0 %v4581
    %5805 = vmatprep.subr.bf16.mxu0 %v4590
    %5806 = vmatpush1.bf16.msra.mxu0 %v4589
    %5807 = vmatprep.subr.bf16.mxu0 %v4598
    %5808 = vmatpush1.bf16.msra.mxu0 %v4597
    %5809 = vmatprep.subr.bf16.mxu0 %v4606
    %5810 = vmatpush1.bf16.msra.mxu0 %v4605
    %5811 = vmatprep.subr.bf16.mxu0 %v4614
    %5812 = vmatpush1.bf16.msra.mxu0 %v4613
    %5813 = vmatprep.subr.bf16.mxu0 %v4622
    %5814 = vmatpush1.bf16.msra.mxu0 %v4621
    %5815 = vmatprep.subr.bf16.mxu0 %v4630
    %5816 = vmatpush1.bf16.msra.mxu0 %v4629
    %5817 = vmatprep.subr.bf16.mxu0 %v4638
    %5818 = vmatpush1.bf16.msra.mxu0 %v4637
    %5819 = vmatprep.mubr.bf16.mxu0 %v122
    %5820 = vmatmul.mubr.bf16.gmra.mrb[0].mxu0 %v121
    %v5821 = vpop.f32.mrb[0].mxu0
    %v5822 = vadd.f32 %v5781, %v5821
    %v5823 = vpop.f32.mrb[0].mxu0
    %v5824 = vadd.f32 %v5783, %v5823
    %v5825 = vpop.f32.mrb[0].mxu0
    %v5826 = vpop.f32.mrb[0].mxu0
    %5827 = vdwg.mxu0
    %5828 = vmatprep.subr.bf16.mxu0 %v3752
    %5829 = vmatpush1.bf16.msra.mxu0 %v3751
    %5830 = vmatprep.subr.bf16.mxu0 %v3760
    %5831 = vmatpush1.bf16.msra.mxu0 %v3759
    %5832 = vmatprep.subr.bf16.mxu0 %v3768
    %5833 = vmatpush1.bf16.msra.mxu0 %v3767
    %5834 = vmatprep.subr.bf16.mxu0 %v3776
    %5835 = vmatpush1.bf16.msra.mxu0 %v3775
    %5836 = vmatprep.subr.bf16.mxu0 %v3784
    %5837 = vmatpush1.bf16.msra.mxu0 %v3783
    %5838 = vmatprep.subr.bf16.mxu0 %v3792
    %5839 = vmatpush1.bf16.msra.mxu0 %v3791
    %5840 = vmatprep.subr.bf16.mxu0 %v3800
    %5841 = vmatpush1.bf16.msra.mxu0 %v3799
    %5842 = vmatprep.subr.bf16.mxu0 %v3808
    %5843 = vmatpush1.bf16.msra.mxu0 %v3807
    %5844 = vmatprep.subr.bf16.mxu0 %v3816
    %5845 = vmatpush1.bf16.msra.mxu0 %v3815
    %5846 = vmatprep.subr.bf16.mxu0 %v3824
    %5847 = vmatpush1.bf16.msra.mxu0 %v3823
    %5848 = vmatprep.subr.bf16.mxu0 %v3832
    %5849 = vmatpush1.bf16.msra.mxu0 %v3831
    %5850 = vmatprep.subr.bf16.mxu0 %v3840
    %5851 = vmatpush1.bf16.msra.mxu0 %v3839
    %5852 = vmatprep.subr.bf16.mxu0 %v3848
    %5853 = vmatpush1.bf16.msra.mxu0 %v3847
    %5854 = vmatprep.subr.bf16.mxu0 %v3856
    %5855 = vmatpush1.bf16.msra.mxu0 %v3855
    %5856 = vmatprep.subr.bf16.mxu0 %v3864
    %5857 = vmatpush1.bf16.msra.mxu0 %v3863
    %5858 = vmatprep.subr.bf16.mxu0 %v3872
    %5859 = vmatpush1.bf16.msra.mxu0 %v3871
    %5860 = vmatprep.mubr.bf16.mxu0 %v110
    %5861 = vmatmul.mubr.bf16.gmra.mrb[0].mxu0 %v109
    %v5862 = vpop.f32.mrb[0].mxu0
    %v5863 = vadd.f32 %v1032, %v5862
    %v5864 = vpop.f32.mrb[0].mxu0
    %v5865 = vadd.f32 %v1036, %v5864
    %v5866 = vpop.f32.mrb[0].mxu0
    %v5867 = vpop.f32.mrb[0].mxu0
    %5868 = vdwg.mxu0
    %5869 = vmatprep.subr.bf16.mxu0 %v3880
    %5870 = vmatpush1.bf16.msra.mxu0 %v3879
    %5871 = vmatprep.subr.bf16.mxu0 %v3888
    %5872 = vmatpush1.bf16.msra.mxu0 %v3887
    %5873 = vmatprep.subr.bf16.mxu0 %v3896
    %5874 = vmatpush1.bf16.msra.mxu0 %v3895
    %5875 = vmatprep.subr.bf16.mxu0 %v3904
    %5876 = vmatpush1.bf16.msra.mxu0 %v3903
    %5877 = vmatprep.subr.bf16.mxu0 %v3912
    %5878 = vmatpush1.bf16.msra.mxu0 %v3911
    %5879 = vmatprep.subr.bf16.mxu0 %v3920
    %5880 = vmatpush1.bf16.msra.mxu0 %v3919
    %5881 = vmatprep.subr.bf16.mxu0 %v3928
    %5882 = vmatpush1.bf16.msra.mxu0 %v3927
    %5883 = vmatprep.subr.bf16.mxu0 %v3936
    %5884 = vmatpush1.bf16.msra.mxu0 %v3935
    %5885 = vmatprep.subr.bf16.mxu0 %v3944
    %5886 = vmatpush1.bf16.msra.mxu0 %v3943
    %5887 = vmatprep.subr.bf16.mxu0 %v3952
    %5888 = vmatpush1.bf16.msra.mxu0 %v3951
    %5889 = vmatprep.subr.bf16.mxu0 %v3960
    %5890 = vmatpush1.bf16.msra.mxu0 %v3959
    %5891 = vmatprep.subr.bf16.mxu0 %v3968
    %5892 = vmatpush1.bf16.msra.mxu0 %v3967
    %5893 = vmatprep.subr.bf16.mxu0 %v3976
    %5894 = vmatpush1.bf16.msra.mxu0 %v3975
    %5895 = vmatprep.subr.bf16.mxu0 %v3984
    %5896 = vmatpush1.bf16.msra.mxu0 %v3983
    %5897 = vmatprep.subr.bf16.mxu0 %v3992
    %5898 = vmatpush1.bf16.msra.mxu0 %v3991
    %5899 = vmatprep.subr.bf16.mxu0 %v4000
    %5900 = vmatpush1.bf16.msra.mxu0 %v3999
    %5901 = vmatprep.mubr.bf16.mxu0 %v112
    %5902 = vmatmul.mubr.bf16.gmra.mrb[0].mxu0 %v111
    %v5903 = vpop.f32.mrb[0].mxu0
    %v5904 = vadd.f32 %v5863, %v5903
    %v5905 = vpop.f32.mrb[0].mxu0
    %v5906 = vadd.f32 %v5865, %v5905
    %v5907 = vpop.f32.mrb[0].mxu0
    %v5908 = vpop.f32.mrb[0].mxu0
    %5909 = vdwg.mxu0
    %5910 = vmatprep.subr.bf16.mxu0 %v4008
    %5911 = vmatpush1.bf16.msra.mxu0 %v4007
    %5912 = vmatprep.subr.bf16.mxu0 %v4016
    %5913 = vmatpush1.bf16.msra.mxu0 %v4015
    %5914 = vmatprep.subr.bf16.mxu0 %v4024
    %5915 = vmatpush1.bf16.msra.mxu0 %v4023
    %5916 = vmatprep.subr.bf16.mxu0 %v4032
    %5917 = vmatpush1.bf16.msra.mxu0 %v4031
    %5918 = vmatprep.subr.bf16.mxu0 %v4040
    %5919 = vmatpush1.bf16.msra.mxu0 %v4039
    %5920 = vmatprep.subr.bf16.mxu0 %v4048
    %5921 = vmatpush1.bf16.msra.mxu0 %v4047
    %5922 = vmatprep.subr.bf16.mxu0 %v4056
    %5923 = vmatpush1.bf16.msra.mxu0 %v4055
    %5924 = vmatprep.subr.bf16.mxu0 %v4064
    %5925 = vmatpush1.bf16.msra.mxu0 %v4063
    %5926 = vmatprep.subr.bf16.mxu0 %v4072
    %5927 = vmatpush1.bf16.msra.mxu0 %v4071
    %5928 = vmatprep.subr.bf16.mxu0 %v4080
    %5929 = vmatpush1.bf16.msra.mxu0 %v4079
    %5930 = vmatprep.subr.bf16.mxu0 %v4088
    %5931 = vmatpush1.bf16.msra.mxu0 %v4087
    %5932 = vmatprep.subr.bf16.mxu0 %v4096
    %5933 = vmatpush1.bf16.msra.mxu0 %v4095
    %5934 = vmatprep.subr.bf16.mxu0 %v4104
    %5935 = vmatpush1.bf16.msra.mxu0 %v4103
    %5936 = vmatprep.subr.bf16.mxu0 %v4112
    %5937 = vmatpush1.bf16.msra.mxu0 %v4111
    %5938 = vmatprep.subr.bf16.mxu0 %v4120
    %5939 = vmatpush1.bf16.msra.mxu0 %v4119
    %5940 = vmatprep.subr.bf16.mxu0 %v4128
    %5941 = vmatpush1.bf16.msra.mxu0 %v4127
    %5942 = vmatprep.mubr.bf16.mxu0 %v114
    %5943 = vmatmul.mubr.bf16.gmra.mrb[0].mxu0 %v113
    %v5944 = vpop.f32.mrb[0].mxu0
    %v5945 = vadd.f32 %v5904, %v5944
    %v5946 = vpop.f32.mrb[0].mxu0
    %v5947 = vadd.f32 %v5906, %v5946
    %v5948 = vpop.f32.mrb[0].mxu0
    %v5949 = vpop.f32.mrb[0].mxu0
    %5950 = vdwg.mxu0
    %5951 = vmatprep.subr.bf16.mxu0 %v4136
    %5952 = vmatpush1.bf16.msra.mxu0 %v4135
    %5953 = vmatprep.subr.bf16.mxu0 %v4144
    %5954 = vmatpush1.bf16.msra.mxu0 %v4143
    %5955 = vmatprep.subr.bf16.mxu0 %v4152
    %5956 = vmatpush1.bf16.msra.mxu0 %v4151
    %5957 = vmatprep.subr.bf16.mxu0 %v4160
    %5958 = vmatpush1.bf16.msra.mxu0 %v4159
    %5959 = vmatprep.subr.bf16.mxu0 %v4168
    %5960 = vmatpush1.bf16.msra.mxu0 %v4167
    %5961 = vmatprep.subr.bf16.mxu0 %v4176
    %5962 = vmatpush1.bf16.msra.mxu0 %v4175
    %5963 = vmatprep.subr.bf16.mxu0 %v4184
    %5964 = vmatpush1.bf16.msra.mxu0 %v4183
    %5965 = vmatprep.subr.bf16.mxu0 %v4192
    %5966 = vmatpush1.bf16.msra.mxu0 %v4191
    %5967 = vmatprep.subr.bf16.mxu0 %v4200
    %5968 = vmatpush1.bf16.msra.mxu0 %v4199
    %5969 = vmatprep.subr.bf16.mxu0 %v4208
    %5970 = vmatpush1.bf16.msra.mxu0 %v4207
    %5971 = vmatprep.subr.bf16.mxu0 %v4216
    %5972 = vmatpush1.bf16.msra.mxu0 %v4215
    %5973 = vmatprep.subr.bf16.mxu0 %v4224
    %5974 = vmatpush1.bf16.msra.mxu0 %v4223
    %5975 = vmatprep.subr.bf16.mxu0 %v4232
    %5976 = vmatpush1.bf16.msra.mxu0 %v4231
    %5977 = vmatprep.subr.bf16.mxu0 %v4240
    %5978 = vmatpush1.bf16.msra.mxu0 %v4239
    %5979 = vmatprep.subr.bf16.mxu0 %v4248
    %5980 = vmatpush1.bf16.msra.mxu0 %v4247
    %5981 = vmatprep.subr.bf16.mxu0 %v4256
    %5982 = vmatpush1.bf16.msra.mxu0 %v4255
    %5983 = vmatprep.mubr.bf16.mxu0 %v116
    %5984 = vmatmul.mubr.bf16.gmra.mrb[0].mxu0 %v115
    %v5985 = vpop.f32.mrb[0].mxu0
    %v5986 = vadd.f32 %v5945, %v5985
    %v5987 = vpop.f32.mrb[0].mxu0
    %v5988 = vadd.f32 %v5947, %v5987
    %v5989 = vpop.f32.mrb[0].mxu0
    %v5990 = vpop.f32.mrb[0].mxu0
    %5991 = vdwg.mxu0
    %5992 = vmatprep.subr.bf16.mxu0 %v4264
    %5993 = vmatpush1.bf16.msra.mxu0 %v4263
    %5994 = vmatprep.subr.bf16.mxu0 %v4272
    %5995 = vmatpush1.bf16.msra.mxu0 %v4271
    %5996 = vmatprep.subr.bf16.mxu0 %v4280
    %5997 = vmatpush1.bf16.msra.mxu0 %v4279
    %5998 = vmatprep.subr.bf16.mxu0 %v4288
    %5999 = vmatpush1.bf16.msra.mxu0 %v4287
    %6000 = vmatprep.subr.bf16.mxu0 %v4296
    %6001 = vmatpush1.bf16.msra.mxu0 %v4295
    %6002 = vmatprep.subr.bf16.mxu0 %v4304
    %6003 = vmatpush1.bf16.msra.mxu0 %v4303
    %6004 = vmatprep.subr.bf16.mxu0 %v4312
    %6005 = vmatpush1.bf16.msra.mxu0 %v4311
    %6006 = vmatprep.subr.bf16.mxu0 %v4320
    %6007 = vmatpush1.bf16.msra.mxu0 %v4319
    %6008 = vmatprep.subr.bf16.mxu0 %v4328
    %6009 = vmatpush1.bf16.msra.mxu0 %v4327
    %6010 = vmatprep.subr.bf16.mxu0 %v4336
    %6011 = vmatpush1.bf16.msra.mxu0 %v4335
    %6012 = vmatprep.subr.bf16.mxu0 %v4344
    %6013 = vmatpush1.bf16.msra.mxu0 %v4343
    %6014 = vmatprep.subr.bf16.mxu0 %v4352
    %6015 = vmatpush1.bf16.msra.mxu0 %v4351
    %6016 = vmatprep.subr.bf16.mxu0 %v4360
    %6017 = vmatpush1.bf16.msra.mxu0 %v4359
    %6018 = vmatprep.subr.bf16.mxu0 %v4368
    %6019 = vmatpush1.bf16.msra.mxu0 %v4367
    %6020 = vmatprep.subr.bf16.mxu0 %v4376
    %6021 = vmatpush1.bf16.msra.mxu0 %v4375
    %6022 = vmatprep.subr.bf16.mxu0 %v4384
    %6023 = vmatpush1.bf16.msra.mxu0 %v4383
    %6024 = vmatprep.mubr.bf16.mxu0 %v118
    %6025 = vmatmul.mubr.bf16.gmra.mrb[0].mxu0 %v117
    %v6026 = vpop.f32.mrb[0].mxu0
    %v6027 = vadd.f32 %v5986, %v6026
    %v6028 = vpop.f32.mrb[0].mxu0
    %v6029 = vadd.f32 %v5988, %v6028
    %v6030 = vpop.f32.mrb[0].mxu0
    %v6031 = vpop.f32.mrb[0].mxu0
    %6032 = vdwg.mxu0
    %6033 = vmatprep.subr.bf16.mxu0 %v4392
    %6034 = vmatpush1.bf16.msra.mxu0 %v4391
    %6035 = vmatprep.subr.bf16.mxu0 %v4400
    %6036 = vmatpush1.bf16.msra.mxu0 %v4399
    %6037 = vmatprep.subr.bf16.mxu0 %v4408
    %6038 = vmatpush1.bf16.msra.mxu0 %v4407
    %6039 = vmatprep.subr.bf16.mxu0 %v4416
    %6040 = vmatpush1.bf16.msra.mxu0 %v4415
    %6041 = vmatprep.subr.bf16.mxu0 %v4424
    %6042 = vmatpush1.bf16.msra.mxu0 %v4423
    %6043 = vmatprep.subr.bf16.mxu0 %v4432
    %6044 = vmatpush1.bf16.msra.mxu0 %v4431
    %6045 = vmatprep.subr.bf16.mxu0 %v4440
    %6046 = vmatpush1.bf16.msra.mxu0 %v4439
    %6047 = vmatprep.subr.bf16.mxu0 %v4448
    %6048 = vmatpush1.bf16.msra.mxu0 %v4447
    %6049 = vmatprep.subr.bf16.mxu0 %v4456
    %6050 = vmatpush1.bf16.msra.mxu0 %v4455
    %6051 = vmatprep.subr.bf16.mxu0 %v4464
    %6052 = vmatpush1.bf16.msra.mxu0 %v4463
    %6053 = vmatprep.subr.bf16.mxu0 %v4472
    %6054 = vmatpush1.bf16.msra.mxu0 %v4471
    %6055 = vmatprep.subr.bf16.mxu0 %v4480
    %6056 = vmatpush1.bf16.msra.mxu0 %v4479
    %6057 = vmatprep.subr.bf16.mxu0 %v4488
    %6058 = vmatpush1.bf16.msra.mxu0 %v4487
    %6059 = vmatprep.subr.bf16.mxu0 %v4496
    %6060 = vmatpush1.bf16.msra.mxu0 %v4495
    %6061 = vmatprep.subr.bf16.mxu0 %v4504
    %6062 = vmatpush1.bf16.msra.mxu0 %v4503
    %6063 = vmatprep.subr.bf16.mxu0 %v4512
    %6064 = vmatpush1.bf16.msra.mxu0 %v4511
    %6065 = vmatprep.mubr.bf16.mxu0 %v120
    %6066 = vmatmul.mubr.bf16.gmra.mrb[0].mxu0 %v119
    %v6067 = vpop.f32.mrb[0].mxu0
    %v6068 = vadd.f32 %v6027, %v6067
    %v6069 = vpop.f32.mrb[0].mxu0
    %v6070 = vadd.f32 %v6029, %v6069
    %v6071 = vpop.f32.mrb[0].mxu0
    %v6072 = vpop.f32.mrb[0].mxu0
    %6073 = vdwg.mxu0
    %6074 = vmatprep.subr.bf16.mxu0 %v4520
    %6075 = vmatpush1.bf16.msra.mxu0 %v4519
    %6076 = vmatprep.subr.bf16.mxu0 %v4528
    %6077 = vmatpush1.bf16.msra.mxu0 %v4527
    %6078 = vmatprep.subr.bf16.mxu0 %v4536
    %6079 = vmatpush1.bf16.msra.mxu0 %v4535
    %6080 = vmatprep.subr.bf16.mxu0 %v4544
    %6081 = vmatpush1.bf16.msra.mxu0 %v4543
    %6082 = vmatprep.subr.bf16.mxu0 %v4552
    %6083 = vmatpush1.bf16.msra.mxu0 %v4551
    %6084 = vmatprep.subr.bf16.mxu0 %v4560
    %6085 = vmatpush1.bf16.msra.mxu0 %v4559
    %6086 = vmatprep.subr.bf16.mxu0 %v4568
    %6087 = vmatpush1.bf16.msra.mxu0 %v4567
    %6088 = vmatprep.subr.bf16.mxu0 %v4576
    %6089 = vmatpush1.bf16.msra.mxu0 %v4575
    %6090 = vmatprep.subr.bf16.mxu0 %v4584
    %6091 = vmatpush1.bf16.msra.mxu0 %v4583
    %6092 = vmatprep.subr.bf16.mxu0 %v4592
    %6093 = vmatpush1.bf16.msra.mxu0 %v4591
    %6094 = vmatprep.subr.bf16.mxu0 %v4600
    %6095 = vmatpush1.bf16.msra.mxu0 %v4599
    %6096 = vmatprep.subr.bf16.mxu0 %v4608
    %6097 = vmatpush1.bf16.msra.mxu0 %v4607
    %6098 = vmatprep.subr.bf16.mxu0 %v4616
    %6099 = vmatpush1.bf16.msra.mxu0 %v4615
    %6100 = vmatprep.subr.bf16.mxu0 %v4624
    %6101 = vmatpush1.bf16.msra.mxu0 %v4623
    %6102 = vmatprep.subr.bf16.mxu0 %v4632
    %6103 = vmatpush1.bf16.msra.mxu0 %v4631
    %6104 = vmatprep.subr.bf16.mxu0 %v4640
    %6105 = vmatpush1.bf16.msra.mxu0 %v4639
    %6106 = vmatprep.mubr.bf16.mxu0 %v122
    %6107 = vmatmul.mubr.bf16.gmra.mrb[0].mxu0 %v121
    %v6108 = vpop.f32.mrb[0].mxu0
    %v6109 = vadd.f32 %v6068, %v6108
    %v6110 = vpop.f32.mrb[0].mxu0
    %v6111 = vadd.f32 %v6070, %v6110
    %v6112 = vpop.f32.mrb[0].mxu0
    %v6113 = vpop.f32.mrb[0].mxu0
    %6114 = vdwg.mxu0
    %6115 = vmatprep.subr.bf16.mxu0 %v3754
    %6116 = vmatpush1.bf16.msra.mxu0 %v3753
    %6117 = vmatprep.subr.bf16.mxu0 %v3762
    %6118 = vmatpush1.bf16.msra.mxu0 %v3761
    %6119 = vmatprep.subr.bf16.mxu0 %v3770
    %6120 = vmatpush1.bf16.msra.mxu0 %v3769
    %6121 = vmatprep.subr.bf16.mxu0 %v3778
    %6122 = vmatpush1.bf16.msra.mxu0 %v3777
    %6123 = vmatprep.subr.bf16.mxu0 %v3786
    %6124 = vmatpush1.bf16.msra.mxu0 %v3785
    %6125 = vmatprep.subr.bf16.mxu0 %v3794
    %6126 = vmatpush1.bf16.msra.mxu0 %v3793
    %6127 = vmatprep.subr.bf16.mxu0 %v3802
    %6128 = vmatpush1.bf16.msra.mxu0 %v3801
    %6129 = vmatprep.subr.bf16.mxu0 %v3810
    %6130 = vmatpush1.bf16.msra.mxu0 %v3809
    %6131 = vmatprep.subr.bf16.mxu0 %v3818
    %6132 = vmatpush1.bf16.msra.mxu0 %v3817
    %6133 = vmatprep.subr.bf16.mxu0 %v3826
    %6134 = vmatpush1.bf16.msra.mxu0 %v3825
    %6135 = vmatprep.subr.bf16.mxu0 %v3834
    %6136 = vmatpush1.bf16.msra.mxu0 %v3833
    %6137 = vmatprep.subr.bf16.mxu0 %v3842
    %6138 = vmatpush1.bf16.msra.mxu0 %v3841
    %6139 = vmatprep.subr.bf16.mxu0 %v3850
    %6140 = vmatpush1.bf16.msra.mxu0 %v3849
    %6141 = vmatprep.subr.bf16.mxu0 %v3858
    %6142 = vmatpush1.bf16.msra.mxu0 %v3857
    %6143 = vmatprep.subr.bf16.mxu0 %v3866
    %6144 = vmatpush1.bf16.msra.mxu0 %v3865
    %6145 = vmatprep.subr.bf16.mxu0 %v3874
    %6146 = vmatpush1.bf16.msra.mxu0 %v3873
    %6147 = vmatprep.mubr.bf16.mxu0 %v110
    %6148 = vmatmul.mubr.bf16.gmra.mrb[0].mxu0 %v109
    %v6149 = vpop.f32.mrb[0].mxu0
    %v6150 = vadd.f32 %v1040, %v6149
    %v6151 = vpop.f32.mrb[0].mxu0
    %v6152 = vadd.f32 %v1044, %v6151
    %v6153 = vpop.f32.mrb[0].mxu0
    %v6154 = vpop.f32.mrb[0].mxu0
    %6155 = vdwg.mxu0
    %6156 = vmatprep.subr.bf16.mxu0 %v3882
    %6157 = vmatpush1.bf16.msra.mxu0 %v3881
    %6158 = vmatprep.subr.bf16.mxu0 %v3890
    %6159 = vmatpush1.bf16.msra.mxu0 %v3889
    %6160 = vmatprep.subr.bf16.mxu0 %v3898
    %6161 = vmatpush1.bf16.msra.mxu0 %v3897
    %6162 = vmatprep.subr.bf16.mxu0 %v3906
    %6163 = vmatpush1.bf16.msra.mxu0 %v3905
    %6164 = vmatprep.subr.bf16.mxu0 %v3914
    %6165 = vmatpush1.bf16.msra.mxu0 %v3913
    %6166 = vmatprep.subr.bf16.mxu0 %v3922
    %6167 = vmatpush1.bf16.msra.mxu0 %v3921
    %6168 = vmatprep.subr.bf16.mxu0 %v3930
    %6169 = vmatpush1.bf16.msra.mxu0 %v3929
    %6170 = vmatprep.subr.bf16.mxu0 %v3938
    %6171 = vmatpush1.bf16.msra.mxu0 %v3937
    %6172 = vmatprep.subr.bf16.mxu0 %v3946
    %6173 = vmatpush1.bf16.msra.mxu0 %v3945
    %6174 = vmatprep.subr.bf16.mxu0 %v3954
    %6175 = vmatpush1.bf16.msra.mxu0 %v3953
    %6176 = vmatprep.subr.bf16.mxu0 %v3962
    %6177 = vmatpush1.bf16.msra.mxu0 %v3961
    %6178 = vmatprep.subr.bf16.mxu0 %v3970
    %6179 = vmatpush1.bf16.msra.mxu0 %v3969
    %6180 = vmatprep.subr.bf16.mxu0 %v3978
    %6181 = vmatpush1.bf16.msra.mxu0 %v3977
    %6182 = vmatprep.subr.bf16.mxu0 %v3986
    %6183 = vmatpush1.bf16.msra.mxu0 %v3985
    %6184 = vmatprep.subr.bf16.mxu0 %v3994
    %6185 = vmatpush1.bf16.msra.mxu0 %v3993
    %6186 = vmatprep.subr.bf16.mxu0 %v4002
    %6187 = vmatpush1.bf16.msra.mxu0 %v4001
    %6188 = vmatprep.mubr.bf16.mxu0 %v112
    %6189 = vmatmul.mubr.bf16.gmra.mrb[0].mxu0 %v111
    %v6190 = vpop.f32.mrb[0].mxu0
    %v6191 = vadd.f32 %v6150, %v6190
    %v6192 = vpop.f32.mrb[0].mxu0
    %v6193 = vadd.f32 %v6152, %v6192
    %v6194 = vpop.f32.mrb[0].mxu0
    %v6195 = vpop.f32.mrb[0].mxu0
    %6196 = vdwg.mxu0
    %6197 = vmatprep.subr.bf16.mxu0 %v4010
    %6198 = vmatpush1.bf16.msra.mxu0 %v4009
    %6199 = vmatprep.subr.bf16.mxu0 %v4018
    %6200 = vmatpush1.bf16.msra.mxu0 %v4017
    %6201 = vmatprep.subr.bf16.mxu0 %v4026
    %6202 = vmatpush1.bf16.msra.mxu0 %v4025
    %6203 = vmatprep.subr.bf16.mxu0 %v4034
    %6204 = vmatpush1.bf16.msra.mxu0 %v4033
    %6205 = vmatprep.subr.bf16.mxu0 %v4042
    %6206 = vmatpush1.bf16.msra.mxu0 %v4041
    %6207 = vmatprep.subr.bf16.mxu0 %v4050
    %6208 = vmatpush1.bf16.msra.mxu0 %v4049
    %6209 = vmatprep.subr.bf16.mxu0 %v4058
    %6210 = vmatpush1.bf16.msra.mxu0 %v4057
    %6211 = vmatprep.subr.bf16.mxu0 %v4066
    %6212 = vmatpush1.bf16.msra.mxu0 %v4065
    %6213 = vmatprep.subr.bf16.mxu0 %v4074
    %6214 = vmatpush1.bf16.msra.mxu0 %v4073
    %6215 = vmatprep.subr.bf16.mxu0 %v4082
    %6216 = vmatpush1.bf16.msra.mxu0 %v4081
    %6217 = vmatprep.subr.bf16.mxu0 %v4090
    %6218 = vmatpush1.bf16.msra.mxu0 %v4089
    %6219 = vmatprep.subr.bf16.mxu0 %v4098
    %6220 = vmatpush1.bf16.msra.mxu0 %v4097
    %6221 = vmatprep.subr.bf16.mxu0 %v4106
    %6222 = vmatpush1.bf16.msra.mxu0 %v4105
    %6223 = vmatprep.subr.bf16.mxu0 %v4114
    %6224 = vmatpush1.bf16.msra.mxu0 %v4113
    %6225 = vmatprep.subr.bf16.mxu0 %v4122
    %6226 = vmatpush1.bf16.msra.mxu0 %v4121
    %6227 = vmatprep.subr.bf16.mxu0 %v4130
    %6228 = vmatpush1.bf16.msra.mxu0 %v4129
    %6229 = vmatprep.mubr.bf16.mxu0 %v114
    %6230 = vmatmul.mubr.bf16.gmra.mrb[0].mxu0 %v113
    %v6231 = vpop.f32.mrb[0].mxu0
    %v6232 = vadd.f32 %v6191, %v6231
    %v6233 = vpop.f32.mrb[0].mxu0
    %v6234 = vadd.f32 %v6193, %v6233
    %v6235 = vpop.f32.mrb[0].mxu0
    %v6236 = vpop.f32.mrb[0].mxu0
    %6237 = vdwg.mxu0
    %6238 = vmatprep.subr.bf16.mxu0 %v4138
    %6239 = vmatpush1.bf16.msra.mxu0 %v4137
    %6240 = vmatprep.subr.bf16.mxu0 %v4146
    %6241 = vmatpush1.bf16.msra.mxu0 %v4145
    %6242 = vmatprep.subr.bf16.mxu0 %v4154
    %6243 = vmatpush1.bf16.msra.mxu0 %v4153
    %6244 = vmatprep.subr.bf16.mxu0 %v4162
    %6245 = vmatpush1.bf16.msra.mxu0 %v4161
    %6246 = vmatprep.subr.bf16.mxu0 %v4170
    %6247 = vmatpush1.bf16.msra.mxu0 %v4169
    %6248 = vmatprep.subr.bf16.mxu0 %v4178
    %6249 = vmatpush1.bf16.msra.mxu0 %v4177
    %6250 = vmatprep.subr.bf16.mxu0 %v4186
    %6251 = vmatpush1.bf16.msra.mxu0 %v4185
    %6252 = vmatprep.subr.bf16.mxu0 %v4194
    %6253 = vmatpush1.bf16.msra.mxu0 %v4193
    %6254 = vmatprep.subr.bf16.mxu0 %v4202
    %6255 = vmatpush1.bf16.msra.mxu0 %v4201
    %6256 = vmatprep.subr.bf16.mxu0 %v4210
    %6257 = vmatpush1.bf16.msra.mxu0 %v4209
    %6258 = vmatprep.subr.bf16.mxu0 %v4218
    %6259 = vmatpush1.bf16.msra.mxu0 %v4217
    %6260 = vmatprep.subr.bf16.mxu0 %v4226
    %6261 = vmatpush1.bf16.msra.mxu0 %v4225
    %6262 = vmatprep.subr.bf16.mxu0 %v4234
    %6263 = vmatpush1.bf16.msra.mxu0 %v4233
    %6264 = vmatprep.subr.bf16.mxu0 %v4242
    %6265 = vmatpush1.bf16.msra.mxu0 %v4241
    %6266 = vmatprep.subr.bf16.mxu0 %v4250
    %6267 = vmatpush1.bf16.msra.mxu0 %v4249
    %6268 = vmatprep.subr.bf16.mxu0 %v4258
    %6269 = vmatpush1.bf16.msra.mxu0 %v4257
    %6270 = vmatprep.mubr.bf16.mxu0 %v116
    %6271 = vmatmul.mubr.bf16.gmra.mrb[0].mxu0 %v115
    %v6272 = vpop.f32.mrb[0].mxu0
    %v6273 = vadd.f32 %v6232, %v6272
    %v6274 = vpop.f32.mrb[0].mxu0
    %v6275 = vadd.f32 %v6234, %v6274
    %v6276 = vpop.f32.mrb[0].mxu0
    %v6277 = vpop.f32.mrb[0].mxu0
    %6278 = vdwg.mxu0
    %6279 = vmatprep.subr.bf16.mxu0 %v4266
    %6280 = vmatpush1.bf16.msra.mxu0 %v4265
    %6281 = vmatprep.subr.bf16.mxu0 %v4274
    %6282 = vmatpush1.bf16.msra.mxu0 %v4273
    %6283 = vmatprep.subr.bf16.mxu0 %v4282
    %6284 = vmatpush1.bf16.msra.mxu0 %v4281
    %6285 = vmatprep.subr.bf16.mxu0 %v4290
    %6286 = vmatpush1.bf16.msra.mxu0 %v4289
    %6287 = vmatprep.subr.bf16.mxu0 %v4298
    %6288 = vmatpush1.bf16.msra.mxu0 %v4297
    %6289 = vmatprep.subr.bf16.mxu0 %v4306
    %6290 = vmatpush1.bf16.msra.mxu0 %v4305
    %6291 = vmatprep.subr.bf16.mxu0 %v4314
    %6292 = vmatpush1.bf16.msra.mxu0 %v4313
    %6293 = vmatprep.subr.bf16.mxu0 %v4322
    %6294 = vmatpush1.bf16.msra.mxu0 %v4321
    %6295 = vmatprep.subr.bf16.mxu0 %v4330
    %6296 = vmatpush1.bf16.msra.mxu0 %v4329
    %6297 = vmatprep.subr.bf16.mxu0 %v4338
    %6298 = vmatpush1.bf16.msra.mxu0 %v4337
    %6299 = vmatprep.subr.bf16.mxu0 %v4346
    %6300 = vmatpush1.bf16.msra.mxu0 %v4345
    %6301 = vmatprep.subr.bf16.mxu0 %v4354
    %6302 = vmatpush1.bf16.msra.mxu0 %v4353
    %6303 = vmatprep.subr.bf16.mxu0 %v4362
    %6304 = vmatpush1.bf16.msra.mxu0 %v4361
    %6305 = vmatprep.subr.bf16.mxu0 %v4370
    %6306 = vmatpush1.bf16.msra.mxu0 %v4369
    %6307 = vmatprep.subr.bf16.mxu0 %v4378
    %6308 = vmatpush1.bf16.msra.mxu0 %v4377
    %6309 = vmatprep.subr.bf16.mxu0 %v4386
    %6310 = vmatpush1.bf16.msra.mxu0 %v4385
    %6311 = vmatprep.mubr.bf16.mxu0 %v118
    %6312 = vmatmul.mubr.bf16.gmra.mrb[0].mxu0 %v117
    %v6313 = vpop.f32.mrb[0].mxu0
    %v6314 = vadd.f32 %v6273, %v6313
    %v6315 = vpop.f32.mrb[0].mxu0
    %v6316 = vadd.f32 %v6275, %v6315
    %v6317 = vpop.f32.mrb[0].mxu0
    %v6318 = vpop.f32.mrb[0].mxu0
    %6319 = vdwg.mxu0
    %6320 = vmatprep.subr.bf16.mxu0 %v4394
    %6321 = vmatpush1.bf16.msra.mxu0 %v4393
    %6322 = vmatprep.subr.bf16.mxu0 %v4402
    %6323 = vmatpush1.bf16.msra.mxu0 %v4401
    %6324 = vmatprep.subr.bf16.mxu0 %v4410
    %6325 = vmatpush1.bf16.msra.mxu0 %v4409
    %6326 = vmatprep.subr.bf16.mxu0 %v4418
    %6327 = vmatpush1.bf16.msra.mxu0 %v4417
    %6328 = vmatprep.subr.bf16.mxu0 %v4426
    %6329 = vmatpush1.bf16.msra.mxu0 %v4425
    %6330 = vmatprep.subr.bf16.mxu0 %v4434
    %6331 = vmatpush1.bf16.msra.mxu0 %v4433
    %6332 = vmatprep.subr.bf16.mxu0 %v4442
    %6333 = vmatpush1.bf16.msra.mxu0 %v4441
    %6334 = vmatprep.subr.bf16.mxu0 %v4450
    %6335 = vmatpush1.bf16.msra.mxu0 %v4449
    %6336 = vmatprep.subr.bf16.mxu0 %v4458
    %6337 = vmatpush1.bf16.msra.mxu0 %v4457
    %6338 = vmatprep.subr.bf16.mxu0 %v4466
    %6339 = vmatpush1.bf16.msra.mxu0 %v4465
    %6340 = vmatprep.subr.bf16.mxu0 %v4474
    %6341 = vmatpush1.bf16.msra.mxu0 %v4473
    %6342 = vmatprep.subr.bf16.mxu0 %v4482
    %6343 = vmatpush1.bf16.msra.mxu0 %v4481
    %6344 = vmatprep.subr.bf16.mxu0 %v4490
    %6345 = vmatpush1.bf16.msra.mxu0 %v4489
    %6346 = vmatprep.subr.bf16.mxu0 %v4498
    %6347 = vmatpush1.bf16.msra.mxu0 %v4497
    %6348 = vmatprep.subr.bf16.mxu0 %v4506
    %6349 = vmatpush1.bf16.msra.mxu0 %v4505
    %6350 = vmatprep.subr.bf16.mxu0 %v4514
    %6351 = vmatpush1.bf16.msra.mxu0 %v4513
    %6352 = vmatprep.mubr.bf16.mxu0 %v120
    %6353 = vmatmul.mubr.bf16.gmra.mrb[0].mxu0 %v119
    %v6354 = vpop.f32.mrb[0].mxu0
    %v6355 = vadd.f32 %v6314, %v6354
    %v6356 = vpop.f32.mrb[0].mxu0
    %v6357 = vadd.f32 %v6316, %v6356
    %v6358 = vpop.f32.mrb[0].mxu0
    %v6359 = vpop.f32.mrb[0].mxu0
    %6360 = vdwg.mxu0
    %6361 = vmatprep.subr.bf16.mxu0 %v4522
    %6362 = vmatpush1.bf16.msra.mxu0 %v4521
    %6363 = vmatprep.subr.bf16.mxu0 %v4530
    %6364 = vmatpush1.bf16.msra.mxu0 %v4529
    %6365 = vmatprep.subr.bf16.mxu0 %v4538
    %6366 = vmatpush1.bf16.msra.mxu0 %v4537
    %6367 = vmatprep.subr.bf16.mxu0 %v4546
    %6368 = vmatpush1.bf16.msra.mxu0 %v4545
    %6369 = vmatprep.subr.bf16.mxu0 %v4554
    %6370 = vmatpush1.bf16.msra.mxu0 %v4553
    %6371 = vmatprep.subr.bf16.mxu0 %v4562
    %6372 = vmatpush1.bf16.msra.mxu0 %v4561
    %6373 = vmatprep.subr.bf16.mxu0 %v4570
    %6374 = vmatpush1.bf16.msra.mxu0 %v4569
    %6375 = vmatprep.subr.bf16.mxu0 %v4578
    %6376 = vmatpush1.bf16.msra.mxu0 %v4577
    %6377 = vmatprep.subr.bf16.mxu0 %v4586
    %6378 = vmatpush1.bf16.msra.mxu0 %v4585
    %6379 = vmatprep.subr.bf16.mxu0 %v4594
    %6380 = vmatpush1.bf16.msra.mxu0 %v4593
    %6381 = vmatprep.subr.bf16.mxu0 %v4602
    %6382 = vmatpush1.bf16.msra.mxu0 %v4601
    %6383 = vmatprep.subr.bf16.mxu0 %v4610
    %6384 = vmatpush1.bf16.msra.mxu0 %v4609
    %6385 = vmatprep.subr.bf16.mxu0 %v4618
    %6386 = vmatpush1.bf16.msra.mxu0 %v4617
    %6387 = vmatprep.subr.bf16.mxu0 %v4626
    %6388 = vmatpush1.bf16.msra.mxu0 %v4625
    %6389 = vmatprep.subr.bf16.mxu0 %v4634
    %6390 = vmatpush1.bf16.msra.mxu0 %v4633
    %6391 = vmatprep.subr.bf16.mxu0 %v4642
    %6392 = vmatpush1.bf16.msra.mxu0 %v4641
    %6393 = vmatprep.mubr.bf16.mxu0 %v122
    %6394 = vmatmul.mubr.bf16.gmra.mrb[0].mxu0 %v121
    %v6395 = vpop.f32.mrb[0].mxu0
    %v6396 = vadd.f32 %v6355, %v6395
    %v6397 = vpop.f32.mrb[0].mxu0
    %v6398 = vadd.f32 %v6357, %v6397
    %v6399 = vpop.f32.mrb[0].mxu0
    %v6400 = vpop.f32.mrb[0].mxu0
    %6401 = vdwg.mxu0
    %6402 = vmatprep.subr.bf16.mxu0 %v3756
    %6403 = vmatpush1.bf16.msra.mxu0 %v3755
    %6404 = vmatprep.subr.bf16.mxu0 %v3764
    %6405 = vmatpush1.bf16.msra.mxu0 %v3763
    %6406 = vmatprep.subr.bf16.mxu0 %v3772
    %6407 = vmatpush1.bf16.msra.mxu0 %v3771
    %6408 = vmatprep.subr.bf16.mxu0 %v3780
    %6409 = vmatpush1.bf16.msra.mxu0 %v3779
    %6410 = vmatprep.subr.bf16.mxu0 %v3788
    %6411 = vmatpush1.bf16.msra.mxu0 %v3787
    %6412 = vmatprep.subr.bf16.mxu0 %v3796
    %6413 = vmatpush1.bf16.msra.mxu0 %v3795
    %6414 = vmatprep.subr.bf16.mxu0 %v3804
    %6415 = vmatpush1.bf16.msra.mxu0 %v3803
    %6416 = vmatprep.subr.bf16.mxu0 %v3812
    %6417 = vmatpush1.bf16.msra.mxu0 %v3811
    %6418 = vmatprep.subr.bf16.mxu0 %v3820
    %6419 = vmatpush1.bf16.msra.mxu0 %v3819
    %6420 = vmatprep.subr.bf16.mxu0 %v3828
    %6421 = vmatpush1.bf16.msra.mxu0 %v3827
    %6422 = vmatprep.subr.bf16.mxu0 %v3836
    %6423 = vmatpush1.bf16.msra.mxu0 %v3835
    %6424 = vmatprep.subr.bf16.mxu0 %v3844
    %6425 = vmatpush1.bf16.msra.mxu0 %v3843
    %6426 = vmatprep.subr.bf16.mxu0 %v3852
    %6427 = vmatpush1.bf16.msra.mxu0 %v3851
    %6428 = vmatprep.subr.bf16.mxu0 %v3860
    %6429 = vmatpush1.bf16.msra.mxu0 %v3859
    %6430 = vmatprep.subr.bf16.mxu0 %v3868
    %6431 = vmatpush1.bf16.msra.mxu0 %v3867
    %6432 = vmatprep.subr.bf16.mxu0 %v3876
    %6433 = vmatpush1.bf16.msra.mxu0 %v3875
    %6434 = vmatprep.mubr.bf16.mxu0 %v110
    %6435 = vmatmul.mubr.bf16.gmra.mrb[0].mxu0 %v109
    %v6436 = vpop.f32.mrb[0].mxu0
    %v6437 = vadd.f32 %v1048, %v6436
    %v6438 = vpop.f32.mrb[0].mxu0
    %v6439 = vadd.f32 %v1052, %v6438
    %v6440 = vpop.f32.mrb[0].mxu0
    %v6441 = vpop.f32.mrb[0].mxu0
    %6442 = vdwg.mxu0
    %6443 = vmatprep.subr.bf16.mxu0 %v3884
    %6444 = vmatpush1.bf16.msra.mxu0 %v3883
    %6445 = vmatprep.subr.bf16.mxu0 %v3892
    %6446 = vmatpush1.bf16.msra.mxu0 %v3891
    %6447 = vmatprep.subr.bf16.mxu0 %v3900
    %6448 = vmatpush1.bf16.msra.mxu0 %v3899
    %6449 = vmatprep.subr.bf16.mxu0 %v3908
    %6450 = vmatpush1.bf16.msra.mxu0 %v3907
    %6451 = vmatprep.subr.bf16.mxu0 %v3916
    %6452 = vmatpush1.bf16.msra.mxu0 %v3915
    %6453 = vmatprep.subr.bf16.mxu0 %v3924
    %6454 = vmatpush1.bf16.msra.mxu0 %v3923
    %6455 = vmatprep.subr.bf16.mxu0 %v3932
    %6456 = vmatpush1.bf16.msra.mxu0 %v3931
    %6457 = vmatprep.subr.bf16.mxu0 %v3940
    %6458 = vmatpush1.bf16.msra.mxu0 %v3939
    %6459 = vmatprep.subr.bf16.mxu0 %v3948
    %6460 = vmatpush1.bf16.msra.mxu0 %v3947
    %6461 = vmatprep.subr.bf16.mxu0 %v3956
    %6462 = vmatpush1.bf16.msra.mxu0 %v3955
    %6463 = vmatprep.subr.bf16.mxu0 %v3964
    %6464 = vmatpush1.bf16.msra.mxu0 %v3963
    %6465 = vmatprep.subr.bf16.mxu0 %v3972
    %6466 = vmatpush1.bf16.msra.mxu0 %v3971
    %6467 = vmatprep.subr.bf16.mxu0 %v3980
    %6468 = vmatpush1.bf16.msra.mxu0 %v3979
    %6469 = vmatprep.subr.bf16.mxu0 %v3988
    %6470 = vmatpush1.bf16.msra.mxu0 %v3987
    %6471 = vmatprep.subr.bf16.mxu0 %v3996
    %6472 = vmatpush1.bf16.msra.mxu0 %v3995
    %6473 = vmatprep.subr.bf16.mxu0 %v4004
    %6474 = vmatpush1.bf16.msra.mxu0 %v4003
    %6475 = vmatprep.mubr.bf16.mxu0 %v112
    %6476 = vmatmul.mubr.bf16.gmra.mrb[0].mxu0 %v111
    %v6477 = vpop.f32.mrb[0].mxu0
    %v6478 = vadd.f32 %v6437, %v6477
    %v6479 = vpop.f32.mrb[0].mxu0
    %v6480 = vadd.f32 %v6439, %v6479
    %v6481 = vpop.f32.mrb[0].mxu0
    %v6482 = vpop.f32.mrb[0].mxu0
    %6483 = vdwg.mxu0
    %6484 = vmatprep.subr.bf16.mxu0 %v4012
    %6485 = vmatpush1.bf16.msra.mxu0 %v4011
    %6486 = vmatprep.subr.bf16.mxu0 %v4020
    %6487 = vmatpush1.bf16.msra.mxu0 %v4019
    %6488 = vmatprep.subr.bf16.mxu0 %v4028
    %6489 = vmatpush1.bf16.msra.mxu0 %v4027
    %6490 = vmatprep.subr.bf16.mxu0 %v4036
    %6491 = vmatpush1.bf16.msra.mxu0 %v4035
    %6492 = vmatprep.subr.bf16.mxu0 %v4044
    %6493 = vmatpush1.bf16.msra.mxu0 %v4043
    %6494 = vmatprep.subr.bf16.mxu0 %v4052
    %6495 = vmatpush1.bf16.msra.mxu0 %v4051
    %6496 = vmatprep.subr.bf16.mxu0 %v4060
    %6497 = vmatpush1.bf16.msra.mxu0 %v4059
    %6498 = vmatprep.subr.bf16.mxu0 %v4068
    %6499 = vmatpush1.bf16.msra.mxu0 %v4067
    %6500 = vmatprep.subr.bf16.mxu0 %v4076
    %6501 = vmatpush1.bf16.msra.mxu0 %v4075
    %6502 = vmatprep.subr.bf16.mxu0 %v4084
    %6503 = vmatpush1.bf16.msra.mxu0 %v4083
    %6504 = vmatprep.subr.bf16.mxu0 %v4092
    %6505 = vmatpush1.bf16.msra.mxu0 %v4091
    %6506 = vmatprep.subr.bf16.mxu0 %v4100
    %6507 = vmatpush1.bf16.msra.mxu0 %v4099
    %6508 = vmatprep.subr.bf16.mxu0 %v4108
    %6509 = vmatpush1.bf16.msra.mxu0 %v4107
    %6510 = vmatprep.subr.bf16.mxu0 %v4116
    %6511 = vmatpush1.bf16.msra.mxu0 %v4115
    %6512 = vmatprep.subr.bf16.mxu0 %v4124
    %6513 = vmatpush1.bf16.msra.mxu0 %v4123
    %6514 = vmatprep.subr.bf16.mxu0 %v4132
    %6515 = vmatpush1.bf16.msra.mxu0 %v4131
    %6516 = vmatprep.mubr.bf16.mxu0 %v114
    %6517 = vmatmul.mubr.bf16.gmra.mrb[0].mxu0 %v113
    %v6518 = vpop.f32.mrb[0].mxu0
    %v6519 = vadd.f32 %v6478, %v6518
    %v6520 = vpop.f32.mrb[0].mxu0
    %v6521 = vadd.f32 %v6480, %v6520
    %v6522 = vpop.f32.mrb[0].mxu0
    %v6523 = vpop.f32.mrb[0].mxu0
    %6524 = vdwg.mxu0
    %6525 = vmatprep.subr.bf16.mxu0 %v4140
    %6526 = vmatpush1.bf16.msra.mxu0 %v4139
    %6527 = vmatprep.subr.bf16.mxu0 %v4148
    %6528 = vmatpush1.bf16.msra.mxu0 %v4147
    %6529 = vmatprep.subr.bf16.mxu0 %v4156
    %6530 = vmatpush1.bf16.msra.mxu0 %v4155
    %6531 = vmatprep.subr.bf16.mxu0 %v4164
    %6532 = vmatpush1.bf16.msra.mxu0 %v4163
    %6533 = vmatprep.subr.bf16.mxu0 %v4172
    %6534 = vmatpush1.bf16.msra.mxu0 %v4171
    %6535 = vmatprep.subr.bf16.mxu0 %v4180
    %6536 = vmatpush1.bf16.msra.mxu0 %v4179
    %6537 = vmatprep.subr.bf16.mxu0 %v4188
    %6538 = vmatpush1.bf16.msra.mxu0 %v4187
    %6539 = vmatprep.subr.bf16.mxu0 %v4196
    %6540 = vmatpush1.bf16.msra.mxu0 %v4195
    %6541 = vmatprep.subr.bf16.mxu0 %v4204
    %6542 = vmatpush1.bf16.msra.mxu0 %v4203
    %6543 = vmatprep.subr.bf16.mxu0 %v4212
    %6544 = vmatpush1.bf16.msra.mxu0 %v4211
    %6545 = vmatprep.subr.bf16.mxu0 %v4220
    %6546 = vmatpush1.bf16.msra.mxu0 %v4219
    %6547 = vmatprep.subr.bf16.mxu0 %v4228
    %6548 = vmatpush1.bf16.msra.mxu0 %v4227
    %6549 = vmatprep.subr.bf16.mxu0 %v4236
    %6550 = vmatpush1.bf16.msra.mxu0 %v4235
    %6551 = vmatprep.subr.bf16.mxu0 %v4244
    %6552 = vmatpush1.bf16.msra.mxu0 %v4243
    %6553 = vmatprep.subr.bf16.mxu0 %v4252
    %6554 = vmatpush1.bf16.msra.mxu0 %v4251
    %6555 = vmatprep.subr.bf16.mxu0 %v4260
    %6556 = vmatpush1.bf16.msra.mxu0 %v4259
    %6557 = vmatprep.mubr.bf16.mxu0 %v116
    %6558 = vmatmul.mubr.bf16.gmra.mrb[0].mxu0 %v115
    %v6559 = vpop.f32.mrb[0].mxu0
    %v6560 = vadd.f32 %v6519, %v6559
    %v6561 = vpop.f32.mrb[0].mxu0
    %v6562 = vadd.f32 %v6521, %v6561
    %v6563 = vpop.f32.mrb[0].mxu0
    %v6564 = vpop.f32.mrb[0].mxu0
    %6565 = vdwg.mxu0
    %6566 = vmatprep.subr.bf16.mxu0 %v4268
    %6567 = vmatpush1.bf16.msra.mxu0 %v4267
    %6568 = vmatprep.subr.bf16.mxu0 %v4276
    %6569 = vmatpush1.bf16.msra.mxu0 %v4275
    %6570 = vmatprep.subr.bf16.mxu0 %v4284
    %6571 = vmatpush1.bf16.msra.mxu0 %v4283
    %6572 = vmatprep.subr.bf16.mxu0 %v4292
    %6573 = vmatpush1.bf16.msra.mxu0 %v4291
    %6574 = vmatprep.subr.bf16.mxu0 %v4300
    %6575 = vmatpush1.bf16.msra.mxu0 %v4299
    %6576 = vmatprep.subr.bf16.mxu0 %v4308
    %6577 = vmatpush1.bf16.msra.mxu0 %v4307
    %6578 = vmatprep.subr.bf16.mxu0 %v4316
    %6579 = vmatpush1.bf16.msra.mxu0 %v4315
    %6580 = vmatprep.subr.bf16.mxu0 %v4324
    %6581 = vmatpush1.bf16.msra.mxu0 %v4323
    %6582 = vmatprep.subr.bf16.mxu0 %v4332
    %6583 = vmatpush1.bf16.msra.mxu0 %v4331
    %6584 = vmatprep.subr.bf16.mxu0 %v4340
    %6585 = vmatpush1.bf16.msra.mxu0 %v4339
    %6586 = vmatprep.subr.bf16.mxu0 %v4348
    %6587 = vmatpush1.bf16.msra.mxu0 %v4347
    %6588 = vmatprep.subr.bf16.mxu0 %v4356
    %6589 = vmatpush1.bf16.msra.mxu0 %v4355
    %6590 = vmatprep.subr.bf16.mxu0 %v4364
    %6591 = vmatpush1.bf16.msra.mxu0 %v4363
    %6592 = vmatprep.subr.bf16.mxu0 %v4372
    %6593 = vmatpush1.bf16.msra.mxu0 %v4371
    %6594 = vmatprep.subr.bf16.mxu0 %v4380
    %6595 = vmatpush1.bf16.msra.mxu0 %v4379
    %6596 = vmatprep.subr.bf16.mxu0 %v4388
    %6597 = vmatpush1.bf16.msra.mxu0 %v4387
    %6598 = vmatprep.mubr.bf16.mxu0 %v118
    %6599 = vmatmul.mubr.bf16.gmra.mrb[0].mxu0 %v117
    %v6600 = vpop.f32.mrb[0].mxu0
    %v6601 = vadd.f32 %v6560, %v6600
    %v6602 = vpop.f32.mrb[0].mxu0
    %v6603 = vadd.f32 %v6562, %v6602
    %v6604 = vpop.f32.mrb[0].mxu0
    %v6605 = vpop.f32.mrb[0].mxu0
    %6606 = vdwg.mxu0
    %6607 = vmatprep.subr.bf16.mxu0 %v4396
    %6608 = vmatpush1.bf16.msra.mxu0 %v4395
    %6609 = vmatprep.subr.bf16.mxu0 %v4404
    %6610 = vmatpush1.bf16.msra.mxu0 %v4403
    %6611 = vmatprep.subr.bf16.mxu0 %v4412
    %6612 = vmatpush1.bf16.msra.mxu0 %v4411
    %6613 = vmatprep.subr.bf16.mxu0 %v4420
    %6614 = vmatpush1.bf16.msra.mxu0 %v4419
    %6615 = vmatprep.subr.bf16.mxu0 %v4428
    %6616 = vmatpush1.bf16.msra.mxu0 %v4427
    %6617 = vmatprep.subr.bf16.mxu0 %v4436
    %6618 = vmatpush1.bf16.msra.mxu0 %v4435
    %6619 = vmatprep.subr.bf16.mxu0 %v4444
    %6620 = vmatpush1.bf16.msra.mxu0 %v4443
    %6621 = vmatprep.subr.bf16.mxu0 %v4452
    %6622 = vmatpush1.bf16.msra.mxu0 %v4451
    %6623 = vmatprep.subr.bf16.mxu0 %v4460
    %6624 = vmatpush1.bf16.msra.mxu0 %v4459
    %6625 = vmatprep.subr.bf16.mxu0 %v4468
    %6626 = vmatpush1.bf16.msra.mxu0 %v4467
    %6627 = vmatprep.subr.bf16.mxu0 %v4476
    %6628 = vmatpush1.bf16.msra.mxu0 %v4475
    %6629 = vmatprep.subr.bf16.mxu0 %v4484
    %6630 = vmatpush1.bf16.msra.mxu0 %v4483
    %6631 = vmatprep.subr.bf16.mxu0 %v4492
    %6632 = vmatpush1.bf16.msra.mxu0 %v4491
    %6633 = vmatprep.subr.bf16.mxu0 %v4500
    %6634 = vmatpush1.bf16.msra.mxu0 %v4499
    %6635 = vmatprep.subr.bf16.mxu0 %v4508
    %6636 = vmatpush1.bf16.msra.mxu0 %v4507
    %6637 = vmatprep.subr.bf16.mxu0 %v4516
    %6638 = vmatpush1.bf16.msra.mxu0 %v4515
    %6639 = vmatprep.mubr.bf16.mxu0 %v120
    %6640 = vmatmul.mubr.bf16.gmra.mrb[0].mxu0 %v119
    %v6641 = vpop.f32.mrb[0].mxu0
    %v6642 = vadd.f32 %v6601, %v6641
    %v6643 = vpop.f32.mrb[0].mxu0
    %v6644 = vadd.f32 %v6603, %v6643
    %v6645 = vpop.f32.mrb[0].mxu0
    %v6646 = vpop.f32.mrb[0].mxu0
    %6647 = vdwg.mxu0
    %6648 = vmatprep.subr.bf16.mxu0 %v4524
    %6649 = vmatpush1.bf16.msra.mxu0 %v4523
    %6650 = vmatprep.subr.bf16.mxu0 %v4532
    %6651 = vmatpush1.bf16.msra.mxu0 %v4531
    %6652 = vmatprep.subr.bf16.mxu0 %v4540
    %6653 = vmatpush1.bf16.msra.mxu0 %v4539
    %6654 = vmatprep.subr.bf16.mxu0 %v4548
    %6655 = vmatpush1.bf16.msra.mxu0 %v4547
    %6656 = vmatprep.subr.bf16.mxu0 %v4556
    %6657 = vmatpush1.bf16.msra.mxu0 %v4555
    %6658 = vmatprep.subr.bf16.mxu0 %v4564
    %6659 = vmatpush1.bf16.msra.mxu0 %v4563
    %6660 = vmatprep.subr.bf16.mxu0 %v4572
    %6661 = vmatpush1.bf16.msra.mxu0 %v4571
    %6662 = vmatprep.subr.bf16.mxu0 %v4580
    %6663 = vmatpush1.bf16.msra.mxu0 %v4579
    %6664 = vmatprep.subr.bf16.mxu0 %v4588
    %6665 = vmatpush1.bf16.msra.mxu0 %v4587
    %6666 = vmatprep.subr.bf16.mxu0 %v4596
    %6667 = vmatpush1.bf16.msra.mxu0 %v4595
    %6668 = vmatprep.subr.bf16.mxu0 %v4604
    %6669 = vmatpush1.bf16.msra.mxu0 %v4603
    %6670 = vmatprep.subr.bf16.mxu0 %v4612
    %6671 = vmatpush1.bf16.msra.mxu0 %v4611
    %6672 = vmatprep.subr.bf16.mxu0 %v4620
    %6673 = vmatpush1.bf16.msra.mxu0 %v4619
    %6674 = vmatprep.subr.bf16.mxu0 %v4628
    %6675 = vmatpush1.bf16.msra.mxu0 %v4627
    %6676 = vmatprep.subr.bf16.mxu0 %v4636
    %6677 = vmatpush1.bf16.msra.mxu0 %v4635
    %6678 = vmatprep.subr.bf16.mxu0 %v4644
    %6679 = vmatpush1.bf16.msra.mxu0 %v4643
    %6680 = vmatprep.mubr.bf16.mxu0 %v122
    %6681 = vmatmul.mubr.bf16.gmra.mrb[0].mxu0 %v121
    %v6682 = vpop.f32.mrb[0].mxu0
    %v6683 = vadd.f32 %v6642, %v6682
    %v6684 = vpop.f32.mrb[0].mxu0
    %v6685 = vadd.f32 %v6644, %v6684
    %v6686 = vpop.f32.mrb[0].mxu0
    %v6687 = vpop.f32.mrb[0].mxu0
    %6688 = vdwg.mxu0
    %v6689 = vmax.f32 %v5822, 0.0
    %v6690 = vmax.f32 %v5824, 0.0
    %v6691 = vmax.f32 %v6109, 0.0
    %v6692 = vmax.f32 %v6111, 0.0
    %v6693 = vmax.f32 %v6396, 0.0
    %v6694 = vmax.f32 %v6398, 0.0
    %v6695 = vmax.f32 %v6683, 0.0
    %v6696 = vmax.f32 %v6685, 0.0
    %v6697 = vpack.c.bf16 %v6689, %v6689
    %v6698 = vpack.c.bf16 %v6690, %v6690
    %v6699 = vpack.c.bf16 %v6691, %v6691
    %v6700 = vpack.c.bf16 %v6692, %v6692
    %v6701 = vpack.c.bf16 %v6693, %v6693
    %v6702 = vpack.c.bf16 %v6694, %v6694
    %v6703 = vpack.c.bf16 %v6695, %v6695
    %v6704 = vpack.c.bf16 %v6696, %v6696
    %v6705 = vld [vmem:[%s3] sm:$0xff]
    %v6706 = vld [vmem:[%s3 + $0x8] sm:$0xff]
    %v6707 = vld [vmem:[%s3 + $0x10] sm:$0xff]
    %v6708 = vld [vmem:[%s3 + $0x18] sm:$0xff]
    %v6709 = vld [vmem:[%s3 + $0x20] sm:$0xff]
    %v6710 = vld [vmem:[%s3 + $0x28] sm:$0xff]
    %v6711 = vld [vmem:[%s3 + $0x30] sm:$0xff]
    %v6712 = vld [vmem:[%s3 + $0x38] sm:$0xff]
    %v6713 = vld [vmem:[%s3 + $0x40] sm:$0xff]
    %v6714 = vld [vmem:[%s3 + $0x48] sm:$0xff]
    %v6715 = vld [vmem:[%s3 + $0x50] sm:$0xff]
    %v6716 = vld [vmem:[%s3 + $0x58] sm:$0xff]
    %v6717 = vld [vmem:[%s3 + $0x60] sm:$0xff]
    %v6718 = vld [vmem:[%s3 + $0x68] sm:$0xff]
    %v6719 = vld [vmem:[%s3 + $0x70] sm:$0xff]
    %v6720 = vld [vmem:[%s3 + $0x78] sm:$0xff]
    %v6721 = vld [vmem:[%s3 + $0x80] sm:$0xff]
    %v6722 = vld [vmem:[%s3 + $0x88] sm:$0xff]
    %v6723 = vld [vmem:[%s3 + $0x90] sm:$0xff]
    %v6724 = vld [vmem:[%s3 + $0x98] sm:$0xff]
    %v6725 = vld [vmem:[%s3 + $0xa0] sm:$0xff]
    %v6726 = vld [vmem:[%s3 + $0xa8] sm:$0xff]
    %v6727 = vld [vmem:[%s3 + $0xb0] sm:$0xff]
    %v6728 = vld [vmem:[%s3 + $0xb8] sm:$0xff]
    %v6729 = vld [vmem:[%s3 + $0xc0] sm:$0xff]
    %v6730 = vld [vmem:[%s3 + $0xc8] sm:$0xff]
    %v6731 = vld [vmem:[%s3 + $0xd0] sm:$0xff]
    %v6732 = vld [vmem:[%s3 + $0xd8] sm:$0xff]
    %v6733 = vld [vmem:[%s3 + $0xe0] sm:$0xff]
    %v6734 = vld [vmem:[%s3 + $0xe8] sm:$0xff]
    %v6735 = vld [vmem:[%s3 + $0xf0] sm:$0xff]
    %v6736 = vld [vmem:[%s3 + $0xf8] sm:$0xff]
    %v6737 = vld [vmem:[%s3 + $0x100] sm:$0xff]
    %v6738 = vld [vmem:[%s3 + $0x108] sm:$0xff]
    %v6739 = vld [vmem:[%s3 + $0x110] sm:$0xff]
    %v6740 = vld [vmem:[%s3 + $0x118] sm:$0xff]
    %v6741 = vld [vmem:[%s3 + $0x120] sm:$0xff]
    %v6742 = vld [vmem:[%s3 + $0x128] sm:$0xff]
    %v6743 = vld [vmem:[%s3 + $0x130] sm:$0xff]
    %v6744 = vld [vmem:[%s3 + $0x138] sm:$0xff]
    %v6745 = vld [vmem:[%s3 + $0x140] sm:$0xff]
    %v6746 = vld [vmem:[%s3 + $0x148] sm:$0xff]
    %v6747 = vld [vmem:[%s3 + $0x150] sm:$0xff]
    %v6748 = vld [vmem:[%s3 + $0x158] sm:$0xff]
    %v6749 = vld [vmem:[%s3 + $0x160] sm:$0xff]
    %v6750 = vld [vmem:[%s3 + $0x168] sm:$0xff]
    %v6751 = vld [vmem:[%s3 + $0x170] sm:$0xff]
    %v6752 = vld [vmem:[%s3 + $0x178] sm:$0xff]
    %v6753 = vld [vmem:[%s3 + $0x180] sm:$0xff]
    %v6754 = vld [vmem:[%s3 + $0x188] sm:$0xff]
    %v6755 = vld [vmem:[%s3 + $0x190] sm:$0xff]
    %v6756 = vld [vmem:[%s3 + $0x198] sm:$0xff]
    %v6757 = vld [vmem:[%s3 + $0x1a0] sm:$0xff]
    %v6758 = vld [vmem:[%s3 + $0x1a8] sm:$0xff]
    %v6759 = vld [vmem:[%s3 + $0x1b0] sm:$0xff]
    %v6760 = vld [vmem:[%s3 + $0x1b8] sm:$0xff]
    %v6761 = vld [vmem:[%s3 + $0x1c0] sm:$0xff]
    %v6762 = vld [vmem:[%s3 + $0x1c8] sm:$0xff]
    %v6763 = vld [vmem:[%s3 + $0x1d0] sm:$0xff]
    %v6764 = vld [vmem:[%s3 + $0x1d8] sm:$0xff]
    %v6765 = vld [vmem:[%s3 + $0x1e0] sm:$0xff]
    %v6766 = vld [vmem:[%s3 + $0x1e8] sm:$0xff]
    %v6767 = vld [vmem:[%s3 + $0x1f0] sm:$0xff]
    %v6768 = vld [vmem:[%s3 + $0x1f8] sm:$0xff]
    %v6769 = vld [vmem:[%s3 + $0x200] sm:$0xff]
    %v6770 = vld [vmem:[%s3 + $0x208] sm:$0xff]
    %v6771 = vld [vmem:[%s3 + $0x210] sm:$0xff]
    %v6772 = vld [vmem:[%s3 + $0x218] sm:$0xff]
    %v6773 = vld [vmem:[%s3 + $0x220] sm:$0xff]
    %v6774 = vld [vmem:[%s3 + $0x228] sm:$0xff]
    %v6775 = vld [vmem:[%s3 + $0x230] sm:$0xff]
    %v6776 = vld [vmem:[%s3 + $0x238] sm:$0xff]
    %v6777 = vld [vmem:[%s3 + $0x240] sm:$0xff]
    %v6778 = vld [vmem:[%s3 + $0x248] sm:$0xff]
    %v6779 = vld [vmem:[%s3 + $0x250] sm:$0xff]
    %v6780 = vld [vmem:[%s3 + $0x258] sm:$0xff]
    %v6781 = vld [vmem:[%s3 + $0x260] sm:$0xff]
    %v6782 = vld [vmem:[%s3 + $0x268] sm:$0xff]
    %v6783 = vld [vmem:[%s3 + $0x270] sm:$0xff]
    %v6784 = vld [vmem:[%s3 + $0x278] sm:$0xff]
    %v6785 = vld [vmem:[%s3 + $0x280] sm:$0xff]
    %v6786 = vld [vmem:[%s3 + $0x288] sm:$0xff]
    %v6787 = vld [vmem:[%s3 + $0x290] sm:$0xff]
    %v6788 = vld [vmem:[%s3 + $0x298] sm:$0xff]
    %v6789 = vld [vmem:[%s3 + $0x2a0] sm:$0xff]
    %v6790 = vld [vmem:[%s3 + $0x2a8] sm:$0xff]
    %v6791 = vld [vmem:[%s3 + $0x2b0] sm:$0xff]
    %v6792 = vld [vmem:[%s3 + $0x2b8] sm:$0xff]
    %v6793 = vld [vmem:[%s3 + $0x2c0] sm:$0xff]
    %v6794 = vld [vmem:[%s3 + $0x2c8] sm:$0xff]
    %v6795 = vld [vmem:[%s3 + $0x2d0] sm:$0xff]
    %v6796 = vld [vmem:[%s3 + $0x2d8] sm:$0xff]
    %v6797 = vld [vmem:[%s3 + $0x2e0] sm:$0xff]
    %v6798 = vld [vmem:[%s3 + $0x2e8] sm:$0xff]
    %v6799 = vld [vmem:[%s3 + $0x2f0] sm:$0xff]
    %v6800 = vld [vmem:[%s3 + $0x2f8] sm:$0xff]
    %v6801 = vld [vmem:[%s3 + $0x300] sm:$0xff]
    %v6802 = vld [vmem:[%s3 + $0x308] sm:$0xff]
    %v6803 = vld [vmem:[%s3 + $0x310] sm:$0xff]
    %v6804 = vld [vmem:[%s3 + $0x318] sm:$0xff]
    %v6805 = vld [vmem:[%s3 + $0x320] sm:$0xff]
    %v6806 = vld [vmem:[%s3 + $0x328] sm:$0xff]
    %v6807 = vld [vmem:[%s3 + $0x330] sm:$0xff]
    %v6808 = vld [vmem:[%s3 + $0x338] sm:$0xff]
    %v6809 = vld [vmem:[%s3 + $0x340] sm:$0xff]
    %v6810 = vld [vmem:[%s3 + $0x348] sm:$0xff]
    %v6811 = vld [vmem:[%s3 + $0x350] sm:$0xff]
    %v6812 = vld [vmem:[%s3 + $0x358] sm:$0xff]
    %v6813 = vld [vmem:[%s3 + $0x360] sm:$0xff]
    %v6814 = vld [vmem:[%s3 + $0x368] sm:$0xff]
    %v6815 = vld [vmem:[%s3 + $0x370] sm:$0xff]
    %v6816 = vld [vmem:[%s3 + $0x378] sm:$0xff]
    %v6817 = vld [vmem:[%s3 + $0x380] sm:$0xff]
    %v6818 = vld [vmem:[%s3 + $0x388] sm:$0xff]
    %v6819 = vld [vmem:[%s3 + $0x390] sm:$0xff]
    %v6820 = vld [vmem:[%s3 + $0x398] sm:$0xff]
    %v6821 = vld [vmem:[%s3 + $0x3a0] sm:$0xff]
    %v6822 = vld [vmem:[%s3 + $0x3a8] sm:$0xff]
    %v6823 = vld [vmem:[%s3 + $0x3b0] sm:$0xff]
    %v6824 = vld [vmem:[%s3 + $0x3b8] sm:$0xff]
    %v6825 = vld [vmem:[%s3 + $0x3c0] sm:$0xff]
    %v6826 = vld [vmem:[%s3 + $0x3c8] sm:$0xff]
    %v6827 = vld [vmem:[%s3 + $0x3d0] sm:$0xff]
    %v6828 = vld [vmem:[%s3 + $0x3d8] sm:$0xff]
    %v6829 = vld [vmem:[%s3 + $0x3e0] sm:$0xff]
    %v6830 = vld [vmem:[%s3 + $0x3e8] sm:$0xff]
    %v6831 = vld [vmem:[%s3 + $0x3f0] sm:$0xff]
    %v6832 = vld [vmem:[%s3 + $0x3f8] sm:$0xff]
    %v6833 = vld [vmem:[%s3 + $0x400] sm:$0xff]
    %v6834 = vld [vmem:[%s3 + $0x408] sm:$0xff]
    %v6835 = vld [vmem:[%s3 + $0x410] sm:$0xff]
    %v6836 = vld [vmem:[%s3 + $0x418] sm:$0xff]
    %v6837 = vld [vmem:[%s3 + $0x420] sm:$0xff]
    %v6838 = vld [vmem:[%s3 + $0x428] sm:$0xff]
    %v6839 = vld [vmem:[%s3 + $0x430] sm:$0xff]
    %v6840 = vld [vmem:[%s3 + $0x438] sm:$0xff]
    %v6841 = vld [vmem:[%s3 + $0x440] sm:$0xff]
    %v6842 = vld [vmem:[%s3 + $0x448] sm:$0xff]
    %v6843 = vld [vmem:[%s3 + $0x450] sm:$0xff]
    %v6844 = vld [vmem:[%s3 + $0x458] sm:$0xff]
    %v6845 = vld [vmem:[%s3 + $0x460] sm:$0xff]
    %v6846 = vld [vmem:[%s3 + $0x468] sm:$0xff]
    %v6847 = vld [vmem:[%s3 + $0x470] sm:$0xff]
    %v6848 = vld [vmem:[%s3 + $0x478] sm:$0xff]
    %v6849 = vld [vmem:[%s3 + $0x480] sm:$0xff]
    %v6850 = vld [vmem:[%s3 + $0x488] sm:$0xff]
    %v6851 = vld [vmem:[%s3 + $0x490] sm:$0xff]
    %v6852 = vld [vmem:[%s3 + $0x498] sm:$0xff]
    %v6853 = vld [vmem:[%s3 + $0x4a0] sm:$0xff]
    %v6854 = vld [vmem:[%s3 + $0x4a8] sm:$0xff]
    %v6855 = vld [vmem:[%s3 + $0x4b0] sm:$0xff]
    %v6856 = vld [vmem:[%s3 + $0x4b8] sm:$0xff]
    %v6857 = vld [vmem:[%s3 + $0x4c0] sm:$0xff]
    %v6858 = vld [vmem:[%s3 + $0x4c8] sm:$0xff]
    %v6859 = vld [vmem:[%s3 + $0x4d0] sm:$0xff]
    %v6860 = vld [vmem:[%s3 + $0x4d8] sm:$0xff]
    %v6861 = vld [vmem:[%s3 + $0x4e0] sm:$0xff]
    %v6862 = vld [vmem:[%s3 + $0x4e8] sm:$0xff]
    %v6863 = vld [vmem:[%s3 + $0x4f0] sm:$0xff]
    %v6864 = vld [vmem:[%s3 + $0x4f8] sm:$0xff]
    %v6865 = vld [vmem:[%s3 + $0x500] sm:$0xff]
    %v6866 = vld [vmem:[%s3 + $0x508] sm:$0xff]
    %v6867 = vld [vmem:[%s3 + $0x510] sm:$0xff]
    %v6868 = vld [vmem:[%s3 + $0x518] sm:$0xff]
    %v6869 = vld [vmem:[%s3 + $0x520] sm:$0xff]
    %v6870 = vld [vmem:[%s3 + $0x528] sm:$0xff]
    %v6871 = vld [vmem:[%s3 + $0x530] sm:$0xff]
    %v6872 = vld [vmem:[%s3 + $0x538] sm:$0xff]
    %v6873 = vld [vmem:[%s3 + $0x540] sm:$0xff]
    %v6874 = vld [vmem:[%s3 + $0x548] sm:$0xff]
    %v6875 = vld [vmem:[%s3 + $0x550] sm:$0xff]
    %v6876 = vld [vmem:[%s3 + $0x558] sm:$0xff]
    %v6877 = vld [vmem:[%s3 + $0x560] sm:$0xff]
    %v6878 = vld [vmem:[%s3 + $0x568] sm:$0xff]
    %v6879 = vld [vmem:[%s3 + $0x570] sm:$0xff]
    %v6880 = vld [vmem:[%s3 + $0x578] sm:$0xff]
    %v6881 = vld [vmem:[%s3 + $0x580] sm:$0xff]
    %v6882 = vld [vmem:[%s3 + $0x588] sm:$0xff]
    %v6883 = vld [vmem:[%s3 + $0x590] sm:$0xff]
    %v6884 = vld [vmem:[%s3 + $0x598] sm:$0xff]
    %v6885 = vld [vmem:[%s3 + $0x5a0] sm:$0xff]
    %v6886 = vld [vmem:[%s3 + $0x5a8] sm:$0xff]
    %v6887 = vld [vmem:[%s3 + $0x5b0] sm:$0xff]
    %v6888 = vld [vmem:[%s3 + $0x5b8] sm:$0xff]
    %v6889 = vld [vmem:[%s3 + $0x5c0] sm:$0xff]
    %v6890 = vld [vmem:[%s3 + $0x5c8] sm:$0xff]
    %v6891 = vld [vmem:[%s3 + $0x5d0] sm:$0xff]
    %v6892 = vld [vmem:[%s3 + $0x5d8] sm:$0xff]
    %v6893 = vld [vmem:[%s3 + $0x5e0] sm:$0xff]
    %v6894 = vld [vmem:[%s3 + $0x5e8] sm:$0xff]
    %v6895 = vld [vmem:[%s3 + $0x5f0] sm:$0xff]
    %v6896 = vld [vmem:[%s3 + $0x5f8] sm:$0xff]
    %v6897 = vld [vmem:[%s3 + $0x600] sm:$0xff]
    %v6898 = vld [vmem:[%s3 + $0x608] sm:$0xff]
    %v6899 = vld [vmem:[%s3 + $0x610] sm:$0xff]
    %v6900 = vld [vmem:[%s3 + $0x618] sm:$0xff]
    %v6901 = vld [vmem:[%s3 + $0x620] sm:$0xff]
    %v6902 = vld [vmem:[%s3 + $0x628] sm:$0xff]
    %v6903 = vld [vmem:[%s3 + $0x630] sm:$0xff]
    %v6904 = vld [vmem:[%s3 + $0x638] sm:$0xff]
    %v6905 = vld [vmem:[%s3 + $0x640] sm:$0xff]
    %v6906 = vld [vmem:[%s3 + $0x648] sm:$0xff]
    %v6907 = vld [vmem:[%s3 + $0x650] sm:$0xff]
    %v6908 = vld [vmem:[%s3 + $0x658] sm:$0xff]
    %v6909 = vld [vmem:[%s3 + $0x660] sm:$0xff]
    %v6910 = vld [vmem:[%s3 + $0x668] sm:$0xff]
    %v6911 = vld [vmem:[%s3 + $0x670] sm:$0xff]
    %v6912 = vld [vmem:[%s3 + $0x678] sm:$0xff]
    %v6913 = vld [vmem:[%s3 + $0x680] sm:$0xff]
    %v6914 = vld [vmem:[%s3 + $0x688] sm:$0xff]
    %v6915 = vld [vmem:[%s3 + $0x690] sm:$0xff]
    %v6916 = vld [vmem:[%s3 + $0x698] sm:$0xff]
    %v6917 = vld [vmem:[%s3 + $0x6a0] sm:$0xff]
    %v6918 = vld [vmem:[%s3 + $0x6a8] sm:$0xff]
    %v6919 = vld [vmem:[%s3 + $0x6b0] sm:$0xff]
    %v6920 = vld [vmem:[%s3 + $0x6b8] sm:$0xff]
    %v6921 = vld [vmem:[%s3 + $0x6c0] sm:$0xff]
    %v6922 = vld [vmem:[%s3 + $0x6c8] sm:$0xff]
    %v6923 = vld [vmem:[%s3 + $0x6d0] sm:$0xff]
    %v6924 = vld [vmem:[%s3 + $0x6d8] sm:$0xff]
    %v6925 = vld [vmem:[%s3 + $0x6e0] sm:$0xff]
    %v6926 = vld [vmem:[%s3 + $0x6e8] sm:$0xff]
    %v6927 = vld [vmem:[%s3 + $0x6f0] sm:$0xff]
    %v6928 = vld [vmem:[%s3 + $0x6f8] sm:$0xff]
    %v6929 = vld [vmem:[%s3 + $0x700] sm:$0xff]
    %v6930 = vld [vmem:[%s3 + $0x708] sm:$0xff]
    %v6931 = vld [vmem:[%s3 + $0x710] sm:$0xff]
    %v6932 = vld [vmem:[%s3 + $0x718] sm:$0xff]
    %v6933 = vld [vmem:[%s3 + $0x720] sm:$0xff]
    %v6934 = vld [vmem:[%s3 + $0x728] sm:$0xff]
    %v6935 = vld [vmem:[%s3 + $0x730] sm:$0xff]
    %v6936 = vld [vmem:[%s3 + $0x738] sm:$0xff]
    %v6937 = vld [vmem:[%s3 + $0x740] sm:$0xff]
    %v6938 = vld [vmem:[%s3 + $0x748] sm:$0xff]
    %v6939 = vld [vmem:[%s3 + $0x750] sm:$0xff]
    %v6940 = vld [vmem:[%s3 + $0x758] sm:$0xff]
    %v6941 = vld [vmem:[%s3 + $0x760] sm:$0xff]
    %v6942 = vld [vmem:[%s3 + $0x768] sm:$0xff]
    %v6943 = vld [vmem:[%s3 + $0x770] sm:$0xff]
    %v6944 = vld [vmem:[%s3 + $0x778] sm:$0xff]
    %v6945 = vld [vmem:[%s3 + $0x780] sm:$0xff]
    %v6946 = vld [vmem:[%s3 + $0x788] sm:$0xff]
    %v6947 = vld [vmem:[%s3 + $0x790] sm:$0xff]
    %v6948 = vld [vmem:[%s3 + $0x798] sm:$0xff]
    %v6949 = vld [vmem:[%s3 + $0x7a0] sm:$0xff]
    %v6950 = vld [vmem:[%s3 + $0x7a8] sm:$0xff]
    %v6951 = vld [vmem:[%s3 + $0x7b0] sm:$0xff]
    %v6952 = vld [vmem:[%s3 + $0x7b8] sm:$0xff]
    %v6953 = vld [vmem:[%s3 + $0x7c0] sm:$0xff]
    %v6954 = vld [vmem:[%s3 + $0x7c8] sm:$0xff]
    %v6955 = vld [vmem:[%s3 + $0x7d0] sm:$0xff]
    %v6956 = vld [vmem:[%s3 + $0x7d8] sm:$0xff]
    %v6957 = vld [vmem:[%s3 + $0x7e0] sm:$0xff]
    %v6958 = vld [vmem:[%s3 + $0x7e8] sm:$0xff]
    %v6959 = vld [vmem:[%s3 + $0x7f0] sm:$0xff]
    %v6960 = vld [vmem:[%s3 + $0x7f8] sm:$0xff]
    %v6961 = vld [vmem:[%s4] sm:$0xf]
    %v6963 = vlaneseq
    %v6964 = vshrl.u32 %v6963, 7
    %v6965 = vsub.s32 0, %v6964
    %v6966 = vrot.slane %v6961, %v6965
    %v6967 = vlaneseq
    %v6968 = vshrl.u32 %v6967, 7
    %v6969 = vsub.s32 1, %v6968
    %v6970 = vrot.slane %v6961, %v6969
    %v6971 = vlaneseq
    %v6972 = vshrl.u32 %v6971, 7
    %v6973 = vsub.s32 2, %v6972
    %v6974 = vrot.slane %v6961, %v6973
    %v6975 = vlaneseq
    %v6976 = vshrl.u32 %v6975, 7
    %v6977 = vsub.s32 3, %v6976
    %v6978 = vrot.slane %v6961, %v6977
    %v7239 = vunpack.c.l.b16 %v6705
    %v7240 = vunpack.c.h.b16 %v6705
    %v7241 = vunpack.c.l.b16 %v6706
    %v7242 = vunpack.c.h.b16 %v6706
    %v7243 = vunpack.c.l.b16 %v6707
    %v7244 = vunpack.c.h.b16 %v6707
    %v7245 = vunpack.c.l.b16 %v6708
    %v7246 = vunpack.c.h.b16 %v6708
    %v7247 = vunpack.c.l.b16 %v6709
    %v7248 = vunpack.c.h.b16 %v6709
    %v7249 = vunpack.c.l.b16 %v6710
    %v7250 = vunpack.c.h.b16 %v6710
    %v7251 = vunpack.c.l.b16 %v6711
    %v7252 = vunpack.c.h.b16 %v6711
    %v7253 = vunpack.c.l.b16 %v6712
    %v7254 = vunpack.c.h.b16 %v6712
    %v7255 = vunpack.c.l.b16 %v6713
    %v7256 = vunpack.c.h.b16 %v6713
    %v7257 = vunpack.c.l.b16 %v6714
    %v7258 = vunpack.c.h.b16 %v6714
    %v7259 = vunpack.c.l.b16 %v6715
    %v7260 = vunpack.c.h.b16 %v6715
    %v7261 = vunpack.c.l.b16 %v6716
    %v7262 = vunpack.c.h.b16 %v6716
    %v7263 = vunpack.c.l.b16 %v6717
    %v7264 = vunpack.c.h.b16 %v6717
    %v7265 = vunpack.c.l.b16 %v6718
    %v7266 = vunpack.c.h.b16 %v6718
    %v7267 = vunpack.c.l.b16 %v6719
    %v7268 = vunpack.c.h.b16 %v6719
    %v7269 = vunpack.c.l.b16 %v6720
    %v7270 = vunpack.c.h.b16 %v6720
    %v7271 = vunpack.c.l.b16 %v6721
    %v7272 = vunpack.c.h.b16 %v6721
    %v7273 = vunpack.c.l.b16 %v6722
    %v7274 = vunpack.c.h.b16 %v6722
    %v7275 = vunpack.c.l.b16 %v6723
    %v7276 = vunpack.c.h.b16 %v6723
    %v7277 = vunpack.c.l.b16 %v6724
    %v7278 = vunpack.c.h.b16 %v6724
    %v7279 = vunpack.c.l.b16 %v6725
    %v7280 = vunpack.c.h.b16 %v6725
    %v7281 = vunpack.c.l.b16 %v6726
    %v7282 = vunpack.c.h.b16 %v6726
    %v7283 = vunpack.c.l.b16 %v6727
    %v7284 = vunpack.c.h.b16 %v6727
    %v7285 = vunpack.c.l.b16 %v6728
    %v7286 = vunpack.c.h.b16 %v6728
    %v7287 = vunpack.c.l.b16 %v6729
    %v7288 = vunpack.c.h.b16 %v6729
    %v7289 = vunpack.c.l.b16 %v6730
    %v7290 = vunpack.c.h.b16 %v6730
    %v7291 = vunpack.c.l.b16 %v6731
    %v7292 = vunpack.c.h.b16 %v6731
    %v7293 = vunpack.c.l.b16 %v6732
    %v7294 = vunpack.c.h.b16 %v6732
    %v7295 = vunpack.c.l.b16 %v6733
    %v7296 = vunpack.c.h.b16 %v6733
    %v7297 = vunpack.c.l.b16 %v6734
    %v7298 = vunpack.c.h.b16 %v6734
    %v7299 = vunpack.c.l.b16 %v6735
    %v7300 = vunpack.c.h.b16 %v6735
    %v7301 = vunpack.c.l.b16 %v6736
    %v7302 = vunpack.c.h.b16 %v6736
    %v7303 = vunpack.c.l.b16 %v6737
    %v7304 = vunpack.c.h.b16 %v6737
    %v7305 = vunpack.c.l.b16 %v6738
    %v7306 = vunpack.c.h.b16 %v6738
    %v7307 = vunpack.c.l.b16 %v6739
    %v7308 = vunpack.c.h.b16 %v6739
    %v7309 = vunpack.c.l.b16 %v6740
    %v7310 = vunpack.c.h.b16 %v6740
    %v7311 = vunpack.c.l.b16 %v6741
    %v7312 = vunpack.c.h.b16 %v6741
    %v7313 = vunpack.c.l.b16 %v6742
    %v7314 = vunpack.c.h.b16 %v6742
    %v7315 = vunpack.c.l.b16 %v6743
    %v7316 = vunpack.c.h.b16 %v6743
    %v7317 = vunpack.c.l.b16 %v6744
    %v7318 = vunpack.c.h.b16 %v6744
    %v7319 = vunpack.c.l.b16 %v6745
    %v7320 = vunpack.c.h.b16 %v6745
    %v7321 = vunpack.c.l.b16 %v6746
    %v7322 = vunpack.c.h.b16 %v6746
    %v7323 = vunpack.c.l.b16 %v6747
    %v7324 = vunpack.c.h.b16 %v6747
    %v7325 = vunpack.c.l.b16 %v6748
    %v7326 = vunpack.c.h.b16 %v6748
    %v7327 = vunpack.c.l.b16 %v6749
    %v7328 = vunpack.c.h.b16 %v6749
    %v7329 = vunpack.c.l.b16 %v6750
    %v7330 = vunpack.c.h.b16 %v6750
    %v7331 = vunpack.c.l.b16 %v6751
    %v7332 = vunpack.c.h.b16 %v6751
    %v7333 = vunpack.c.l.b16 %v6752
    %v7334 = vunpack.c.h.b16 %v6752
    %v7335 = vunpack.c.l.b16 %v6753
    %v7336 = vunpack.c.h.b16 %v6753
    %v7337 = vunpack.c.l.b16 %v6754
    %v7338 = vunpack.c.h.b16 %v6754
    %v7339 = vunpack.c.l.b16 %v6755
    %v7340 = vunpack.c.h.b16 %v6755
    %v7341 = vunpack.c.l.b16 %v6756
    %v7342 = vunpack.c.h.b16 %v6756
    %v7343 = vunpack.c.l.b16 %v6757
    %v7344 = vunpack.c.h.b16 %v6757
    %v7345 = vunpack.c.l.b16 %v6758
    %v7346 = vunpack.c.h.b16 %v6758
    %v7347 = vunpack.c.l.b16 %v6759
    %v7348 = vunpack.c.h.b16 %v6759
    %v7349 = vunpack.c.l.b16 %v6760
    %v7350 = vunpack.c.h.b16 %v6760
    %v7351 = vunpack.c.l.b16 %v6761
    %v7352 = vunpack.c.h.b16 %v6761
    %v7353 = vunpack.c.l.b16 %v6762
    %v7354 = vunpack.c.h.b16 %v6762
    %v7355 = vunpack.c.l.b16 %v6763
    %v7356 = vunpack.c.h.b16 %v6763
    %v7357 = vunpack.c.l.b16 %v6764
    %v7358 = vunpack.c.h.b16 %v6764
    %v7359 = vunpack.c.l.b16 %v6765
    %v7360 = vunpack.c.h.b16 %v6765
    %v7361 = vunpack.c.l.b16 %v6766
    %v7362 = vunpack.c.h.b16 %v6766
    %v7363 = vunpack.c.l.b16 %v6767
    %v7364 = vunpack.c.h.b16 %v6767
    %v7365 = vunpack.c.l.b16 %v6768
    %v7366 = vunpack.c.h.b16 %v6768
    %v7367 = vunpack.c.l.b16 %v6769
    %v7368 = vunpack.c.h.b16 %v6769
    %v7369 = vunpack.c.l.b16 %v6770
    %v7370 = vunpack.c.h.b16 %v6770
    %v7371 = vunpack.c.l.b16 %v6771
    %v7372 = vunpack.c.h.b16 %v6771
    %v7373 = vunpack.c.l.b16 %v6772
    %v7374 = vunpack.c.h.b16 %v6772
    %v7375 = vunpack.c.l.b16 %v6773
    %v7376 = vunpack.c.h.b16 %v6773
    %v7377 = vunpack.c.l.b16 %v6774
    %v7378 = vunpack.c.h.b16 %v6774
    %v7379 = vunpack.c.l.b16 %v6775
    %v7380 = vunpack.c.h.b16 %v6775
    %v7381 = vunpack.c.l.b16 %v6776
    %v7382 = vunpack.c.h.b16 %v6776
    %v7383 = vunpack.c.l.b16 %v6777
    %v7384 = vunpack.c.h.b16 %v6777
    %v7385 = vunpack.c.l.b16 %v6778
    %v7386 = vunpack.c.h.b16 %v6778
    %v7387 = vunpack.c.l.b16 %v6779
    %v7388 = vunpack.c.h.b16 %v6779
    %v7389 = vunpack.c.l.b16 %v6780
    %v7390 = vunpack.c.h.b16 %v6780
    %v7391 = vunpack.c.l.b16 %v6781
    %v7392 = vunpack.c.h.b16 %v6781
    %v7393 = vunpack.c.l.b16 %v6782
    %v7394 = vunpack.c.h.b16 %v6782
    %v7395 = vunpack.c.l.b16 %v6783
    %v7396 = vunpack.c.h.b16 %v6783
    %v7397 = vunpack.c.l.b16 %v6784
    %v7398 = vunpack.c.h.b16 %v6784
    %v7399 = vunpack.c.l.b16 %v6785
    %v7400 = vunpack.c.h.b16 %v6785
    %v7401 = vunpack.c.l.b16 %v6786
    %v7402 = vunpack.c.h.b16 %v6786
    %v7403 = vunpack.c.l.b16 %v6787
    %v7404 = vunpack.c.h.b16 %v6787
    %v7405 = vunpack.c.l.b16 %v6788
    %v7406 = vunpack.c.h.b16 %v6788
    %v7407 = vunpack.c.l.b16 %v6789
    %v7408 = vunpack.c.h.b16 %v6789
    %v7409 = vunpack.c.l.b16 %v6790
    %v7410 = vunpack.c.h.b16 %v6790
    %v7411 = vunpack.c.l.b16 %v6791
    %v7412 = vunpack.c.h.b16 %v6791
    %v7413 = vunpack.c.l.b16 %v6792
    %v7414 = vunpack.c.h.b16 %v6792
    %v7415 = vunpack.c.l.b16 %v6793
    %v7416 = vunpack.c.h.b16 %v6793
    %v7417 = vunpack.c.l.b16 %v6794
    %v7418 = vunpack.c.h.b16 %v6794
    %v7419 = vunpack.c.l.b16 %v6795
    %v7420 = vunpack.c.h.b16 %v6795
    %v7421 = vunpack.c.l.b16 %v6796
    %v7422 = vunpack.c.h.b16 %v6796
    %v7423 = vunpack.c.l.b16 %v6797
    %v7424 = vunpack.c.h.b16 %v6797
    %v7425 = vunpack.c.l.b16 %v6798
    %v7426 = vunpack.c.h.b16 %v6798
    %v7427 = vunpack.c.l.b16 %v6799
    %v7428 = vunpack.c.h.b16 %v6799
    %v7429 = vunpack.c.l.b16 %v6800
    %v7430 = vunpack.c.h.b16 %v6800
    %v7431 = vunpack.c.l.b16 %v6801
    %v7432 = vunpack.c.h.b16 %v6801
    %v7433 = vunpack.c.l.b16 %v6802
    %v7434 = vunpack.c.h.b16 %v6802
    %v7435 = vunpack.c.l.b16 %v6803
    %v7436 = vunpack.c.h.b16 %v6803
    %v7437 = vunpack.c.l.b16 %v6804
    %v7438 = vunpack.c.h.b16 %v6804
    %v7439 = vunpack.c.l.b16 %v6805
    %v7440 = vunpack.c.h.b16 %v6805
    %v7441 = vunpack.c.l.b16 %v6806
    %v7442 = vunpack.c.h.b16 %v6806
    %v7443 = vunpack.c.l.b16 %v6807
    %v7444 = vunpack.c.h.b16 %v6807
    %v7445 = vunpack.c.l.b16 %v6808
    %v7446 = vunpack.c.h.b16 %v6808
    %v7447 = vunpack.c.l.b16 %v6809
    %v7448 = vunpack.c.h.b16 %v6809
    %v7449 = vunpack.c.l.b16 %v6810
    %v7450 = vunpack.c.h.b16 %v6810
    %v7451 = vunpack.c.l.b16 %v6811
    %v7452 = vunpack.c.h.b16 %v6811
    %v7453 = vunpack.c.l.b16 %v6812
    %v7454 = vunpack.c.h.b16 %v6812
    %v7455 = vunpack.c.l.b16 %v6813
    %v7456 = vunpack.c.h.b16 %v6813
    %v7457 = vunpack.c.l.b16 %v6814
    %v7458 = vunpack.c.h.b16 %v6814
    %v7459 = vunpack.c.l.b16 %v6815
    %v7460 = vunpack.c.h.b16 %v6815
    %v7461 = vunpack.c.l.b16 %v6816
    %v7462 = vunpack.c.h.b16 %v6816
    %v7463 = vunpack.c.l.b16 %v6817
    %v7464 = vunpack.c.h.b16 %v6817
    %v7465 = vunpack.c.l.b16 %v6818
    %v7466 = vunpack.c.h.b16 %v6818
    %v7467 = vunpack.c.l.b16 %v6819
    %v7468 = vunpack.c.h.b16 %v6819
    %v7469 = vunpack.c.l.b16 %v6820
    %v7470 = vunpack.c.h.b16 %v6820
    %v7471 = vunpack.c.l.b16 %v6821
    %v7472 = vunpack.c.h.b16 %v6821
    %v7473 = vunpack.c.l.b16 %v6822
    %v7474 = vunpack.c.h.b16 %v6822
    %v7475 = vunpack.c.l.b16 %v6823
    %v7476 = vunpack.c.h.b16 %v6823
    %v7477 = vunpack.c.l.b16 %v6824
    %v7478 = vunpack.c.h.b16 %v6824
    %v7479 = vunpack.c.l.b16 %v6825
    %v7480 = vunpack.c.h.b16 %v6825
    %v7481 = vunpack.c.l.b16 %v6826
    %v7482 = vunpack.c.h.b16 %v6826
    %v7483 = vunpack.c.l.b16 %v6827
    %v7484 = vunpack.c.h.b16 %v6827
    %v7485 = vunpack.c.l.b16 %v6828
    %v7486 = vunpack.c.h.b16 %v6828
    %v7487 = vunpack.c.l.b16 %v6829
    %v7488 = vunpack.c.h.b16 %v6829
    %v7489 = vunpack.c.l.b16 %v6830
    %v7490 = vunpack.c.h.b16 %v6830
    %v7491 = vunpack.c.l.b16 %v6831
    %v7492 = vunpack.c.h.b16 %v6831
    %v7493 = vunpack.c.l.b16 %v6832
    %v7494 = vunpack.c.h.b16 %v6832
    %v7495 = vunpack.c.l.b16 %v6833
    %v7496 = vunpack.c.h.b16 %v6833
    %v7497 = vunpack.c.l.b16 %v6834
    %v7498 = vunpack.c.h.b16 %v6834
    %v7499 = vunpack.c.l.b16 %v6835
    %v7500 = vunpack.c.h.b16 %v6835
    %v7501 = vunpack.c.l.b16 %v6836
    %v7502 = vunpack.c.h.b16 %v6836
    %v7503 = vunpack.c.l.b16 %v6837
    %v7504 = vunpack.c.h.b16 %v6837
    %v7505 = vunpack.c.l.b16 %v6838
    %v7506 = vunpack.c.h.b16 %v6838
    %v7507 = vunpack.c.l.b16 %v6839
    %v7508 = vunpack.c.h.b16 %v6839
    %v7509 = vunpack.c.l.b16 %v6840
    %v7510 = vunpack.c.h.b16 %v6840
    %v7511 = vunpack.c.l.b16 %v6841
    %v7512 = vunpack.c.h.b16 %v6841
    %v7513 = vunpack.c.l.b16 %v6842
    %v7514 = vunpack.c.h.b16 %v6842
    %v7515 = vunpack.c.l.b16 %v6843
    %v7516 = vunpack.c.h.b16 %v6843
    %v7517 = vunpack.c.l.b16 %v6844
    %v7518 = vunpack.c.h.b16 %v6844
    %v7519 = vunpack.c.l.b16 %v6845
    %v7520 = vunpack.c.h.b16 %v6845
    %v7521 = vunpack.c.l.b16 %v6846
    %v7522 = vunpack.c.h.b16 %v6846
    %v7523 = vunpack.c.l.b16 %v6847
    %v7524 = vunpack.c.h.b16 %v6847
    %v7525 = vunpack.c.l.b16 %v6848
    %v7526 = vunpack.c.h.b16 %v6848
    %v7527 = vunpack.c.l.b16 %v6849
    %v7528 = vunpack.c.h.b16 %v6849
    %v7529 = vunpack.c.l.b16 %v6850
    %v7530 = vunpack.c.h.b16 %v6850
    %v7531 = vunpack.c.l.b16 %v6851
    %v7532 = vunpack.c.h.b16 %v6851
    %v7533 = vunpack.c.l.b16 %v6852
    %v7534 = vunpack.c.h.b16 %v6852
    %v7535 = vunpack.c.l.b16 %v6853
    %v7536 = vunpack.c.h.b16 %v6853
    %v7537 = vunpack.c.l.b16 %v6854
    %v7538 = vunpack.c.h.b16 %v6854
    %v7539 = vunpack.c.l.b16 %v6855
    %v7540 = vunpack.c.h.b16 %v6855
    %v7541 = vunpack.c.l.b16 %v6856
    %v7542 = vunpack.c.h.b16 %v6856
    %v7543 = vunpack.c.l.b16 %v6857
    %v7544 = vunpack.c.h.b16 %v6857
    %v7545 = vunpack.c.l.b16 %v6858
    %v7546 = vunpack.c.h.b16 %v6858
    %v7547 = vunpack.c.l.b16 %v6859
    %v7548 = vunpack.c.h.b16 %v6859
    %v7549 = vunpack.c.l.b16 %v6860
    %v7550 = vunpack.c.h.b16 %v6860
    %v7551 = vunpack.c.l.b16 %v6861
    %v7552 = vunpack.c.h.b16 %v6861
    %v7553 = vunpack.c.l.b16 %v6862
    %v7554 = vunpack.c.h.b16 %v6862
    %v7555 = vunpack.c.l.b16 %v6863
    %v7556 = vunpack.c.h.b16 %v6863
    %v7557 = vunpack.c.l.b16 %v6864
    %v7558 = vunpack.c.h.b16 %v6864
    %v7559 = vunpack.c.l.b16 %v6865
    %v7560 = vunpack.c.h.b16 %v6865
    %v7561 = vunpack.c.l.b16 %v6866
    %v7562 = vunpack.c.h.b16 %v6866
    %v7563 = vunpack.c.l.b16 %v6867
    %v7564 = vunpack.c.h.b16 %v6867
    %v7565 = vunpack.c.l.b16 %v6868
    %v7566 = vunpack.c.h.b16 %v6868
    %v7567 = vunpack.c.l.b16 %v6869
    %v7568 = vunpack.c.h.b16 %v6869
    %v7569 = vunpack.c.l.b16 %v6870
    %v7570 = vunpack.c.h.b16 %v6870
    %v7571 = vunpack.c.l.b16 %v6871
    %v7572 = vunpack.c.h.b16 %v6871
    %v7573 = vunpack.c.l.b16 %v6872
    %v7574 = vunpack.c.h.b16 %v6872
    %v7575 = vunpack.c.l.b16 %v6873
    %v7576 = vunpack.c.h.b16 %v6873
    %v7577 = vunpack.c.l.b16 %v6874
    %v7578 = vunpack.c.h.b16 %v6874
    %v7579 = vunpack.c.l.b16 %v6875
    %v7580 = vunpack.c.h.b16 %v6875
    %v7581 = vunpack.c.l.b16 %v6876
    %v7582 = vunpack.c.h.b16 %v6876
    %v7583 = vunpack.c.l.b16 %v6877
    %v7584 = vunpack.c.h.b16 %v6877
    %v7585 = vunpack.c.l.b16 %v6878
    %v7586 = vunpack.c.h.b16 %v6878
    %v7587 = vunpack.c.l.b16 %v6879
    %v7588 = vunpack.c.h.b16 %v6879
    %v7589 = vunpack.c.l.b16 %v6880
    %v7590 = vunpack.c.h.b16 %v6880
    %v7591 = vunpack.c.l.b16 %v6881
    %v7592 = vunpack.c.h.b16 %v6881
    %v7593 = vunpack.c.l.b16 %v6882
    %v7594 = vunpack.c.h.b16 %v6882
    %v7595 = vunpack.c.l.b16 %v6883
    %v7596 = vunpack.c.h.b16 %v6883
    %v7597 = vunpack.c.l.b16 %v6884
    %v7598 = vunpack.c.h.b16 %v6884
    %v7599 = vunpack.c.l.b16 %v6885
    %v7600 = vunpack.c.h.b16 %v6885
    %v7601 = vunpack.c.l.b16 %v6886
    %v7602 = vunpack.c.h.b16 %v6886
    %v7603 = vunpack.c.l.b16 %v6887
    %v7604 = vunpack.c.h.b16 %v6887
    %v7605 = vunpack.c.l.b16 %v6888
    %v7606 = vunpack.c.h.b16 %v6888
    %v7607 = vunpack.c.l.b16 %v6889
    %v7608 = vunpack.c.h.b16 %v6889
    %v7609 = vunpack.c.l.b16 %v6890
    %v7610 = vunpack.c.h.b16 %v6890
    %v7611 = vunpack.c.l.b16 %v6891
    %v7612 = vunpack.c.h.b16 %v6891
    %v7613 = vunpack.c.l.b16 %v6892
    %v7614 = vunpack.c.h.b16 %v6892
    %v7615 = vunpack.c.l.b16 %v6893
    %v7616 = vunpack.c.h.b16 %v6893
    %v7617 = vunpack.c.l.b16 %v6894
    %v7618 = vunpack.c.h.b16 %v6894
    %v7619 = vunpack.c.l.b16 %v6895
    %v7620 = vunpack.c.h.b16 %v6895
    %v7621 = vunpack.c.l.b16 %v6896
    %v7622 = vunpack.c.h.b16 %v6896
    %v7623 = vunpack.c.l.b16 %v6897
    %v7624 = vunpack.c.h.b16 %v6897
    %v7625 = vunpack.c.l.b16 %v6898
    %v7626 = vunpack.c.h.b16 %v6898
    %v7627 = vunpack.c.l.b16 %v6899
    %v7628 = vunpack.c.h.b16 %v6899
    %v7629 = vunpack.c.l.b16 %v6900
    %v7630 = vunpack.c.h.b16 %v6900
    %v7631 = vunpack.c.l.b16 %v6901
    %v7632 = vunpack.c.h.b16 %v6901
    %v7633 = vunpack.c.l.b16 %v6902
    %v7634 = vunpack.c.h.b16 %v6902
    %v7635 = vunpack.c.l.b16 %v6903
    %v7636 = vunpack.c.h.b16 %v6903
    %v7637 = vunpack.c.l.b16 %v6904
    %v7638 = vunpack.c.h.b16 %v6904
    %v7639 = vunpack.c.l.b16 %v6905
    %v7640 = vunpack.c.h.b16 %v6905
    %v7641 = vunpack.c.l.b16 %v6906
    %v7642 = vunpack.c.h.b16 %v6906
    %v7643 = vunpack.c.l.b16 %v6907
    %v7644 = vunpack.c.h.b16 %v6907
    %v7645 = vunpack.c.l.b16 %v6908
    %v7646 = vunpack.c.h.b16 %v6908
    %v7647 = vunpack.c.l.b16 %v6909
    %v7648 = vunpack.c.h.b16 %v6909
    %v7649 = vunpack.c.l.b16 %v6910
    %v7650 = vunpack.c.h.b16 %v6910
    %v7651 = vunpack.c.l.b16 %v6911
    %v7652 = vunpack.c.h.b16 %v6911
    %v7653 = vunpack.c.l.b16 %v6912
    %v7654 = vunpack.c.h.b16 %v6912
    %v7655 = vunpack.c.l.b16 %v6913
    %v7656 = vunpack.c.h.b16 %v6913
    %v7657 = vunpack.c.l.b16 %v6914
    %v7658 = vunpack.c.h.b16 %v6914
    %v7659 = vunpack.c.l.b16 %v6915
    %v7660 = vunpack.c.h.b16 %v6915
    %v7661 = vunpack.c.l.b16 %v6916
    %v7662 = vunpack.c.h.b16 %v6916
    %v7663 = vunpack.c.l.b16 %v6917
    %v7664 = vunpack.c.h.b16 %v6917
    %v7665 = vunpack.c.l.b16 %v6918
    %v7666 = vunpack.c.h.b16 %v6918
    %v7667 = vunpack.c.l.b16 %v6919
    %v7668 = vunpack.c.h.b16 %v6919
    %v7669 = vunpack.c.l.b16 %v6920
    %v7670 = vunpack.c.h.b16 %v6920
    %v7671 = vunpack.c.l.b16 %v6921
    %v7672 = vunpack.c.h.b16 %v6921
    %v7673 = vunpack.c.l.b16 %v6922
    %v7674 = vunpack.c.h.b16 %v6922
    %v7675 = vunpack.c.l.b16 %v6923
    %v7676 = vunpack.c.h.b16 %v6923
    %v7677 = vunpack.c.l.b16 %v6924
    %v7678 = vunpack.c.h.b16 %v6924
    %v7679 = vunpack.c.l.b16 %v6925
    %v7680 = vunpack.c.h.b16 %v6925
    %v7681 = vunpack.c.l.b16 %v6926
    %v7682 = vunpack.c.h.b16 %v6926
    %v7683 = vunpack.c.l.b16 %v6927
    %v7684 = vunpack.c.h.b16 %v6927
    %v7685 = vunpack.c.l.b16 %v6928
    %v7686 = vunpack.c.h.b16 %v6928
    %v7687 = vunpack.c.l.b16 %v6929
    %v7688 = vunpack.c.h.b16 %v6929
    %v7689 = vunpack.c.l.b16 %v6930
    %v7690 = vunpack.c.h.b16 %v6930
    %v7691 = vunpack.c.l.b16 %v6931
    %v7692 = vunpack.c.h.b16 %v6931
    %v7693 = vunpack.c.l.b16 %v6932
    %v7694 = vunpack.c.h.b16 %v6932
    %v7695 = vunpack.c.l.b16 %v6933
    %v7696 = vunpack.c.h.b16 %v6933
    %v7697 = vunpack.c.l.b16 %v6934
    %v7698 = vunpack.c.h.b16 %v6934
    %v7699 = vunpack.c.l.b16 %v6935
    %v7700 = vunpack.c.h.b16 %v6935
    %v7701 = vunpack.c.l.b16 %v6936
    %v7702 = vunpack.c.h.b16 %v6936
    %v7703 = vunpack.c.l.b16 %v6937
    %v7704 = vunpack.c.h.b16 %v6937
    %v7705 = vunpack.c.l.b16 %v6938
    %v7706 = vunpack.c.h.b16 %v6938
    %v7707 = vunpack.c.l.b16 %v6939
    %v7708 = vunpack.c.h.b16 %v6939
    %v7709 = vunpack.c.l.b16 %v6940
    %v7710 = vunpack.c.h.b16 %v6940
    %v7711 = vunpack.c.l.b16 %v6941
    %v7712 = vunpack.c.h.b16 %v6941
    %v7713 = vunpack.c.l.b16 %v6942
    %v7714 = vunpack.c.h.b16 %v6942
    %v7715 = vunpack.c.l.b16 %v6943
    %v7716 = vunpack.c.h.b16 %v6943
    %v7717 = vunpack.c.l.b16 %v6944
    %v7718 = vunpack.c.h.b16 %v6944
    %v7719 = vunpack.c.l.b16 %v6945
    %v7720 = vunpack.c.h.b16 %v6945
    %v7721 = vunpack.c.l.b16 %v6946
    %v7722 = vunpack.c.h.b16 %v6946
    %v7723 = vunpack.c.l.b16 %v6947
    %v7724 = vunpack.c.h.b16 %v6947
    %v7725 = vunpack.c.l.b16 %v6948
    %v7726 = vunpack.c.h.b16 %v6948
    %v7727 = vunpack.c.l.b16 %v6949
    %v7728 = vunpack.c.h.b16 %v6949
    %v7729 = vunpack.c.l.b16 %v6950
    %v7730 = vunpack.c.h.b16 %v6950
    %v7731 = vunpack.c.l.b16 %v6951
    %v7732 = vunpack.c.h.b16 %v6951
    %v7733 = vunpack.c.l.b16 %v6952
    %v7734 = vunpack.c.h.b16 %v6952
    %v7735 = vunpack.c.l.b16 %v6953
    %v7736 = vunpack.c.h.b16 %v6953
    %v7737 = vunpack.c.l.b16 %v6954
    %v7738 = vunpack.c.h.b16 %v6954
    %v7739 = vunpack.c.l.b16 %v6955
    %v7740 = vunpack.c.h.b16 %v6955
    %v7741 = vunpack.c.l.b16 %v6956
    %v7742 = vunpack.c.h.b16 %v6956
    %v7743 = vunpack.c.l.b16 %v6957
    %v7744 = vunpack.c.h.b16 %v6957
    %v7745 = vunpack.c.l.b16 %v6958
    %v7746 = vunpack.c.h.b16 %v6958
    %v7747 = vunpack.c.l.b16 %v6959
    %v7748 = vunpack.c.h.b16 %v6959
    %v7749 = vunpack.c.l.b16 %v6960
    %v7750 = vunpack.c.h.b16 %v6960
    %v7751 = vpack.c.b16 %v7243, %v7239
    %v7752 = vpack.c.b16 %v7244, %v7240
    %v7753 = vpack.c.b16 %v7245, %v7241
    %v7754 = vpack.c.b16 %v7246, %v7242
    %v7755 = vpack.c.b16 %v7251, %v7247
    %v7756 = vpack.c.b16 %v7252, %v7248
    %v7757 = vpack.c.b16 %v7253, %v7249
    %v7758 = vpack.c.b16 %v7254, %v7250
    %v7759 = vpack.c.b16 %v7259, %v7255
    %v7760 = vpack.c.b16 %v7260, %v7256
    %v7761 = vpack.c.b16 %v7261, %v7257
    %v7762 = vpack.c.b16 %v7262, %v7258
    %v7763 = vpack.c.b16 %v7267, %v7263
    %v7764 = vpack.c.b16 %v7268, %v7264
    %v7765 = vpack.c.b16 %v7269, %v7265
    %v7766 = vpack.c.b16 %v7270, %v7266
    %v7767 = vpack.c.b16 %v7275, %v7271
    %v7768 = vpack.c.b16 %v7276, %v7272
    %v7769 = vpack.c.b16 %v7277, %v7273
    %v7770 = vpack.c.b16 %v7278, %v7274
    %v7771 = vpack.c.b16 %v7283, %v7279
    %v7772 = vpack.c.b16 %v7284, %v7280
    %v7773 = vpack.c.b16 %v7285, %v7281
    %v7774 = vpack.c.b16 %v7286, %v7282
    %v7775 = vpack.c.b16 %v7291, %v7287
    %v7776 = vpack.c.b16 %v7292, %v7288
    %v7777 = vpack.c.b16 %v7293, %v7289
    %v7778 = vpack.c.b16 %v7294, %v7290
    %v7779 = vpack.c.b16 %v7299, %v7295
    %v7780 = vpack.c.b16 %v7300, %v7296
    %v7781 = vpack.c.b16 %v7301, %v7297
    %v7782 = vpack.c.b16 %v7302, %v7298
    %v7783 = vpack.c.b16 %v7307, %v7303
    %v7784 = vpack.c.b16 %v7308, %v7304
    %v7785 = vpack.c.b16 %v7309, %v7305
    %v7786 = vpack.c.b16 %v7310, %v7306
    %v7787 = vpack.c.b16 %v7315, %v7311
    %v7788 = vpack.c.b16 %v7316, %v7312
    %v7789 = vpack.c.b16 %v7317, %v7313
    %v7790 = vpack.c.b16 %v7318, %v7314
    %v7791 = vpack.c.b16 %v7323, %v7319
    %v7792 = vpack.c.b16 %v7324, %v7320
    %v7793 = vpack.c.b16 %v7325, %v7321
    %v7794 = vpack.c.b16 %v7326, %v7322
    %v7795 = vpack.c.b16 %v7331, %v7327
    %v7796 = vpack.c.b16 %v7332, %v7328
    %v7797 = vpack.c.b16 %v7333, %v7329
    %v7798 = vpack.c.b16 %v7334, %v7330
    %v7799 = vpack.c.b16 %v7339, %v7335
    %v7800 = vpack.c.b16 %v7340, %v7336
    %v7801 = vpack.c.b16 %v7341, %v7337
    %v7802 = vpack.c.b16 %v7342, %v7338
    %v7803 = vpack.c.b16 %v7347, %v7343
    %v7804 = vpack.c.b16 %v7348, %v7344
    %v7805 = vpack.c.b16 %v7349, %v7345
    %v7806 = vpack.c.b16 %v7350, %v7346
    %v7807 = vpack.c.b16 %v7355, %v7351
    %v7808 = vpack.c.b16 %v7356, %v7352
    %v7809 = vpack.c.b16 %v7357, %v7353
    %v7810 = vpack.c.b16 %v7358, %v7354
    %v7811 = vpack.c.b16 %v7363, %v7359
    %v7812 = vpack.c.b16 %v7364, %v7360
    %v7813 = vpack.c.b16 %v7365, %v7361
    %v7814 = vpack.c.b16 %v7366, %v7362
    %v7815 = vpack.c.b16 %v7371, %v7367
    %v7816 = vpack.c.b16 %v7372, %v7368
    %v7817 = vpack.c.b16 %v7373, %v7369
    %v7818 = vpack.c.b16 %v7374, %v7370
    %v7819 = vpack.c.b16 %v7379, %v7375
    %v7820 = vpack.c.b16 %v7380, %v7376
    %v7821 = vpack.c.b16 %v7381, %v7377
    %v7822 = vpack.c.b16 %v7382, %v7378
    %v7823 = vpack.c.b16 %v7387, %v7383
    %v7824 = vpack.c.b16 %v7388, %v7384
    %v7825 = vpack.c.b16 %v7389, %v7385
    %v7826 = vpack.c.b16 %v7390, %v7386
    %v7827 = vpack.c.b16 %v7395, %v7391
    %v7828 = vpack.c.b16 %v7396, %v7392
    %v7829 = vpack.c.b16 %v7397, %v7393
    %v7830 = vpack.c.b16 %v7398, %v7394
    %v7831 = vpack.c.b16 %v7403, %v7399
    %v7832 = vpack.c.b16 %v7404, %v7400
    %v7833 = vpack.c.b16 %v7405, %v7401
    %v7834 = vpack.c.b16 %v7406, %v7402
    %v7835 = vpack.c.b16 %v7411, %v7407
    %v7836 = vpack.c.b16 %v7412, %v7408
    %v7837 = vpack.c.b16 %v7413, %v7409
    %v7838 = vpack.c.b16 %v7414, %v7410
    %v7839 = vpack.c.b16 %v7419, %v7415
    %v7840 = vpack.c.b16 %v7420, %v7416
    %v7841 = vpack.c.b16 %v7421, %v7417
    %v7842 = vpack.c.b16 %v7422, %v7418
    %v7843 = vpack.c.b16 %v7427, %v7423
    %v7844 = vpack.c.b16 %v7428, %v7424
    %v7845 = vpack.c.b16 %v7429, %v7425
    %v7846 = vpack.c.b16 %v7430, %v7426
    %v7847 = vpack.c.b16 %v7435, %v7431
    %v7848 = vpack.c.b16 %v7436, %v7432
    %v7849 = vpack.c.b16 %v7437, %v7433
    %v7850 = vpack.c.b16 %v7438, %v7434
    %v7851 = vpack.c.b16 %v7443, %v7439
    %v7852 = vpack.c.b16 %v7444, %v7440
    %v7853 = vpack.c.b16 %v7445, %v7441
    %v7854 = vpack.c.b16 %v7446, %v7442
    %v7855 = vpack.c.b16 %v7451, %v7447
    %v7856 = vpack.c.b16 %v7452, %v7448
    %v7857 = vpack.c.b16 %v7453, %v7449
    %v7858 = vpack.c.b16 %v7454, %v7450
    %v7859 = vpack.c.b16 %v7459, %v7455
    %v7860 = vpack.c.b16 %v7460, %v7456
    %v7861 = vpack.c.b16 %v7461, %v7457
    %v7862 = vpack.c.b16 %v7462, %v7458
    %v7863 = vpack.c.b16 %v7467, %v7463
    %v7864 = vpack.c.b16 %v7468, %v7464
    %v7865 = vpack.c.b16 %v7469, %v7465
    %v7866 = vpack.c.b16 %v7470, %v7466
    %v7867 = vpack.c.b16 %v7475, %v7471
    %v7868 = vpack.c.b16 %v7476, %v7472
    %v7869 = vpack.c.b16 %v7477, %v7473
    %v7870 = vpack.c.b16 %v7478, %v7474
    %v7871 = vpack.c.b16 %v7483, %v7479
    %v7872 = vpack.c.b16 %v7484, %v7480
    %v7873 = vpack.c.b16 %v7485, %v7481
    %v7874 = vpack.c.b16 %v7486, %v7482
    %v7875 = vpack.c.b16 %v7491, %v7487
    %v7876 = vpack.c.b16 %v7492, %v7488
    %v7877 = vpack.c.b16 %v7493, %v7489
    %v7878 = vpack.c.b16 %v7494, %v7490
    %v7879 = vpack.c.b16 %v7499, %v7495
    %v7880 = vpack.c.b16 %v7500, %v7496
    %v7881 = vpack.c.b16 %v7501, %v7497
    %v7882 = vpack.c.b16 %v7502, %v7498
    %v7883 = vpack.c.b16 %v7507, %v7503
    %v7884 = vpack.c.b16 %v7508, %v7504
    %v7885 = vpack.c.b16 %v7509, %v7505
    %v7886 = vpack.c.b16 %v7510, %v7506
    %v7887 = vpack.c.b16 %v7515, %v7511
    %v7888 = vpack.c.b16 %v7516, %v7512
    %v7889 = vpack.c.b16 %v7517, %v7513
    %v7890 = vpack.c.b16 %v7518, %v7514
    %v7891 = vpack.c.b16 %v7523, %v7519
    %v7892 = vpack.c.b16 %v7524, %v7520
    %v7893 = vpack.c.b16 %v7525, %v7521
    %v7894 = vpack.c.b16 %v7526, %v7522
    %v7895 = vpack.c.b16 %v7531, %v7527
    %v7896 = vpack.c.b16 %v7532, %v7528
    %v7897 = vpack.c.b16 %v7533, %v7529
    %v7898 = vpack.c.b16 %v7534, %v7530
    %v7899 = vpack.c.b16 %v7539, %v7535
    %v7900 = vpack.c.b16 %v7540, %v7536
    %v7901 = vpack.c.b16 %v7541, %v7537
    %v7902 = vpack.c.b16 %v7542, %v7538
    %v7903 = vpack.c.b16 %v7547, %v7543
    %v7904 = vpack.c.b16 %v7548, %v7544
    %v7905 = vpack.c.b16 %v7549, %v7545
    %v7906 = vpack.c.b16 %v7550, %v7546
    %v7907 = vpack.c.b16 %v7555, %v7551
    %v7908 = vpack.c.b16 %v7556, %v7552
    %v7909 = vpack.c.b16 %v7557, %v7553
    %v7910 = vpack.c.b16 %v7558, %v7554
    %v7911 = vpack.c.b16 %v7563, %v7559
    %v7912 = vpack.c.b16 %v7564, %v7560
    %v7913 = vpack.c.b16 %v7565, %v7561
    %v7914 = vpack.c.b16 %v7566, %v7562
    %v7915 = vpack.c.b16 %v7571, %v7567
    %v7916 = vpack.c.b16 %v7572, %v7568
    %v7917 = vpack.c.b16 %v7573, %v7569
    %v7918 = vpack.c.b16 %v7574, %v7570
    %v7919 = vpack.c.b16 %v7579, %v7575
    %v7920 = vpack.c.b16 %v7580, %v7576
    %v7921 = vpack.c.b16 %v7581, %v7577
    %v7922 = vpack.c.b16 %v7582, %v7578
    %v7923 = vpack.c.b16 %v7587, %v7583
    %v7924 = vpack.c.b16 %v7588, %v7584
    %v7925 = vpack.c.b16 %v7589, %v7585
    %v7926 = vpack.c.b16 %v7590, %v7586
    %v7927 = vpack.c.b16 %v7595, %v7591
    %v7928 = vpack.c.b16 %v7596, %v7592
    %v7929 = vpack.c.b16 %v7597, %v7593
    %v7930 = vpack.c.b16 %v7598, %v7594
    %v7931 = vpack.c.b16 %v7603, %v7599
    %v7932 = vpack.c.b16 %v7604, %v7600
    %v7933 = vpack.c.b16 %v7605, %v7601
    %v7934 = vpack.c.b16 %v7606, %v7602
    %v7935 = vpack.c.b16 %v7611, %v7607
    %v7936 = vpack.c.b16 %v7612, %v7608
    %v7937 = vpack.c.b16 %v7613, %v7609
    %v7938 = vpack.c.b16 %v7614, %v7610
    %v7939 = vpack.c.b16 %v7619, %v7615
    %v7940 = vpack.c.b16 %v7620, %v7616
    %v7941 = vpack.c.b16 %v7621, %v7617
    %v7942 = vpack.c.b16 %v7622, %v7618
    %v7943 = vpack.c.b16 %v7627, %v7623
    %v7944 = vpack.c.b16 %v7628, %v7624
    %v7945 = vpack.c.b16 %v7629, %v7625
    %v7946 = vpack.c.b16 %v7630, %v7626
    %v7947 = vpack.c.b16 %v7635, %v7631
    %v7948 = vpack.c.b16 %v7636, %v7632
    %v7949 = vpack.c.b16 %v7637, %v7633
    %v7950 = vpack.c.b16 %v7638, %v7634
    %v7951 = vpack.c.b16 %v7643, %v7639
    %v7952 = vpack.c.b16 %v7644, %v7640
    %v7953 = vpack.c.b16 %v7645, %v7641
    %v7954 = vpack.c.b16 %v7646, %v7642
    %v7955 = vpack.c.b16 %v7651, %v7647
    %v7956 = vpack.c.b16 %v7652, %v7648
    %v7957 = vpack.c.b16 %v7653, %v7649
    %v7958 = vpack.c.b16 %v7654, %v7650
    %v7959 = vpack.c.b16 %v7659, %v7655
    %v7960 = vpack.c.b16 %v7660, %v7656
    %v7961 = vpack.c.b16 %v7661, %v7657
    %v7962 = vpack.c.b16 %v7662, %v7658
    %v7963 = vpack.c.b16 %v7667, %v7663
    %v7964 = vpack.c.b16 %v7668, %v7664
    %v7965 = vpack.c.b16 %v7669, %v7665
    %v7966 = vpack.c.b16 %v7670, %v7666
    %v7967 = vpack.c.b16 %v7675, %v7671
    %v7968 = vpack.c.b16 %v7676, %v7672
    %v7969 = vpack.c.b16 %v7677, %v7673
    %v7970 = vpack.c.b16 %v7678, %v7674
    %v7971 = vpack.c.b16 %v7683, %v7679
    %v7972 = vpack.c.b16 %v7684, %v7680
    %v7973 = vpack.c.b16 %v7685, %v7681
    %v7974 = vpack.c.b16 %v7686, %v7682
    %v7975 = vpack.c.b16 %v7691, %v7687
    %v7976 = vpack.c.b16 %v7692, %v7688
    %v7977 = vpack.c.b16 %v7693, %v7689
    %v7978 = vpack.c.b16 %v7694, %v7690
    %v7979 = vpack.c.b16 %v7699, %v7695
    %v7980 = vpack.c.b16 %v7700, %v7696
    %v7981 = vpack.c.b16 %v7701, %v7697
    %v7982 = vpack.c.b16 %v7702, %v7698
    %v7983 = vpack.c.b16 %v7707, %v7703
    %v7984 = vpack.c.b16 %v7708, %v7704
    %v7985 = vpack.c.b16 %v7709, %v7705
    %v7986 = vpack.c.b16 %v7710, %v7706
    %v7987 = vpack.c.b16 %v7715, %v7711
    %v7988 = vpack.c.b16 %v7716, %v7712
    %v7989 = vpack.c.b16 %v7717, %v7713
    %v7990 = vpack.c.b16 %v7718, %v7714
    %v7991 = vpack.c.b16 %v7723, %v7719
    %v7992 = vpack.c.b16 %v7724, %v7720
    %v7993 = vpack.c.b16 %v7725, %v7721
    %v7994 = vpack.c.b16 %v7726, %v7722
    %v7995 = vpack.c.b16 %v7731, %v7727
    %v7996 = vpack.c.b16 %v7732, %v7728
    %v7997 = vpack.c.b16 %v7733, %v7729
    %v7998 = vpack.c.b16 %v7734, %v7730
    %v7999 = vpack.c.b16 %v7739, %v7735
    %v8000 = vpack.c.b16 %v7740, %v7736
    %v8001 = vpack.c.b16 %v7741, %v7737
    %v8002 = vpack.c.b16 %v7742, %v7738
    %v8003 = vpack.c.b16 %v7747, %v7743
    %v8004 = vpack.c.b16 %v7748, %v7744
    %v8005 = vpack.c.b16 %v7749, %v7745
    %v8006 = vpack.c.b16 %v7750, %v7746
    %8263 = vmatprep.subr.bf16.mxu0 %v7752
    %8264 = vmatpush1.bf16.msra.mxu0 %v7751
    %8265 = vmatprep.subr.bf16.mxu0 %v7756
    %8266 = vmatpush1.bf16.msra.mxu0 %v7755
    %8267 = vmatprep.subr.bf16.mxu0 %v7760
    %8268 = vmatpush1.bf16.msra.mxu0 %v7759
    %8269 = vmatprep.subr.bf16.mxu0 %v7764
    %8270 = vmatpush1.bf16.msra.mxu0 %v7763
    %8271 = vmatprep.subr.bf16.mxu0 %v7768
    %8272 = vmatpush1.bf16.msra.mxu0 %v7767
    %8273 = vmatprep.subr.bf16.mxu0 %v7772
    %8274 = vmatpush1.bf16.msra.mxu0 %v7771
    %8275 = vmatprep.subr.bf16.mxu0 %v7776
    %8276 = vmatpush1.bf16.msra.mxu0 %v7775
    %8277 = vmatprep.subr.bf16.mxu0 %v7780
    %8278 = vmatpush1.bf16.msra.mxu0 %v7779
    %8279 = vmatprep.subr.bf16.mxu0 %v7784
    %8280 = vmatpush1.bf16.msra.mxu0 %v7783
    %8281 = vmatprep.subr.bf16.mxu0 %v7788
    %8282 = vmatpush1.bf16.msra.mxu0 %v7787
    %8283 = vmatprep.subr.bf16.mxu0 %v7792
    %8284 = vmatpush1.bf16.msra.mxu0 %v7791
    %8285 = vmatprep.subr.bf16.mxu0 %v7796
    %8286 = vmatpush1.bf16.msra.mxu0 %v7795
    %8287 = vmatprep.subr.bf16.mxu0 %v7800
    %8288 = vmatpush1.bf16.msra.mxu0 %v7799
    %8289 = vmatprep.subr.bf16.mxu0 %v7804
    %8290 = vmatpush1.bf16.msra.mxu0 %v7803
    %8291 = vmatprep.subr.bf16.mxu0 %v7808
    %8292 = vmatpush1.bf16.msra.mxu0 %v7807
    %8293 = vmatprep.subr.bf16.mxu0 %v7812
    %8294 = vmatpush1.bf16.msra.mxu0 %v7811
    %8295 = vmatprep.mubr.bf16.mxu0 %v6698
    %8296 = vmatmul.mubr.bf16.gmra.mrb[0].mxu0 %v6697
    %v8297 = vpop.f32.mrb[0].mxu0
    %v8298 = vadd.f32 %v6966, %v8297
    %v8299 = vpop.f32.mrb[0].mxu0
    %v8300 = vadd.f32 %v6970, %v8299
    %v8301 = vpop.f32.mrb[0].mxu0
    %v8302 = vpop.f32.mrb[0].mxu0
    %8303 = vdwg.mxu0
    %8304 = vmatprep.subr.bf16.mxu0 %v7816
    %8305 = vmatpush1.bf16.msra.mxu0 %v7815
    %8306 = vmatprep.subr.bf16.mxu0 %v7820
    %8307 = vmatpush1.bf16.msra.mxu0 %v7819
    %8308 = vmatprep.subr.bf16.mxu0 %v7824
    %8309 = vmatpush1.bf16.msra.mxu0 %v7823
    %8310 = vmatprep.subr.bf16.mxu0 %v7828
    %8311 = vmatpush1.bf16.msra.mxu0 %v7827
    %8312 = vmatprep.subr.bf16.mxu0 %v7832
    %8313 = vmatpush1.bf16.msra.mxu0 %v7831
    %8314 = vmatprep.subr.bf16.mxu0 %v7836
    %8315 = vmatpush1.bf16.msra.mxu0 %v7835
    %8316 = vmatprep.subr.bf16.mxu0 %v7840
    %8317 = vmatpush1.bf16.msra.mxu0 %v7839
    %8318 = vmatprep.subr.bf16.mxu0 %v7844
    %8319 = vmatpush1.bf16.msra.mxu0 %v7843
    %8320 = vmatprep.subr.bf16.mxu0 %v7848
    %8321 = vmatpush1.bf16.msra.mxu0 %v7847
    %8322 = vmatprep.subr.bf16.mxu0 %v7852
    %8323 = vmatpush1.bf16.msra.mxu0 %v7851
    %8324 = vmatprep.subr.bf16.mxu0 %v7856
    %8325 = vmatpush1.bf16.msra.mxu0 %v7855
    %8326 = vmatprep.subr.bf16.mxu0 %v7860
    %8327 = vmatpush1.bf16.msra.mxu0 %v7859
    %8328 = vmatprep.subr.bf16.mxu0 %v7864
    %8329 = vmatpush1.bf16.msra.mxu0 %v7863
    %8330 = vmatprep.subr.bf16.mxu0 %v7868
    %8331 = vmatpush1.bf16.msra.mxu0 %v7867
    %8332 = vmatprep.subr.bf16.mxu0 %v7872
    %8333 = vmatpush1.bf16.msra.mxu0 %v7871
    %8334 = vmatprep.subr.bf16.mxu0 %v7876
    %8335 = vmatpush1.bf16.msra.mxu0 %v7875
    %8336 = vmatprep.mubr.bf16.mxu0 %v6700
    %8337 = vmatmul.mubr.bf16.gmra.mrb[0].mxu0 %v6699
    %v8338 = vpop.f32.mrb[0].mxu0
    %v8339 = vadd.f32 %v8298, %v8338
    %v8340 = vpop.f32.mrb[0].mxu0
    %v8341 = vadd.f32 %v8300, %v8340
    %v8342 = vpop.f32.mrb[0].mxu0
    %v8343 = vpop.f32.mrb[0].mxu0
    %8344 = vdwg.mxu0
    %8345 = vmatprep.subr.bf16.mxu0 %v7880
    %8346 = vmatpush1.bf16.msra.mxu0 %v7879
    %8347 = vmatprep.subr.bf16.mxu0 %v7884
    %8348 = vmatpush1.bf16.msra.mxu0 %v7883
    %8349 = vmatprep.subr.bf16.mxu0 %v7888
    %8350 = vmatpush1.bf16.msra.mxu0 %v7887
    %8351 = vmatprep.subr.bf16.mxu0 %v7892
    %8352 = vmatpush1.bf16.msra.mxu0 %v7891
    %8353 = vmatprep.subr.bf16.mxu0 %v7896
    %8354 = vmatpush1.bf16.msra.mxu0 %v7895
    %8355 = vmatprep.subr.bf16.mxu0 %v7900
    %8356 = vmatpush1.bf16.msra.mxu0 %v7899
    %8357 = vmatprep.subr.bf16.mxu0 %v7904
    %8358 = vmatpush1.bf16.msra.mxu0 %v7903
    %8359 = vmatprep.subr.bf16.mxu0 %v7908
    %8360 = vmatpush1.bf16.msra.mxu0 %v7907
    %8361 = vmatprep.subr.bf16.mxu0 %v7912
    %8362 = vmatpush1.bf16.msra.mxu0 %v7911
    %8363 = vmatprep.subr.bf16.mxu0 %v7916
    %8364 = vmatpush1.bf16.msra.mxu0 %v7915
    %8365 = vmatprep.subr.bf16.mxu0 %v7920
    %8366 = vmatpush1.bf16.msra.mxu0 %v7919
    %8367 = vmatprep.subr.bf16.mxu0 %v7924
    %8368 = vmatpush1.bf16.msra.mxu0 %v7923
    %8369 = vmatprep.subr.bf16.mxu0 %v7928
    %8370 = vmatpush1.bf16.msra.mxu0 %v7927
    %8371 = vmatprep.subr.bf16.mxu0 %v7932
    %8372 = vmatpush1.bf16.msra.mxu0 %v7931
    %8373 = vmatprep.subr.bf16.mxu0 %v7936
    %8374 = vmatpush1.bf16.msra.mxu0 %v7935
    %8375 = vmatprep.subr.bf16.mxu0 %v7940
    %8376 = vmatpush1.bf16.msra.mxu0 %v7939
    %8377 = vmatprep.mubr.bf16.mxu0 %v6702
    %8378 = vmatmul.mubr.bf16.gmra.mrb[0].mxu0 %v6701
    %v8379 = vpop.f32.mrb[0].mxu0
    %v8380 = vadd.f32 %v8339, %v8379
    %v8381 = vpop.f32.mrb[0].mxu0
    %v8382 = vadd.f32 %v8341, %v8381
    %v8383 = vpop.f32.mrb[0].mxu0
    %v8384 = vpop.f32.mrb[0].mxu0
    %8385 = vdwg.mxu0
    %8386 = vmatprep.subr.bf16.mxu0 %v7944
    %8387 = vmatpush1.bf16.msra.mxu0 %v7943
    %8388 = vmatprep.subr.bf16.mxu0 %v7948
    %8389 = vmatpush1.bf16.msra.mxu0 %v7947
    %8390 = vmatprep.subr.bf16.mxu0 %v7952
    %8391 = vmatpush1.bf16.msra.mxu0 %v7951
    %8392 = vmatprep.subr.bf16.mxu0 %v7956
    %8393 = vmatpush1.bf16.msra.mxu0 %v7955
    %8394 = vmatprep.subr.bf16.mxu0 %v7960
    %8395 = vmatpush1.bf16.msra.mxu0 %v7959
    %8396 = vmatprep.subr.bf16.mxu0 %v7964
    %8397 = vmatpush1.bf16.msra.mxu0 %v7963
    %8398 = vmatprep.subr.bf16.mxu0 %v7968
    %8399 = vmatpush1.bf16.msra.mxu0 %v7967
    %8400 = vmatprep.subr.bf16.mxu0 %v7972
    %8401 = vmatpush1.bf16.msra.mxu0 %v7971
    %8402 = vmatprep.subr.bf16.mxu0 %v7976
    %8403 = vmatpush1.bf16.msra.mxu0 %v7975
    %8404 = vmatprep.subr.bf16.mxu0 %v7980
    %8405 = vmatpush1.bf16.msra.mxu0 %v7979
    %8406 = vmatprep.subr.bf16.mxu0 %v7984
    %8407 = vmatpush1.bf16.msra.mxu0 %v7983
    %8408 = vmatprep.subr.bf16.mxu0 %v7988
    %8409 = vmatpush1.bf16.msra.mxu0 %v7987
    %8410 = vmatprep.subr.bf16.mxu0 %v7992
    %8411 = vmatpush1.bf16.msra.mxu0 %v7991
    %8412 = vmatprep.subr.bf16.mxu0 %v7996
    %8413 = vmatpush1.bf16.msra.mxu0 %v7995
    %8414 = vmatprep.subr.bf16.mxu0 %v8000
    %8415 = vmatpush1.bf16.msra.mxu0 %v7999
    %8416 = vmatprep.subr.bf16.mxu0 %v8004
    %8417 = vmatpush1.bf16.msra.mxu0 %v8003
    %8418 = vmatprep.mubr.bf16.mxu0 %v6704
    %8419 = vmatmul.mubr.bf16.gmra.mrb[0].mxu0 %v6703
    %v8420 = vpop.f32.mrb[0].mxu0
    %v8421 = vadd.f32 %v8380, %v8420
    %v8422 = vpop.f32.mrb[0].mxu0
    %v8423 = vadd.f32 %v8382, %v8422
    %v8424 = vpop.f32.mrb[0].mxu0
    %v8425 = vpop.f32.mrb[0].mxu0
    %8426 = vdwg.mxu0
    %8427 = vmatprep.subr.bf16.mxu0 %v7754
    %8428 = vmatpush1.bf16.msra.mxu0 %v7753
    %8429 = vmatprep.subr.bf16.mxu0 %v7758
    %8430 = vmatpush1.bf16.msra.mxu0 %v7757
    %8431 = vmatprep.subr.bf16.mxu0 %v7762
    %8432 = vmatpush1.bf16.msra.mxu0 %v7761
    %8433 = vmatprep.subr.bf16.mxu0 %v7766
    %8434 = vmatpush1.bf16.msra.mxu0 %v7765
    %8435 = vmatprep.subr.bf16.mxu0 %v7770
    %8436 = vmatpush1.bf16.msra.mxu0 %v7769
    %8437 = vmatprep.subr.bf16.mxu0 %v7774
    %8438 = vmatpush1.bf16.msra.mxu0 %v7773
    %8439 = vmatprep.subr.bf16.mxu0 %v7778
    %8440 = vmatpush1.bf16.msra.mxu0 %v7777
    %8441 = vmatprep.subr.bf16.mxu0 %v7782
    %8442 = vmatpush1.bf16.msra.mxu0 %v7781
    %8443 = vmatprep.subr.bf16.mxu0 %v7786
    %8444 = vmatpush1.bf16.msra.mxu0 %v7785
    %8445 = vmatprep.subr.bf16.mxu0 %v7790
    %8446 = vmatpush1.bf16.msra.mxu0 %v7789
    %8447 = vmatprep.subr.bf16.mxu0 %v7794
    %8448 = vmatpush1.bf16.msra.mxu0 %v7793
    %8449 = vmatprep.subr.bf16.mxu0 %v7798
    %8450 = vmatpush1.bf16.msra.mxu0 %v7797
    %8451 = vmatprep.subr.bf16.mxu0 %v7802
    %8452 = vmatpush1.bf16.msra.mxu0 %v7801
    %8453 = vmatprep.subr.bf16.mxu0 %v7806
    %8454 = vmatpush1.bf16.msra.mxu0 %v7805
    %8455 = vmatprep.subr.bf16.mxu0 %v7810
    %8456 = vmatpush1.bf16.msra.mxu0 %v7809
    %8457 = vmatprep.subr.bf16.mxu0 %v7814
    %8458 = vmatpush1.bf16.msra.mxu0 %v7813
    %8459 = vmatprep.mubr.bf16.mxu0 %v6698
    %8460 = vmatmul.mubr.bf16.gmra.mrb[0].mxu0 %v6697
    %v8461 = vpop.f32.mrb[0].mxu0
    %v8462 = vadd.f32 %v6974, %v8461
    %v8463 = vpop.f32.mrb[0].mxu0
    %v8464 = vadd.f32 %v6978, %v8463
    %v8465 = vpop.f32.mrb[0].mxu0
    %v8466 = vpop.f32.mrb[0].mxu0
    %8467 = vdwg.mxu0
    %8468 = vmatprep.subr.bf16.mxu0 %v7818
    %8469 = vmatpush1.bf16.msra.mxu0 %v7817
    %8470 = vmatprep.subr.bf16.mxu0 %v7822
    %8471 = vmatpush1.bf16.msra.mxu0 %v7821
    %8472 = vmatprep.subr.bf16.mxu0 %v7826
    %8473 = vmatpush1.bf16.msra.mxu0 %v7825
    %8474 = vmatprep.subr.bf16.mxu0 %v7830
    %8475 = vmatpush1.bf16.msra.mxu0 %v7829
    %8476 = vmatprep.subr.bf16.mxu0 %v7834
    %8477 = vmatpush1.bf16.msra.mxu0 %v7833
    %8478 = vmatprep.subr.bf16.mxu0 %v7838
    %8479 = vmatpush1.bf16.msra.mxu0 %v7837
    %8480 = vmatprep.subr.bf16.mxu0 %v7842
    %8481 = vmatpush1.bf16.msra.mxu0 %v7841
    %8482 = vmatprep.subr.bf16.mxu0 %v7846
    %8483 = vmatpush1.bf16.msra.mxu0 %v7845
    %8484 = vmatprep.subr.bf16.mxu0 %v7850
    %8485 = vmatpush1.bf16.msra.mxu0 %v7849
    %8486 = vmatprep.subr.bf16.mxu0 %v7854
    %8487 = vmatpush1.bf16.msra.mxu0 %v7853
    %8488 = vmatprep.subr.bf16.mxu0 %v7858
    %8489 = vmatpush1.bf16.msra.mxu0 %v7857
    %8490 = vmatprep.subr.bf16.mxu0 %v7862
    %8491 = vmatpush1.bf16.msra.mxu0 %v7861
    %8492 = vmatprep.subr.bf16.mxu0 %v7866
    %8493 = vmatpush1.bf16.msra.mxu0 %v7865
    %8494 = vmatprep.subr.bf16.mxu0 %v7870
    %8495 = vmatpush1.bf16.msra.mxu0 %v7869
    %8496 = vmatprep.subr.bf16.mxu0 %v7874
    %8497 = vmatpush1.bf16.msra.mxu0 %v7873
    %8498 = vmatprep.subr.bf16.mxu0 %v7878
    %8499 = vmatpush1.bf16.msra.mxu0 %v7877
    %8500 = vmatprep.mubr.bf16.mxu0 %v6700
    %8501 = vmatmul.mubr.bf16.gmra.mrb[0].mxu0 %v6699
    %v8502 = vpop.f32.mrb[0].mxu0
    %v8503 = vadd.f32 %v8462, %v8502
    %v8504 = vpop.f32.mrb[0].mxu0
    %v8505 = vadd.f32 %v8464, %v8504
    %v8506 = vpop.f32.mrb[0].mxu0
    %v8507 = vpop.f32.mrb[0].mxu0
    %8508 = vdwg.mxu0
    %8509 = vmatprep.subr.bf16.mxu0 %v7882
    %8510 = vmatpush1.bf16.msra.mxu0 %v7881
    %8511 = vmatprep.subr.bf16.mxu0 %v7886
    %8512 = vmatpush1.bf16.msra.mxu0 %v7885
    %8513 = vmatprep.subr.bf16.mxu0 %v7890
    %8514 = vmatpush1.bf16.msra.mxu0 %v7889
    %8515 = vmatprep.subr.bf16.mxu0 %v7894
    %8516 = vmatpush1.bf16.msra.mxu0 %v7893
    %8517 = vmatprep.subr.bf16.mxu0 %v7898
    %8518 = vmatpush1.bf16.msra.mxu0 %v7897
    %8519 = vmatprep.subr.bf16.mxu0 %v7902
    %8520 = vmatpush1.bf16.msra.mxu0 %v7901
    %8521 = vmatprep.subr.bf16.mxu0 %v7906
    %8522 = vmatpush1.bf16.msra.mxu0 %v7905
    %8523 = vmatprep.subr.bf16.mxu0 %v7910
    %8524 = vmatpush1.bf16.msra.mxu0 %v7909
    %8525 = vmatprep.subr.bf16.mxu0 %v7914
    %8526 = vmatpush1.bf16.msra.mxu0 %v7913
    %8527 = vmatprep.subr.bf16.mxu0 %v7918
    %8528 = vmatpush1.bf16.msra.mxu0 %v7917
    %8529 = vmatprep.subr.bf16.mxu0 %v7922
    %8530 = vmatpush1.bf16.msra.mxu0 %v7921
    %8531 = vmatprep.subr.bf16.mxu0 %v7926
    %8532 = vmatpush1.bf16.msra.mxu0 %v7925
    %8533 = vmatprep.subr.bf16.mxu0 %v7930
    %8534 = vmatpush1.bf16.msra.mxu0 %v7929
    %8535 = vmatprep.subr.bf16.mxu0 %v7934
    %8536 = vmatpush1.bf16.msra.mxu0 %v7933
    %8537 = vmatprep.subr.bf16.mxu0 %v7938
    %8538 = vmatpush1.bf16.msra.mxu0 %v7937
    %8539 = vmatprep.subr.bf16.mxu0 %v7942
    %8540 = vmatpush1.bf16.msra.mxu0 %v7941
    %8541 = vmatprep.mubr.bf16.mxu0 %v6702
    %8542 = vmatmul.mubr.bf16.gmra.mrb[0].mxu0 %v6701
    %v8543 = vpop.f32.mrb[0].mxu0
    %v8544 = vadd.f32 %v8503, %v8543
    %v8545 = vpop.f32.mrb[0].mxu0
    %v8546 = vadd.f32 %v8505, %v8545
    %v8547 = vpop.f32.mrb[0].mxu0
    %v8548 = vpop.f32.mrb[0].mxu0
    %8549 = vdwg.mxu0
    %8550 = vmatprep.subr.bf16.mxu0 %v7946
    %8551 = vmatpush1.bf16.msra.mxu0 %v7945
    %8552 = vmatprep.subr.bf16.mxu0 %v7950
    %8553 = vmatpush1.bf16.msra.mxu0 %v7949
    %8554 = vmatprep.subr.bf16.mxu0 %v7954
    %8555 = vmatpush1.bf16.msra.mxu0 %v7953
    %8556 = vmatprep.subr.bf16.mxu0 %v7958
    %8557 = vmatpush1.bf16.msra.mxu0 %v7957
    %8558 = vmatprep.subr.bf16.mxu0 %v7962
    %8559 = vmatpush1.bf16.msra.mxu0 %v7961
    %8560 = vmatprep.subr.bf16.mxu0 %v7966
    %8561 = vmatpush1.bf16.msra.mxu0 %v7965
    %8562 = vmatprep.subr.bf16.mxu0 %v7970
    %8563 = vmatpush1.bf16.msra.mxu0 %v7969
    %8564 = vmatprep.subr.bf16.mxu0 %v7974
    %8565 = vmatpush1.bf16.msra.mxu0 %v7973
    %8566 = vmatprep.subr.bf16.mxu0 %v7978
    %8567 = vmatpush1.bf16.msra.mxu0 %v7977
    %8568 = vmatprep.subr.bf16.mxu0 %v7982
    %8569 = vmatpush1.bf16.msra.mxu0 %v7981
    %8570 = vmatprep.subr.bf16.mxu0 %v7986
    %8571 = vmatpush1.bf16.msra.mxu0 %v7985
    %8572 = vmatprep.subr.bf16.mxu0 %v7990
    %8573 = vmatpush1.bf16.msra.mxu0 %v7989
    %8574 = vmatprep.subr.bf16.mxu0 %v7994
    %8575 = vmatpush1.bf16.msra.mxu0 %v7993
    %8576 = vmatprep.subr.bf16.mxu0 %v7998
    %8577 = vmatpush1.bf16.msra.mxu0 %v7997
    %8578 = vmatprep.subr.bf16.mxu0 %v8002
    %8579 = vmatpush1.bf16.msra.mxu0 %v8001
    %8580 = vmatprep.subr.bf16.mxu0 %v8006
    %8581 = vmatpush1.bf16.msra.mxu0 %v8005
    %8582 = vmatprep.mubr.bf16.mxu0 %v6704
    %8583 = vmatmul.mubr.bf16.gmra.mrb[0].mxu0 %v6703
    %v8584 = vpop.f32.mrb[0].mxu0
    %v8585 = vadd.f32 %v8544, %v8584
    %v8586 = vpop.f32.mrb[0].mxu0
    %v8587 = vadd.f32 %v8546, %v8586
    %v8588 = vpop.f32.mrb[0].mxu0
    %v8589 = vpop.f32.mrb[0].mxu0
    %8590 = vdwg.mxu0
    %v8591 = vmax.f32 %v8421, 0.0
    %v8592 = vmax.f32 %v8423, 0.0
    %v8593 = vmax.f32 %v8585, 0.0
    %v8594 = vmax.f32 %v8587, 0.0
    %v8595 = vpack.c.bf16 %v8591, %v8591
    %v8596 = vpack.c.bf16 %v8592, %v8592
    %v8597 = vpack.c.bf16 %v8593, %v8593
    %v8598 = vpack.c.bf16 %v8594, %v8594
    %v8599 = vld [vmem:[%s5] sm:$0xf]
    %v8600 = vld [vmem:[%s5 + $0x4] sm:$0xf]
    %v8601 = vld [vmem:[%s5 + $0x8] sm:$0xf]
    %v8602 = vld [vmem:[%s5 + $0xc] sm:$0xf]
    %v8603 = vld [vmem:[%s5 + $0x10] sm:$0xf]
    %v8604 = vld [vmem:[%s5 + $0x14] sm:$0xf]
    %v8605 = vld [vmem:[%s5 + $0x18] sm:$0xf]
    %v8606 = vld [vmem:[%s5 + $0x1c] sm:$0xf]
    %v8607 = vld [vmem:[%s5 + $0x20] sm:$0xf]
    %v8608 = vld [vmem:[%s5 + $0x24] sm:$0xf]
    %v8609 = vld [vmem:[%s5 + $0x28] sm:$0xf]
    %v8610 = vld [vmem:[%s5 + $0x2c] sm:$0xf]
    %v8611 = vld [vmem:[%s5 + $0x30] sm:$0xf]
    %v8612 = vld [vmem:[%s5 + $0x34] sm:$0xf]
    %v8613 = vld [vmem:[%s5 + $0x38] sm:$0xf]
    %v8614 = vld [vmem:[%s5 + $0x3c] sm:$0xf]
    %v8615 = vld [vmem:[%s5 + $0x40] sm:$0xf]
    %v8616 = vld [vmem:[%s5 + $0x44] sm:$0xf]
    %v8617 = vld [vmem:[%s5 + $0x48] sm:$0xf]
    %v8618 = vld [vmem:[%s5 + $0x4c] sm:$0xf]
    %v8619 = vld [vmem:[%s5 + $0x50] sm:$0xf]
    %v8620 = vld [vmem:[%s5 + $0x54] sm:$0xf]
    %v8621 = vld [vmem:[%s5 + $0x58] sm:$0xf]
    %v8622 = vld [vmem:[%s5 + $0x5c] sm:$0xf]
    %v8623 = vld [vmem:[%s5 + $0x60] sm:$0xf]
    %v8624 = vld [vmem:[%s5 + $0x64] sm:$0xf]
    %v8625 = vld [vmem:[%s5 + $0x68] sm:$0xf]
    %v8626 = vld [vmem:[%s5 + $0x6c] sm:$0xf]
    %v8627 = vld [vmem:[%s5 + $0x70] sm:$0xf]
    %v8628 = vld [vmem:[%s5 + $0x74] sm:$0xf]
    %v8629 = vld [vmem:[%s5 + $0x78] sm:$0xf]
    %v8630 = vld [vmem:[%s5 + $0x7c] sm:$0xf]
    %v8631 = vld [vmem:[%s5 + $0x80] sm:$0xf]
    %v8632 = vld [vmem:[%s5 + $0x84] sm:$0xf]
    %v8633 = vld [vmem:[%s5 + $0x88] sm:$0xf]
    %v8634 = vld [vmem:[%s5 + $0x8c] sm:$0xf]
    %v8635 = vld [vmem:[%s5 + $0x90] sm:$0xf]
    %v8636 = vld [vmem:[%s5 + $0x94] sm:$0xf]
    %v8637 = vld [vmem:[%s5 + $0x98] sm:$0xf]
    %v8638 = vld [vmem:[%s5 + $0x9c] sm:$0xf]
    %v8639 = vld [vmem:[%s5 + $0xa0] sm:$0xf]
    %v8640 = vld [vmem:[%s5 + $0xa4] sm:$0xf]
    %v8641 = vld [vmem:[%s5 + $0xa8] sm:$0xf]
    %v8642 = vld [vmem:[%s5 + $0xac] sm:$0xf]
    %v8643 = vld [vmem:[%s5 + $0xb0] sm:$0xf]
    %v8644 = vld [vmem:[%s5 + $0xb4] sm:$0xf]
    %v8645 = vld [vmem:[%s5 + $0xb8] sm:$0xf]
    %v8646 = vld [vmem:[%s5 + $0xbc] sm:$0xf]
    %v8647 = vld [vmem:[%s5 + $0xc0] sm:$0xf]
    %v8648 = vld [vmem:[%s5 + $0xc4] sm:$0xf]
    %v8649 = vld [vmem:[%s5 + $0xc8] sm:$0xf]
    %v8650 = vld [vmem:[%s5 + $0xcc] sm:$0xf]
    %v8651 = vld [vmem:[%s5 + $0xd0] sm:$0xf]
    %v8652 = vld [vmem:[%s5 + $0xd4] sm:$0xf]
    %v8653 = vld [vmem:[%s5 + $0xd8] sm:$0xf]
    %v8654 = vld [vmem:[%s5 + $0xdc] sm:$0xf]
    %v8655 = vld [vmem:[%s5 + $0xe0] sm:$0xf]
    %v8656 = vld [vmem:[%s5 + $0xe4] sm:$0xf]
    %v8657 = vld [vmem:[%s5 + $0xe8] sm:$0xf]
    %v8658 = vld [vmem:[%s5 + $0xec] sm:$0xf]
    %v8659 = vld [vmem:[%s5 + $0xf0] sm:$0xf]
    %v8660 = vld [vmem:[%s5 + $0xf4] sm:$0xf]
    %v8661 = vld [vmem:[%s5 + $0xf8] sm:$0xf]
    %v8662 = vld [vmem:[%s5 + $0xfc] sm:$0xf]
    %v8663 = vld [vmem:[%s6] sm:$0x1]
    %v8665 = vlaneseq
    %v8666 = vshrl.u32 %v8665, 7
    %v8667 = vsub.s32 0, %v8666
    %v8668 = vrot.slane %v8663, %v8667
    %v8734 = vunpack.c.l.b16 %v8599
    %v8735 = vunpack.c.l.b16 %v8600
    %v8736 = vunpack.c.l.b16 %v8601
    %v8737 = vunpack.c.l.b16 %v8602
    %v8738 = vunpack.c.l.b16 %v8603
    %v8739 = vunpack.c.l.b16 %v8604
    %v8740 = vunpack.c.l.b16 %v8605
    %v8741 = vunpack.c.l.b16 %v8606
    %v8742 = vunpack.c.l.b16 %v8607
    %v8743 = vunpack.c.l.b16 %v8608
    %v8744 = vunpack.c.l.b16 %v8609
    %v8745 = vunpack.c.l.b16 %v8610
    %v8746 = vunpack.c.l.b16 %v8611
    %v8747 = vunpack.c.l.b16 %v8612
    %v8748 = vunpack.c.l.b16 %v8613
    %v8749 = vunpack.c.l.b16 %v8614
    %v8750 = vunpack.c.l.b16 %v8615
    %v8751 = vunpack.c.l.b16 %v8616
    %v8752 = vunpack.c.l.b16 %v8617
    %v8753 = vunpack.c.l.b16 %v8618
    %v8754 = vunpack.c.l.b16 %v8619
    %v8755 = vunpack.c.l.b16 %v8620
    %v8756 = vunpack.c.l.b16 %v8621
    %v8757 = vunpack.c.l.b16 %v8622
    %v8758 = vunpack.c.l.b16 %v8623
    %v8759 = vunpack.c.l.b16 %v8624
    %v8760 = vunpack.c.l.b16 %v8625
    %v8761 = vunpack.c.l.b16 %v8626
    %v8762 = vunpack.c.l.b16 %v8627
    %v8763 = vunpack.c.l.b16 %v8628
    %v8764 = vunpack.c.l.b16 %v8629
    %v8765 = vunpack.c.l.b16 %v8630
    %v8766 = vunpack.c.l.b16 %v8631
    %v8767 = vunpack.c.l.b16 %v8632
    %v8768 = vunpack.c.l.b16 %v8633
    %v8769 = vunpack.c.l.b16 %v8634
    %v8770 = vunpack.c.l.b16 %v8635
    %v8771 = vunpack.c.l.b16 %v8636
    %v8772 = vunpack.c.l.b16 %v8637
    %v8773 = vunpack.c.l.b16 %v8638
    %v8774 = vunpack.c.l.b16 %v8639
    %v8775 = vunpack.c.l.b16 %v8640
    %v8776 = vunpack.c.l.b16 %v8641
    %v8777 = vunpack.c.l.b16 %v8642
    %v8778 = vunpack.c.l.b16 %v8643
    %v8779 = vunpack.c.l.b16 %v8644
    %v8780 = vunpack.c.l.b16 %v8645
    %v8781 = vunpack.c.l.b16 %v8646
    %v8782 = vunpack.c.l.b16 %v8647
    %v8783 = vunpack.c.l.b16 %v8648
    %v8784 = vunpack.c.l.b16 %v8649
    %v8785 = vunpack.c.l.b16 %v8650
    %v8786 = vunpack.c.l.b16 %v8651
    %v8787 = vunpack.c.l.b16 %v8652
    %v8788 = vunpack.c.l.b16 %v8653
    %v8789 = vunpack.c.l.b16 %v8654
    %v8790 = vunpack.c.l.b16 %v8655
    %v8791 = vunpack.c.l.b16 %v8656
    %v8792 = vunpack.c.l.b16 %v8657
    %v8793 = vunpack.c.l.b16 %v8658
    %v8794 = vunpack.c.l.b16 %v8659
    %v8795 = vunpack.c.l.b16 %v8660
    %v8796 = vunpack.c.l.b16 %v8661
    %v8797 = vunpack.c.l.b16 %v8662
    %v8798 = vpack.c.b16 %v8735, %v8734
    %v8799 = vpack.c.b16 %v8737, %v8736
    %v8800 = vpack.c.b16 %v8739, %v8738
    %v8801 = vpack.c.b16 %v8741, %v8740
    %v8802 = vpack.c.b16 %v8743, %v8742
    %v8803 = vpack.c.b16 %v8745, %v8744
    %v8804 = vpack.c.b16 %v8747, %v8746
    %v8805 = vpack.c.b16 %v8749, %v8748
    %v8806 = vpack.c.b16 %v8751, %v8750
    %v8807 = vpack.c.b16 %v8753, %v8752
    %v8808 = vpack.c.b16 %v8755, %v8754
    %v8809 = vpack.c.b16 %v8757, %v8756
    %v8810 = vpack.c.b16 %v8759, %v8758
    %v8811 = vpack.c.b16 %v8761, %v8760
    %v8812 = vpack.c.b16 %v8763, %v8762
    %v8813 = vpack.c.b16 %v8765, %v8764
    %v8814 = vpack.c.b16 %v8767, %v8766
    %v8815 = vpack.c.b16 %v8769, %v8768
    %v8816 = vpack.c.b16 %v8771, %v8770
    %v8817 = vpack.c.b16 %v8773, %v8772
    %v8818 = vpack.c.b16 %v8775, %v8774
    %v8819 = vpack.c.b16 %v8777, %v8776
    %v8820 = vpack.c.b16 %v8779, %v8778
    %v8821 = vpack.c.b16 %v8781, %v8780
    %v8822 = vpack.c.b16 %v8783, %v8782
    %v8823 = vpack.c.b16 %v8785, %v8784
    %v8824 = vpack.c.b16 %v8787, %v8786
    %v8825 = vpack.c.b16 %v8789, %v8788
    %v8826 = vpack.c.b16 %v8791, %v8790
    %v8827 = vpack.c.b16 %v8793, %v8792
    %v8828 = vpack.c.b16 %v8795, %v8794
    %v8829 = vpack.c.b16 %v8797, %v8796
    %8862 = vmatprep.subr.bf16.mxu0 0
    %8863 = vmatpush1.bf16.msra.mxu0 %v8798
    %8864 = vmatprep.subr.bf16.mxu0 0
    %8865 = vmatpush1.bf16.msra.mxu0 %v8799
    %8866 = vmatprep.subr.bf16.mxu0 0
    %8867 = vmatpush1.bf16.msra.mxu0 %v8800
    %8868 = vmatprep.subr.bf16.mxu0 0
    %8869 = vmatpush1.bf16.msra.mxu0 %v8801
    %8870 = vmatprep.subr.bf16.mxu0 0
    %8871 = vmatpush1.bf16.msra.mxu0 %v8802
    %8872 = vmatprep.subr.bf16.mxu0 0
    %8873 = vmatpush1.bf16.msra.mxu0 %v8803
    %8874 = vmatprep.subr.bf16.mxu0 0
    %8875 = vmatpush1.bf16.msra.mxu0 %v8804
    %8876 = vmatprep.subr.bf16.mxu0 0
    %8877 = vmatpush1.bf16.msra.mxu0 %v8805
    %8878 = vmatprep.subr.bf16.mxu0 0
    %8879 = vmatpush1.bf16.msra.mxu0 %v8806
    %8880 = vmatprep.subr.bf16.mxu0 0
    %8881 = vmatpush1.bf16.msra.mxu0 %v8807
    %8882 = vmatprep.subr.bf16.mxu0 0
    %8883 = vmatpush1.bf16.msra.mxu0 %v8808
    %8884 = vmatprep.subr.bf16.mxu0 0
    %8885 = vmatpush1.bf16.msra.mxu0 %v8809
    %8886 = vmatprep.subr.bf16.mxu0 0
    %8887 = vmatpush1.bf16.msra.mxu0 %v8810
    %8888 = vmatprep.subr.bf16.mxu0 0
    %8889 = vmatpush1.bf16.msra.mxu0 %v8811
    %8890 = vmatprep.subr.bf16.mxu0 0
    %8891 = vmatpush1.bf16.msra.mxu0 %v8812
    %8892 = vmatprep.subr.bf16.mxu0 0
    %8893 = vmatpush1.bf16.msra.mxu0 %v8813
    %8894 = vmatprep.mubr.bf16.mxu0 %v8596
    %8895 = vmatmul.mubr.bf16.gmra.mrb[0].mxu0 %v8595
    %v8896 = vpop.f32.mrb[0].mxu0
    %v8897 = vadd.f32 %v8668, %v8896
    %v8898 = vpop.f32.mrb[0].mxu0
    %v8899 = vpop.f32.mrb[0].mxu0
    %v8900 = vpop.f32.mrb[0].mxu0
    %8901 = vdwg.mxu0
    %8902 = vmatprep.subr.bf16.mxu0 0
    %8903 = vmatpush1.bf16.msra.mxu0 %v8814
    %8904 = vmatprep.subr.bf16.mxu0 0
    %8905 = vmatpush1.bf16.msra.mxu0 %v8815
    %8906 = vmatprep.subr.bf16.mxu0 0
    %8907 = vmatpush1.bf16.msra.mxu0 %v8816
    %8908 = vmatprep.subr.bf16.mxu0 0
    %8909 = vmatpush1.bf16.msra.mxu0 %v8817
    %8910 = vmatprep.subr.bf16.mxu0 0
    %8911 = vmatpush1.bf16.msra.mxu0 %v8818
    %8912 = vmatprep.subr.bf16.mxu0 0
    %8913 = vmatpush1.bf16.msra.mxu0 %v8819
    %8914 = vmatprep.subr.bf16.mxu0 0
    %8915 = vmatpush1.bf16.msra.mxu0 %v8820
    %8916 = vmatprep.subr.bf16.mxu0 0
    %8917 = vmatpush1.bf16.msra.mxu0 %v8821
    %8918 = vmatprep.subr.bf16.mxu0 0
    %8919 = vmatpush1.bf16.msra.mxu0 %v8822
    %8920 = vmatprep.subr.bf16.mxu0 0
    %8921 = vmatpush1.bf16.msra.mxu0 %v8823
    %8922 = vmatprep.subr.bf16.mxu0 0
    %8923 = vmatpush1.bf16.msra.mxu0 %v8824
    %8924 = vmatprep.subr.bf16.mxu0 0
    %8925 = vmatpush1.bf16.msra.mxu0 %v8825
    %8926 = vmatprep.subr.bf16.mxu0 0
    %8927 = vmatpush1.bf16.msra.mxu0 %v8826
    %8928 = vmatprep.subr.bf16.mxu0 0
    %8929 = vmatpush1.bf16.msra.mxu0 %v8827
    %8930 = vmatprep.subr.bf16.mxu0 0
    %8931 = vmatpush1.bf16.msra.mxu0 %v8828
    %8932 = vmatprep.subr.bf16.mxu0 0
    %8933 = vmatpush1.bf16.msra.mxu0 %v8829
    %8934 = vmatprep.mubr.bf16.mxu0 %v8598
    %8935 = vmatmul.mubr.bf16.gmra.mrb[0].mxu0 %v8597
    %v8936 = vpop.f32.mrb[0].mxu0
    %v8937 = vadd.f32 %v8897, %v8936
    %v8938 = vpop.f32.mrb[0].mxu0
    %v8939 = vpop.f32.mrb[0].mxu0
    %v8940 = vpop.f32.mrb[0].mxu0
    %8941 = vdwg.mxu0
    %8942 = vst [vmem:[#allocation2] sm:$0x3] %v8937
    // Predicated region
    $region30: #{chest_xray_forward.3} parent=1 // pred_check
      _
    $region31: #{chest_xray_forward.3} parent=1 // pred_check_branch
      %8944 = sbr.rel (0) target = $region33
    $region32: #{chest_xray_forward.3} parent=1 // pred_region
      %s8946 = ssub.s32 32, 32
      %8947 = vsyncadd [#allocation3], %s8946
      %s8949 = sshll.u32 [#allocation2], 4
      %s8950 = int_to_ptr.vmem [resolvable:$true] %s8949
      %8952 = dma.vmem_to_hbm [thread:$0]  %s8950, 32, %s7, [#allocation3]
    $region33: #{chest_xray_forward.3} parent=1 // pred_fallthru
      _
    // Predicated region
    $region34: #{chest_xray_forward.3} parent=1 // pred_check
      _
    $region35: #{chest_xray_forward.3} parent=1 // pred_check_branch
      %8954 = sbr.rel (0) target = $region37
    $region36: #{chest_xray_forward.3} parent=1 // pred_region
      %8955 = dma.done [#allocation3], 32
    $region37: #{chest_xray_forward.3} parent=1 // pred_fallthru
      _
    %8956 = vsyncpa [#allocation3], 1

</llo_original>
